<compile_context>
chip_gen: v5e
topology: v5e:2x2
jax: 0.10.0
libtpu: 0.0.40
codegen_flags: <defaults>
</compile_context>

<pallas_src>
import functools
import math

import jax
import jax.numpy as jnp
from jax.experimental import pallas as pl
from jax.experimental.pallas import tpu as pltpu


# ----------------------------------------------------------------------------
# BlockSpec helpers
# ----------------------------------------------------------------------------
def _full_spec(shape):
    """Whole-array block, same block for every grid step (weights / small tensors)."""
    zeros = (0,) * len(shape)
    return pl.BlockSpec(tuple(shape), lambda *_: zeros)


# ----------------------------------------------------------------------------
# Kernel A: long-text encoder projection, tiled over rows
# ----------------------------------------------------------------------------
def _project_kernel(src_ref, w_ref, b_ref, o_ref):
    h = jnp.dot(src_ref[...], w_ref[...], preferred_element_type=jnp.float32)
    o_ref[...] = jnp.maximum(h + b_ref[...], 0.0).astype(o_ref.dtype)


def project(params, src_emb_flat, cfg):
    M, D = src_emb_flat.shape
    TM = cfg.TM
    assert M % TM == 0
    return pl.pallas_call(
        _project_kernel,
        grid=(M // TM,),
        out_shape=jax.ShapeDtypeStruct((M, D), jnp.bfloat16),
        in_specs=[
            pl.BlockSpec((TM, D), lambda i: (i, 0)),
            _full_spec((D, D)),
            _full_spec((1, D)),
        ],
        out_specs=pl.BlockSpec((TM, D), lambda i: (i, 0)),
        compiler_params=pltpu.CompilerParams(dimension_semantics=("parallel",)),
    )(src_emb_flat.astype(jnp.bfloat16), params["lt_w"], params["lt_b"])


# ----------------------------------------------------------------------------
# Kernel B: 2-layer GNN message passing + mean pool + prefix-encoder MLP
# ----------------------------------------------------------------------------
def _gnn_prefix_kernel(adj_ref, feat_ref, g1w_ref, g1b_ref, g2w_ref, g2b_ref,
                       pool_ref, p1w_ref, p1b_ref, p2w_ref, p2b_ref, pre_ref):
    adj = adj_ref[...]
    # GNN layer 1: relu((A @ X) @ W1 + b1)
    msg = jnp.dot(adj, feat_ref[...], preferred_element_type=jnp.float32)
    h = jnp.maximum(jnp.dot(msg.astype(jnp.bfloat16), g1w_ref[...],
                            preferred_element_type=jnp.float32) + g1b_ref[...], 0.0)
    # GNN layer 2
    msg = jnp.dot(adj, h.astype(jnp.bfloat16), preferred_element_type=jnp.float32)
    h = jnp.maximum(jnp.dot(msg.astype(jnp.bfloat16), g2w_ref[...],
                            preferred_element_type=jnp.float32) + g2b_ref[...], 0.0)
    # per-graph mean pooling (normalized assignment matmul) + 2-layer prefix MLP
    pooled = jnp.dot(pool_ref[...], h.astype(jnp.bfloat16),
                     preferred_element_type=jnp.float32)
    hid = jnp.maximum(jnp.dot(pooled.astype(jnp.bfloat16), p1w_ref[...],
                              preferred_element_type=jnp.float32) + p1b_ref[...], 0.0)
    pre = jnp.dot(hid.astype(jnp.bfloat16), p2w_ref[...],
                  preferred_element_type=jnp.float32) + p2b_ref[...]
    pre_ref[...] = pre.astype(pre_ref.dtype)


def gnn_prefix(params, adj, node_feats, pool, cfg):
    N = adj.shape[0]
    GI, GH = params["g1_w"].shape
    GO = params["g2_w"].shape[1]
    B = pool.shape[0]
    PD = params["p2_w"].shape[1]
    D = params["p1_w"].shape[1]
    return pl.pallas_call(
        _gnn_prefix_kernel,
        grid=(1,),
        out_shape=jax.ShapeDtypeStruct((B, PD), jnp.bfloat16),
        in_specs=[
            _full_spec((N, N)), _full_spec((N, GI)),
            _full_spec((GI, GH)), _full_spec((1, GH)),
            _full_spec((GH, GO)), _full_spec((1, GO)),
            _full_spec((B, N)),
            _full_spec((GO, D)), _full_spec((1, D)),
            _full_spec((D, PD)), _full_spec((1, PD)),
        ],
        out_specs=_full_spec((B, PD)),
        compiler_params=pltpu.CompilerParams(dimension_semantics=("arbitrary",)),
    )(adj.astype(jnp.bfloat16), node_feats.astype(jnp.bfloat16),
      params["g1_w"], params["g1_b"], params["g2_w"], params["g2_b"],
      pool.astype(jnp.bfloat16),
      params["p1_w"], params["p1_b"], params["p2_w"], params["p2_b"])


# ----------------------------------------------------------------------------
# Kernel C: fused encoder + decoder + V-tiled LM head + online-logsumexp CE
# ----------------------------------------------------------------------------
def _encdec_kernel(x_ref, y_ref, bias_ref, lab_ref,
                   ewqkv_ref, ebqkv_ref, ewo_ref, ebo_ref,
                   ewf1_ref, ebf1_ref, ewf2_ref, ebf2_ref,
                   dwqkv_ref, dbqkv_ref, dwso_ref, dbso_ref,
                   dwq_ref, dbq_ref, dwkv_ref, dbkv_ref, dwo_ref, dbo_ref,
                   dwf1_ref, dbf1_ref, dwf2_ref, dbf2_ref,
                   lmw_ref, lmb_ref,
                   logits_ref, ce_ref, cov_ref,
                   dec_sc, m_sc, s_sc, tgt_sc,
                   *, scale, tv, nv):
    v = pl.program_id(1)

    # ------------------------------------------------------------------
    # heavy per-batch work: done once (first V tile), kept in VMEM scratch
    # ------------------------------------------------------------------
    @pl.when(v == 0)
    def _():
        x_bf = x_ref[0]                               # [T, D] bf16 (prefix || source)
        bias = bias_ref[0]                            # [1, T] additive mask bias (f32)
        D = x_bf.shape[-1]
        x = x_bf.astype(jnp.float32)                  # residual base

        # ---- encoder self-attention block (fused QKV, no K transpose) ----
        qkv = jnp.dot(x_bf, ewqkv_ref[...],
                      preferred_element_type=jnp.float32) + ebqkv_ref[...]
        q = qkv[:, :D].astype(jnp.bfloat16)           # 128-aligned lane slices
        k = qkv[:, D:2 * D].astype(jnp.bfloat16)
        vv = qkv[:, 2 * D:].astype(jnp.bfloat16)
        s = jax.lax.dot_general(q, k, (((1,), (1,)), ((), ())),
                                preferred_element_type=jnp.float32) * scale + bias
        s = s - jnp.max(s, axis=-1, keepdims=True)
        e = jnp.exp(s)
        p = e * pl.reciprocal(jnp.sum(e, axis=-1, keepdims=True), approx=True)
        attn = jnp.dot(p.astype(jnp.bfloat16), vv, preferred_element_type=jnp.float32)
        x = x + jnp.dot(attn.astype(jnp.bfloat16), ewo_ref[...],
                        preferred_element_type=jnp.float32) + ebo_ref[...]
        ff = jnp.maximum(jnp.dot(x.astype(jnp.bfloat16), ewf1_ref[...],
                                 preferred_element_type=jnp.float32) + ebf1_ref[...],
                         0.0)
        enc = x + jnp.dot(ff.astype(jnp.bfloat16), ewf2_ref[...],
                          preferred_element_type=jnp.float32) + ebf2_ref[...]
        enc_bf = enc.astype(jnp.bfloat16)             # stays on-chip, never hits HBM

        # ---- decoder causal self-attention block ----
        y_bf = y_ref[0]                               # [L, D] bf16
        L = y_bf.shape[0]
        y = y_bf.astype(jnp.float32)
        qkv_d = jnp.dot(y_bf, dwqkv_ref[...],
                        preferred_element_type=jnp.float32) + dbqkv_ref[...]
        qd = qkv_d[:, :D].astype(jnp.bfloat16)
        kd = qkv_d[:, D:2 * D].astype(jnp.bfloat16)
        vd = qkv_d[:, 2 * D:].astype(jnp.bfloat16)
        sd = jax.lax.dot_general(qd, kd, (((1,), (1,)), ((), ())),
                                 preferred_element_type=jnp.float32) * scale
        row = jax.lax.broadcasted_iota(jnp.int32, (L, L), 0)
        col = jax.lax.broadcasted_iota(jnp.int32, (L, L), 1)
        sd = sd + jnp.where(col <= row, 0.0, -1e30)   # causal additive bias
        sd = sd - jnp.max(sd, axis=-1, keepdims=True)
        ed = jnp.exp(sd)
        pd = ed * pl.reciprocal(jnp.sum(ed, axis=-1, keepdims=True), approx=True)
        sattn = jnp.dot(pd.astype(jnp.bfloat16), vd, preferred_element_type=jnp.float32)
        y = y + jnp.dot(sattn.astype(jnp.bfloat16), dwso_ref[...],
                        preferred_element_type=jnp.float32) + dbso_ref[...]

        # ---- cross-attention (exact softmax: feeds the coverage loss) ----
        qc = (jnp.dot(y.astype(jnp.bfloat16), dwq_ref[...],
                      preferred_element_type=jnp.float32) + dbq_ref[...]
              ).astype(jnp.bfloat16)
        kvc = jnp.dot(enc_bf, dwkv_ref[...],
                      preferred_element_type=jnp.float32) + dbkv_ref[...]
        kc = kvc[:, :D].astype(jnp.bfloat16)
        vc = kvc[:, D:].astype(jnp.bfloat16)
        sc = jax.lax.dot_general(qc, kc, (((1,), (1,)), ((), ())),
                                 preferred_element_type=jnp.float32) * scale + bias
        sc = sc - jnp.max(sc, axis=-1, keepdims=True)
        ec = jnp.exp(sc)
        pc = ec / jnp.sum(ec, axis=-1, keepdims=True)  # exact (coverage path)
        # coverage: attention mass per encoder position, lane-dense [1, T]
        cov_ref[0] = jnp.sum(pc, axis=0, keepdims=True).astype(cov_ref.dtype)
        cattn = jnp.dot(pc.astype(jnp.bfloat16), vc, preferred_element_type=jnp.float32)
        y = y + jnp.dot(cattn.astype(jnp.bfloat16), dwo_ref[...],
                        preferred_element_type=jnp.float32) + dbo_ref[...]

        # ---- decoder FFN ----
        ffd = jnp.maximum(jnp.dot(y.astype(jnp.bfloat16), dwf1_ref[...],
                                  preferred_element_type=jnp.float32) + dbf1_ref[...],
                          0.0)
        dec = y + jnp.dot(ffd.astype(jnp.bfloat16), dwf2_ref[...],
                          preferred_element_type=jnp.float32) + dbf2_ref[...]
        dec_sc[...] = dec.astype(dec_sc.dtype)

        # init online-logsumexp / target carries
        m_sc[...] = jnp.full_like(m_sc, -jnp.inf)
        s_sc[...] = jnp.zeros_like(s_sc)
        tgt_sc[...] = jnp.zeros_like(tgt_sc)

    # ------------------------------------------------------------------
    # LM head V-tile + online logsumexp + target-logit gather (every step)
    # ------------------------------------------------------------------
    labels = lab_ref[0]                                # [L, 1] int32
    logits_t = jnp.dot(dec_sc[...], lmw_ref[...],
                       preferred_element_type=jnp.float32) + lmb_ref[...]   # [L, TV]
    logits_ref[0] = logits_t.astype(logits_ref.dtype)  # bf16 writeback (half traffic)

    m_prev = m_sc[...]
    m_new = jnp.maximum(m_prev, jnp.max(logits_t, axis=-1, keepdims=True))
    s_sc[...] = (s_sc[...] * jnp.exp(m_prev - m_new)
                 + jnp.sum(jnp.exp(logits_t - m_new), axis=-1, keepdims=True))
    m_sc[...] = m_new
    col_ids = jax.lax.broadcasted_iota(jnp.int32, logits_t.shape, 1) + v * tv
    tgt_sc[...] += jnp.sum(jnp.where(col_ids == labels, logits_t, 0.0),
                           axis=-1, keepdims=True)

    @pl.when(v == nv - 1)
    def _():
        L = dec_sc.shape[0]
        ce_col = (m_sc[...] + jnp.log(s_sc[...])) - tgt_sc[...]          # [L, 1]
        # emit lane-dense [1, L]: diagonal-select + sublane reduction (no transpose)
        r = jax.lax.broadcasted_iota(jnp.int32, (L, L), 0)
        c = jax.lax.broadcasted_iota(jnp.int32, (L, L), 1)
        ce_ref[0] = jnp.sum(jnp.where(r == c, ce_col, 0.0),
                            axis=0, keepdims=True).astype(ce_ref.dtype)


def encdec(params, full_embeds, dec_emb, mask_bias, labels, cfg):
    B, T, D = full_embeds.shape
    L = dec_emb.shape[1]
    FF = params["dec_wf1"].shape[1]
    V = params["lm_w"].shape[1]
    TV = cfg.TV
    assert V % TV == 0
    NV = V // TV
    scale = 1.0 / math.sqrt(D)
    labels3 = labels.astype(jnp.int32)[:, :, None]                       # [B, L, 1]

    def c2(r, c):  # constant (weight) spec, arity matches 2-D grid
        return _full_spec((r, c))

    return pl.pallas_call(
        functools.partial(_encdec_kernel, scale=scale, tv=TV, nv=NV),
        grid=(B, NV),
        out_shape=(jax.ShapeDtypeStruct((B, L, V), jnp.bfloat16),        # logits
                   jax.ShapeDtypeStruct((B, 1, L), jnp.float32),         # per-token CE
                   jax.ShapeDtypeStruct((B, 1, T), jnp.float32)),        # coverage
        in_specs=[
            pl.BlockSpec((1, T, D), lambda b, v: (b, 0, 0)),             # full_embeds
            pl.BlockSpec((1, L, D), lambda b, v: (b, 0, 0)),             # dec_emb
            pl.BlockSpec((1, 1, T), lambda b, v: (b, 0, 0)),             # mask bias
            pl.BlockSpec((1, L, 1), lambda b, v: (b, 0, 0)),             # labels
            c2(D, 3 * D), c2(1, 3 * D), c2(D, D), c2(1, D),              # enc attn
            c2(D, FF), c2(1, FF), c2(FF, D), c2(1, D),                   # enc ffn
            c2(D, 3 * D), c2(1, 3 * D), c2(D, D), c2(1, D),              # dec self attn
            c2(D, D), c2(1, D), c2(D, 2 * D), c2(1, 2 * D),              # dec cross q/kv
            c2(D, D), c2(1, D),                                          # dec cross out
            c2(D, FF), c2(1, FF), c2(FF, D), c2(1, D),                   # dec ffn
            pl.BlockSpec((D, TV), lambda b, v: (0, v)),                  # lm_w V tile
            pl.BlockSpec((1, TV), lambda b, v: (0, v)),                  # lm_b V tile
        ],
        out_specs=(
            pl.BlockSpec((1, L, TV), lambda b, v: (b, 0, v)),
            pl.BlockSpec((1, 1, L), lambda b, v: (b, 0, 0)),
            pl.BlockSpec((1, 1, T), lambda b, v: (b, 0, 0)),
        ),
        scratch_shapes=[
            pltpu.VMEM((L, D), jnp.bfloat16),      # decoder hidden (LM head input)
            pltpu.VMEM((L, 1), jnp.float32),       # running max
            pltpu.VMEM((L, 1), jnp.float32),       # running sum-exp
            pltpu.VMEM((L, 1), jnp.float32),       # target logit accumulator
        ],
        compiler_params=pltpu.CompilerParams(
            dimension_semantics=("parallel", "arbitrary"),
            # sized for a real-scale block budget (weights + [T,T]/[L,T] scores +
            # f32 residuals), with headroom under v7x's 64 MiB physical VMEM.
            vmem_limit_bytes=48 * 1024 * 1024),
    )(full_embeds.astype(jnp.bfloat16), dec_emb.astype(jnp.bfloat16),
      mask_bias, labels3,
      params["enc_wqkv"], params["enc_bqkv"], params["enc_wo"], params["enc_bo"],
      params["enc_wf1"], params["enc_bf1"], params["enc_wf2"], params["enc_bf2"],
      params["dec_wqkv"], params["dec_bqkv"], params["dec_wso"], params["dec_bso"],
      params["dec_wq"], params["dec_bq"], params["dec_wkv"], params["dec_bkv"],
      params["dec_wo"], params["dec_bo"],
      params["dec_wf1"], params["dec_bf1"], params["dec_wf2"], params["dec_bf2"],
      params["lm_w"], params["lm_b"])


# ----------------------------------------------------------------------------
# Model (parameters + forward pass)
# ----------------------------------------------------------------------------
class Config:
    B = 4                 # batch (documents / graphs)
    S = 112               # source sequence length
    P = 16                # prefix_length            -> T = P + S = 128 (lane aligned)
    L = 128               # label (summary) sequence length
    D = 128               # d_model (128-multiple: MXU / lane friendly)
    V = 256               # vocab size (128-multiple)
    TV = 128              # vocab tile for the LM head grid axis
    FF = 256              # feed-forward hidden
    TM = 64               # row tile for the long-text projection kernel
    N_SENT = 8            # sentence nodes in the batched graph
    GNN_IN = 128
    GNN_HID = 128
    GNN_OUT = 128


def init_params(key, cfg):
    def dense(k, fan_in, fan_out):
        w = jax.random.normal(k, (fan_in, fan_out), jnp.float32) / math.sqrt(fan_in)
        return w.astype(jnp.bfloat16), jnp.zeros((1, fan_out), jnp.float32)

    keys = jax.random.split(key, 18)
    p = {}
    p["emb"] = (jax.random.normal(keys[0], (cfg.V, cfg.D), jnp.float32) * 0.02
                ).astype(jnp.bfloat16)
    p["lt_w"], p["lt_b"] = dense(keys[1], cfg.D, cfg.D)                  # long-text proj
    p["g1_w"], p["g1_b"] = dense(keys[2], cfg.GNN_IN, cfg.GNN_HID)       # gnn layer 1
    p["g2_w"], p["g2_b"] = dense(keys[3], cfg.GNN_HID, cfg.GNN_OUT)      # gnn layer 2
    p["p1_w"], p["p1_b"] = dense(keys[4], cfg.GNN_OUT, cfg.D)            # prefix MLP
    p["p2_w"], p["p2_b"] = dense(keys[5], cfg.D, cfg.P * cfg.D)
    p["enc_wqkv"], p["enc_bqkv"] = dense(keys[6], cfg.D, 3 * cfg.D)      # enc fused QKV
    p["enc_wo"], p["enc_bo"] = dense(keys[7], cfg.D, cfg.D)
    p["enc_wf1"], p["enc_bf1"] = dense(keys[8], cfg.D, cfg.FF)
    p["enc_wf2"], p["enc_bf2"] = dense(keys[9], cfg.FF, cfg.D)
    p["dec_wqkv"], p["dec_bqkv"] = dense(keys[10], cfg.D, 3 * cfg.D)     # dec self QKV
    p["dec_wso"], p["dec_bso"] = dense(keys[11], cfg.D, cfg.D)           # dec self out
    p["dec_wq"], p["dec_bq"] = dense(keys[12], cfg.D, cfg.D)             # cross Q
    p["dec_wkv"], p["dec_bkv"] = dense(keys[13], cfg.D, 2 * cfg.D)       # cross fused KV
    p["dec_wo"], p["dec_bo"] = dense(keys[14], cfg.D, cfg.D)
    p["dec_wf1"], p["dec_bf1"] = dense(keys[15], cfg.D, cfg.FF)
    p["dec_wf2"], p["dec_bf2"] = dense(keys[16], cfg.FF, cfg.D)
    p["lm_w"], p["lm_b"] = dense(keys[17], cfg.D, cfg.V)                 # LM head
    return p


def joint_orchestrator_forward(params, source_ids, source_mask, adj, node_feats,
                               sent_batch, labels, cov_lambda, cfg):
    B, S, P, D, L = cfg.B, cfg.S, cfg.P, cfg.D, cfg.L

    # TODO(synk): tokenization / chunking+striding of raw source strings (the HF
    # LongTextEncoderEnhanced) is string processing; documents and summaries arrive
    # pre-tokenized as integer id arrays here.
    src_emb = jnp.take(params["emb"], source_ids, axis=0)                # [B, S, D] bf16
    dec_in_ids = jnp.concatenate(
        [jnp.zeros((B, 1), jnp.int32), labels[:, :-1]], axis=1)          # shift right
    dec_emb = jnp.take(params["emb"], dec_in_ids, axis=0)                # [B, L, D] bf16

    # per-graph mean-pool assignment matrix (tiny, JAX glue)
    onehot = (sent_batch[None, :] == jnp.arange(B)[:, None]).astype(jnp.float32)
    pool = onehot / jnp.maximum(onehot.sum(axis=1, keepdims=True), 1.0)  # [B, N]

    # ---- kernel A: long-text projection (row-tiled, parallel) ----
    src_proj = project(params, src_emb.reshape(B * S, D), cfg)
    source_embs = src_proj.reshape(B, S, D)                              # bf16

    # ---- kernel B: GNN + prefix encoder ----
    prefix_flat = gnn_prefix(params, adj, node_feats, pool, cfg)
    prefix_embeds = prefix_flat.reshape(B, P, D)                         # bf16

    # prefix || source concat + additive mask bias (JAX glue)
    full_embeds = jnp.concatenate([prefix_embeds, source_embs], axis=1)  # [B, T, D]
    full_mask = jnp.concatenate(
        [jnp.ones((B, P), jnp.float32), source_mask.astype(jnp.float32)], axis=1)
    mask_bias = ((full_mask - 1.0) * 1e30)[:, None, :]                   # [B, 1, T]

    # ---- kernel C: fused encoder + decoder + V-tiled LM head + CE + coverage ----
    # TODO(synk): the full pretrained multi-layer T5 stack is abstracted to one
    # encoder block and one decoder block (causal self-attn + cross-attn + FFN).
    logits, ce, cov = encdec(params, full_embeds, dec_emb, mask_bias, labels, cfg)

    # masked losses (tiny scalar reductions in JAX)
    per_tok_ce = ce[:, 0, :]                                             # [B, L]
    label_mask = (labels != 0).astype(jnp.float32)                       # pad id = 0
    ce_loss = jnp.sum(per_tok_ce * label_mask) / jnp.maximum(jnp.sum(label_mask), 1.0)
    coverage = cov[:, 0, :]                                              # [B, T]
    cov_loss = jnp.sum(jnp.square(coverage - 1.0) * full_mask) / jnp.sum(full_mask)
    loss = ce_loss + cov_lambda * cov_loss
    return {"loss": loss, "ce_loss": ce_loss, "cov_loss": cov_loss, "logits": logits}


# ----------------------------------------------------------------------------
# Driver
# ----------------------------------------------------------------------------
if __name__ == "__main__":
    cfg = Config()
    key = jax.random.PRNGKey(0)
    k_param, k_src, k_lab, k_feat = jax.random.split(key, 4)

    params = init_params(k_param, cfg)

    # synthetic pre-tokenized source documents and summaries (with some padding)
    source_ids = jax.random.randint(k_src, (cfg.B, cfg.S), 0, cfg.V, dtype=jnp.int32)
    source_mask = jnp.ones((cfg.B, cfg.S), jnp.float32).at[1, cfg.S - 24:].set(0.0)
    labels = jax.random.randint(k_lab, (cfg.B, cfg.L), 1, cfg.V, dtype=jnp.int32)
    labels = labels.at[0, cfg.L - 32:].set(0)                            # padded tail

    # synthetic batched sentence graph: chain + self loops, row-normalized adjacency
    N = cfg.N_SENT
    eye = jnp.eye(N, dtype=jnp.float32)
    chain = jnp.eye(N, k=1, dtype=jnp.float32) + jnp.eye(N, k=-1, dtype=jnp.float32)
    adj = eye + chain
    adj = adj / jnp.sum(adj, axis=1, keepdims=True)
    node_feats = jax.random.normal(k_feat, (N, cfg.GNN_IN), jnp.float32)
    sent_batch = jnp.repeat(jnp.arange(cfg.B, dtype=jnp.int32), N // cfg.B)  # node->graph

    fwd = jax.jit(functools.partial(joint_orchestrator_forward, cfg=cfg))
    outputs = fwd(params, source_ids, source_mask, adj, node_feats, sent_batch,
                  labels, jnp.float32(0.5))

    jax.block_until_ready(outputs["loss"])
    assert outputs["logits"].shape == (cfg.B, cfg.L, cfg.V)
    assert bool(jnp.isfinite(outputs["loss"]))
    print("KERNEL_OK")
</pallas_src>

<mosaic_0001>
module attributes {stable_mosaic.version = 11 : i64} {
  func.func @_project_kernel(%arg0: i32, %arg1: memref<64x128xbf16, #tpu.memory_space<vmem>>, %arg2: memref<128x128xbf16, #tpu.memory_space<vmem>>, %arg3: memref<1x128xf32, #tpu.memory_space<vmem>>, %arg4: memref<64x128xbf16, #tpu.memory_space<vmem>>) attributes {dimension_semantics = [#tpu.dimension_semantics<parallel>], iteration_bounds = array<i64: 7>, scalar_prefetch = 0 : i64, scratch_operands = 0 : i64, tpu.core_type = #tpu.core_type<tc>, window_params = [{transform_indices = @transform_0, window_bounds = array<i64: 64, 128>}, {pipeline_mode = #tpu.pipeline_mode<synchronous>, transform_indices = @transform_1, window_bounds = array<i64: 128, 128>}, {pipeline_mode = #tpu.pipeline_mode<synchronous>, transform_indices = @transform_2, window_bounds = array<i64: 1, 128>}, {transform_indices = @transform_3, window_bounds = array<i64: 64, 128>}]} {
    %c0 = arith.constant 0 : index
    %c0_0 = arith.constant 0 : index
    %0 = vector.load %arg1[%c0, %c0_0] : memref<64x128xbf16, #tpu.memory_space<vmem>>, vector<64x128xbf16>
    %c0_1 = arith.constant 0 : index
    %c0_2 = arith.constant 0 : index
    %1 = vector.load %arg2[%c0_1, %c0_2] : memref<128x128xbf16, #tpu.memory_space<vmem>>, vector<128x128xbf16>
    %cst = arith.constant dense<0.000000e+00> : vector<64x128xf32>
    %2 = tpu.matmul %0, %1, %cst {dimension_numbers = #tpu.dot_dimension_numbers<[1], [0], [0], [1], [0, 0, 1, 1], [], []>} : vector<64x128xbf16>, vector<128x128xbf16>, vector<64x128xf32> -> vector<64x128xf32>
    %c0_3 = arith.constant 0 : index
    %c0_4 = arith.constant 0 : index
    %3 = vector.load %arg3[%c0_3, %c0_4] : memref<1x128xf32, #tpu.memory_space<vmem>>, vector<1x128xf32>
    %4 = vector.broadcast %3 : vector<1x128xf32> to vector<64x128xf32>
    %5 = arith.addf %2, %4 : vector<64x128xf32>
    %cst_5 = arith.constant 0.000000e+00 : f32
    %6 = vector.broadcast %cst_5 : f32 to vector<64x128xf32>
    %7 = arith.maximumf %5, %6 : vector<64x128xf32>
    %8 = arith.truncf %7 : vector<64x128xf32> to vector<64x128xbf16>
    %c0_6 = arith.constant 0 : index
    %c0_7 = arith.constant 0 : index
    %9 = vector.load %arg4[%c0_6, %c0_7] : memref<64x128xbf16, #tpu.memory_space<vmem>>, vector<64x128xbf16>
    tpu.vector_store %arg4[%c0_6, %c0_7], %8 {strides = array<i32>} : memref<64x128xbf16, #tpu.memory_space<vmem>>, vector<64x128xbf16>,
    return
  }
  func.func @transform_0(%arg0: i32) -> (i32, i32) {
    %c0_i32 = arith.constant 0 : i32
    %c0_i32_0 = arith.constant 0 : i32
    return %arg0, %c0_i32 : i32, i32
  }
  func.func @transform_1(%arg0: i32) -> (i32, i32) {
    %c0_i32 = arith.constant 0 : i32
    %c0_i32_0 = arith.constant 0 : i32
    %c0_i32_1 = arith.constant 0 : i32
    return %c0_i32, %c0_i32_0 : i32, i32
  }
  func.func @transform_2(%arg0: i32) -> (i32, i32) {
    %c0_i32 = arith.constant 0 : i32
    %c0_i32_0 = arith.constant 0 : i32
    %c0_i32_1 = arith.constant 0 : i32
    return %c0_i32, %c0_i32_0 : i32, i32
  }
  func.func @transform_3(%arg0: i32) -> (i32, i32) {
    %c0_i32 = arith.constant 0 : i32
    %c0_i32_0 = arith.constant 0 : i32
    return %arg0, %c0_i32 : i32, i32
  }
}

module attributes {stable_mosaic.version = 11 : i64} {
  func.func @_gnn_prefix_kernel(%arg0: i32, %arg1: memref<8x8xbf16, #tpu.memory_space<vmem>>, %arg2: memref<8x128xbf16, #tpu.memory_space<vmem>>, %arg3: memref<128x128xbf16, #tpu.memory_space<vmem>>, %arg4: memref<1x128xf32, #tpu.memory_space<vmem>>, %arg5: memref<128x128xbf16, #tpu.memory_space<vmem>>, %arg6: memref<1x128xf32, #tpu.memory_space<vmem>>, %arg7: memref<4x8xbf16, #tpu.memory_space<vmem>>, %arg8: memref<128x128xbf16, #tpu.memory_space<vmem>>, %arg9: memref<1x128xf32, #tpu.memory_space<vmem>>, %arg10: memref<128x2048xbf16, #tpu.memory_space<vmem>>, %arg11: memref<1x2048xf32, #tpu.memory_space<vmem>>, %arg12: memref<4x2048xbf16, #tpu.memory_space<vmem>>) attributes {dimension_semantics = [#tpu.dimension_semantics<arbitrary>], iteration_bounds = array<i64: 1>, scalar_prefetch = 0 : i64, scratch_operands = 0 : i64, tpu.core_type = #tpu.core_type<tc>, window_params = [{pipeline_mode = #tpu.pipeline_mode<synchronous>, transform_indices = @transform_0, window_bounds = array<i64: 8, 8>}, {pipeline_mode = #tpu.pipeline_mode<synchronous>, transform_indices = @transform_1, window_bounds = array<i64: 8, 128>}, {pipeline_mode = #tpu.pipeline_mode<synchronous>, transform_indices = @transform_2, window_bounds = array<i64: 128, 128>}, {pipeline_mode = #tpu.pipeline_mode<synchronous>, transform_indices = @transform_3, window_bounds = array<i64: 1, 128>}, {pipeline_mode = #tpu.pipeline_mode<synchronous>, transform_indices = @transform_4, window_bounds = array<i64: 128, 128>}, {pipeline_mode = #tpu.pipeline_mode<synchronous>, transform_indices = @transform_5, window_bounds = array<i64: 1, 128>}, {pipeline_mode = #tpu.pipeline_mode<synchronous>, transform_indices = @transform_6, window_bounds = array<i64: 4, 8>}, {pipeline_mode = #tpu.pipeline_mode<synchronous>, transform_indices = @transform_7, window_bounds = array<i64: 128, 128>}, {pipeline_mode = #tpu.pipeline_mode<synchronous>, transform_indices = @transform_8, window_bounds = array<i64: 1, 128>}, {pipeline_mode = #tpu.pipeline_mode<synchronous>, transform_indices = @transform_9, window_bounds = array<i64: 128, 2048>}, {pipeline_mode = #tpu.pipeline_mode<synchronous>, transform_indices = @transform_10, window_bounds = array<i64: 1, 2048>}, {pipeline_mode = #tpu.pipeline_mode<synchronous>, transform_indices = @transform_11, window_bounds = array<i64: 4, 2048>}]} {
    %c0 = arith.constant 0 : index
    %c0_0 = arith.constant 0 : index
    %0 = vector.load %arg1[%c0, %c0_0] : memref<8x8xbf16, #tpu.memory_space<vmem>>, vector<8x8xbf16>
    %c0_1 = arith.constant 0 : index
    %c0_2 = arith.constant 0 : index
    %1 = vector.load %arg2[%c0_1, %c0_2] : memref<8x128xbf16, #tpu.memory_space<vmem>>, vector<8x128xbf16>
    %cst = arith.constant dense<0.000000e+00> : vector<8x128xf32>
    %2 = tpu.matmul %0, %1, %cst {dimension_numbers = #tpu.dot_dimension_numbers<[1], [0], [0], [1], [0, 0, 1, 1], [], []>} : vector<8x8xbf16>, vector<8x128xbf16>, vector<8x128xf32> -> vector<8x128xf32>
    %3 = arith.truncf %2 : vector<8x128xf32> to vector<8x128xbf16>
    %c0_3 = arith.constant 0 : index
    %c0_4 = arith.constant 0 : index
    %4 = vector.load %arg3[%c0_3, %c0_4] : memref<128x128xbf16, #tpu.memory_space<vmem>>, vector<128x128xbf16>
    %cst_5 = arith.constant dense<0.000000e+00> : vector<8x128xf32>
    %5 = tpu.matmul %3, %4, %cst_5 {dimension_numbers = #tpu.dot_dimension_numbers<[1], [0], [0], [1], [0, 0, 1, 1], [], []>} : vector<8x128xbf16>, vector<128x128xbf16>, vector<8x128xf32> -> vector<8x128xf32>
    %c0_6 = arith.constant 0 : index
    %c0_7 = arith.constant 0 : index
    %6 = vector.load %arg4[%c0_6, %c0_7] : memref<1x128xf32, #tpu.memory_space<vmem>>, vector<1x128xf32>
    %7 = vector.broadcast %6 : vector<1x128xf32> to vector<8x128xf32>
    %8 = arith.addf %5, %7 : vector<8x128xf32>
    %cst_8 = arith.constant 0.000000e+00 : f32
    %9 = vector.broadcast %cst_8 : f32 to vector<8x128xf32>
    %10 = arith.maximumf %8, %9 : vector<8x128xf32>
    %11 = arith.truncf %10 : vector<8x128xf32> to vector<8x128xbf16>
    %cst_9 = arith.constant dense<0.000000e+00> : vector<8x128xf32>
    %12 = tpu.matmul %0, %11, %cst_9 {dimension_numbers = #tpu.dot_dimension_numbers<[1], [0], [0], [1], [0, 0, 1, 1], [], []>} : vector<8x8xbf16>, vector<8x128xbf16>, vector<8x128xf32> -> vector<8x128xf32>
    %13 = arith.truncf %12 : vector<8x128xf32> to vector<8x128xbf16>
    %c0_10 = arith.constant 0 : index
    %c0_11 = arith.constant 0 : index
    %14 = vector.load %arg5[%c0_10, %c0_11] : memref<128x128xbf16, #tpu.memory_space<vmem>>, vector<128x128xbf16>
    %cst_12 = arith.constant dense<0.000000e+00> : vector<8x128xf32>
    %15 = tpu.matmul %13, %14, %cst_12 {dimension_numbers = #tpu.dot_dimension_numbers<[1], [0], [0], [1], [0, 0, 1, 1], [], []>} : vector<8x128xbf16>, vector<128x128xbf16>, vector<8x128xf32> -> vector<8x128xf32>
    %c0_13 = arith.constant 0 : index
    %c0_14 = arith.constant 0 : index
    %16 = vector.load %arg6[%c0_13, %c0_14] : memref<1x128xf32, #tpu.memory_space<vmem>>, vector<1x128xf32>
    %17 = vector.broadcast %16 : vector<1x128xf32> to vector<8x128xf32>
    %18 = arith.addf %15, %17 : vector<8x128xf32>
    %cst_15 = arith.constant 0.000000e+00 : f32
    %19 = vector.broadcast %cst_15 : f32 to vector<8x128xf32>
    %20 = arith.maximumf %18, %19 : vector<8x128xf32>
    %c0_16 = arith.constant 0 : index
    %c0_17 = arith.constant 0 : index
    %21 = vector.load %arg7[%c0_16, %c0_17] : memref<4x8xbf16, #tpu.memory_space<vmem>>, vector<4x8xbf16>
    %22 = arith.truncf %20 : vector<8x128xf32> to vector<8x128xbf16>
    %cst_18 = arith.constant dense<0.000000e+00> : vector<4x128xf32>
    %23 = tpu.matmul %21, %22, %cst_18 {dimension_numbers = #tpu.dot_dimension_numbers<[1], [0], [0], [1], [0, 0, 1, 1], [], []>} : vector<4x8xbf16>, vector<8x128xbf16>, vector<4x128xf32> -> vector<4x128xf32>
    %24 = arith.truncf %23 : vector<4x128xf32> to vector<4x128xbf16>
    %c0_19 = arith.constant 0 : index
    %c0_20 = arith.constant 0 : index
    %25 = vector.load %arg8[%c0_19, %c0_20] : memref<128x128xbf16, #tpu.memory_space<vmem>>, vector<128x128xbf16>
    %cst_21 = arith.constant dense<0.000000e+00> : vector<4x128xf32>
    %26 = tpu.matmul %24, %25, %cst_21 {dimension_numbers = #tpu.dot_dimension_numbers<[1], [0], [0], [1], [0, 0, 1, 1], [], []>} : vector<4x128xbf16>, vector<128x128xbf16>, vector<4x128xf32> -> vector<4x128xf32>
    %c0_22 = arith.constant 0 : index
    %c0_23 = arith.constant 0 : index
    %27 = vector.load %arg9[%c0_22, %c0_23] : memref<1x128xf32, #tpu.memory_space<vmem>>, vector<1x128xf32>
    %28 = vector.broadcast %27 : vector<1x128xf32> to vector<4x128xf32>
    %29 = arith.addf %26, %28 : vector<4x128xf32>
    %cst_24 = arith.constant 0.000000e+00 : f32
    %30 = vector.broadcast %cst_24 : f32 to vector<4x128xf32>
    %31 = arith.maximumf %29, %30 : vector<4x128xf32>
    %32 = arith.truncf %31 : vector<4x128xf32> to vector<4x128xbf16>
    %c0_25 = arith.constant 0 : index
    %c0_26 = arith.constant 0 : index
    %33 = vector.load %arg10[%c0_25, %c0_26] : memref<128x2048xbf16, #tpu.memory_space<vmem>>, vector<128x2048xbf16>
    %cst_27 = arith.constant dense<0.000000e+00> : vector<4x2048xf32>
    %34 = tpu.matmul %32, %33, %cst_27 {dimension_numbers = #tpu.dot_dimension_numbers<[1], [0], [0], [1], [0, 0, 1, 1], [], []>} : vector<4x128xbf16>, vector<128x2048xbf16>, vector<4x2048xf32> -> vector<4x2048xf32>
    %c0_28 = arith.constant 0 : index
    %c0_29 = arith.constant 0 : index
    %35 = vector.load %arg11[%c0_28, %c0_29] : memref<1x2048xf32, #tpu.memory_space<vmem>>, vector<1x2048xf32>
    %36 = vector.broadcast %35 : vector<1x2048xf32> to vector<4x2048xf32>
    %37 = arith.addf %34, %36 : vector<4x2048xf32>
    %38 = arith.truncf %37 : vector<4x2048xf32> to vector<4x2048xbf16>
    %c0_30 = arith.constant 0 : index
    %c0_31 = arith.constant 0 : index
    %39 = vector.load %arg12[%c0_30, %c0_31] : memref<4x2048xbf16, #tpu.memory_space<vmem>>, vector<4x2048xbf16>
    tpu.vector_store %arg12[%c0_30, %c0_31], %38 {strides = array<i32>} : memref<4x2048xbf16, #tpu.memory_space<vmem>>, vector<4x2048xbf16>,
    return
  }
  func.func @transform_0(%arg0: i32) -> (i32, i32) {
    %c0_i32 = arith.constant 0 : i32
    %c0_i32_0 = arith.constant 0 : i32
    %c0_i32_1 = arith.constant 0 : i32
    return %c0_i32, %c0_i32_0 : i32, i32
  }
  func.func @transform_1(%arg0: i32) -> (i32, i32) {
    %c0_i32 = arith.constant 0 : i32
    %c0_i32_0 = arith.constant 0 : i32
    %c0_i32_1 = arith.constant 0 : i32
    return %c0_i32, %c0_i32_0 : i32, i32
  }
  func.func @transform_2(%arg0: i32) -> (i32, i32) {
    %c0_i32 = arith.constant 0 : i32
    %c0_i32_0 = arith.constant 0 : i32
    %c0_i32_1 = arith.constant 0 : i32
    return %c0_i32, %c0_i32_0 : i32, i32
  }
  func.func @transform_3(%arg0: i32) -> (i32, i32) {
    %c0_i32 = arith.constant 0 : i32
    %c0_i32_0 = arith.constant 0 : i32
    %c0_i32_1 = arith.constant 0 : i32
    return %c0_i32, %c0_i32_0 : i32, i32
  }
  func.func @transform_4(%arg0: i32) -> (i32, i32) {
    %c0_i32 = arith.constant 0 : i32
    %c0_i32_0 = arith.constant 0 : i32
    %c0_i32_1 = arith.constant 0 : i32
    return %c0_i32, %c0_i32_0 : i32, i32
  }
  func.func @transform_5(%arg0: i32) -> (i32, i32) {
    %c0_i32 = arith.constant 0 : i32
    %c0_i32_0 = arith.constant 0 : i32
    %c0_i32_1 = arith.constant 0 : i32
    return %c0_i32, %c0_i32_0 : i32, i32
  }
  func.func @transform_6(%arg0: i32) -> (i32, i32) {
    %c0_i32 = arith.constant 0 : i32
    %c0_i32_0 = arith.constant 0 : i32
    %c0_i32_1 = arith.constant 0 : i32
    return %c0_i32, %c0_i32_0 : i32, i32
  }
  func.func @transform_7(%arg0: i32) -> (i32, i32) {
    %c0_i32 = arith.constant 0 : i32
    %c0_i32_0 = arith.constant 0 : i32
    %c0_i32_1 = arith.constant 0 : i32
    return %c0_i32, %c0_i32_0 : i32, i32
  }
  func.func @transform_8(%arg0: i32) -> (i32, i32) {
    %c0_i32 = arith.constant 0 : i32
    %c0_i32_0 = arith.constant 0 : i32
    %c0_i32_1 = arith.constant 0 : i32
    return %c0_i32, %c0_i32_0 : i32, i32
  }
  func.func @transform_9(%arg0: i32) -> (i32, i32) {
    %c0_i32 = arith.constant 0 : i32
    %c0_i32_0 = arith.constant 0 : i32
    %c0_i32_1 = arith.constant 0 : i32
    return %c0_i32, %c0_i32_0 : i32, i32
  }
  func.func @transform_10(%arg0: i32) -> (i32, i32) {
    %c0_i32 = arith.constant 0 : i32
    %c0_i32_0 = arith.constant 0 : i32
    %c0_i32_1 = arith.constant 0 : i32
    return %c0_i32, %c0_i32_0 : i32, i32
  }
  func.func @transform_11(%arg0: i32) -> (i32, i32) {
    %c0_i32 = arith.constant 0 : i32
    %c0_i32_0 = arith.constant 0 : i32
    %c0_i32_1 = arith.constant 0 : i32
    return %c0_i32, %c0_i32_0 : i32, i32
  }
}

module attributes {stable_mosaic.version = 11 : i64} {
  func.func @_encdec_kernel(%arg0: i32, %arg1: i32, %arg2: memref<1x128x128xbf16, #tpu.memory_space<vmem>>, %arg3: memref<1x128x128xbf16, #tpu.memory_space<vmem>>, %arg4: memref<1x1x128xf32, #tpu.memory_space<vmem>>, %arg5: memref<1x128x1xi32, #tpu.memory_space<vmem>>, %arg6: memref<128x384xbf16, #tpu.memory_space<vmem>>, %arg7: memref<1x384xf32, #tpu.memory_space<vmem>>, %arg8: memref<128x128xbf16, #tpu.memory_space<vmem>>, %arg9: memref<1x128xf32, #tpu.memory_space<vmem>>, %arg10: memref<128x256xbf16, #tpu.memory_space<vmem>>, %arg11: memref<1x256xf32, #tpu.memory_space<vmem>>, %arg12: memref<256x128xbf16, #tpu.memory_space<vmem>>, %arg13: memref<1x128xf32, #tpu.memory_space<vmem>>, %arg14: memref<128x384xbf16, #tpu.memory_space<vmem>>, %arg15: memref<1x384xf32, #tpu.memory_space<vmem>>, %arg16: memref<128x128xbf16, #tpu.memory_space<vmem>>, %arg17: memref<1x128xf32, #tpu.memory_space<vmem>>, %arg18: memref<128x128xbf16, #tpu.memory_space<vmem>>, %arg19: memref<1x128xf32, #tpu.memory_space<vmem>>, %arg20: memref<128x256xbf16, #tpu.memory_space<vmem>>, %arg21: memref<1x256xf32, #tpu.memory_space<vmem>>, %arg22: memref<128x128xbf16, #tpu.memory_space<vmem>>, %arg23: memref<1x128xf32, #tpu.memory_space<vmem>>, %arg24: memref<128x256xbf16, #tpu.memory_space<vmem>>, %arg25: memref<1x256xf32, #tpu.memory_space<vmem>>, %arg26: memref<256x128xbf16, #tpu.memory_space<vmem>>, %arg27: memref<1x128xf32, #tpu.memory_space<vmem>>, %arg28: memref<128x128xbf16, #tpu.memory_space<vmem>>, %arg29: memref<1x128xf32, #tpu.memory_space<vmem>>, %arg30: memref<1x128x128xbf16, #tpu.memory_space<vmem>>, %arg31: memref<1x1x128xf32, #tpu.memory_space<vmem>>, %arg32: memref<1x1x128xf32, #tpu.memory_space<vmem>>, %arg33: memref<128x128xbf16, #tpu.memory_space<vmem>>, %arg34: memref<128x1xf32, #tpu.memory_space<vmem>>, %arg35: memref<128x1xf32, #tpu.memory_space<vmem>>, %arg36: memref<128x1xf32, #tpu.memory_space<vmem>>) attributes {dimension_semantics = [#tpu.dimension_semantics<parallel>, #tpu.dimension_semantics<arbitrary>], iteration_bounds = array<i64: 4, 2>, scalar_prefetch = 0 : i64, scratch_operands = 4 : i64, tpu.core_type = #tpu.core_type<tc>, window_params = [{transform_indices = @transform_0, window_bounds = array<i64: 1, 128, 128>}, {transform_indices = @transform_1, window_bounds = array<i64: 1, 128, 128>}, {transform_indices = @transform_2, window_bounds = array<i64: 1, 1, 128>}, {transform_indices = @transform_3, window_bounds = array<i64: 1, 128, 1>}, {pipeline_mode = #tpu.pipeline_mode<synchronous>, transform_indices = @transform_4, window_bounds = array<i64: 128, 384>}, {pipeline_mode = #tpu.pipeline_mode<synchronous>, transform_indices = @transform_5, window_bounds = array<i64: 1, 384>}, {pipeline_mode = #tpu.pipeline_mode<synchronous>, transform_indices = @transform_6, window_bounds = array<i64: 128, 128>}, {pipeline_mode = #tpu.pipeline_mode<synchronous>, transform_indices = @transform_7, window_bounds = array<i64: 1, 128>}, {pipeline_mode = #tpu.pipeline_mode<synchronous>, transform_indices = @transform_8, window_bounds = array<i64: 128, 256>}, {pipeline_mode = #tpu.pipeline_mode<synchronous>, transform_indices = @transform_9, window_bounds = array<i64: 1, 256>}, {pipeline_mode = #tpu.pipeline_mode<synchronous>, transform_indices = @transform_10, window_bounds = array<i64: 256, 128>}, {pipeline_mode = #tpu.pipeline_mode<synchronous>, transform_indices = @transform_11, window_bounds = array<i64: 1, 128>}, {pipeline_mode = #tpu.pipeline_mode<synchronous>, transform_indices = @transform_12, window_bounds = array<i64: 128, 384>}, {pipeline_mode = #tpu.pipeline_mode<synchronous>, transform_indices = @transform_13, window_bounds = array<i64: 1, 384>}, {pipeline_mode = #tpu.pipeline_mode<synchronous>, transform_indices = @transform_14, window_bounds = array<i64: 128, 128>}, {pipeline_mode = #tpu.pipeline_mode<synchronous>, transform_indices = @transform_15, window_bounds = array<i64: 1, 128>}, {pipeline_mode = #tpu.pipeline_mode<synchronous>, transform_indices = @transform_16, window_bounds = array<i64: 128, 128>}, {pipeline_mode = #tpu.pipeline_mode<synchronous>, transform_indices = @transform_17, window_bounds = array<i64: 1, 128>}, {pipeline_mode = #tpu.pipeline_mode<synchronous>, transform_indices = @transform_18, window_bounds = array<i64: 128, 256>}, {pipeline_mode = #tpu.pipeline_mode<synchronous>, transform_indices = @transform_19, window_bounds = array<i64: 1, 256>}, {pipeline_mode = #tpu.pipeline_mode<synchronous>, transform_indices = @transform_20, window_bounds = array<i64: 128, 128>}, {pipeline_mode = #tpu.pipeline_mode<synchronous>, transform_indices = @transform_21, window_bounds = array<i64: 1, 128>}, {pipeline_mode = #tpu.pipeline_mode<synchronous>, transform_indices = @transform_22, window_bounds = array<i64: 128, 256>}, {pipeline_mode = #tpu.pipeline_mode<synchronous>, transform_indices = @transform_23, window_bounds = array<i64: 1, 256>}, {pipeline_mode = #tpu.pipeline_mode<synchronous>, transform_indices = @transform_24, window_bounds = array<i64: 256, 128>}, {pipeline_mode = #tpu.pipeline_mode<synchronous>, transform_indices = @transform_25, window_bounds = array<i64: 1, 128>}, {transform_indices = @transform_26, window_bounds = array<i64: 128, 128>}, {transform_indices = @transform_27, window_bounds = array<i64: 1, 128>}, {transform_indices = @transform_28, window_bounds = array<i64: 1, 128, 128>}, {transform_indices = @transform_29, window_bounds = array<i64: 1, 1, 128>}, {transform_indices = @transform_30, window_bounds = array<i64: 1, 1, 128>}]} {
    %c0_i32 = arith.constant 0 : i32
    %0 = arith.cmpi eq, %arg1, %c0_i32 : i32
    %1 = arith.extui %0 : i1 to i32
    %c0_i32_0 = arith.constant 0 : i32
    %2 = arith.cmpi ne, %1, %c0_i32_0 : i32
    scf.if %2 {
      %c0_29 = arith.constant 0 : index
      %c0_30 = arith.constant 0 : index
      %c0_31 = arith.constant 0 : index
      %47 = vector.load %arg2[%c0_29, %c0_30, %c0_31] : memref<1x128x128xbf16, #tpu.memory_space<vmem>>, vector<1x128x128xbf16>
      %48 = vector.shape_cast %47 : vector<1x128x128xbf16> to vector<128x128xbf16>
      %c0_32 = arith.constant 0 : index
      %c0_33 = arith.constant 0 : index
      %c0_34 = arith.constant 0 : index
      %49 = vector.load %arg4[%c0_32, %c0_33, %c0_34] : memref<1x1x128xf32, #tpu.memory_space<vmem>>, vector<1x1x128xf32>
      %50 = vector.shape_cast %49 : vector<1x1x128xf32> to vector<1x128xf32>
      %51 = arith.extf %48 : vector<128x128xbf16> to vector<128x128xf32>
      %c0_35 = arith.constant 0 : index
      %c0_36 = arith.constant 0 : index
      %52 = vector.load %arg6[%c0_35, %c0_36] : memref<128x384xbf16, #tpu.memory_space<vmem>>, vector<128x384xbf16>
      %cst_37 = arith.constant dense<0.000000e+00> : vector<128x384xf32>
      %53 = tpu.matmul %48, %52, %cst_37 {dimension_numbers = #tpu.dot_dimension_numbers<[1], [0], [0], [1], [0, 0, 1, 1], [], []>} : vector<128x128xbf16>, vector<128x384xbf16>, vector<128x384xf32> -> vector<128x384xf32>
      %c0_38 = arith.constant 0 : index
      %c0_39 = arith.constant 0 : index
      %54 = vector.load %arg7[%c0_38, %c0_39] : memref<1x384xf32, #tpu.memory_space<vmem>>, vector<1x384xf32>
      %55 = vector.broadcast %54 : vector<1x384xf32> to vector<128x384xf32>
      %56 = arith.addf %53, %55 : vector<128x384xf32>
      %57 = vector.extract_strided_slice %56 {offsets = [0, 0], sizes = [128, 128], strides = [1, 1]} : vector<128x384xf32> to vector<128x128xf32>
      %58 = arith.truncf %57 : vector<128x128xf32> to vector<128x128xbf16>
      %59 = vector.extract_strided_slice %56 {offsets = [0, 128], sizes = [128, 128], strides = [1, 1]} : vector<128x384xf32> to vector<128x128xf32>
      %60 = arith.truncf %59 : vector<128x128xf32> to vector<128x128xbf16>
      %61 = vector.extract_strided_slice %56 {offsets = [0, 256], sizes = [128, 128], strides = [1, 1]} : vector<128x384xf32> to vector<128x128xf32>
      %62 = arith.truncf %61 : vector<128x128xf32> to vector<128x128xbf16>
      %cst_40 = arith.constant dense<0.000000e+00> : vector<128x128xf32>
      %63 = tpu.matmul %58, %60, %cst_40 {dimension_numbers = #tpu.dot_dimension_numbers<[1], [1], [0], [0], [0, 0, 1, 0], [], []>} : vector<128x128xbf16>, vector<128x128xbf16>, vector<128x128xf32> -> vector<128x128xf32>
      %cst_41 = arith.constant 0.0883883461 : f32
      %64 = vector.broadcast %cst_41 : f32 to vector<128x128xf32>
      %65 = arith.mulf %63, %64 : vector<128x128xf32>
      %66 = vector.broadcast %50 : vector<1x128xf32> to vector<128x128xf32>
      %67 = arith.addf %65, %66 : vector<128x128xf32>
      %cst_42 = arith.constant dense<0xFF800000> : vector<128xf32>
      %68 = vector.multi_reduction <maximumf>, %67, %cst_42 [1] : vector<128x128xf32> to vector<128xf32>
      %69 = vector.shape_cast %68 : vector<128xf32> to vector<128x1xf32>
      %70 = vector.broadcast %69 : vector<128x1xf32> to vector<128x128xf32>
      %71 = arith.subf %67, %70 : vector<128x128xf32>
      %72 = math.exp %71 : vector<128x128xf32>
      %cst_43 = arith.constant dense<0.000000e+00> : vector<128xf32>
      %73 = vector.multi_reduction <add>, %72, %cst_43 [1] : vector<128x128xf32> to vector<128xf32>
      %74 = vector.shape_cast %73 : vector<128xf32> to vector<128x1xf32>
      %75 = tpu.reciprocal %74 {approx = true} : vector<128x1xf32> -> vector<128x1xf32>
      %76 = vector.broadcast %75 : vector<128x1xf32> to vector<128x128xf32>
      %77 = arith.mulf %72, %76 : vector<128x128xf32>
      %78 = arith.truncf %77 : vector<128x128xf32> to vector<128x128xbf16>
      %cst_44 = arith.constant dense<0.000000e+00> : vector<128x128xf32>
      %79 = tpu.matmul %78, %62, %cst_44 {dimension_numbers = #tpu.dot_dimension_numbers<[1], [0], [0], [1], [0, 0, 1, 1], [], []>} : vector<128x128xbf16>, vector<128x128xbf16>, vector<128x128xf32> -> vector<128x128xf32>
      %80 = arith.truncf %79 : vector<128x128xf32> to vector<128x128xbf16>
      %c0_45 = arith.constant 0 : index
      %c0_46 = arith.constant 0 : index
      %81 = vector.load %arg8[%c0_45, %c0_46] : memref<128x128xbf16, #tpu.memory_space<vmem>>, vector<128x128xbf16>
      %cst_47 = arith.constant dense<0.000000e+00> : vector<128x128xf32>
      %82 = tpu.matmul %80, %81, %cst_47 {dimension_numbers = #tpu.dot_dimension_numbers<[1], [0], [0], [1], [0, 0, 1, 1], [], []>} : vector<128x128xbf16>, vector<128x128xbf16>, vector<128x128xf32> -> vector<128x128xf32>
      %83 = arith.addf %51, %82 : vector<128x128xf32>
      %c0_48 = arith.constant 0 : index
      %c0_49 = arith.constant 0 : index
      %84 = vector.load %arg9[%c0_48, %c0_49] : memref<1x128xf32, #tpu.memory_space<vmem>>, vector<1x128xf32>
      %85 = vector.broadcast %84 : vector<1x128xf32> to vector<128x128xf32>
      %86 = arith.addf %83, %85 : vector<128x128xf32>
      %87 = arith.truncf %86 : vector<128x128xf32> to vector<128x128xbf16>
      %c0_50 = arith.constant 0 : index
      %c0_51 = arith.constant 0 : index
      %88 = vector.load %arg10[%c0_50, %c0_51] : memref<128x256xbf16, #tpu.memory_space<vmem>>, vector<128x256xbf16>
      %cst_52 = arith.constant dense<0.000000e+00> : vector<128x256xf32>
      %89 = tpu.matmul %87, %88, %cst_52 {dimension_numbers = #tpu.dot_dimension_numbers<[1], [0], [0], [1], [0, 0, 1, 1], [], []>} : vector<128x128xbf16>, vector<128x256xbf16>, vector<128x256xf32> -> vector<128x256xf32>
      %c0_53 = arith.constant 0 : index
      %c0_54 = arith.constant 0 : index
      %90 = vector.load %arg11[%c0_53, %c0_54] : memref<1x256xf32, #tpu.memory_space<vmem>>, vector<1x256xf32>
      %91 = vector.broadcast %90 : vector<1x256xf32> to vector<128x256xf32>
      %92 = arith.addf %89, %91 : vector<128x256xf32>
      %cst_55 = arith.constant 0.000000e+00 : f32
      %93 = vector.broadcast %cst_55 : f32 to vector<128x256xf32>
      %94 = arith.maximumf %92, %93 : vector<128x256xf32>
      %95 = arith.truncf %94 : vector<128x256xf32> to vector<128x256xbf16>
      %c0_56 = arith.constant 0 : index
      %c0_57 = arith.constant 0 : index
      %96 = vector.load %arg12[%c0_56, %c0_57] : memref<256x128xbf16, #tpu.memory_space<vmem>>, vector<256x128xbf16>
      %cst_58 = arith.constant dense<0.000000e+00> : vector<128x128xf32>
      %97 = tpu.matmul %95, %96, %cst_58 {dimension_numbers = #tpu.dot_dimension_numbers<[1], [0], [0], [1], [0, 0, 1, 1], [], []>} : vector<128x256xbf16>, vector<256x128xbf16>, vector<128x128xf32> -> vector<128x128xf32>
      %98 = arith.addf %86, %97 : vector<128x128xf32>
      %c0_59 = arith.constant 0 : index
      %c0_60 = arith.constant 0 : index
      %99 = vector.load %arg13[%c0_59, %c0_60] : memref<1x128xf32, #tpu.memory_space<vmem>>, vector<1x128xf32>
      %100 = vector.broadcast %99 : vector<1x128xf32> to vector<128x128xf32>
      %101 = arith.addf %98, %100 : vector<128x128xf32>
      %102 = arith.truncf %101 : vector<128x128xf32> to vector<128x128xbf16>
      %c0_61 = arith.constant 0 : index
      %c0_62 = arith.constant 0 : index
      %c0_63 = arith.constant 0 : index
      %103 = vector.load %arg3[%c0_61, %c0_62, %c0_63] : memref<1x128x128xbf16, #tpu.memory_space<vmem>>, vector<1x128x128xbf16>
      %104 = vector.shape_cast %103 : vector<1x128x128xbf16> to vector<128x128xbf16>
      %105 = arith.extf %104 : vector<128x128xbf16> to vector<128x128xf32>
      %c0_64 = arith.constant 0 : index
      %c0_65 = arith.constant 0 : index
      %106 = vector.load %arg14[%c0_64, %c0_65] : memref<128x384xbf16, #tpu.memory_space<vmem>>, vector<128x384xbf16>
      %cst_66 = arith.constant dense<0.000000e+00> : vector<128x384xf32>
      %107 = tpu.matmul %104, %106, %cst_66 {dimension_numbers = #tpu.dot_dimension_numbers<[1], [0], [0], [1], [0, 0, 1, 1], [], []>} : vector<128x128xbf16>, vector<128x384xbf16>, vector<128x384xf32> -> vector<128x384xf32>
      %c0_67 = arith.constant 0 : index
      %c0_68 = arith.constant 0 : index
      %108 = vector.load %arg15[%c0_67, %c0_68] : memref<1x384xf32, #tpu.memory_space<vmem>>, vector<1x384xf32>
      %109 = vector.broadcast %108 : vector<1x384xf32> to vector<128x384xf32>
      %110 = arith.addf %107, %109 : vector<128x384xf32>
      %111 = vector.extract_strided_slice %110 {offsets = [0, 0], sizes = [128, 128], strides = [1, 1]} : vector<128x384xf32> to vector<128x128xf32>
      %112 = arith.truncf %111 : vector<128x128xf32> to vector<128x128xbf16>
      %113 = vector.extract_strided_slice %110 {offsets = [0, 128], sizes = [128, 128], strides = [1, 1]} : vector<128x384xf32> to vector<128x128xf32>
      %114 = arith.truncf %113 : vector<128x128xf32> to vector<128x128xbf16>
      %115 = vector.extract_strided_slice %110 {offsets = [0, 256], sizes = [128, 128], strides = [1, 1]} : vector<128x384xf32> to vector<128x128xf32>
      %116 = arith.truncf %115 : vector<128x128xf32> to vector<128x128xbf16>
      %cst_69 = arith.constant dense<0.000000e+00> : vector<128x128xf32>
      %117 = tpu.matmul %112, %114, %cst_69 {dimension_numbers = #tpu.dot_dimension_numbers<[1], [1], [0], [0], [0, 0, 1, 0], [], []>} : vector<128x128xbf16>, vector<128x128xbf16>, vector<128x128xf32> -> vector<128x128xf32>
      %cst_70 = arith.constant 0.0883883461 : f32
      %118 = vector.broadcast %cst_70 : f32 to vector<128x128xf32>
      %119 = arith.mulf %117, %118 : vector<128x128xf32>
      %120 = tpu.iota {dimensions = array<i32: 0>} : vector<128x128xi32>
      %121 = tpu.iota {dimensions = array<i32: 1>} : vector<128x128xi32>
      %122 = arith.cmpi sle, %121, %120 : vector<128x128xi32>
      %cst_71 = arith.constant 0.000000e+00 : f32
      %cst_72 = arith.constant -1.000000e+30 : f32
      %123 = vector.broadcast %cst_71 : f32 to vector<128x128xf32>
      %124 = vector.broadcast %cst_72 : f32 to vector<128x128xf32>
      %125 = arith.select %122, %123, %124 : vector<128x128xi1>, vector<128x128xf32>
      %126 = arith.addf %119, %125 : vector<128x128xf32>
      %cst_73 = arith.constant dense<0xFF800000> : vector<128xf32>
      %127 = vector.multi_reduction <maximumf>, %126, %cst_73 [1] : vector<128x128xf32> to vector<128xf32>
      %128 = vector.shape_cast %127 : vector<128xf32> to vector<128x1xf32>
      %129 = vector.broadcast %128 : vector<128x1xf32> to vector<128x128xf32>
      %130 = arith.subf %126, %129 : vector<128x128xf32>
      %131 = math.exp %130 : vector<128x128xf32>
      %cst_74 = arith.constant dense<0.000000e+00> : vector<128xf32>
      %132 = vector.multi_reduction <add>, %131, %cst_74 [1] : vector<128x128xf32> to vector<128xf32>
      %133 = vector.shape_cast %132 : vector<128xf32> to vector<128x1xf32>
      %134 = tpu.reciprocal %133 {approx = true} : vector<128x1xf32> -> vector<128x1xf32>
      %135 = vector.broadcast %134 : vector<128x1xf32> to vector<128x128xf32>
      %136 = arith.mulf %131, %135 : vector<128x128xf32>
      %137 = arith.truncf %136 : vector<128x128xf32> to vector<128x128xbf16>
      %cst_75 = arith.constant dense<0.000000e+00> : vector<128x128xf32>
      %138 = tpu.matmul %137, %116, %cst_75 {dimension_numbers = #tpu.dot_dimension_numbers<[1], [0], [0], [1], [0, 0, 1, 1], [], []>} : vector<128x128xbf16>, vector<128x128xbf16>, vector<128x128xf32> -> vector<128x128xf32>
      %139 = arith.truncf %138 : vector<128x128xf32> to vector<128x128xbf16>
      %c0_76 = arith.constant 0 : index
      %c0_77 = arith.constant 0 : index
      %140 = vector.load %arg16[%c0_76, %c0_77] : memref<128x128xbf16, #tpu.memory_space<vmem>>, vector<128x128xbf16>
      %cst_78 = arith.constant dense<0.000000e+00> : vector<128x128xf32>
      %141 = tpu.matmul %139, %140, %cst_78 {dimension_numbers = #tpu.dot_dimension_numbers<[1], [0], [0], [1], [0, 0, 1, 1], [], []>} : vector<128x128xbf16>, vector<128x128xbf16>, vector<128x128xf32> -> vector<128x128xf32>
      %142 = arith.addf %105, %141 : vector<128x128xf32>
      %c0_79 = arith.constant 0 : index
      %c0_80 = arith.constant 0 : index
      %143 = vector.load %arg17[%c0_79, %c0_80] : memref<1x128xf32, #tpu.memory_space<vmem>>, vector<1x128xf32>
      %144 = vector.broadcast %143 : vector<1x128xf32> to vector<128x128xf32>
      %145 = arith.addf %142, %144 : vector<128x128xf32>
      %146 = arith.truncf %145 : vector<128x128xf32> to vector<128x128xbf16>
      %c0_81 = arith.constant 0 : index
      %c0_82 = arith.constant 0 : index
      %147 = vector.load %arg18[%c0_81, %c0_82] : memref<128x128xbf16, #tpu.memory_space<vmem>>, vector<128x128xbf16>
      %cst_83 = arith.constant dense<0.000000e+00> : vector<128x128xf32>
      %148 = tpu.matmul %146, %147, %cst_83 {dimension_numbers = #tpu.dot_dimension_numbers<[1], [0], [0], [1], [0, 0, 1, 1], [], []>} : vector<128x128xbf16>, vector<128x128xbf16>, vector<128x128xf32> -> vector<128x128xf32>
      %c0_84 = arith.constant 0 : index
      %c0_85 = arith.constant 0 : index
      %149 = vector.load %arg19[%c0_84, %c0_85] : memref<1x128xf32, #tpu.memory_space<vmem>>, vector<1x128xf32>
      %150 = vector.broadcast %149 : vector<1x128xf32> to vector<128x128xf32>
      %151 = arith.addf %148, %150 : vector<128x128xf32>
      %152 = arith.truncf %151 : vector<128x128xf32> to vector<128x128xbf16>
      %c0_86 = arith.constant 0 : index
      %c0_87 = arith.constant 0 : index
      %153 = vector.load %arg20[%c0_86, %c0_87] : memref<128x256xbf16, #tpu.memory_space<vmem>>, vector<128x256xbf16>
      %cst_88 = arith.constant dense<0.000000e+00> : vector<128x256xf32>
      %154 = tpu.matmul %102, %153, %cst_88 {dimension_numbers = #tpu.dot_dimension_numbers<[1], [0], [0], [1], [0, 0, 1, 1], [], []>} : vector<128x128xbf16>, vector<128x256xbf16>, vector<128x256xf32> -> vector<128x256xf32>
      %c0_89 = arith.constant 0 : index
      %c0_90 = arith.constant 0 : index
      %155 = vector.load %arg21[%c0_89, %c0_90] : memref<1x256xf32, #tpu.memory_space<vmem>>, vector<1x256xf32>
      %156 = vector.broadcast %155 : vector<1x256xf32> to vector<128x256xf32>
      %157 = arith.addf %154, %156 : vector<128x256xf32>
      %158 = vector.extract_strided_slice %157 {offsets = [0, 0], sizes = [128, 128], strides = [1, 1]} : vector<128x256xf32> to vector<128x128xf32>
      %159 = arith.truncf %158 : vector<128x128xf32> to vector<128x128xbf16>
      %160 = vector.extract_strided_slice %157 {offsets = [0, 128], sizes = [128, 128], strides = [1, 1]} : vector<128x256xf32> to vector<128x128xf32>
      %161 = arith.truncf %160 : vector<128x128xf32> to vector<128x128xbf16>
      %cst_91 = arith.constant dense<0.000000e+00> : vector<128x128xf32>
      %162 = tpu.matmul %152, %159, %cst_91 {dimension_numbers = #tpu.dot_dimension_numbers<[1], [1], [0], [0], [0, 0, 1, 0], [], []>} : vector<128x128xbf16>, vector<128x128xbf16>, vector<128x128xf32> -> vector<128x128xf32>
      %cst_92 = arith.constant 0.0883883461 : f32
      %163 = vector.broadcast %cst_92 : f32 to vector<128x128xf32>
      %164 = arith.mulf %162, %163 : vector<128x128xf32>
      %165 = vector.broadcast %50 : vector<1x128xf32> to vector<128x128xf32>
      %166 = arith.addf %164, %165 : vector<128x128xf32>
      %cst_93 = arith.constant dense<0xFF800000> : vector<128xf32>
      %167 = vector.multi_reduction <maximumf>, %166, %cst_93 [1] : vector<128x128xf32> to vector<128xf32>
      %168 = vector.shape_cast %167 : vector<128xf32> to vector<128x1xf32>
      %169 = vector.broadcast %168 : vector<128x1xf32> to vector<128x128xf32>
      %170 = arith.subf %166, %169 : vector<128x128xf32>
      %171 = math.exp %170 : vector<128x128xf32>
      %cst_94 = arith.constant dense<0.000000e+00> : vector<128xf32>
      %172 = vector.multi_reduction <add>, %171, %cst_94 [1] : vector<128x128xf32> to vector<128xf32>
      %173 = vector.shape_cast %172 : vector<128xf32> to vector<128x1xf32>
      %174 = vector.broadcast %173 : vector<128x1xf32> to vector<128x128xf32>
      %175 = arith.divf %171, %174 : vector<128x128xf32>
      %cst_95 = arith.constant dense<0.000000e+00> : vector<128xf32>
      %176 = vector.multi_reduction <add>, %175, %cst_95 [0] : vector<128x128xf32> to vector<128xf32>
      %177 = vector.shape_cast %176 : vector<128xf32> to vector<1x128xf32>
      %c0_96 = arith.constant 0 : index
      %c0_97 = arith.constant 0 : index
      %c0_98 = arith.constant 0 : index
      %178 = vector.load %arg32[%c0_96, %c0_97, %c0_98] : memref<1x1x128xf32, #tpu.memory_space<vmem>>, vector<1x1x128xf32>
      %179 = vector.shape_cast %178 : vector<1x1x128xf32> to vector<1x128xf32>
      %180 = vector.shape_cast %177 : vector<1x128xf32> to vector<1x1x128xf32>
      tpu.vector_store %arg32[%c0_96, %c0_97, %c0_98], %180 {strides = array<i32>} : memref<1x1x128xf32, #tpu.memory_space<vmem>>, vector<1x1x128xf32>,
      %181 = arith.truncf %175 : vector<128x128xf32> to vector<128x128xbf16>
      %cst_99 = arith.constant dense<0.000000e+00> : vector<128x128xf32>
      %182 = tpu.matmul %181, %161, %cst_99 {dimension_numbers = #tpu.dot_dimension_numbers<[1], [0], [0], [1], [0, 0, 1, 1], [], []>} : vector<128x128xbf16>, vector<128x128xbf16>, vector<128x128xf32> -> vector<128x128xf32>
      %183 = arith.truncf %182 : vector<128x128xf32> to vector<128x128xbf16>
      %c0_100 = arith.constant 0 : index
      %c0_101 = arith.constant 0 : index
      %184 = vector.load %arg22[%c0_100, %c0_101] : memref<128x128xbf16, #tpu.memory_space<vmem>>, vector<128x128xbf16>
      %cst_102 = arith.constant dense<0.000000e+00> : vector<128x128xf32>
      %185 = tpu.matmul %183, %184, %cst_102 {dimension_numbers = #tpu.dot_dimension_numbers<[1], [0], [0], [1], [0, 0, 1, 1], [], []>} : vector<128x128xbf16>, vector<128x128xbf16>, vector<128x128xf32> -> vector<128x128xf32>
      %186 = arith.addf %145, %185 : vector<128x128xf32>
      %c0_103 = arith.constant 0 : index
      %c0_104 = arith.constant 0 : index
      %187 = vector.load %arg23[%c0_103, %c0_104] : memref<1x128xf32, #tpu.memory_space<vmem>>, vector<1x128xf32>
      %188 = vector.broadcast %187 : vector<1x128xf32> to vector<128x128xf32>
      %189 = arith.addf %186, %188 : vector<128x128xf32>
      %190 = arith.truncf %189 : vector<128x128xf32> to vector<128x128xbf16>
      %c0_105 = arith.constant 0 : index
      %c0_106 = arith.constant 0 : index
      %191 = vector.load %arg24[%c0_105, %c0_106] : memref<128x256xbf16, #tpu.memory_space<vmem>>, vector<128x256xbf16>
      %cst_107 = arith.constant dense<0.000000e+00> : vector<128x256xf32>
      %192 = tpu.matmul %190, %191, %cst_107 {dimension_numbers = #tpu.dot_dimension_numbers<[1], [0], [0], [1], [0, 0, 1, 1], [], []>} : vector<128x128xbf16>, vector<128x256xbf16>, vector<128x256xf32> -> vector<128x256xf32>
      %c0_108 = arith.constant 0 : index
      %c0_109 = arith.constant 0 : index
      %193 = vector.load %arg25[%c0_108, %c0_109] : memref<1x256xf32, #tpu.memory_space<vmem>>, vector<1x256xf32>
      %194 = vector.broadcast %193 : vector<1x256xf32> to vector<128x256xf32>
      %195 = arith.addf %192, %194 : vector<128x256xf32>
      %cst_110 = arith.constant 0.000000e+00 : f32
      %196 = vector.broadcast %cst_110 : f32 to vector<128x256xf32>
      %197 = arith.maximumf %195, %196 : vector<128x256xf32>
      %198 = arith.truncf %197 : vector<128x256xf32> to vector<128x256xbf16>
      %c0_111 = arith.constant 0 : index
      %c0_112 = arith.constant 0 : index
      %199 = vector.load %arg26[%c0_111, %c0_112] : memref<256x128xbf16, #tpu.memory_space<vmem>>, vector<256x128xbf16>
      %cst_113 = arith.constant dense<0.000000e+00> : vector<128x128xf32>
      %200 = tpu.matmul %198, %199, %cst_113 {dimension_numbers = #tpu.dot_dimension_numbers<[1], [0], [0], [1], [0, 0, 1, 1], [], []>} : vector<128x256xbf16>, vector<256x128xbf16>, vector<128x128xf32> -> vector<128x128xf32>
      %201 = arith.addf %189, %200 : vector<128x128xf32>
      %c0_114 = arith.constant 0 : index
      %c0_115 = arith.constant 0 : index
      %202 = vector.load %arg27[%c0_114, %c0_115] : memref<1x128xf32, #tpu.memory_space<vmem>>, vector<1x128xf32>
      %203 = vector.broadcast %202 : vector<1x128xf32> to vector<128x128xf32>
      %204 = arith.addf %201, %203 : vector<128x128xf32>
      %205 = arith.truncf %204 : vector<128x128xf32> to vector<128x128xbf16>
      %c0_116 = arith.constant 0 : index
      %c0_117 = arith.constant 0 : index
      %206 = vector.load %arg33[%c0_116, %c0_117] : memref<128x128xbf16, #tpu.memory_space<vmem>>, vector<128x128xbf16>
      tpu.vector_store %arg33[%c0_116, %c0_117], %205 {strides = array<i32>} : memref<128x128xbf16, #tpu.memory_space<vmem>>, vector<128x128xbf16>,
      %cst_118 = arith.constant 0xFF800000 : f32
      %207 = vector.broadcast %cst_118 : f32 to vector<128x1xf32>
      %c0_119 = arith.constant 0 : index
      %c0_120 = arith.constant 0 : index
      %208 = vector.load %arg34[%c0_119, %c0_120] : memref<128x1xf32, #tpu.memory_space<vmem>>, vector<128x1xf32>
      tpu.vector_store %arg34[%c0_119, %c0_120], %207 {strides = array<i32>} : memref<128x1xf32, #tpu.memory_space<vmem>>, vector<128x1xf32>,
      %cst_121 = arith.constant 0.000000e+00 : f32
      %209 = vector.broadcast %cst_121 : f32 to vector<128x1xf32>
      %c0_122 = arith.constant 0 : index
      %c0_123 = arith.constant 0 : index
      %210 = vector.load %arg35[%c0_122, %c0_123] : memref<128x1xf32, #tpu.memory_space<vmem>>, vector<128x1xf32>
      tpu.vector_store %arg35[%c0_122, %c0_123], %209 {strides = array<i32>} : memref<128x1xf32, #tpu.memory_space<vmem>>, vector<128x1xf32>,
      %cst_124 = arith.constant 0.000000e+00 : f32
      %211 = vector.broadcast %cst_124 : f32 to vector<128x1xf32>
      %c0_125 = arith.constant 0 : index
      %c0_126 = arith.constant 0 : index
      %212 = vector.load %arg36[%c0_125, %c0_126] : memref<128x1xf32, #tpu.memory_space<vmem>>, vector<128x1xf32>
      tpu.vector_store %arg36[%c0_125, %c0_126], %211 {strides = array<i32>} : memref<128x1xf32, #tpu.memory_space<vmem>>, vector<128x1xf32>,
    } else {
    }
    %c0 = arith.constant 0 : index
    %c0_1 = arith.constant 0 : index
    %c0_2 = arith.constant 0 : index
    %3 = vector.load %arg5[%c0, %c0_1, %c0_2] : memref<1x128x1xi32, #tpu.memory_space<vmem>>, vector<1x128x1xi32>
    %4 = vector.shape_cast %3 : vector<1x128x1xi32> to vector<128x1xi32>
    %c0_3 = arith.constant 0 : index
    %c0_4 = arith.constant 0 : index
    %5 = vector.load %arg33[%c0_3, %c0_4] : memref<128x128xbf16, #tpu.memory_space<vmem>>, vector<128x128xbf16>
    %c0_5 = arith.constant 0 : index
    %c0_6 = arith.constant 0 : index
    %6 = vector.load %arg28[%c0_5, %c0_6] : memref<128x128xbf16, #tpu.memory_space<vmem>>, vector<128x128xbf16>
    %cst = arith.constant dense<0.000000e+00> : vector<128x128xf32>
    %7 = tpu.matmul %5, %6, %cst {dimension_numbers = #tpu.dot_dimension_numbers<[1], [0], [0], [1], [0, 0, 1, 1], [], []>} : vector<128x128xbf16>, vector<128x128xbf16>, vector<128x128xf32> -> vector<128x128xf32>
    %c0_7 = arith.constant 0 : index
    %c0_8 = arith.constant 0 : index
    %8 = vector.load %arg29[%c0_7, %c0_8] : memref<1x128xf32, #tpu.memory_space<vmem>>, vector<1x128xf32>
    %9 = vector.broadcast %8 : vector<1x128xf32> to vector<128x128xf32>
    %10 = arith.addf %7, %9 : vector<128x128xf32>
    %11 = arith.truncf %10 : vector<128x128xf32> to vector<128x128xbf16>
    %c0_9 = arith.constant 0 : index
    %c0_10 = arith.constant 0 : index
    %c0_11 = arith.constant 0 : index
    %12 = vector.load %arg30[%c0_9, %c0_10, %c0_11] : memref<1x128x128xbf16, #tpu.memory_space<vmem>>, vector<1x128x128xbf16>
    %13 = vector.shape_cast %12 : vector<1x128x128xbf16> to vector<128x128xbf16>
    %14 = vector.shape_cast %11 : vector<128x128xbf16> to vector<1x128x128xbf16>
    tpu.vector_store %arg30[%c0_9, %c0_10, %c0_11], %14 {strides = array<i32>} : memref<1x128x128xbf16, #tpu.memory_space<vmem>>, vector<1x128x128xbf16>,
    %c0_12 = arith.constant 0 : index
    %c0_13 = arith.constant 0 : index
    %15 = vector.load %arg34[%c0_12, %c0_13] : memref<128x1xf32, #tpu.memory_space<vmem>>, vector<128x1xf32>
    %cst_14 = arith.constant dense<0xFF800000> : vector<128xf32>
    %16 = vector.multi_reduction <maximumf>, %10, %cst_14 [1] : vector<128x128xf32> to vector<128xf32>
    %17 = vector.shape_cast %16 : vector<128xf32> to vector<128x1xf32>
    %18 = arith.maximumf %15, %17 : vector<128x1xf32>
    %c0_15 = arith.constant 0 : index
    %c0_16 = arith.constant 0 : index
    %19 = vector.load %arg35[%c0_15, %c0_16] : memref<128x1xf32, #tpu.memory_space<vmem>>, vector<128x1xf32>
    %20 = arith.subf %15, %18 : vector<128x1xf32>
    %21 = math.exp %20 : vector<128x1xf32>
    %22 = arith.mulf %19, %21 : vector<128x1xf32>
    %23 = vector.broadcast %18 : vector<128x1xf32> to vector<128x128xf32>
    %24 = arith.subf %10, %23 : vector<128x128xf32>
    %25 = math.exp %24 : vector<128x128xf32>
    %cst_17 = arith.constant dense<0.000000e+00> : vector<128xf32>
    %26 = vector.multi_reduction <add>, %25, %cst_17 [1] : vector<128x128xf32> to vector<128xf32>
    %27 = vector.shape_cast %26 : vector<128xf32> to vector<128x1xf32>
    %28 = arith.addf %22, %27 : vector<128x1xf32>
    %c0_18 = arith.constant 0 : index
    %c0_19 = arith.constant 0 : index
    %29 = vector.load %arg35[%c0_18, %c0_19] : memref<128x1xf32, #tpu.memory_space<vmem>>, vector<128x1xf32>
    tpu.vector_store %arg35[%c0_18, %c0_19], %28 {strides = array<i32>} : memref<128x1xf32, #tpu.memory_space<vmem>>, vector<128x1xf32>,
    %c0_20 = arith.constant 0 : index
    %c0_21 = arith.constant 0 : index
    %30 = vector.load %arg34[%c0_20, %c0_21] : memref<128x1xf32, #tpu.memory_space<vmem>>, vector<128x1xf32>
    tpu.vector_store %arg34[%c0_20, %c0_21], %18 {strides = array<i32>} : memref<128x1xf32, #tpu.memory_space<vmem>>, vector<128x1xf32>,
    %31 = tpu.iota {dimensions = array<i32: 1>} : vector<128x128xi32>
    %c128_i32 = arith.constant 128 : i32
    %32 = arith.muli %arg1, %c128_i32 : i32
    %33 = vector.broadcast %32 : i32 to vector<128x128xi32>
    %34 = arith.addi %31, %33 : vector<128x128xi32>
    %c0_22 = arith.constant 0 : index
    %c0_23 = arith.constant 0 : index
    %35 = vector.load %arg36[%c0_22, %c0_23] : memref<128x1xf32, #tpu.memory_space<vmem>>, vector<128x1xf32>
    %36 = vector.broadcast %4 : vector<128x1xi32> to vector<128x128xi32>
    %37 = arith.cmpi eq, %34, %36 : vector<128x128xi32>
    %cst_24 = arith.constant 0.000000e+00 : f32
    %38 = vector.broadcast %cst_24 : f32 to vector<128x128xf32>
    %39 = arith.select %37, %10, %38 : vector<128x128xi1>, vector<128x128xf32>
    %cst_25 = arith.constant dense<0.000000e+00> : vector<128xf32>
    %40 = vector.multi_reduction <add>, %39, %cst_25 [1] : vector<128x128xf32> to vector<128xf32>
    %41 = vector.shape_cast %40 : vector<128xf32> to vector<128x1xf32>
    %42 = arith.addf %35, %41 : vector<128x1xf32>
    %c0_26 = arith.constant 0 : index
    %c0_27 = arith.constant 0 : index
    %43 = vector.load %arg36[%c0_26, %c0_27] : memref<128x1xf32, #tpu.memory_space<vmem>>, vector<128x1xf32>
    tpu.vector_store %arg36[%c0_26, %c0_27], %42 {strides = array<i32>} : memref<128x1xf32, #tpu.memory_space<vmem>>, vector<128x1xf32>,
    %c1_i32 = arith.constant 1 : i32
    %44 = arith.cmpi eq, %arg1, %c1_i32 : i32
    %45 = arith.extui %44 : i1 to i32
    %c0_i32_28 = arith.constant 0 : i32
    %46 = arith.cmpi ne, %45, %c0_i32_28 : i32
    scf.if %46 {
      %c0_29 = arith.constant 0 : index
      %c0_30 = arith.constant 0 : index
      %47 = vector.load %arg34[%c0_29, %c0_30] : memref<128x1xf32, #tpu.memory_space<vmem>>, vector<128x1xf32>
      %c0_31 = arith.constant 0 : index
      %c0_32 = arith.constant 0 : index
      %48 = vector.load %arg35[%c0_31, %c0_32] : memref<128x1xf32, #tpu.memory_space<vmem>>, vector<128x1xf32>
      %49 = math.log %48 : vector<128x1xf32>
      %50 = arith.addf %47, %49 : vector<128x1xf32>
      %c0_33 = arith.constant 0 : index
      %c0_34 = arith.constant 0 : index
      %51 = vector.load %arg36[%c0_33, %c0_34] : memref<128x1xf32, #tpu.memory_space<vmem>>, vector<128x1xf32>
      %52 = arith.subf %50, %51 : vector<128x1xf32>
      %53 = tpu.iota {dimensions = array<i32: 0>} : vector<128x128xi32>
      %54 = tpu.iota {dimensions = array<i32: 1>} : vector<128x128xi32>
      %55 = arith.cmpi eq, %53, %54 : vector<128x128xi32>
      %cst_35 = arith.constant 0.000000e+00 : f32
      %56 = vector.shape_cast %52 : vector<128x1xf32> to vector<128x1xf32>
      %57 = vector.broadcast %56 : vector<128x1xf32> to vector<128x128xf32>
      %58 = vector.broadcast %cst_35 : f32 to vector<128x128xf32>
      %59 = arith.select %55, %57, %58 : vector<128x128xi1>, vector<128x128xf32>
      %cst_36 = arith.constant dense<0.000000e+00> : vector<128xf32>
      %60 = vector.multi_reduction <add>, %59, %cst_36 [0] : vector<128x128xf32> to vector<128xf32>
      %61 = vector.shape_cast %60 : vector<128xf32> to vector<1x128xf32>
      %c0_37 = arith.constant 0 : index
      %c0_38 = arith.constant 0 : index
      %c0_39 = arith.constant 0 : index
      %62 = vector.load %arg31[%c0_37, %c0_38, %c0_39] : memref<1x1x128xf32, #tpu.memory_space<vmem>>, vector<1x1x128xf32>
      %63 = vector.shape_cast %62 : vector<1x1x128xf32> to vector<1x128xf32>
      %64 = vector.shape_cast %61 : vector<1x128xf32> to vector<1x1x128xf32>
      tpu.vector_store %arg31[%c0_37, %c0_38, %c0_39], %64 {strides = array<i32>} : memref<1x1x128xf32, #tpu.memory_space<vmem>>, vector<1x1x128xf32>,
    } else {
    }
    return
  }
  func.func @transform_0(%arg0: i32, %arg1: i32) -> (i32, i32, i32) {
    %c0_i32 = arith.constant 0 : i32
    %c0_i32_0 = arith.constant 0 : i32
    %c0_i32_1 = arith.constant 0 : i32
    return %arg0, %c0_i32, %c0_i32_0 : i32, i32, i32
  }
  func.func @transform_1(%arg0: i32, %arg1: i32) -> (i32, i32, i32) {
    %c0_i32 = arith.constant 0 : i32
    %c0_i32_0 = arith.constant 0 : i32
    %c0_i32_1 = arith.constant 0 : i32
    return %arg0, %c0_i32, %c0_i32_0 : i32, i32, i32
  }
  func.func @transform_2(%arg0: i32, %arg1: i32) -> (i32, i32, i32) {
    %c0_i32 = arith.constant 0 : i32
    %c0_i32_0 = arith.constant 0 : i32
    %c0_i32_1 = arith.constant 0 : i32
    return %arg0, %c0_i32, %c0_i32_0 : i32, i32, i32
  }
  func.func @transform_3(%arg0: i32, %arg1: i32) -> (i32, i32, i32) {
    %c0_i32 = arith.constant 0 : i32
    %c0_i32_0 = arith.constant 0 : i32
    %c0_i32_1 = arith.constant 0 : i32
    return %arg0, %c0_i32, %c0_i32_0 : i32, i32, i32
  }
  func.func @transform_4(%arg0: i32, %arg1: i32) -> (i32, i32) {
    %c0_i32 = arith.constant 0 : i32
    %c0_i32_0 = arith.constant 0 : i32
    %c0_i32_1 = arith.constant 0 : i32
    return %c0_i32, %c0_i32_0 : i32, i32
  }
  func.func @transform_5(%arg0: i32, %arg1: i32) -> (i32, i32) {
    %c0_i32 = arith.constant 0 : i32
    %c0_i32_0 = arith.constant 0 : i32
    %c0_i32_1 = arith.constant 0 : i32
    return %c0_i32, %c0_i32_0 : i32, i32
  }
  func.func @transform_6(%arg0: i32, %arg1: i32) -> (i32, i32) {
    %c0_i32 = arith.constant 0 : i32
    %c0_i32_0 = arith.constant 0 : i32
    %c0_i32_1 = arith.constant 0 : i32
    return %c0_i32, %c0_i32_0 : i32, i32
  }
  func.func @transform_7(%arg0: i32, %arg1: i32) -> (i32, i32) {
    %c0_i32 = arith.constant 0 : i32
    %c0_i32_0 = arith.constant 0 : i32
    %c0_i32_1 = arith.constant 0 : i32
    return %c0_i32, %c0_i32_0 : i32, i32
  }
  func.func @transform_8(%arg0: i32, %arg1: i32) -> (i32, i32) {
    %c0_i32 = arith.constant 0 : i32
    %c0_i32_0 = arith.constant 0 : i32
    %c0_i32_1 = arith.constant 0 : i32
    return %c0_i32, %c0_i32_0 : i32, i32
  }
  func.func @transform_9(%arg0: i32, %arg1: i32) -> (i32, i32) {
    %c0_i32 = arith.constant 0 : i32
    %c0_i32_0 = arith.constant 0 : i32
    %c0_i32_1 = arith.constant 0 : i32
    return %c0_i32, %c0_i32_0 : i32, i32
  }
  func.func @transform_10(%arg0: i32, %arg1: i32) -> (i32, i32) {
    %c0_i32 = arith.constant 0 : i32
    %c0_i32_0 = arith.constant 0 : i32
    %c0_i32_1 = arith.constant 0 : i32
    return %c0_i32, %c0_i32_0 : i32, i32
  }
  func.func @transform_11(%arg0: i32, %arg1: i32) -> (i32, i32) {
    %c0_i32 = arith.constant 0 : i32
    %c0_i32_0 = arith.constant 0 : i32
    %c0_i32_1 = arith.constant 0 : i32
    return %c0_i32, %c0_i32_0 : i32, i32
  }
  func.func @transform_12(%arg0: i32, %arg1: i32) -> (i32, i32) {
    %c0_i32 = arith.constant 0 : i32
    %c0_i32_0 = arith.constant 0 : i32
    %c0_i32_1 = arith.constant 0 : i32
    return %c0_i32, %c0_i32_0 : i32, i32
  }
  func.func @transform_13(%arg0: i32, %arg1: i32) -> (i32, i32) {
    %c0_i32 = arith.constant 0 : i32
    %c0_i32_0 = arith.constant 0 : i32
    %c0_i32_1 = arith.constant 0 : i32
    return %c0_i32, %c0_i32_0 : i32, i32
  }
  func.func @transform_14(%arg0: i32, %arg1: i32) -> (i32, i32) {
    %c0_i32 = arith.constant 0 : i32
    %c0_i32_0 = arith.constant 0 : i32
    %c0_i32_1 = arith.constant 0 : i32
    return %c0_i32, %c0_i32_0 : i32, i32
  }
  func.func @transform_15(%arg0: i32, %arg1: i32) -> (i32, i32) {
    %c0_i32 = arith.constant 0 : i32
    %c0_i32_0 = arith.constant 0 : i32
    %c0_i32_1 = arith.constant 0 : i32
    return %c0_i32, %c0_i32_0 : i32, i32
  }
  func.func @transform_16(%arg0: i32, %arg1: i32) -> (i32, i32) {
    %c0_i32 = arith.constant 0 : i32
    %c0_i32_0 = arith.constant 0 : i32
    %c0_i32_1 = arith.constant 0 : i32
    return %c0_i32, %c0_i32_0 : i32, i32
  }
  func.func @transform_17(%arg0: i32, %arg1: i32) -> (i32, i32) {
    %c0_i32 = arith.constant 0 : i32
    %c0_i32_0 = arith.constant 0 : i32
    %c0_i32_1 = arith.constant 0 : i32
    return %c0_i32, %c0_i32_0 : i32, i32
  }
  func.func @transform_18(%arg0: i32, %arg1: i32) -> (i32, i32) {
    %c0_i32 = arith.constant 0 : i32
    %c0_i32_0 = arith.constant 0 : i32
    %c0_i32_1 = arith.constant 0 : i32
    return %c0_i32, %c0_i32_0 : i32, i32
  }
  func.func @transform_19(%arg0: i32, %arg1: i32) -> (i32, i32) {
    %c0_i32 = arith.constant 0 : i32
    %c0_i32_0 = arith.constant 0 : i32
    %c0_i32_1 = arith.constant 0 : i32
    return %c0_i32, %c0_i32_0 : i32, i32
  }
  func.func @transform_20(%arg0: i32, %arg1: i32) -> (i32, i32) {
    %c0_i32 = arith.constant 0 : i32
    %c0_i32_0 = arith.constant 0 : i32
    %c0_i32_1 = arith.constant 0 : i32
    return %c0_i32, %c0_i32_0 : i32, i32
  }
  func.func @transform_21(%arg0: i32, %arg1: i32) -> (i32, i32) {
    %c0_i32 = arith.constant 0 : i32
    %c0_i32_0 = arith.constant 0 : i32
    %c0_i32_1 = arith.constant 0 : i32
    return %c0_i32, %c0_i32_0 : i32, i32
  }
  func.func @transform_22(%arg0: i32, %arg1: i32) -> (i32, i32) {
    %c0_i32 = arith.constant 0 : i32
    %c0_i32_0 = arith.constant 0 : i32
    %c0_i32_1 = arith.constant 0 : i32
    return %c0_i32, %c0_i32_0 : i32, i32
  }
  func.func @transform_23(%arg0: i32, %arg1: i32) -> (i32, i32) {
    %c0_i32 = arith.constant 0 : i32
    %c0_i32_0 = arith.constant 0 : i32
    %c0_i32_1 = arith.constant 0 : i32
    return %c0_i32, %c0_i32_0 : i32, i32
  }
  func.func @transform_24(%arg0: i32, %arg1: i32) -> (i32, i32) {
    %c0_i32 = arith.constant 0 : i32
    %c0_i32_0 = arith.constant 0 : i32
    %c0_i32_1 = arith.constant 0 : i32
    return %c0_i32, %c0_i32_0 : i32, i32
  }
  func.func @transform_25(%arg0: i32, %arg1: i32) -> (i32, i32) {
    %c0_i32 = arith.constant 0 : i32
    %c0_i32_0 = arith.constant 0 : i32
    %c0_i32_1 = arith.constant 0 : i32
    return %c0_i32, %c0_i32_0 : i32, i32
  }
  func.func @transform_26(%arg0: i32, %arg1: i32) -> (i32, i32) {
    %c0_i32 = arith.constant 0 : i32
    %c0_i32_0 = arith.constant 0 : i32
    return %c0_i32, %arg1 : i32, i32
  }
  func.func @transform_27(%arg0: i32, %arg1: i32) -> (i32, i32) {
    %c0_i32 = arith.constant 0 : i32
    %c0_i32_0 = arith.constant 0 : i32
    return %c0_i32, %arg1 : i32, i32
  }
  func.func @transform_28(%arg0: i32, %arg1: i32) -> (i32, i32, i32) {
    %c0_i32 = arith.constant 0 : i32
    %c0_i32_0 = arith.constant 0 : i32
    return %arg0, %c0_i32, %arg1 : i32, i32, i32
  }
  func.func @transform_29(%arg0: i32, %arg1: i32) -> (i32, i32, i32) {
    %c0_i32 = arith.constant 0 : i32
    %c0_i32_0 = arith.constant 0 : i32
    %c0_i32_1 = arith.constant 0 : i32
    return %arg0, %c0_i32, %c0_i32_0 : i32, i32, i32
  }
  func.func @transform_30(%arg0: i32, %arg1: i32) -> (i32, i32, i32) {
    %c0_i32 = arith.constant 0 : i32
    %c0_i32_0 = arith.constant 0 : i32
    %c0_i32_1 = arith.constant 0 : i32
    return %arg0, %c0_i32, %c0_i32_0 : i32, i32, i32
  }
}

</mosaic_0001>

<llo_original>
// kernel: joint_orchestrator_forward.3
$region0: #{joint_orchestrator_forward.3}
  #allocation0 [shape = 'u32[]', space=smem, size = 0x4, offset = 0x4, fixed_abs, tag = 'smem constant byte address 0x4 - core index']
  #allocation1 [shape = 'u32[72,128]{1,0:T(1,128)}', space=vmem, size = 0x9000, scoped, tag = 'internal scratch']
  %s0 = inlined_call_operand.vmem [shape: bf16[448,128], index: 0, kind: input, shape index: {}]
  %s1 = inlined_call_operand.vmem [shape: bf16[128,128], index: 1, kind: input, shape index: {}]
  %s2 = inlined_call_operand.vmem [shape: f32[1,128], index: 2, kind: input, shape index: {}]
  %s3 = inlined_call_operand.vmem [shape: bf16[448,128], index: 3, kind: output, shape index: {}]
  %s4 = sld [smem:[#allocation0]]
  $region45: #{joint_orchestrator_forward.3} parent=0
    _
  %s6 = ssub.s32 1, %s4
  %s7 = scalar_select 0, %s6, %s4
  loop: start=0, step=1, limit=9
  $region2: #{joint_orchestrator_forward.3} parent=0 // loop_pre_header
    _
  $region3: #{joint_orchestrator_forward.3} parent=0 // loop_header
    %s9 = sphi 0, %s13
    %p10 = scmp.ge.s32.totalorder %s9, 9
    %s19 = sphi 0, %s21
    %s22 = sphi 0, %s19
    %s23 = sphi 0, %s22
    %s39 = sphi 0, %s23
    %s43 = sphi 0, %s43
    %s45 = sphi 0, %s43
    %s46 = sphi 0, %s45
    %s60 = sphi 0, %s46
    %s64 = sphi 0, %s64
    %s66 = sphi 0, %s64
    %s67 = sphi 0, %s66
    %s81 = sphi 0, %s67
    %s87 = sphi 0, %s89
    %s90 = sphi 0, %s87
    %s91 = sphi 0, %s90
    %s107 = sphi 0, %s91
  $region4: #{joint_orchestrator_forward.3} parent=0 // loop_header_branch
    %12 = sbr.rel (%p10) target = $region8
  $region5: #{joint_orchestrator_forward.3} parent=0 // loop_body
    %s14 = ssub.s32 %s9, 1
    %s15 = ssub.s32 %s9, 2
    %s16 = sadd.s32 %s9, 1
    %s17 = ssub.s32 %s9, %s16
    %p18 = scmp.eq.s32.totalorder %s17, 0
    %s20 = sadd.s32 %s19, 1
    %s21 = scalar_select %p18, %s19, %s20
    %p24 = pneg %p18
    %p25 = scmp.eq.s32.totalorder %s9, 6
    %p26 = por %p24, %p25
    %p27 = scmp.ne.s32.totalorder %s19, %s22
    %p28 = scmp.eq.s32.totalorder %s9, 0
    %p29 = por %p27, %p28
    %p30 = scmp.ne.s32.totalorder %s19, %s22
    %p31 = scmp.eq.s32.totalorder %s14, 6
    %p32 = por %p30, %p31
    %p33 = scmp.ne.s32.totalorder %s22, %s23
    %p34 = scmp.eq.s32.totalorder %s14, 0
    %p35 = por %p33, %p34
    %p36 = scmp.ne.s32.totalorder %s22, %s23
    %p37 = scmp.eq.s32.totalorder %s15, 6
    %p38 = por %p36, %p37
    %p40 = scmp.ne.s32.totalorder %s23, %s39
    %p41 = scmp.eq.s32.totalorder %s15, 0
    %p42 = por %p40, %p41
    %s44 = sadd.s32 %s43, 1
    %p47 = scmp.eq.s32.totalorder %s9, 6
    %p48 = scmp.ne.s32.totalorder %s43, %s45
    %p49 = scmp.eq.s32.totalorder %s9, 0
    %p50 = por %p48, %p49
    %p51 = scmp.ne.s32.totalorder %s43, %s45
    %p52 = scmp.eq.s32.totalorder %s14, 6
    %p53 = por %p51, %p52
    %p54 = scmp.ne.s32.totalorder %s45, %s46
    %p55 = scmp.eq.s32.totalorder %s14, 0
    %p56 = por %p54, %p55
    %p57 = scmp.ne.s32.totalorder %s45, %s46
    %p58 = scmp.eq.s32.totalorder %s15, 6
    %p59 = por %p57, %p58
    %p61 = scmp.ne.s32.totalorder %s46, %s60
    %p62 = scmp.eq.s32.totalorder %s15, 0
    %p63 = por %p61, %p62
    %s65 = sadd.s32 %s64, 1
    %p68 = scmp.eq.s32.totalorder %s9, 6
    %p69 = scmp.ne.s32.totalorder %s64, %s66
    %p70 = scmp.eq.s32.totalorder %s9, 0
    %p71 = por %p69, %p70
    %p72 = scmp.ne.s32.totalorder %s64, %s66
    %p73 = scmp.eq.s32.totalorder %s14, 6
    %p74 = por %p72, %p73
    %p75 = scmp.ne.s32.totalorder %s66, %s67
    %p76 = scmp.eq.s32.totalorder %s14, 0
    %p77 = por %p75, %p76
    %p78 = scmp.ne.s32.totalorder %s66, %s67
    %p79 = scmp.eq.s32.totalorder %s15, 6
    %p80 = por %p78, %p79
    %p82 = scmp.ne.s32.totalorder %s67, %s81
    %p83 = scmp.eq.s32.totalorder %s15, 0
    %p84 = por %p82, %p83
    %s85 = ssub.s32 %s9, %s16
    %p86 = scmp.eq.s32.totalorder %s85, 0
    %s88 = sadd.s32 %s87, 1
    %s89 = scalar_select %p86, %s87, %s88
    %p92 = pneg %p86
    %p93 = scmp.eq.s32.totalorder %s9, 6
    %p94 = por %p92, %p93
    %p95 = scmp.ne.s32.totalorder %s87, %s90
    %p96 = scmp.eq.s32.totalorder %s9, 0
    %p97 = por %p95, %p96
    %p98 = scmp.ne.s32.totalorder %s87, %s90
    %p99 = scmp.eq.s32.totalorder %s14, 6
    %p100 = por %p98, %p99
    %p101 = scmp.ne.s32.totalorder %s90, %s91
    %p102 = scmp.eq.s32.totalorder %s14, 0
    %p103 = por %p101, %p102
    %p104 = scmp.ne.s32.totalorder %s90, %s91
    %p105 = scmp.eq.s32.totalorder %s15, 6
    %p106 = por %p104, %p105
    %p108 = scmp.ne.s32.totalorder %s91, %s107
    %p109 = scmp.eq.s32.totalorder %s15, 0
    %p110 = por %p108, %p109
    %p111 = scmp.le.s32.totalorder 1, %s9
    %p112 = scmp.lt.s32.totalorder %s9, 8
    %p113 = pnand %p111, %p112
    %p114 = pneg %p113
    // Predicated region
    $region9: #{joint_orchestrator_forward.3} parent=5 // pred_check
      _
    $region10: #{joint_orchestrator_forward.3} parent=5 // pred_check_branch
      %116 = sbr.rel (%p113) target = $region12
    $region11: #{joint_orchestrator_forward.3} parent=5 // pred_region
      %s117 = ssub.s32 %s9, 1
      // Predicated region
      $region13: #{joint_orchestrator_forward.3} parent=11 // pred_check
        %p118 = pneg %p56
      $region14: #{joint_orchestrator_forward.3} parent=11 // pred_check_branch
        %120 = sbr.rel (%p118) target = $region16
      $region15: #{joint_orchestrator_forward.3} parent=11 // pred_region
        _
      $region16: #{joint_orchestrator_forward.3} parent=11 // pred_fallthru
        _
      // Predicated region
      $region17: #{joint_orchestrator_forward.3} parent=11 // pred_check
        %p121 = pneg %p77
      $region18: #{joint_orchestrator_forward.3} parent=11 // pred_check_branch
        %123 = sbr.rel (%p121) target = $region20
      $region19: #{joint_orchestrator_forward.3} parent=11 // pred_region
        _
      $region20: #{joint_orchestrator_forward.3} parent=11 // pred_fallthru
        _
    $region12: #{joint_orchestrator_forward.3} parent=5 // pred_fallthru
      _
    %p124 = scmp.lt.s32.totalorder %s9, 7
    // Predicated region
    $region21: #{joint_orchestrator_forward.3} parent=5 // pred_check
      %p125 = pneg %p124
    $region22: #{joint_orchestrator_forward.3} parent=5 // pred_check_branch
      %127 = sbr.rel (%p125) target = $region24
    $region23: #{joint_orchestrator_forward.3} parent=5 // pred_region
      // Predicated region
      $region25: #{joint_orchestrator_forward.3} parent=23 // pred_check
        %p128 = pneg %p29
      $region26: #{joint_orchestrator_forward.3} parent=23 // pred_check_branch
        %130 = sbr.rel (%p128) target = $region28
      $region27: #{joint_orchestrator_forward.3} parent=23 // pred_region
        %s131 = smul.u32 8, %s9
        %p132 = scmp.lt.s32.totalorder %s131, 55
        %s133 = scalar_select %p132, %s131, 55
        %s134 = smul.addr %s133, 4
        %s135 = scalar_lea.vmem %s0, %s134
        %s136 = smul.u32 8, %s9
      $region28: #{joint_orchestrator_forward.3} parent=23 // pred_fallthru
        _
    $region24: #{joint_orchestrator_forward.3} parent=5 // pred_fallthru
      _
    %p137 = scmp.le.s32.totalorder 1, %s9
    %p138 = scmp.lt.s32.totalorder %s9, 8
    %p139 = pnand %p137, %p138
    %p140 = pneg %p139
    // Predicated region
    $region29: #{joint_orchestrator_forward.3} parent=5 // pred_check
      _
    $region30: #{joint_orchestrator_forward.3} parent=5 // pred_check_branch
      %142 = sbr.rel (%p139) target = $region32
    $region31: #{joint_orchestrator_forward.3} parent=5 // pred_region
      %s143 = ssub.s32 %s9, 1
      %s144 = smul.u32 8, %s14
      %p145 = scmp.lt.s32.totalorder %s144, 55
      %s146 = scalar_select %p145, %s144, 55
      %s147 = smul.addr %s146, 4
      %s148 = scalar_lea.vmem %s0, %s147
      %p149 = pneg %p35
      %p150 = pneg %p32
      %p151 = pneg %p56
      %p152 = pneg %p53
      %p153 = pneg %p77
      %p154 = pneg %p74
      %p155 = pneg %p103
      %p156 = pneg %p100
      %s157 = smul.u32 8, %s14
      %p158 = scmp.lt.s32.totalorder %s157, 55
      %s159 = scalar_select %p158, %s157, 55
      %s160 = smul.addr %s159, 4
      %s161 = scalar_lea.vmem %s3, %s160
      %s162 = smul.u32 8, %s14
      %p163 = scmp.lt.s32.totalorder %s162, 55
      %s164 = scalar_select %p163, %s162, 55
      %s165 = smul.addr %s164, 4
      %s166 = scalar_lea.vmem %s0, %s165
      %s167 = smul.u32 8, %s14
      %s168 = smul.u32 8, %s14
      %p169 = scmp.lt.s32.totalorder %s168, 55
      %s170 = scalar_select %p169, %s168, 55
      %s171 = smul.addr %s170, 4
      %s172 = scalar_lea.vmem %s3, %s171
      %s173 = smul.u32 8, %s14
      %v174 = vld [vmem:[%s166] sm:$0xf]
      %v175 = vld [vmem:[%s166 + $0x4] sm:$0xf]
      %v176 = vld [vmem:[%s166 + $0x8] sm:$0xf]
      %v177 = vld [vmem:[%s166 + $0xc] sm:$0xf]
      %v178 = vld [vmem:[%s166 + $0x10] sm:$0xf]
      %v179 = vld [vmem:[%s166 + $0x14] sm:$0xf]
      %v180 = vld [vmem:[%s166 + $0x18] sm:$0xf]
      %v181 = vld [vmem:[%s166 + $0x1c] sm:$0xf]
      %v182 = vld [vmem:[%s1] sm:$0xf]
      %v183 = vld [vmem:[%s1 + $0x4] sm:$0xf]
      %v184 = vld [vmem:[%s1 + $0x8] sm:$0xf]
      %v185 = vld [vmem:[%s1 + $0xc] sm:$0xf]
      %v186 = vld [vmem:[%s1 + $0x10] sm:$0xf]
      %v187 = vld [vmem:[%s1 + $0x14] sm:$0xf]
      %v188 = vld [vmem:[%s1 + $0x18] sm:$0xf]
      %v189 = vld [vmem:[%s1 + $0x1c] sm:$0xf]
      %v190 = vld [vmem:[%s1 + $0x20] sm:$0xf]
      %v191 = vld [vmem:[%s1 + $0x24] sm:$0xf]
      %v192 = vld [vmem:[%s1 + $0x28] sm:$0xf]
      %v193 = vld [vmem:[%s1 + $0x2c] sm:$0xf]
      %v194 = vld [vmem:[%s1 + $0x30] sm:$0xf]
      %v195 = vld [vmem:[%s1 + $0x34] sm:$0xf]
      %v196 = vld [vmem:[%s1 + $0x38] sm:$0xf]
      %v197 = vld [vmem:[%s1 + $0x3c] sm:$0xf]
      %v198 = vld [vmem:[%s2] sm:$0x1]
      %v200 = vperm.slane %v198, 0
      %v210 = vunpack.c.l.b16 %v174
      %v211 = vunpack.c.l.b16 %v175
      %v212 = vunpack.c.l.b16 %v176
      %v213 = vunpack.c.l.b16 %v177
      %v214 = vunpack.c.l.b16 %v178
      %v215 = vunpack.c.l.b16 %v179
      %v216 = vunpack.c.l.b16 %v180
      %v217 = vunpack.c.l.b16 %v181
      %v218 = vpack.c.b16 %v211, %v210
      %v219 = vpack.c.b16 %v213, %v212
      %v220 = vpack.c.b16 %v215, %v214
      %v221 = vpack.c.b16 %v217, %v216
      %v242 = vunpack.c.l.b16 %v182
      %v243 = vunpack.c.l.b16 %v183
      %v244 = vunpack.c.l.b16 %v184
      %v245 = vunpack.c.l.b16 %v185
      %v246 = vunpack.c.l.b16 %v186
      %v247 = vunpack.c.l.b16 %v187
      %v248 = vunpack.c.l.b16 %v188
      %v249 = vunpack.c.l.b16 %v189
      %v250 = vunpack.c.l.b16 %v190
      %v251 = vunpack.c.l.b16 %v191
      %v252 = vunpack.c.l.b16 %v192
      %v253 = vunpack.c.l.b16 %v193
      %v254 = vunpack.c.l.b16 %v194
      %v255 = vunpack.c.l.b16 %v195
      %v256 = vunpack.c.l.b16 %v196
      %v257 = vunpack.c.l.b16 %v197
      %v258 = vpack.c.b16 %v243, %v242
      %v259 = vpack.c.b16 %v245, %v244
      %v260 = vpack.c.b16 %v247, %v246
      %v261 = vpack.c.b16 %v249, %v248
      %v262 = vpack.c.b16 %v251, %v250
      %v263 = vpack.c.b16 %v253, %v252
      %v264 = vpack.c.b16 %v255, %v254
      %v265 = vpack.c.b16 %v257, %v256
      %274 = vmatpush.bf16.msra.mxu0 %v265
      %275 = vmatpush.bf16.msra.mxu0 %v264
      %276 = vmatpush.bf16.msra.mxu0 %v263
      %277 = vmatpush.bf16.msra.mxu0 %v262
      %278 = vmatpush.bf16.msra.mxu0 %v261
      %279 = vmatpush.bf16.msra.mxu0 %v260
      %280 = vmatpush.bf16.msra.mxu0 %v259
      %281 = vmatpush.bf16.msra.mxu0 %v258
      %282 = vmatmul.bf16.gmra.mxu0 %v218
      %v283 = vpop.f32.mrf.mxu0
      %v284 = vadd.f32 %v200, %v283
      %v285 = vpop.f32.mrf.mxu0
      %v286 = vadd.f32 %v200, %v285
      %287 = vmatmul.bf16.gmra.mxu0 %v219
      %v288 = vpop.f32.mrf.mxu0
      %v289 = vadd.f32 %v200, %v288
      %v290 = vpop.f32.mrf.mxu0
      %v291 = vadd.f32 %v200, %v290
      %292 = vmatmul.bf16.gmra.mxu0 %v220
      %v293 = vpop.f32.mrf.mxu0
      %v294 = vadd.f32 %v200, %v293
      %v295 = vpop.f32.mrf.mxu0
      %v296 = vadd.f32 %v200, %v295
      %297 = vmatmul.bf16.gmra.mxu0 %v221
      %v298 = vpop.f32.mrf.mxu0
      %v299 = vadd.f32 %v200, %v298
      %v300 = vpop.f32.mrf.mxu0
      %v301 = vadd.f32 %v200, %v300
      %302 = vdwg.mxu0
      %v303 = vmax.f32 %v284, 0.0
      %v304 = vmax.f32 %v286, 0.0
      %v305 = vmax.f32 %v289, 0.0
      %v306 = vmax.f32 %v291, 0.0
      %v307 = vmax.f32 %v294, 0.0
      %v308 = vmax.f32 %v296, 0.0
      %v309 = vmax.f32 %v299, 0.0
      %v310 = vmax.f32 %v301, 0.0
      %v311 = vpack.c.bf16 %v303, %v303
      %v312 = vpack.c.bf16 %v304, %v304
      %v313 = vpack.c.bf16 %v305, %v305
      %v314 = vpack.c.bf16 %v306, %v306
      %v315 = vpack.c.bf16 %v307, %v307
      %v316 = vpack.c.bf16 %v308, %v308
      %v317 = vpack.c.bf16 %v309, %v309
      %v318 = vpack.c.bf16 %v310, %v310
      %319 = vst [vmem:[%s172] sm:$0xf] %v311
      %320 = vst [vmem:[%s172 + $0x4] sm:$0xf] %v312
      %321 = vst [vmem:[%s172 + $0x8] sm:$0xf] %v313
      %322 = vst [vmem:[%s172 + $0xc] sm:$0xf] %v314
      %323 = vst [vmem:[%s172 + $0x10] sm:$0xf] %v315
      %324 = vst [vmem:[%s172 + $0x14] sm:$0xf] %v316
      %325 = vst [vmem:[%s172 + $0x18] sm:$0xf] %v317
      %326 = vst [vmem:[%s172 + $0x1c] sm:$0xf] %v318
      %s327 = smul.u32 8, %s14
      %p328 = scmp.lt.s32.totalorder %s327, 55
      %s329 = scalar_select %p328, %s327, 55
      %s330 = smul.addr %s329, 4
      %s331 = scalar_lea.vmem %s3, %s330
      // Predicated region
      $region33: #{joint_orchestrator_forward.3} parent=31 // pred_check
        %p332 = pneg %p100
      $region34: #{joint_orchestrator_forward.3} parent=31 // pred_check_branch
        %334 = sbr.rel (%p332) target = $region36
      $region35: #{joint_orchestrator_forward.3} parent=31 // pred_region
        %s335 = smul.u32 8, %s14
      $region36: #{joint_orchestrator_forward.3} parent=31 // pred_fallthru
        _
    $region32: #{joint_orchestrator_forward.3} parent=5 // pred_fallthru
      _
    %p336 = scmp.le.s32.totalorder 2, %s9
    // Predicated region
    $region37: #{joint_orchestrator_forward.3} parent=5 // pred_check
      %p337 = pneg %p336
    $region38: #{joint_orchestrator_forward.3} parent=5 // pred_check_branch
      %339 = sbr.rel (%p337) target = $region40
    $region39: #{joint_orchestrator_forward.3} parent=5 // pred_region
      %s340 = ssub.s32 %s9, 2
      // Predicated region
      $region41: #{joint_orchestrator_forward.3} parent=39 // pred_check
        %p341 = pneg %p106
      $region42: #{joint_orchestrator_forward.3} parent=39 // pred_check_branch
        %343 = sbr.rel (%p341) target = $region44
      $region43: #{joint_orchestrator_forward.3} parent=39 // pred_region
        %s344 = smul.u32 8, %s15
        %p345 = scmp.lt.s32.totalorder %s344, 55
        %s346 = scalar_select %p345, %s344, 55
        %s347 = smul.addr %s346, 4
        %s348 = scalar_lea.vmem %s3, %s347
      $region44: #{joint_orchestrator_forward.3} parent=39 // pred_fallthru
        _
    $region40: #{joint_orchestrator_forward.3} parent=5 // pred_fallthru
      _
  $region6: #{joint_orchestrator_forward.3} parent=0 // loop_footer
    %s13 = sadd.s32 1, %s9
  $region7: #{joint_orchestrator_forward.3} parent=0 // loop_footer_branch
    %8 = sbr.rel target = $region3
  $region8: #{joint_orchestrator_forward.3} parent=0 // loop_exit
    _

// kernel: joint_orchestrator_forward.4
$region0: #{joint_orchestrator_forward.4}
  #allocation0 [shape = 'u32[]', space=smem, size = 0x4, offset = 0x4, fixed_abs, tag = 'smem constant byte address 0x4 - core index']
  #allocation1 [shape = 'u32[72,128]{1,0:T(1,128)}', space=vmem, size = 0x9000, scoped, tag = 'internal scratch']
  %s0 = inlined_call_operand.vmem [shape: bf16[8,8], index: 0, kind: input, shape index: {}]
  %s1 = inlined_call_operand.vmem [shape: bf16[8,128], index: 1, kind: input, shape index: {}]
  %s2 = inlined_call_operand.vmem [shape: bf16[128,128], index: 2, kind: input, shape index: {}]
  %s3 = inlined_call_operand.vmem [shape: f32[1,128], index: 3, kind: input, shape index: {}]
  %s4 = inlined_call_operand.vmem [shape: bf16[128,128], index: 4, kind: input, shape index: {}]
  %s5 = inlined_call_operand.vmem [shape: f32[1,128], index: 5, kind: input, shape index: {}]
  %s6 = inlined_call_operand.vmem [shape: bf16[4,8], index: 6, kind: input, shape index: {}]
  %s7 = inlined_call_operand.vmem [shape: bf16[128,128], index: 7, kind: input, shape index: {}]
  %s8 = inlined_call_operand.vmem [shape: f32[1,128], index: 8, kind: input, shape index: {}]
  %s9 = inlined_call_operand.vmem [shape: bf16[128,2048], index: 9, kind: input, shape index: {}]
  %s10 = inlined_call_operand.vmem [shape: f32[1,2048], index: 10, kind: input, shape index: {}]
  %s11 = inlined_call_operand.vmem [shape: bf16[4,2048], index: 11, kind: output, shape index: {}]
  %s12 = sld [smem:[#allocation0]]
  $region54: #{joint_orchestrator_forward.4} parent=0
    _
  %s14 = ssub.s32 1, %s12
  %s15 = scalar_select 0, %s14, %s12
  // Predicated region
  $region2: #{joint_orchestrator_forward.4} parent=0 // pred_check
    _
  $region3: #{joint_orchestrator_forward.4} parent=0 // pred_check_branch
    %17 = sbr.rel (0) target = $region5
  $region4: #{joint_orchestrator_forward.4} parent=0 // pred_region
    _
  $region5: #{joint_orchestrator_forward.4} parent=0 // pred_fallthru
    _
  // Predicated region
  $region6: #{joint_orchestrator_forward.4} parent=0 // pred_check
    _
  $region7: #{joint_orchestrator_forward.4} parent=0 // pred_check_branch
    %19 = sbr.rel (0) target = $region9
  $region8: #{joint_orchestrator_forward.4} parent=0 // pred_region
    _
  $region9: #{joint_orchestrator_forward.4} parent=0 // pred_fallthru
    _
  // Predicated region
  $region10: #{joint_orchestrator_forward.4} parent=0 // pred_check
    _
  $region11: #{joint_orchestrator_forward.4} parent=0 // pred_check_branch
    %21 = sbr.rel (0) target = $region13
  $region12: #{joint_orchestrator_forward.4} parent=0 // pred_region
    _
  $region13: #{joint_orchestrator_forward.4} parent=0 // pred_fallthru
    _
  // Predicated region
  $region14: #{joint_orchestrator_forward.4} parent=0 // pred_check
    _
  $region15: #{joint_orchestrator_forward.4} parent=0 // pred_check_branch
    %23 = sbr.rel (0) target = $region17
  $region16: #{joint_orchestrator_forward.4} parent=0 // pred_region
    _
  $region17: #{joint_orchestrator_forward.4} parent=0 // pred_fallthru
    _
  // Predicated region
  $region18: #{joint_orchestrator_forward.4} parent=0 // pred_check
    _
  $region19: #{joint_orchestrator_forward.4} parent=0 // pred_check_branch
    %25 = sbr.rel (0) target = $region21
  $region20: #{joint_orchestrator_forward.4} parent=0 // pred_region
    _
  $region21: #{joint_orchestrator_forward.4} parent=0 // pred_fallthru
    _
  // Predicated region
  $region22: #{joint_orchestrator_forward.4} parent=0 // pred_check
    _
  $region23: #{joint_orchestrator_forward.4} parent=0 // pred_check_branch
    %27 = sbr.rel (0) target = $region25
  $region24: #{joint_orchestrator_forward.4} parent=0 // pred_region
    _
  $region25: #{joint_orchestrator_forward.4} parent=0 // pred_fallthru
    _
  // Predicated region
  $region26: #{joint_orchestrator_forward.4} parent=0 // pred_check
    _
  $region27: #{joint_orchestrator_forward.4} parent=0 // pred_check_branch
    %29 = sbr.rel (0) target = $region29
  $region28: #{joint_orchestrator_forward.4} parent=0 // pred_region
    _
  $region29: #{joint_orchestrator_forward.4} parent=0 // pred_fallthru
    _
  // Predicated region
  $region30: #{joint_orchestrator_forward.4} parent=0 // pred_check
    _
  $region31: #{joint_orchestrator_forward.4} parent=0 // pred_check_branch
    %31 = sbr.rel (0) target = $region33
  $region32: #{joint_orchestrator_forward.4} parent=0 // pred_region
    _
  $region33: #{joint_orchestrator_forward.4} parent=0 // pred_fallthru
    _
  // Predicated region
  $region34: #{joint_orchestrator_forward.4} parent=0 // pred_check
    _
  $region35: #{joint_orchestrator_forward.4} parent=0 // pred_check_branch
    %33 = sbr.rel (0) target = $region37
  $region36: #{joint_orchestrator_forward.4} parent=0 // pred_region
    _
  $region37: #{joint_orchestrator_forward.4} parent=0 // pred_fallthru
    _
  // Predicated region
  $region38: #{joint_orchestrator_forward.4} parent=0 // pred_check
    _
  $region39: #{joint_orchestrator_forward.4} parent=0 // pred_check_branch
    %35 = sbr.rel (0) target = $region41
  $region40: #{joint_orchestrator_forward.4} parent=0 // pred_region
    _
  $region41: #{joint_orchestrator_forward.4} parent=0 // pred_fallthru
    _
  // Predicated region
  $region42: #{joint_orchestrator_forward.4} parent=0 // pred_check
    _
  $region43: #{joint_orchestrator_forward.4} parent=0 // pred_check_branch
    %37 = sbr.rel (0) target = $region45
  $region44: #{joint_orchestrator_forward.4} parent=0 // pred_region
    _
  $region45: #{joint_orchestrator_forward.4} parent=0 // pred_fallthru
    _
  %v39 = vld [vmem:[%s0] sm:$0xf]
  %v40 = vld [vmem:[%s1] sm:$0xf]
  %vm41 = vcmask 64512
  %v43 = vsel %vm41, %v39, 0
  %vm45 = vcmask 1043456
  %v47 = vsel %vm45, %v40, 0
  %49 = vmatpush.bf16.msra.mxu0 0
  %50 = vmatpush.bf16.msra.mxu0 0
  %51 = vmatpush.bf16.msra.mxu0 0
  %52 = vmatpush.bf16.msra.mxu0 0
  %53 = vmatpush.bf16.msra.mxu0 0
  %54 = vmatpush.bf16.msra.mxu0 0
  %55 = vmatpush.bf16.msra.mxu0 0
  %56 = vmatpush.bf16.msra.mxu0 %v47
  %57 = vmatmul.bf16.gmra.mxu0 %v43
  %v58 = vpop.f32.mrf.mxu0
  %v59 = vadd.f32 0.0, %v58
  %v60 = vpop.f32.mrf.mxu0
  %61 = vdwg.mxu0
  %v62 = vpack.c.bf16 %v59, %v59
  %v63 = vld [vmem:[%s2] sm:$0xf]
  %v64 = vld [vmem:[%s2 + $0x4] sm:$0xf]
  %v65 = vld [vmem:[%s2 + $0x8] sm:$0xf]
  %v66 = vld [vmem:[%s2 + $0xc] sm:$0xf]
  %v67 = vld [vmem:[%s2 + $0x10] sm:$0xf]
  %v68 = vld [vmem:[%s2 + $0x14] sm:$0xf]
  %v69 = vld [vmem:[%s2 + $0x18] sm:$0xf]
  %v70 = vld [vmem:[%s2 + $0x1c] sm:$0xf]
  %v71 = vld [vmem:[%s2 + $0x20] sm:$0xf]
  %v72 = vld [vmem:[%s2 + $0x24] sm:$0xf]
  %v73 = vld [vmem:[%s2 + $0x28] sm:$0xf]
  %v74 = vld [vmem:[%s2 + $0x2c] sm:$0xf]
  %v75 = vld [vmem:[%s2 + $0x30] sm:$0xf]
  %v76 = vld [vmem:[%s2 + $0x34] sm:$0xf]
  %v77 = vld [vmem:[%s2 + $0x38] sm:$0xf]
  %v78 = vld [vmem:[%s2 + $0x3c] sm:$0xf]
  %v79 = vld [vmem:[%s3] sm:$0x1]
  %v81 = vperm.slane %v79, 0
  %v99 = vunpack.c.l.b16 %v63
  %v100 = vunpack.c.l.b16 %v64
  %v101 = vunpack.c.l.b16 %v65
  %v102 = vunpack.c.l.b16 %v66
  %v103 = vunpack.c.l.b16 %v67
  %v104 = vunpack.c.l.b16 %v68
  %v105 = vunpack.c.l.b16 %v69
  %v106 = vunpack.c.l.b16 %v70
  %v107 = vunpack.c.l.b16 %v71
  %v108 = vunpack.c.l.b16 %v72
  %v109 = vunpack.c.l.b16 %v73
  %v110 = vunpack.c.l.b16 %v74
  %v111 = vunpack.c.l.b16 %v75
  %v112 = vunpack.c.l.b16 %v76
  %v113 = vunpack.c.l.b16 %v77
  %v114 = vunpack.c.l.b16 %v78
  %v115 = vpack.c.b16 %v100, %v99
  %v116 = vpack.c.b16 %v102, %v101
  %v117 = vpack.c.b16 %v104, %v103
  %v118 = vpack.c.b16 %v106, %v105
  %v119 = vpack.c.b16 %v108, %v107
  %v120 = vpack.c.b16 %v110, %v109
  %v121 = vpack.c.b16 %v112, %v111
  %v122 = vpack.c.b16 %v114, %v113
  %131 = vmatpush.bf16.msra.mxu0 %v122
  %132 = vmatpush.bf16.msra.mxu0 %v121
  %133 = vmatpush.bf16.msra.mxu0 %v120
  %134 = vmatpush.bf16.msra.mxu0 %v119
  %135 = vmatpush.bf16.msra.mxu0 %v118
  %136 = vmatpush.bf16.msra.mxu0 %v117
  %137 = vmatpush.bf16.msra.mxu0 %v116
  %138 = vmatpush.bf16.msra.mxu0 %v115
  %139 = vmatmul.bf16.gmra.mxu0 %v62
  %v140 = vpop.f32.mrf.mxu0
  %v141 = vadd.f32 %v81, %v140
  %v142 = vpop.f32.mrf.mxu0
  %143 = vdwg.mxu0
  %v144 = vmax.f32 %v141, 0.0
  %v145 = vpack.c.bf16 %v144, %v144
  %v147 = vsel %vm45, %v145, 0
  %149 = vmatpush.bf16.msra.mxu0 0
  %150 = vmatpush.bf16.msra.mxu0 0
  %151 = vmatpush.bf16.msra.mxu0 0
  %152 = vmatpush.bf16.msra.mxu0 0
  %153 = vmatpush.bf16.msra.mxu0 0
  %154 = vmatpush.bf16.msra.mxu0 0
  %155 = vmatpush.bf16.msra.mxu0 0
  %156 = vmatpush.bf16.msra.mxu0 %v147
  %157 = vmatmul.bf16.gmra.mxu0 %v43
  %v158 = vpop.f32.mrf.mxu0
  %v159 = vadd.f32 0.0, %v158
  %v160 = vpop.f32.mrf.mxu0
  %161 = vdwg.mxu0
  %v162 = vpack.c.bf16 %v159, %v159
  %v163 = vld [vmem:[%s4] sm:$0xf]
  %v164 = vld [vmem:[%s4 + $0x4] sm:$0xf]
  %v165 = vld [vmem:[%s4 + $0x8] sm:$0xf]
  %v166 = vld [vmem:[%s4 + $0xc] sm:$0xf]
  %v167 = vld [vmem:[%s4 + $0x10] sm:$0xf]
  %v168 = vld [vmem:[%s4 + $0x14] sm:$0xf]
  %v169 = vld [vmem:[%s4 + $0x18] sm:$0xf]
  %v170 = vld [vmem:[%s4 + $0x1c] sm:$0xf]
  %v171 = vld [vmem:[%s4 + $0x20] sm:$0xf]
  %v172 = vld [vmem:[%s4 + $0x24] sm:$0xf]
  %v173 = vld [vmem:[%s4 + $0x28] sm:$0xf]
  %v174 = vld [vmem:[%s4 + $0x2c] sm:$0xf]
  %v175 = vld [vmem:[%s4 + $0x30] sm:$0xf]
  %v176 = vld [vmem:[%s4 + $0x34] sm:$0xf]
  %v177 = vld [vmem:[%s4 + $0x38] sm:$0xf]
  %v178 = vld [vmem:[%s4 + $0x3c] sm:$0xf]
  %v179 = vld [vmem:[%s5] sm:$0x1]
  %v181 = vperm.slane %v179, 0
  %v199 = vunpack.c.l.b16 %v163
  %v200 = vunpack.c.l.b16 %v164
  %v201 = vunpack.c.l.b16 %v165
  %v202 = vunpack.c.l.b16 %v166
  %v203 = vunpack.c.l.b16 %v167
  %v204 = vunpack.c.l.b16 %v168
  %v205 = vunpack.c.l.b16 %v169
  %v206 = vunpack.c.l.b16 %v170
  %v207 = vunpack.c.l.b16 %v171
  %v208 = vunpack.c.l.b16 %v172
  %v209 = vunpack.c.l.b16 %v173
  %v210 = vunpack.c.l.b16 %v174
  %v211 = vunpack.c.l.b16 %v175
  %v212 = vunpack.c.l.b16 %v176
  %v213 = vunpack.c.l.b16 %v177
  %v214 = vunpack.c.l.b16 %v178
  %v215 = vpack.c.b16 %v200, %v199
  %v216 = vpack.c.b16 %v202, %v201
  %v217 = vpack.c.b16 %v204, %v203
  %v218 = vpack.c.b16 %v206, %v205
  %v219 = vpack.c.b16 %v208, %v207
  %v220 = vpack.c.b16 %v210, %v209
  %v221 = vpack.c.b16 %v212, %v211
  %v222 = vpack.c.b16 %v214, %v213
  %231 = vmatpush.bf16.msra.mxu0 %v222
  %232 = vmatpush.bf16.msra.mxu0 %v221
  %233 = vmatpush.bf16.msra.mxu0 %v220
  %234 = vmatpush.bf16.msra.mxu0 %v219
  %235 = vmatpush.bf16.msra.mxu0 %v218
  %236 = vmatpush.bf16.msra.mxu0 %v217
  %237 = vmatpush.bf16.msra.mxu0 %v216
  %238 = vmatpush.bf16.msra.mxu0 %v215
  %239 = vmatmul.bf16.gmra.mxu0 %v162
  %v240 = vpop.f32.mrf.mxu0
  %v241 = vadd.f32 %v181, %v240
  %v242 = vpop.f32.mrf.mxu0
  %243 = vdwg.mxu0
  %v244 = vmax.f32 %v241, 0.0
  %v245 = vld [vmem:[%s6] sm:$0x3]
  %v246 = vpack.c.bf16 %v244, %v244
  %v248 = vsel %vm41, %v245, 0
  %v251 = vsel %vm45, %v246, 0
  %253 = vmatpush.bf16.msra.mxu0 0
  %254 = vmatpush.bf16.msra.mxu0 0
  %255 = vmatpush.bf16.msra.mxu0 0
  %256 = vmatpush.bf16.msra.mxu0 0
  %257 = vmatpush.bf16.msra.mxu0 0
  %258 = vmatpush.bf16.msra.mxu0 0
  %259 = vmatpush.bf16.msra.mxu0 0
  %260 = vmatpush.bf16.msra.mxu0 %v251
  %261 = vmatmul.bf16.gmra.mxu0 %v248
  %v262 = vpop.f32.mrf.mxu0
  %v263 = vadd.f32 0.0, %v262
  %v264 = vpop.f32.mrf.mxu0
  %265 = vdwg.mxu0
  %v266 = vpack.c.bf16 %v263, %v263
  %v267 = vld [vmem:[%s7] sm:$0xf]
  %v268 = vld [vmem:[%s7 + $0x4] sm:$0xf]
  %v269 = vld [vmem:[%s7 + $0x8] sm:$0xf]
  %v270 = vld [vmem:[%s7 + $0xc] sm:$0xf]
  %v271 = vld [vmem:[%s7 + $0x10] sm:$0xf]
  %v272 = vld [vmem:[%s7 + $0x14] sm:$0xf]
  %v273 = vld [vmem:[%s7 + $0x18] sm:$0xf]
  %v274 = vld [vmem:[%s7 + $0x1c] sm:$0xf]
  %v275 = vld [vmem:[%s7 + $0x20] sm:$0xf]
  %v276 = vld [vmem:[%s7 + $0x24] sm:$0xf]
  %v277 = vld [vmem:[%s7 + $0x28] sm:$0xf]
  %v278 = vld [vmem:[%s7 + $0x2c] sm:$0xf]
  %v279 = vld [vmem:[%s7 + $0x30] sm:$0xf]
  %v280 = vld [vmem:[%s7 + $0x34] sm:$0xf]
  %v281 = vld [vmem:[%s7 + $0x38] sm:$0xf]
  %v282 = vld [vmem:[%s7 + $0x3c] sm:$0xf]
  %v283 = vld [vmem:[%s8] sm:$0x1]
  %v285 = vperm.slane %v283, 0
  %v303 = vunpack.c.l.b16 %v267
  %v304 = vunpack.c.l.b16 %v268
  %v305 = vunpack.c.l.b16 %v269
  %v306 = vunpack.c.l.b16 %v270
  %v307 = vunpack.c.l.b16 %v271
  %v308 = vunpack.c.l.b16 %v272
  %v309 = vunpack.c.l.b16 %v273
  %v310 = vunpack.c.l.b16 %v274
  %v311 = vunpack.c.l.b16 %v275
  %v312 = vunpack.c.l.b16 %v276
  %v313 = vunpack.c.l.b16 %v277
  %v314 = vunpack.c.l.b16 %v278
  %v315 = vunpack.c.l.b16 %v279
  %v316 = vunpack.c.l.b16 %v280
  %v317 = vunpack.c.l.b16 %v281
  %v318 = vunpack.c.l.b16 %v282
  %v319 = vpack.c.b16 %v304, %v303
  %v320 = vpack.c.b16 %v306, %v305
  %v321 = vpack.c.b16 %v308, %v307
  %v322 = vpack.c.b16 %v310, %v309
  %v323 = vpack.c.b16 %v312, %v311
  %v324 = vpack.c.b16 %v314, %v313
  %v325 = vpack.c.b16 %v316, %v315
  %v326 = vpack.c.b16 %v318, %v317
  %335 = vmatpush.bf16.msra.mxu0 %v326
  %336 = vmatpush.bf16.msra.mxu0 %v325
  %337 = vmatpush.bf16.msra.mxu0 %v324
  %338 = vmatpush.bf16.msra.mxu0 %v323
  %339 = vmatpush.bf16.msra.mxu0 %v322
  %340 = vmatpush.bf16.msra.mxu0 %v321
  %341 = vmatpush.bf16.msra.mxu0 %v320
  %342 = vmatpush.bf16.msra.mxu0 %v319
  %343 = vmatmul.bf16.gmra.mxu0 %v266
  %v344 = vpop.f32.mrf.mxu0
  %v345 = vadd.f32 %v285, %v344
  %v346 = vpop.f32.mrf.mxu0
  %347 = vdwg.mxu0
  %v348 = vmax.f32 %v345, 0.0
  %v349 = vpack.c.bf16 %v348, %v348
  %v350 = vld [vmem:[%s9] sm:$0xff]
  %v351 = vld [vmem:[%s9 + $0x8] sm:$0xff]
  %v352 = vld [vmem:[%s9 + $0x10] sm:$0xff]
  %v353 = vld [vmem:[%s9 + $0x18] sm:$0xff]
  %v354 = vld [vmem:[%s9 + $0x20] sm:$0xff]
  %v355 = vld [vmem:[%s9 + $0x28] sm:$0xff]
  %v356 = vld [vmem:[%s9 + $0x30] sm:$0xff]
  %v357 = vld [vmem:[%s9 + $0x38] sm:$0xff]
  %v358 = vld [vmem:[%s9 + $0x40] sm:$0xff]
  %v359 = vld [vmem:[%s9 + $0x48] sm:$0xff]
  %v360 = vld [vmem:[%s9 + $0x50] sm:$0xff]
  %v361 = vld [vmem:[%s9 + $0x58] sm:$0xff]
  %v362 = vld [vmem:[%s9 + $0x60] sm:$0xff]
  %v363 = vld [vmem:[%s9 + $0x68] sm:$0xff]
  %v364 = vld [vmem:[%s9 + $0x70] sm:$0xff]
  %v365 = vld [vmem:[%s9 + $0x78] sm:$0xff]
  %v366 = vld [vmem:[%s9 + $0x80] sm:$0xff]
  %v367 = vld [vmem:[%s9 + $0x88] sm:$0xff]
  %v368 = vld [vmem:[%s9 + $0x90] sm:$0xff]
  %v369 = vld [vmem:[%s9 + $0x98] sm:$0xff]
  %v370 = vld [vmem:[%s9 + $0xa0] sm:$0xff]
  %v371 = vld [vmem:[%s9 + $0xa8] sm:$0xff]
  %v372 = vld [vmem:[%s9 + $0xb0] sm:$0xff]
  %v373 = vld [vmem:[%s9 + $0xb8] sm:$0xff]
  %v374 = vld [vmem:[%s9 + $0xc0] sm:$0xff]
  %v375 = vld [vmem:[%s9 + $0xc8] sm:$0xff]
  %v376 = vld [vmem:[%s9 + $0xd0] sm:$0xff]
  %v377 = vld [vmem:[%s9 + $0xd8] sm:$0xff]
  %v378 = vld [vmem:[%s9 + $0xe0] sm:$0xff]
  %v379 = vld [vmem:[%s9 + $0xe8] sm:$0xff]
  %v380 = vld [vmem:[%s9 + $0xf0] sm:$0xff]
  %v381 = vld [vmem:[%s9 + $0xf8] sm:$0xff]
  %v382 = vld [vmem:[%s9 + $0x100] sm:$0xff]
  %v383 = vld [vmem:[%s9 + $0x108] sm:$0xff]
  %v384 = vld [vmem:[%s9 + $0x110] sm:$0xff]
  %v385 = vld [vmem:[%s9 + $0x118] sm:$0xff]
  %v386 = vld [vmem:[%s9 + $0x120] sm:$0xff]
  %v387 = vld [vmem:[%s9 + $0x128] sm:$0xff]
  %v388 = vld [vmem:[%s9 + $0x130] sm:$0xff]
  %v389 = vld [vmem:[%s9 + $0x138] sm:$0xff]
  %v390 = vld [vmem:[%s9 + $0x140] sm:$0xff]
  %v391 = vld [vmem:[%s9 + $0x148] sm:$0xff]
  %v392 = vld [vmem:[%s9 + $0x150] sm:$0xff]
  %v393 = vld [vmem:[%s9 + $0x158] sm:$0xff]
  %v394 = vld [vmem:[%s9 + $0x160] sm:$0xff]
  %v395 = vld [vmem:[%s9 + $0x168] sm:$0xff]
  %v396 = vld [vmem:[%s9 + $0x170] sm:$0xff]
  %v397 = vld [vmem:[%s9 + $0x178] sm:$0xff]
  %v398 = vld [vmem:[%s9 + $0x180] sm:$0xff]
  %v399 = vld [vmem:[%s9 + $0x188] sm:$0xff]
  %v400 = vld [vmem:[%s9 + $0x190] sm:$0xff]
  %v401 = vld [vmem:[%s9 + $0x198] sm:$0xff]
  %v402 = vld [vmem:[%s9 + $0x1a0] sm:$0xff]
  %v403 = vld [vmem:[%s9 + $0x1a8] sm:$0xff]
  %v404 = vld [vmem:[%s9 + $0x1b0] sm:$0xff]
  %v405 = vld [vmem:[%s9 + $0x1b8] sm:$0xff]
  %v406 = vld [vmem:[%s9 + $0x1c0] sm:$0xff]
  %v407 = vld [vmem:[%s9 + $0x1c8] sm:$0xff]
  %v408 = vld [vmem:[%s9 + $0x1d0] sm:$0xff]
  %v409 = vld [vmem:[%s9 + $0x1d8] sm:$0xff]
  %v410 = vld [vmem:[%s9 + $0x1e0] sm:$0xff]
  %v411 = vld [vmem:[%s9 + $0x1e8] sm:$0xff]
  %v412 = vld [vmem:[%s9 + $0x1f0] sm:$0xff]
  %v413 = vld [vmem:[%s9 + $0x1f8] sm:$0xff]
  %v414 = vld [vmem:[%s9 + $0x200] sm:$0xff]
  %v415 = vld [vmem:[%s9 + $0x208] sm:$0xff]
  %v416 = vld [vmem:[%s9 + $0x210] sm:$0xff]
  %v417 = vld [vmem:[%s9 + $0x218] sm:$0xff]
  %v418 = vld [vmem:[%s9 + $0x220] sm:$0xff]
  %v419 = vld [vmem:[%s9 + $0x228] sm:$0xff]
  %v420 = vld [vmem:[%s9 + $0x230] sm:$0xff]
  %v421 = vld [vmem:[%s9 + $0x238] sm:$0xff]
  %v422 = vld [vmem:[%s9 + $0x240] sm:$0xff]
  %v423 = vld [vmem:[%s9 + $0x248] sm:$0xff]
  %v424 = vld [vmem:[%s9 + $0x250] sm:$0xff]
  %v425 = vld [vmem:[%s9 + $0x258] sm:$0xff]
  %v426 = vld [vmem:[%s9 + $0x260] sm:$0xff]
  %v427 = vld [vmem:[%s9 + $0x268] sm:$0xff]
  %v428 = vld [vmem:[%s9 + $0x270] sm:$0xff]
  %v429 = vld [vmem:[%s9 + $0x278] sm:$0xff]
  %v430 = vld [vmem:[%s9 + $0x280] sm:$0xff]
  %v431 = vld [vmem:[%s9 + $0x288] sm:$0xff]
  %v432 = vld [vmem:[%s9 + $0x290] sm:$0xff]
  %v433 = vld [vmem:[%s9 + $0x298] sm:$0xff]
  %v434 = vld [vmem:[%s9 + $0x2a0] sm:$0xff]
  %v435 = vld [vmem:[%s9 + $0x2a8] sm:$0xff]
  %v436 = vld [vmem:[%s9 + $0x2b0] sm:$0xff]
  %v437 = vld [vmem:[%s9 + $0x2b8] sm:$0xff]
  %v438 = vld [vmem:[%s9 + $0x2c0] sm:$0xff]
  %v439 = vld [vmem:[%s9 + $0x2c8] sm:$0xff]
  %v440 = vld [vmem:[%s9 + $0x2d0] sm:$0xff]
  %v441 = vld [vmem:[%s9 + $0x2d8] sm:$0xff]
  %v442 = vld [vmem:[%s9 + $0x2e0] sm:$0xff]
  %v443 = vld [vmem:[%s9 + $0x2e8] sm:$0xff]
  %v444 = vld [vmem:[%s9 + $0x2f0] sm:$0xff]
  %v445 = vld [vmem:[%s9 + $0x2f8] sm:$0xff]
  %v446 = vld [vmem:[%s9 + $0x300] sm:$0xff]
  %v447 = vld [vmem:[%s9 + $0x308] sm:$0xff]
  %v448 = vld [vmem:[%s9 + $0x310] sm:$0xff]
  %v449 = vld [vmem:[%s9 + $0x318] sm:$0xff]
  %v450 = vld [vmem:[%s9 + $0x320] sm:$0xff]
  %v451 = vld [vmem:[%s9 + $0x328] sm:$0xff]
  %v452 = vld [vmem:[%s9 + $0x330] sm:$0xff]
  %v453 = vld [vmem:[%s9 + $0x338] sm:$0xff]
  %v454 = vld [vmem:[%s9 + $0x340] sm:$0xff]
  %v455 = vld [vmem:[%s9 + $0x348] sm:$0xff]
  %v456 = vld [vmem:[%s9 + $0x350] sm:$0xff]
  %v457 = vld [vmem:[%s9 + $0x358] sm:$0xff]
  %v458 = vld [vmem:[%s9 + $0x360] sm:$0xff]
  %v459 = vld [vmem:[%s9 + $0x368] sm:$0xff]
  %v460 = vld [vmem:[%s9 + $0x370] sm:$0xff]
  %v461 = vld [vmem:[%s9 + $0x378] sm:$0xff]
  %v462 = vld [vmem:[%s9 + $0x380] sm:$0xff]
  %v463 = vld [vmem:[%s9 + $0x388] sm:$0xff]
  %v464 = vld [vmem:[%s9 + $0x390] sm:$0xff]
  %v465 = vld [vmem:[%s9 + $0x398] sm:$0xff]
  %v466 = vld [vmem:[%s9 + $0x3a0] sm:$0xff]
  %v467 = vld [vmem:[%s9 + $0x3a8] sm:$0xff]
  %v468 = vld [vmem:[%s9 + $0x3b0] sm:$0xff]
  %v469 = vld [vmem:[%s9 + $0x3b8] sm:$0xff]
  %v470 = vld [vmem:[%s9 + $0x3c0] sm:$0xff]
  %v471 = vld [vmem:[%s9 + $0x3c8] sm:$0xff]
  %v472 = vld [vmem:[%s9 + $0x3d0] sm:$0xff]
  %v473 = vld [vmem:[%s9 + $0x3d8] sm:$0xff]
  %v474 = vld [vmem:[%s9 + $0x3e0] sm:$0xff]
  %v475 = vld [vmem:[%s9 + $0x3e8] sm:$0xff]
  %v476 = vld [vmem:[%s9 + $0x3f0] sm:$0xff]
  %v477 = vld [vmem:[%s9 + $0x3f8] sm:$0xff]
  %v478 = vld [vmem:[%s10] sm:$0xff]
  %v479 = vld [vmem:[%s10 + $0x8] sm:$0xff]
  %v482 = vperm.slane %v478, 0
  %v483 = vperm.slane %v478, 1
  %v484 = vperm.slane %v478, 2
  %v485 = vperm.slane %v478, 3
  %v486 = vperm.slane %v478, 4
  %v487 = vperm.slane %v478, 5
  %v488 = vperm.slane %v478, 6
  %v489 = vperm.slane %v478, 7
  %v490 = vperm.slane %v479, 0
  %v491 = vperm.slane %v479, 1
  %v492 = vperm.slane %v479, 2
  %v493 = vperm.slane %v479, 3
  %v494 = vperm.slane %v479, 4
  %v495 = vperm.slane %v479, 5
  %v496 = vperm.slane %v479, 6
  %v497 = vperm.slane %v479, 7
  %v642 = vunpack.c.l.b16 %v350
  %v643 = vunpack.c.h.b16 %v350
  %v644 = vunpack.c.l.b16 %v351
  %v645 = vunpack.c.h.b16 %v351
  %v646 = vunpack.c.l.b16 %v352
  %v647 = vunpack.c.h.b16 %v352
  %v648 = vunpack.c.l.b16 %v353
  %v649 = vunpack.c.h.b16 %v353
  %v650 = vunpack.c.l.b16 %v354
  %v651 = vunpack.c.h.b16 %v354
  %v652 = vunpack.c.l.b16 %v355
  %v653 = vunpack.c.h.b16 %v355
  %v654 = vunpack.c.l.b16 %v356
  %v655 = vunpack.c.h.b16 %v356
  %v656 = vunpack.c.l.b16 %v357
  %v657 = vunpack.c.h.b16 %v357
  %v658 = vunpack.c.l.b16 %v358
  %v659 = vunpack.c.h.b16 %v358
  %v660 = vunpack.c.l.b16 %v359
  %v661 = vunpack.c.h.b16 %v359
  %v662 = vunpack.c.l.b16 %v360
  %v663 = vunpack.c.h.b16 %v360
  %v664 = vunpack.c.l.b16 %v361
  %v665 = vunpack.c.h.b16 %v361
  %v666 = vunpack.c.l.b16 %v362
  %v667 = vunpack.c.h.b16 %v362
  %v668 = vunpack.c.l.b16 %v363
  %v669 = vunpack.c.h.b16 %v363
  %v670 = vunpack.c.l.b16 %v364
  %v671 = vunpack.c.h.b16 %v364
  %v672 = vunpack.c.l.b16 %v365
  %v673 = vunpack.c.h.b16 %v365
  %v674 = vunpack.c.l.b16 %v366
  %v675 = vunpack.c.h.b16 %v366
  %v676 = vunpack.c.l.b16 %v367
  %v677 = vunpack.c.h.b16 %v367
  %v678 = vunpack.c.l.b16 %v368
  %v679 = vunpack.c.h.b16 %v368
  %v680 = vunpack.c.l.b16 %v369
  %v681 = vunpack.c.h.b16 %v369
  %v682 = vunpack.c.l.b16 %v370
  %v683 = vunpack.c.h.b16 %v370
  %v684 = vunpack.c.l.b16 %v371
  %v685 = vunpack.c.h.b16 %v371
  %v686 = vunpack.c.l.b16 %v372
  %v687 = vunpack.c.h.b16 %v372
  %v688 = vunpack.c.l.b16 %v373
  %v689 = vunpack.c.h.b16 %v373
  %v690 = vunpack.c.l.b16 %v374
  %v691 = vunpack.c.h.b16 %v374
  %v692 = vunpack.c.l.b16 %v375
  %v693 = vunpack.c.h.b16 %v375
  %v694 = vunpack.c.l.b16 %v376
  %v695 = vunpack.c.h.b16 %v376
  %v696 = vunpack.c.l.b16 %v377
  %v697 = vunpack.c.h.b16 %v377
  %v698 = vunpack.c.l.b16 %v378
  %v699 = vunpack.c.h.b16 %v378
  %v700 = vunpack.c.l.b16 %v379
  %v701 = vunpack.c.h.b16 %v379
  %v702 = vunpack.c.l.b16 %v380
  %v703 = vunpack.c.h.b16 %v380
  %v704 = vunpack.c.l.b16 %v381
  %v705 = vunpack.c.h.b16 %v381
  %v706 = vunpack.c.l.b16 %v382
  %v707 = vunpack.c.h.b16 %v382
  %v708 = vunpack.c.l.b16 %v383
  %v709 = vunpack.c.h.b16 %v383
  %v710 = vunpack.c.l.b16 %v384
  %v711 = vunpack.c.h.b16 %v384
  %v712 = vunpack.c.l.b16 %v385
  %v713 = vunpack.c.h.b16 %v385
  %v714 = vunpack.c.l.b16 %v386
  %v715 = vunpack.c.h.b16 %v386
  %v716 = vunpack.c.l.b16 %v387
  %v717 = vunpack.c.h.b16 %v387
  %v718 = vunpack.c.l.b16 %v388
  %v719 = vunpack.c.h.b16 %v388
  %v720 = vunpack.c.l.b16 %v389
  %v721 = vunpack.c.h.b16 %v389
  %v722 = vunpack.c.l.b16 %v390
  %v723 = vunpack.c.h.b16 %v390
  %v724 = vunpack.c.l.b16 %v391
  %v725 = vunpack.c.h.b16 %v391
  %v726 = vunpack.c.l.b16 %v392
  %v727 = vunpack.c.h.b16 %v392
  %v728 = vunpack.c.l.b16 %v393
  %v729 = vunpack.c.h.b16 %v393
  %v730 = vunpack.c.l.b16 %v394
  %v731 = vunpack.c.h.b16 %v394
  %v732 = vunpack.c.l.b16 %v395
  %v733 = vunpack.c.h.b16 %v395
  %v734 = vunpack.c.l.b16 %v396
  %v735 = vunpack.c.h.b16 %v396
  %v736 = vunpack.c.l.b16 %v397
  %v737 = vunpack.c.h.b16 %v397
  %v738 = vunpack.c.l.b16 %v398
  %v739 = vunpack.c.h.b16 %v398
  %v740 = vunpack.c.l.b16 %v399
  %v741 = vunpack.c.h.b16 %v399
  %v742 = vunpack.c.l.b16 %v400
  %v743 = vunpack.c.h.b16 %v400
  %v744 = vunpack.c.l.b16 %v401
  %v745 = vunpack.c.h.b16 %v401
  %v746 = vunpack.c.l.b16 %v402
  %v747 = vunpack.c.h.b16 %v402
  %v748 = vunpack.c.l.b16 %v403
  %v749 = vunpack.c.h.b16 %v403
  %v750 = vunpack.c.l.b16 %v404
  %v751 = vunpack.c.h.b16 %v404
  %v752 = vunpack.c.l.b16 %v405
  %v753 = vunpack.c.h.b16 %v405
  %v754 = vunpack.c.l.b16 %v406
  %v755 = vunpack.c.h.b16 %v406
  %v756 = vunpack.c.l.b16 %v407
  %v757 = vunpack.c.h.b16 %v407
  %v758 = vunpack.c.l.b16 %v408
  %v759 = vunpack.c.h.b16 %v408
  %v760 = vunpack.c.l.b16 %v409
  %v761 = vunpack.c.h.b16 %v409
  %v762 = vunpack.c.l.b16 %v410
  %v763 = vunpack.c.h.b16 %v410
  %v764 = vunpack.c.l.b16 %v411
  %v765 = vunpack.c.h.b16 %v411
  %v766 = vunpack.c.l.b16 %v412
  %v767 = vunpack.c.h.b16 %v412
  %v768 = vunpack.c.l.b16 %v413
  %v769 = vunpack.c.h.b16 %v413
  %v770 = vunpack.c.l.b16 %v414
  %v771 = vunpack.c.h.b16 %v414
  %v772 = vunpack.c.l.b16 %v415
  %v773 = vunpack.c.h.b16 %v415
  %v774 = vunpack.c.l.b16 %v416
  %v775 = vunpack.c.h.b16 %v416
  %v776 = vunpack.c.l.b16 %v417
  %v777 = vunpack.c.h.b16 %v417
  %v778 = vunpack.c.l.b16 %v418
  %v779 = vunpack.c.h.b16 %v418
  %v780 = vunpack.c.l.b16 %v419
  %v781 = vunpack.c.h.b16 %v419
  %v782 = vunpack.c.l.b16 %v420
  %v783 = vunpack.c.h.b16 %v420
  %v784 = vunpack.c.l.b16 %v421
  %v785 = vunpack.c.h.b16 %v421
  %v786 = vunpack.c.l.b16 %v422
  %v787 = vunpack.c.h.b16 %v422
  %v788 = vunpack.c.l.b16 %v423
  %v789 = vunpack.c.h.b16 %v423
  %v790 = vunpack.c.l.b16 %v424
  %v791 = vunpack.c.h.b16 %v424
  %v792 = vunpack.c.l.b16 %v425
  %v793 = vunpack.c.h.b16 %v425
  %v794 = vunpack.c.l.b16 %v426
  %v795 = vunpack.c.h.b16 %v426
  %v796 = vunpack.c.l.b16 %v427
  %v797 = vunpack.c.h.b16 %v427
  %v798 = vunpack.c.l.b16 %v428
  %v799 = vunpack.c.h.b16 %v428
  %v800 = vunpack.c.l.b16 %v429
  %v801 = vunpack.c.h.b16 %v429
  %v802 = vunpack.c.l.b16 %v430
  %v803 = vunpack.c.h.b16 %v430
  %v804 = vunpack.c.l.b16 %v431
  %v805 = vunpack.c.h.b16 %v431
  %v806 = vunpack.c.l.b16 %v432
  %v807 = vunpack.c.h.b16 %v432
  %v808 = vunpack.c.l.b16 %v433
  %v809 = vunpack.c.h.b16 %v433
  %v810 = vunpack.c.l.b16 %v434
  %v811 = vunpack.c.h.b16 %v434
  %v812 = vunpack.c.l.b16 %v435
  %v813 = vunpack.c.h.b16 %v435
  %v814 = vunpack.c.l.b16 %v436
  %v815 = vunpack.c.h.b16 %v436
  %v816 = vunpack.c.l.b16 %v437
  %v817 = vunpack.c.h.b16 %v437
  %v818 = vunpack.c.l.b16 %v438
  %v819 = vunpack.c.h.b16 %v438
  %v820 = vunpack.c.l.b16 %v439
  %v821 = vunpack.c.h.b16 %v439
  %v822 = vunpack.c.l.b16 %v440
  %v823 = vunpack.c.h.b16 %v440
  %v824 = vunpack.c.l.b16 %v441
  %v825 = vunpack.c.h.b16 %v441
  %v826 = vunpack.c.l.b16 %v442
  %v827 = vunpack.c.h.b16 %v442
  %v828 = vunpack.c.l.b16 %v443
  %v829 = vunpack.c.h.b16 %v443
  %v830 = vunpack.c.l.b16 %v444
  %v831 = vunpack.c.h.b16 %v444
  %v832 = vunpack.c.l.b16 %v445
  %v833 = vunpack.c.h.b16 %v445
  %v834 = vunpack.c.l.b16 %v446
  %v835 = vunpack.c.h.b16 %v446
  %v836 = vunpack.c.l.b16 %v447
  %v837 = vunpack.c.h.b16 %v447
  %v838 = vunpack.c.l.b16 %v448
  %v839 = vunpack.c.h.b16 %v448
  %v840 = vunpack.c.l.b16 %v449
  %v841 = vunpack.c.h.b16 %v449
  %v842 = vunpack.c.l.b16 %v450
  %v843 = vunpack.c.h.b16 %v450
  %v844 = vunpack.c.l.b16 %v451
  %v845 = vunpack.c.h.b16 %v451
  %v846 = vunpack.c.l.b16 %v452
  %v847 = vunpack.c.h.b16 %v452
  %v848 = vunpack.c.l.b16 %v453
  %v849 = vunpack.c.h.b16 %v453
  %v850 = vunpack.c.l.b16 %v454
  %v851 = vunpack.c.h.b16 %v454
  %v852 = vunpack.c.l.b16 %v455
  %v853 = vunpack.c.h.b16 %v455
  %v854 = vunpack.c.l.b16 %v456
  %v855 = vunpack.c.h.b16 %v456
  %v856 = vunpack.c.l.b16 %v457
  %v857 = vunpack.c.h.b16 %v457
  %v858 = vunpack.c.l.b16 %v458
  %v859 = vunpack.c.h.b16 %v458
  %v860 = vunpack.c.l.b16 %v459
  %v861 = vunpack.c.h.b16 %v459
  %v862 = vunpack.c.l.b16 %v460
  %v863 = vunpack.c.h.b16 %v460
  %v864 = vunpack.c.l.b16 %v461
  %v865 = vunpack.c.h.b16 %v461
  %v866 = vunpack.c.l.b16 %v462
  %v867 = vunpack.c.h.b16 %v462
  %v868 = vunpack.c.l.b16 %v463
  %v869 = vunpack.c.h.b16 %v463
  %v870 = vunpack.c.l.b16 %v464
  %v871 = vunpack.c.h.b16 %v464
  %v872 = vunpack.c.l.b16 %v465
  %v873 = vunpack.c.h.b16 %v465
  %v874 = vunpack.c.l.b16 %v466
  %v875 = vunpack.c.h.b16 %v466
  %v876 = vunpack.c.l.b16 %v467
  %v877 = vunpack.c.h.b16 %v467
  %v878 = vunpack.c.l.b16 %v468
  %v879 = vunpack.c.h.b16 %v468
  %v880 = vunpack.c.l.b16 %v469
  %v881 = vunpack.c.h.b16 %v469
  %v882 = vunpack.c.l.b16 %v470
  %v883 = vunpack.c.h.b16 %v470
  %v884 = vunpack.c.l.b16 %v471
  %v885 = vunpack.c.h.b16 %v471
  %v886 = vunpack.c.l.b16 %v472
  %v887 = vunpack.c.h.b16 %v472
  %v888 = vunpack.c.l.b16 %v473
  %v889 = vunpack.c.h.b16 %v473
  %v890 = vunpack.c.l.b16 %v474
  %v891 = vunpack.c.h.b16 %v474
  %v892 = vunpack.c.l.b16 %v475
  %v893 = vunpack.c.h.b16 %v475
  %v894 = vunpack.c.l.b16 %v476
  %v895 = vunpack.c.h.b16 %v476
  %v896 = vunpack.c.l.b16 %v477
  %v897 = vunpack.c.h.b16 %v477
  %v898 = vpack.c.b16 %v658, %v642
  %v899 = vpack.c.b16 %v659, %v643
  %v900 = vpack.c.b16 %v660, %v644
  %v901 = vpack.c.b16 %v661, %v645
  %v902 = vpack.c.b16 %v662, %v646
  %v903 = vpack.c.b16 %v663, %v647
  %v904 = vpack.c.b16 %v664, %v648
  %v905 = vpack.c.b16 %v665, %v649
  %v906 = vpack.c.b16 %v666, %v650
  %v907 = vpack.c.b16 %v667, %v651
  %v908 = vpack.c.b16 %v668, %v652
  %v909 = vpack.c.b16 %v669, %v653
  %v910 = vpack.c.b16 %v670, %v654
  %v911 = vpack.c.b16 %v671, %v655
  %v912 = vpack.c.b16 %v672, %v656
  %v913 = vpack.c.b16 %v673, %v657
  %v914 = vpack.c.b16 %v690, %v674
  %v915 = vpack.c.b16 %v691, %v675
  %v916 = vpack.c.b16 %v692, %v676
  %v917 = vpack.c.b16 %v693, %v677
  %v918 = vpack.c.b16 %v694, %v678
  %v919 = vpack.c.b16 %v695, %v679
  %v920 = vpack.c.b16 %v696, %v680
  %v921 = vpack.c.b16 %v697, %v681
  %v922 = vpack.c.b16 %v698, %v682
  %v923 = vpack.c.b16 %v699, %v683
  %v924 = vpack.c.b16 %v700, %v684
  %v925 = vpack.c.b16 %v701, %v685
  %v926 = vpack.c.b16 %v702, %v686
  %v927 = vpack.c.b16 %v703, %v687
  %v928 = vpack.c.b16 %v704, %v688
  %v929 = vpack.c.b16 %v705, %v689
  %v930 = vpack.c.b16 %v722, %v706
  %v931 = vpack.c.b16 %v723, %v707
  %v932 = vpack.c.b16 %v724, %v708
  %v933 = vpack.c.b16 %v725, %v709
  %v934 = vpack.c.b16 %v726, %v710
  %v935 = vpack.c.b16 %v727, %v711
  %v936 = vpack.c.b16 %v728, %v712
  %v937 = vpack.c.b16 %v729, %v713
  %v938 = vpack.c.b16 %v730, %v714
  %v939 = vpack.c.b16 %v731, %v715
  %v940 = vpack.c.b16 %v732, %v716
  %v941 = vpack.c.b16 %v733, %v717
  %v942 = vpack.c.b16 %v734, %v718
  %v943 = vpack.c.b16 %v735, %v719
  %v944 = vpack.c.b16 %v736, %v720
  %v945 = vpack.c.b16 %v737, %v721
  %v946 = vpack.c.b16 %v754, %v738
  %v947 = vpack.c.b16 %v755, %v739
  %v948 = vpack.c.b16 %v756, %v740
  %v949 = vpack.c.b16 %v757, %v741
  %v950 = vpack.c.b16 %v758, %v742
  %v951 = vpack.c.b16 %v759, %v743
  %v952 = vpack.c.b16 %v760, %v744
  %v953 = vpack.c.b16 %v761, %v745
  %v954 = vpack.c.b16 %v762, %v746
  %v955 = vpack.c.b16 %v763, %v747
  %v956 = vpack.c.b16 %v764, %v748
  %v957 = vpack.c.b16 %v765, %v749
  %v958 = vpack.c.b16 %v766, %v750
  %v959 = vpack.c.b16 %v767, %v751
  %v960 = vpack.c.b16 %v768, %v752
  %v961 = vpack.c.b16 %v769, %v753
  %v962 = vpack.c.b16 %v786, %v770
  %v963 = vpack.c.b16 %v787, %v771
  %v964 = vpack.c.b16 %v788, %v772
  %v965 = vpack.c.b16 %v789, %v773
  %v966 = vpack.c.b16 %v790, %v774
  %v967 = vpack.c.b16 %v791, %v775
  %v968 = vpack.c.b16 %v792, %v776
  %v969 = vpack.c.b16 %v793, %v777
  %v970 = vpack.c.b16 %v794, %v778
  %v971 = vpack.c.b16 %v795, %v779
  %v972 = vpack.c.b16 %v796, %v780
  %v973 = vpack.c.b16 %v797, %v781
  %v974 = vpack.c.b16 %v798, %v782
  %v975 = vpack.c.b16 %v799, %v783
  %v976 = vpack.c.b16 %v800, %v784
  %v977 = vpack.c.b16 %v801, %v785
  %v978 = vpack.c.b16 %v818, %v802
  %v979 = vpack.c.b16 %v819, %v803
  %v980 = vpack.c.b16 %v820, %v804
  %v981 = vpack.c.b16 %v821, %v805
  %v982 = vpack.c.b16 %v822, %v806
  %v983 = vpack.c.b16 %v823, %v807
  %v984 = vpack.c.b16 %v824, %v808
  %v985 = vpack.c.b16 %v825, %v809
  %v986 = vpack.c.b16 %v826, %v810
  %v987 = vpack.c.b16 %v827, %v811
  %v988 = vpack.c.b16 %v828, %v812
  %v989 = vpack.c.b16 %v829, %v813
  %v990 = vpack.c.b16 %v830, %v814
  %v991 = vpack.c.b16 %v831, %v815
  %v992 = vpack.c.b16 %v832, %v816
  %v993 = vpack.c.b16 %v833, %v817
  %v994 = vpack.c.b16 %v850, %v834
  %v995 = vpack.c.b16 %v851, %v835
  %v996 = vpack.c.b16 %v852, %v836
  %v997 = vpack.c.b16 %v853, %v837
  %v998 = vpack.c.b16 %v854, %v838
  %v999 = vpack.c.b16 %v855, %v839
  %v1000 = vpack.c.b16 %v856, %v840
  %v1001 = vpack.c.b16 %v857, %v841
  %v1002 = vpack.c.b16 %v858, %v842
  %v1003 = vpack.c.b16 %v859, %v843
  %v1004 = vpack.c.b16 %v860, %v844
  %v1005 = vpack.c.b16 %v861, %v845
  %v1006 = vpack.c.b16 %v862, %v846
  %v1007 = vpack.c.b16 %v863, %v847
  %v1008 = vpack.c.b16 %v864, %v848
  %v1009 = vpack.c.b16 %v865, %v849
  %v1010 = vpack.c.b16 %v882, %v866
  %v1011 = vpack.c.b16 %v883, %v867
  %v1012 = vpack.c.b16 %v884, %v868
  %v1013 = vpack.c.b16 %v885, %v869
  %v1014 = vpack.c.b16 %v886, %v870
  %v1015 = vpack.c.b16 %v887, %v871
  %v1016 = vpack.c.b16 %v888, %v872
  %v1017 = vpack.c.b16 %v889, %v873
  %v1018 = vpack.c.b16 %v890, %v874
  %v1019 = vpack.c.b16 %v891, %v875
  %v1020 = vpack.c.b16 %v892, %v876
  %v1021 = vpack.c.b16 %v893, %v877
  %v1022 = vpack.c.b16 %v894, %v878
  %v1023 = vpack.c.b16 %v895, %v879
  %v1024 = vpack.c.b16 %v896, %v880
  %v1025 = vpack.c.b16 %v897, %v881
  %1154 = vmatpush.bf16.msra.mxu0 %v1010
  %1155 = vmatpush.bf16.msra.mxu0 %v994
  %1156 = vmatpush.bf16.msra.mxu0 %v978
  %1157 = vmatpush.bf16.msra.mxu0 %v962
  %1158 = vmatpush.bf16.msra.mxu0 %v946
  %1159 = vmatpush.bf16.msra.mxu0 %v930
  %1160 = vmatpush.bf16.msra.mxu0 %v914
  %1161 = vmatpush.bf16.msra.mxu0 %v898
  %1162 = vmatmul.bf16.gmra.mxu0 %v349
  %v1163 = vpop.f32.mrf.mxu0
  %v1164 = vadd.f32 %v482, %v1163
  %v1165 = vpop.f32.mrf.mxu0
  %1166 = vdwg.mxu0
  %1167 = vmatpush.bf16.msra.mxu0 %v1011
  %1168 = vmatpush.bf16.msra.mxu0 %v995
  %1169 = vmatpush.bf16.msra.mxu0 %v979
  %1170 = vmatpush.bf16.msra.mxu0 %v963
  %1171 = vmatpush.bf16.msra.mxu0 %v947
  %1172 = vmatpush.bf16.msra.mxu0 %v931
  %1173 = vmatpush.bf16.msra.mxu0 %v915
  %1174 = vmatpush.bf16.msra.mxu0 %v899
  %1175 = vmatmul.bf16.gmra.mxu0 %v349
  %v1176 = vpop.f32.mrf.mxu0
  %v1177 = vadd.f32 %v483, %v1176
  %v1178 = vpop.f32.mrf.mxu0
  %1179 = vdwg.mxu0
  %1180 = vmatpush.bf16.msra.mxu0 %v1012
  %1181 = vmatpush.bf16.msra.mxu0 %v996
  %1182 = vmatpush.bf16.msra.mxu0 %v980
  %1183 = vmatpush.bf16.msra.mxu0 %v964
  %1184 = vmatpush.bf16.msra.mxu0 %v948
  %1185 = vmatpush.bf16.msra.mxu0 %v932
  %1186 = vmatpush.bf16.msra.mxu0 %v916
  %1187 = vmatpush.bf16.msra.mxu0 %v900
  %1188 = vmatmul.bf16.gmra.mxu0 %v349
  %v1189 = vpop.f32.mrf.mxu0
  %v1190 = vadd.f32 %v484, %v1189
  %v1191 = vpop.f32.mrf.mxu0
  %1192 = vdwg.mxu0
  %1193 = vmatpush.bf16.msra.mxu0 %v1013
  %1194 = vmatpush.bf16.msra.mxu0 %v997
  %1195 = vmatpush.bf16.msra.mxu0 %v981
  %1196 = vmatpush.bf16.msra.mxu0 %v965
  %1197 = vmatpush.bf16.msra.mxu0 %v949
  %1198 = vmatpush.bf16.msra.mxu0 %v933
  %1199 = vmatpush.bf16.msra.mxu0 %v917
  %1200 = vmatpush.bf16.msra.mxu0 %v901
  %1201 = vmatmul.bf16.gmra.mxu0 %v349
  %v1202 = vpop.f32.mrf.mxu0
  %v1203 = vadd.f32 %v485, %v1202
  %v1204 = vpop.f32.mrf.mxu0
  %1205 = vdwg.mxu0
  %1206 = vmatpush.bf16.msra.mxu0 %v1014
  %1207 = vmatpush.bf16.msra.mxu0 %v998
  %1208 = vmatpush.bf16.msra.mxu0 %v982
  %1209 = vmatpush.bf16.msra.mxu0 %v966
  %1210 = vmatpush.bf16.msra.mxu0 %v950
  %1211 = vmatpush.bf16.msra.mxu0 %v934
  %1212 = vmatpush.bf16.msra.mxu0 %v918
  %1213 = vmatpush.bf16.msra.mxu0 %v902
  %1214 = vmatmul.bf16.gmra.mxu0 %v349
  %v1215 = vpop.f32.mrf.mxu0
  %v1216 = vadd.f32 %v486, %v1215
  %v1217 = vpop.f32.mrf.mxu0
  %1218 = vdwg.mxu0
  %1219 = vmatpush.bf16.msra.mxu0 %v1015
  %1220 = vmatpush.bf16.msra.mxu0 %v999
  %1221 = vmatpush.bf16.msra.mxu0 %v983
  %1222 = vmatpush.bf16.msra.mxu0 %v967
  %1223 = vmatpush.bf16.msra.mxu0 %v951
  %1224 = vmatpush.bf16.msra.mxu0 %v935
  %1225 = vmatpush.bf16.msra.mxu0 %v919
  %1226 = vmatpush.bf16.msra.mxu0 %v903
  %1227 = vmatmul.bf16.gmra.mxu0 %v349
  %v1228 = vpop.f32.mrf.mxu0
  %v1229 = vadd.f32 %v487, %v1228
  %v1230 = vpop.f32.mrf.mxu0
  %1231 = vdwg.mxu0
  %1232 = vmatpush.bf16.msra.mxu0 %v1016
  %1233 = vmatpush.bf16.msra.mxu0 %v1000
  %1234 = vmatpush.bf16.msra.mxu0 %v984
  %1235 = vmatpush.bf16.msra.mxu0 %v968
  %1236 = vmatpush.bf16.msra.mxu0 %v952
  %1237 = vmatpush.bf16.msra.mxu0 %v936
  %1238 = vmatpush.bf16.msra.mxu0 %v920
  %1239 = vmatpush.bf16.msra.mxu0 %v904
  %1240 = vmatmul.bf16.gmra.mxu0 %v349
  %v1241 = vpop.f32.mrf.mxu0
  %v1242 = vadd.f32 %v488, %v1241
  %v1243 = vpop.f32.mrf.mxu0
  %1244 = vdwg.mxu0
  %1245 = vmatpush.bf16.msra.mxu0 %v1017
  %1246 = vmatpush.bf16.msra.mxu0 %v1001
  %1247 = vmatpush.bf16.msra.mxu0 %v985
  %1248 = vmatpush.bf16.msra.mxu0 %v969
  %1249 = vmatpush.bf16.msra.mxu0 %v953
  %1250 = vmatpush.bf16.msra.mxu0 %v937
  %1251 = vmatpush.bf16.msra.mxu0 %v921
  %1252 = vmatpush.bf16.msra.mxu0 %v905
  %1253 = vmatmul.bf16.gmra.mxu0 %v349
  %v1254 = vpop.f32.mrf.mxu0
  %v1255 = vadd.f32 %v489, %v1254
  %v1256 = vpop.f32.mrf.mxu0
  %1257 = vdwg.mxu0
  %1258 = vmatpush.bf16.msra.mxu0 %v1018
  %1259 = vmatpush.bf16.msra.mxu0 %v1002
  %1260 = vmatpush.bf16.msra.mxu0 %v986
  %1261 = vmatpush.bf16.msra.mxu0 %v970
  %1262 = vmatpush.bf16.msra.mxu0 %v954
  %1263 = vmatpush.bf16.msra.mxu0 %v938
  %1264 = vmatpush.bf16.msra.mxu0 %v922
  %1265 = vmatpush.bf16.msra.mxu0 %v906
  %1266 = vmatmul.bf16.gmra.mxu0 %v349
  %v1267 = vpop.f32.mrf.mxu0
  %v1268 = vadd.f32 %v490, %v1267
  %v1269 = vpop.f32.mrf.mxu0
  %1270 = vdwg.mxu0
  %1271 = vmatpush.bf16.msra.mxu0 %v1019
  %1272 = vmatpush.bf16.msra.mxu0 %v1003
  %1273 = vmatpush.bf16.msra.mxu0 %v987
  %1274 = vmatpush.bf16.msra.mxu0 %v971
  %1275 = vmatpush.bf16.msra.mxu0 %v955
  %1276 = vmatpush.bf16.msra.mxu0 %v939
  %1277 = vmatpush.bf16.msra.mxu0 %v923
  %1278 = vmatpush.bf16.msra.mxu0 %v907
  %1279 = vmatmul.bf16.gmra.mxu0 %v349
  %v1280 = vpop.f32.mrf.mxu0
  %v1281 = vadd.f32 %v491, %v1280
  %v1282 = vpop.f32.mrf.mxu0
  %1283 = vdwg.mxu0
  %1284 = vmatpush.bf16.msra.mxu0 %v1020
  %1285 = vmatpush.bf16.msra.mxu0 %v1004
  %1286 = vmatpush.bf16.msra.mxu0 %v988
  %1287 = vmatpush.bf16.msra.mxu0 %v972
  %1288 = vmatpush.bf16.msra.mxu0 %v956
  %1289 = vmatpush.bf16.msra.mxu0 %v940
  %1290 = vmatpush.bf16.msra.mxu0 %v924
  %1291 = vmatpush.bf16.msra.mxu0 %v908
  %1292 = vmatmul.bf16.gmra.mxu0 %v349
  %v1293 = vpop.f32.mrf.mxu0
  %v1294 = vadd.f32 %v492, %v1293
  %v1295 = vpop.f32.mrf.mxu0
  %1296 = vdwg.mxu0
  %1297 = vmatpush.bf16.msra.mxu0 %v1021
  %1298 = vmatpush.bf16.msra.mxu0 %v1005
  %1299 = vmatpush.bf16.msra.mxu0 %v989
  %1300 = vmatpush.bf16.msra.mxu0 %v973
  %1301 = vmatpush.bf16.msra.mxu0 %v957
  %1302 = vmatpush.bf16.msra.mxu0 %v941
  %1303 = vmatpush.bf16.msra.mxu0 %v925
  %1304 = vmatpush.bf16.msra.mxu0 %v909
  %1305 = vmatmul.bf16.gmra.mxu0 %v349
  %v1306 = vpop.f32.mrf.mxu0
  %v1307 = vadd.f32 %v493, %v1306
  %v1308 = vpop.f32.mrf.mxu0
  %1309 = vdwg.mxu0
  %1310 = vmatpush.bf16.msra.mxu0 %v1022
  %1311 = vmatpush.bf16.msra.mxu0 %v1006
  %1312 = vmatpush.bf16.msra.mxu0 %v990
  %1313 = vmatpush.bf16.msra.mxu0 %v974
  %1314 = vmatpush.bf16.msra.mxu0 %v958
  %1315 = vmatpush.bf16.msra.mxu0 %v942
  %1316 = vmatpush.bf16.msra.mxu0 %v926
  %1317 = vmatpush.bf16.msra.mxu0 %v910
  %1318 = vmatmul.bf16.gmra.mxu0 %v349
  %v1319 = vpop.f32.mrf.mxu0
  %v1320 = vadd.f32 %v494, %v1319
  %v1321 = vpop.f32.mrf.mxu0
  %1322 = vdwg.mxu0
  %1323 = vmatpush.bf16.msra.mxu0 %v1023
  %1324 = vmatpush.bf16.msra.mxu0 %v1007
  %1325 = vmatpush.bf16.msra.mxu0 %v991
  %1326 = vmatpush.bf16.msra.mxu0 %v975
  %1327 = vmatpush.bf16.msra.mxu0 %v959
  %1328 = vmatpush.bf16.msra.mxu0 %v943
  %1329 = vmatpush.bf16.msra.mxu0 %v927
  %1330 = vmatpush.bf16.msra.mxu0 %v911
  %1331 = vmatmul.bf16.gmra.mxu0 %v349
  %v1332 = vpop.f32.mrf.mxu0
  %v1333 = vadd.f32 %v495, %v1332
  %v1334 = vpop.f32.mrf.mxu0
  %1335 = vdwg.mxu0
  %1336 = vmatpush.bf16.msra.mxu0 %v1024
  %1337 = vmatpush.bf16.msra.mxu0 %v1008
  %1338 = vmatpush.bf16.msra.mxu0 %v992
  %1339 = vmatpush.bf16.msra.mxu0 %v976
  %1340 = vmatpush.bf16.msra.mxu0 %v960
  %1341 = vmatpush.bf16.msra.mxu0 %v944
  %1342 = vmatpush.bf16.msra.mxu0 %v928
  %1343 = vmatpush.bf16.msra.mxu0 %v912
  %1344 = vmatmul.bf16.gmra.mxu0 %v349
  %v1345 = vpop.f32.mrf.mxu0
  %v1346 = vadd.f32 %v496, %v1345
  %v1347 = vpop.f32.mrf.mxu0
  %1348 = vdwg.mxu0
  %1349 = vmatpush.bf16.msra.mxu0 %v1025
  %1350 = vmatpush.bf16.msra.mxu0 %v1009
  %1351 = vmatpush.bf16.msra.mxu0 %v993
  %1352 = vmatpush.bf16.msra.mxu0 %v977
  %1353 = vmatpush.bf16.msra.mxu0 %v961
  %1354 = vmatpush.bf16.msra.mxu0 %v945
  %1355 = vmatpush.bf16.msra.mxu0 %v929
  %1356 = vmatpush.bf16.msra.mxu0 %v913
  %1357 = vmatmul.bf16.gmra.mxu0 %v349
  %v1358 = vpop.f32.mrf.mxu0
  %v1359 = vadd.f32 %v497, %v1358
  %v1360 = vpop.f32.mrf.mxu0
  %1361 = vdwg.mxu0
  %v1362 = vpack.c.bf16 %v1177, %v1164
  %v1363 = vpack.c.bf16 %v1203, %v1190
  %v1364 = vpack.c.bf16 %v1229, %v1216
  %v1365 = vpack.c.bf16 %v1255, %v1242
  %v1366 = vpack.c.bf16 %v1281, %v1268
  %v1367 = vpack.c.bf16 %v1307, %v1294
  %v1368 = vpack.c.bf16 %v1333, %v1320
  %v1369 = vpack.c.bf16 %v1359, %v1346
  %v1378 = vrot.slane %v1362, 2
  %v1379 = vrot.slane %v1363, 4
  %v1380 = vrot.slane %v1363, 6
  %v1381 = vrot.slane %v1364, 2
  %v1382 = vrot.slane %v1365, 4
  %v1383 = vrot.slane %v1365, 6
  %v1384 = vrot.slane %v1366, 2
  %v1385 = vrot.slane %v1367, 4
  %v1386 = vrot.slane %v1367, 6
  %v1387 = vrot.slane %v1368, 2
  %v1388 = vrot.slane %v1369, 4
  %v1389 = vrot.slane %v1369, 6
  %vm1390 = vcmask 1041408
  %v1393 = vsel %vm1390, %v1362, %v1378
  %vm1394 = vcmask 1045508
  %v1397 = vsel %vm1394, %v1379, %v1380
  %v1398 = vsel %vm45, %v1393, %v1397
  %v1401 = vsel %vm1390, %v1364, %v1381
  %v1404 = vsel %vm1394, %v1382, %v1383
  %v1405 = vsel %vm45, %v1401, %v1404
  %v1408 = vsel %vm1390, %v1366, %v1384
  %v1411 = vsel %vm1394, %v1385, %v1386
  %v1412 = vsel %vm45, %v1408, %v1411
  %v1415 = vsel %vm1390, %v1368, %v1387
  %v1418 = vsel %vm1394, %v1388, %v1389
  %v1419 = vsel %vm45, %v1415, %v1418
  %1424 = vst [vmem:[%s11] sm:$0xff] %v1398
  %1425 = vst [vmem:[%s11 + $0x8] sm:$0xff] %v1405
  %1426 = vst [vmem:[%s11 + $0x10] sm:$0xff] %v1412
  %1427 = vst [vmem:[%s11 + $0x18] sm:$0xff] %v1419
  // Predicated region
  $region46: #{joint_orchestrator_forward.4} parent=0 // pred_check
    _
  $region47: #{joint_orchestrator_forward.4} parent=0 // pred_check_branch
    %1429 = sbr.rel (0) target = $region49
  $region48: #{joint_orchestrator_forward.4} parent=0 // pred_region
    _
  $region49: #{joint_orchestrator_forward.4} parent=0 // pred_fallthru
    _
  // Predicated region
  $region50: #{joint_orchestrator_forward.4} parent=0 // pred_check
    _
  $region51: #{joint_orchestrator_forward.4} parent=0 // pred_check_branch
    %1431 = sbr.rel (0) target = $region53
  $region52: #{joint_orchestrator_forward.4} parent=0 // pred_region
    _
  $region53: #{joint_orchestrator_forward.4} parent=0 // pred_fallthru
    _

// kernel: joint_orchestrator_forward.5
$region0: #{joint_orchestrator_forward.5}
  #allocation0 [shape = 'u32[]', space=smem, size = 0x4, offset = 0x4, fixed_abs, tag = 'smem constant byte address 0x4 - core index']
  #allocation1 [shape = 'u32[72,128]{1,0:T(1,128)}', space=vmem, size = 0x9000, scoped, tag = 'internal scratch']
  #allocation2 [shape = 'bf16[128,128]{1,0:T(8,128)(2,1)}', space=vmem, size = 0x8000, scoped, tag = 'scratch operand']
  #allocation3 [shape = 'f32[128,1]{1,0:T(8,128)}', space=vmem, size = 0x10000, scoped, tag = 'scratch operand']
  #allocation4 [shape = 'f32[128,1]{1,0:T(8,128)}', space=vmem, size = 0x10000, scoped, tag = 'scratch operand']
  #allocation5 [shape = 'f32[128,1]{1,0:T(8,128)}', space=vmem, size = 0x10000, scoped, tag = 'scratch operand']
  %s0 = inlined_call_operand.smem [shape: u32[31], index: -1, kind: input, shape index: {}]
  %s1 = sld [smem:[%s0]]
  %s2 = scalar_lea.smem %s0, 1
  %s3 = sld [smem:[%s2]]
  %s4 = scalar_lea.smem %s0, 2
  %s5 = sld [smem:[%s4]]
  %s6 = scalar_lea.smem %s0, 3
  %s7 = sld [smem:[%s6]]
  %s8 = scalar_lea.smem %s0, 4
  %s9 = sld [smem:[%s8]]
  %s10 = scalar_lea.smem %s0, 5
  %s11 = sld [smem:[%s10]]
  %s12 = scalar_lea.smem %s0, 6
  %s13 = sld [smem:[%s12]]
  %s14 = scalar_lea.smem %s0, 7
  %s15 = sld [smem:[%s14]]
  %s16 = scalar_lea.smem %s0, 8
  %s17 = sld [smem:[%s16]]
  %s18 = scalar_lea.smem %s0, 9
  %s19 = sld [smem:[%s18]]
  %s20 = scalar_lea.smem %s0, 10
  %s21 = sld [smem:[%s20]]
  %s22 = scalar_lea.smem %s0, 11
  %s23 = sld [smem:[%s22]]
  %s24 = scalar_lea.smem %s0, 12
  %s25 = sld [smem:[%s24]]
  %s26 = scalar_lea.smem %s0, 13
  %s27 = sld [smem:[%s26]]
  %s28 = scalar_lea.smem %s0, 14
  %s29 = sld [smem:[%s28]]
  %s30 = scalar_lea.smem %s0, 15
  %s31 = sld [smem:[%s30]]
  %s32 = scalar_lea.smem %s0, 16
  %s33 = sld [smem:[%s32]]
  %s34 = scalar_lea.smem %s0, 17
  %s35 = sld [smem:[%s34]]
  %s36 = scalar_lea.smem %s0, 18
  %s37 = sld [smem:[%s36]]
  %s38 = scalar_lea.smem %s0, 19
  %s39 = sld [smem:[%s38]]
  %s40 = scalar_lea.smem %s0, 20
  %s41 = sld [smem:[%s40]]
  %s42 = scalar_lea.smem %s0, 21
  %s43 = sld [smem:[%s42]]
  %s44 = scalar_lea.smem %s0, 22
  %s45 = sld [smem:[%s44]]
  %s46 = scalar_lea.smem %s0, 23
  %s47 = sld [smem:[%s46]]
  %s48 = scalar_lea.smem %s0, 24
  %s49 = sld [smem:[%s48]]
  %s50 = scalar_lea.smem %s0, 25
  %s51 = sld [smem:[%s50]]
  %s52 = scalar_lea.smem %s0, 26
  %s53 = sld [smem:[%s52]]
  %s54 = scalar_lea.smem %s0, 27
  %s55 = sld [smem:[%s54]]
  %s56 = scalar_lea.smem %s0, 28
  %s57 = sld [smem:[%s56]]
  %s58 = scalar_lea.smem %s0, 29
  %s59 = sld [smem:[%s58]]
  %s60 = scalar_lea.smem %s0, 30
  %s61 = sld [smem:[%s60]]
  %62 = xla_tuple %s57, %s59, %s61
  %s63 = sld [smem:[#allocation0]]
  $region210: #{joint_orchestrator_forward.5} parent=0
    _
  %s65 = ssub.s32 1, %s63
  %s66 = scalar_select 0, %s65, %s63
  $region1: #{joint_orchestrator_forward.5} parent=0
    #allocation6 [shape = 'u8[65536]{0}', space=vmem, size = 0x10000, scoped, tag = 'input window, operand 26']
    #allocation7 [shape = 'u8[65536]{0}', space=vmem, size = 0x10000, scoped, tag = 'output window, operand 0']
    #allocation8 [shape = 's32[2]{0}', space=sflag, size = 0x8, scoped, tag = 'scoped memory for joint_orchestrator_forward.5']
    %67 = vsyncpa [#allocation8], 0
    %s68 = scalar_lea.sflag [#allocation8], 1
    %69 = vsyncpa %s68, 0
    loop: start=0, step=1, limit=10
    $region2: #{joint_orchestrator_forward.5} parent=1 // loop_pre_header
      _
    $region3: #{joint_orchestrator_forward.5} parent=1 // loop_header
      %s71 = sphi 0, %s75
      %p72 = scmp.ge.s32.totalorder %s71, 10
      %s78 = sphi 0, %s90
      %s79 = sphi 0, %s86
      %s80 = sphi 0, %s78
      %s81 = sphi 0, %s79
      %s82 = sphi 0, %s80
      %s83 = sphi 0, %s81
      %s93 = sphi 0, %s95
      %s96 = sphi 0, %s93
      %s97 = sphi 0, %s96
      %s113 = sphi 0, %s97
      %s119 = sphi 0, %s121
      %s122 = sphi 0, %s119
      %s123 = sphi 0, %s122
      %s139 = sphi 0, %s123
      %s145 = sphi 0, %s147
      %s148 = sphi 0, %s145
      %s149 = sphi 0, %s148
      %s165 = sphi 0, %s149
      %s171 = sphi 0, %s173
      %s174 = sphi 0, %s171
      %s175 = sphi 0, %s174
      %s191 = sphi 0, %s175
      %s195 = sphi 0, %s195
      %s197 = sphi 0, %s195
      %s198 = sphi 0, %s197
      %s212 = sphi 0, %s198
      %s216 = sphi 0, %s216
      %s218 = sphi 0, %s216
      %s219 = sphi 0, %s218
      %s233 = sphi 0, %s219
      %s237 = sphi 0, %s237
      %s239 = sphi 0, %s237
      %s240 = sphi 0, %s239
      %s254 = sphi 0, %s240
      %s258 = sphi 0, %s258
      %s260 = sphi 0, %s258
      %s261 = sphi 0, %s260
      %s275 = sphi 0, %s261
      %s279 = sphi 0, %s279
      %s281 = sphi 0, %s279
      %s282 = sphi 0, %s281
      %s296 = sphi 0, %s282
      %s300 = sphi 0, %s300
      %s302 = sphi 0, %s300
      %s303 = sphi 0, %s302
      %s317 = sphi 0, %s303
      %s321 = sphi 0, %s321
      %s323 = sphi 0, %s321
      %s324 = sphi 0, %s323
      %s338 = sphi 0, %s324
      %s342 = sphi 0, %s342
      %s344 = sphi 0, %s342
      %s345 = sphi 0, %s344
      %s359 = sphi 0, %s345
      %s363 = sphi 0, %s363
      %s365 = sphi 0, %s363
      %s366 = sphi 0, %s365
      %s380 = sphi 0, %s366
      %s384 = sphi 0, %s384
      %s386 = sphi 0, %s384
      %s387 = sphi 0, %s386
      %s401 = sphi 0, %s387
      %s405 = sphi 0, %s405
      %s407 = sphi 0, %s405
      %s408 = sphi 0, %s407
      %s422 = sphi 0, %s408
      %s426 = sphi 0, %s426
      %s428 = sphi 0, %s426
      %s429 = sphi 0, %s428
      %s443 = sphi 0, %s429
      %s447 = sphi 0, %s447
      %s449 = sphi 0, %s447
      %s450 = sphi 0, %s449
      %s464 = sphi 0, %s450
      %s468 = sphi 0, %s468
      %s470 = sphi 0, %s468
      %s471 = sphi 0, %s470
      %s485 = sphi 0, %s471
      %s489 = sphi 0, %s489
      %s491 = sphi 0, %s489
      %s492 = sphi 0, %s491
      %s506 = sphi 0, %s492
      %s510 = sphi 0, %s510
      %s512 = sphi 0, %s510
      %s513 = sphi 0, %s512
      %s527 = sphi 0, %s513
      %s531 = sphi 0, %s531
      %s533 = sphi 0, %s531
      %s534 = sphi 0, %s533
      %s548 = sphi 0, %s534
      %s552 = sphi 0, %s552
      %s554 = sphi 0, %s552
      %s555 = sphi 0, %s554
      %s569 = sphi 0, %s555
      %s573 = sphi 0, %s573
      %s575 = sphi 0, %s573
      %s576 = sphi 0, %s575
      %s590 = sphi 0, %s576
      %s594 = sphi 0, %s594
      %s596 = sphi 0, %s594
      %s597 = sphi 0, %s596
      %s611 = sphi 0, %s597
      %s615 = sphi 0, %s615
      %s617 = sphi 0, %s615
      %s618 = sphi 0, %s617
      %s632 = sphi 0, %s618
      %s636 = sphi 0, %s636
      %s638 = sphi 0, %s636
      %s639 = sphi 0, %s638
      %s653 = sphi 0, %s639
      %s659 = sphi 0, %s661
      %s662 = sphi 0, %s659
      %s663 = sphi 0, %s662
      %s679 = sphi 0, %s663
      %s685 = sphi 0, %s687
      %s688 = sphi 0, %s685
      %s689 = sphi 0, %s688
      %s705 = sphi 0, %s689
      %s713 = sphi 0, %s715
      %s716 = sphi 0, %s713
      %s717 = sphi 0, %s716
      %s733 = sphi 0, %s717
      %s739 = sphi 0, %s741
      %s742 = sphi 0, %s739
      %s743 = sphi 0, %s742
      %s759 = sphi 0, %s743
      %s765 = sphi 0, %s767
      %s768 = sphi 0, %s765
      %s769 = sphi 0, %s768
      %s785 = sphi 0, %s769
    $region4: #{joint_orchestrator_forward.5} parent=1 // loop_header_branch
      %74 = sbr.rel (%p72) target = $region8
    $region5: #{joint_orchestrator_forward.5} parent=1 // loop_body
      %s76 = ssub.s32 %s71, 1
      %s77 = ssub.s32 %s71, 2
      %s84 = sadd.s32 1, %s79
      %p85 = scmp.ge.s32.totalorder %s84, 2
      %s86 = scalar_select %p85, 0, %s84
      %s87 = sadd.s32 1, %s78
      %s88 = scalar_select %p85, %s87, %s78
      %p89 = scmp.ge.s32.totalorder %s88, 4
      %s90 = scalar_select %p89, 0, %s88
      %s91 = ssub.s32 %s78, %s90
      %p92 = scmp.eq.s32.totalorder %s91, 0
      %s94 = sadd.s32 %s93, 1
      %s95 = scalar_select %p92, %s93, %s94
      %p98 = pneg %p92
      %p99 = scmp.eq.s32.totalorder %s71, 7
      %p100 = por %p98, %p99
      %p101 = scmp.ne.s32.totalorder %s93, %s96
      %p102 = scmp.eq.s32.totalorder %s71, 0
      %p103 = por %p101, %p102
      %p104 = scmp.ne.s32.totalorder %s93, %s96
      %p105 = scmp.eq.s32.totalorder %s76, 7
      %p106 = por %p104, %p105
      %p107 = scmp.ne.s32.totalorder %s96, %s97
      %p108 = scmp.eq.s32.totalorder %s76, 0
      %p109 = por %p107, %p108
      %p110 = scmp.ne.s32.totalorder %s96, %s97
      %p111 = scmp.eq.s32.totalorder %s77, 7
      %p112 = por %p110, %p111
      %p114 = scmp.ne.s32.totalorder %s97, %s113
      %p115 = scmp.eq.s32.totalorder %s77, 0
      %p116 = por %p114, %p115
      %s117 = ssub.s32 %s78, %s90
      %p118 = scmp.eq.s32.totalorder %s117, 0
      %s120 = sadd.s32 %s119, 1
      %s121 = scalar_select %p118, %s119, %s120
      %p124 = pneg %p118
      %p125 = scmp.eq.s32.totalorder %s71, 7
      %p126 = por %p124, %p125
      %p127 = scmp.ne.s32.totalorder %s119, %s122
      %p128 = scmp.eq.s32.totalorder %s71, 0
      %p129 = por %p127, %p128
      %p130 = scmp.ne.s32.totalorder %s119, %s122
      %p131 = scmp.eq.s32.totalorder %s76, 7
      %p132 = por %p130, %p131
      %p133 = scmp.ne.s32.totalorder %s122, %s123
      %p134 = scmp.eq.s32.totalorder %s76, 0
      %p135 = por %p133, %p134
      %p136 = scmp.ne.s32.totalorder %s122, %s123
      %p137 = scmp.eq.s32.totalorder %s77, 7
      %p138 = por %p136, %p137
      %p140 = scmp.ne.s32.totalorder %s123, %s139
      %p141 = scmp.eq.s32.totalorder %s77, 0
      %p142 = por %p140, %p141
      %s143 = ssub.s32 %s78, %s90
      %p144 = scmp.eq.s32.totalorder %s143, 0
      %s146 = sadd.s32 %s145, 1
      %s147 = scalar_select %p144, %s145, %s146
      %p150 = pneg %p144
      %p151 = scmp.eq.s32.totalorder %s71, 7
      %p152 = por %p150, %p151
      %p153 = scmp.ne.s32.totalorder %s145, %s148
      %p154 = scmp.eq.s32.totalorder %s71, 0
      %p155 = por %p153, %p154
      %p156 = scmp.ne.s32.totalorder %s145, %s148
      %p157 = scmp.eq.s32.totalorder %s76, 7
      %p158 = por %p156, %p157
      %p159 = scmp.ne.s32.totalorder %s148, %s149
      %p160 = scmp.eq.s32.totalorder %s76, 0
      %p161 = por %p159, %p160
      %p162 = scmp.ne.s32.totalorder %s148, %s149
      %p163 = scmp.eq.s32.totalorder %s77, 7
      %p164 = por %p162, %p163
      %p166 = scmp.ne.s32.totalorder %s149, %s165
      %p167 = scmp.eq.s32.totalorder %s77, 0
      %p168 = por %p166, %p167
      %s169 = ssub.s32 %s78, %s90
      %p170 = scmp.eq.s32.totalorder %s169, 0
      %s172 = sadd.s32 %s171, 1
      %s173 = scalar_select %p170, %s171, %s172
      %p176 = pneg %p170
      %p177 = scmp.eq.s32.totalorder %s71, 7
      %p178 = por %p176, %p177
      %p179 = scmp.ne.s32.totalorder %s171, %s174
      %p180 = scmp.eq.s32.totalorder %s71, 0
      %p181 = por %p179, %p180
      %p182 = scmp.ne.s32.totalorder %s171, %s174
      %p183 = scmp.eq.s32.totalorder %s76, 7
      %p184 = por %p182, %p183
      %p185 = scmp.ne.s32.totalorder %s174, %s175
      %p186 = scmp.eq.s32.totalorder %s76, 0
      %p187 = por %p185, %p186
      %p188 = scmp.ne.s32.totalorder %s174, %s175
      %p189 = scmp.eq.s32.totalorder %s77, 7
      %p190 = por %p188, %p189
      %p192 = scmp.ne.s32.totalorder %s175, %s191
      %p193 = scmp.eq.s32.totalorder %s77, 0
      %p194 = por %p192, %p193
      %s196 = sadd.s32 %s195, 1
      %p199 = scmp.eq.s32.totalorder %s71, 7
      %p200 = scmp.ne.s32.totalorder %s195, %s197
      %p201 = scmp.eq.s32.totalorder %s71, 0
      %p202 = por %p200, %p201
      %p203 = scmp.ne.s32.totalorder %s195, %s197
      %p204 = scmp.eq.s32.totalorder %s76, 7
      %p205 = por %p203, %p204
      %p206 = scmp.ne.s32.totalorder %s197, %s198
      %p207 = scmp.eq.s32.totalorder %s76, 0
      %p208 = por %p206, %p207
      %p209 = scmp.ne.s32.totalorder %s197, %s198
      %p210 = scmp.eq.s32.totalorder %s77, 7
      %p211 = por %p209, %p210
      %p213 = scmp.ne.s32.totalorder %s198, %s212
      %p214 = scmp.eq.s32.totalorder %s77, 0
      %p215 = por %p213, %p214
      %s217 = sadd.s32 %s216, 1
      %p220 = scmp.eq.s32.totalorder %s71, 7
      %p221 = scmp.ne.s32.totalorder %s216, %s218
      %p222 = scmp.eq.s32.totalorder %s71, 0
      %p223 = por %p221, %p222
      %p224 = scmp.ne.s32.totalorder %s216, %s218
      %p225 = scmp.eq.s32.totalorder %s76, 7
      %p226 = por %p224, %p225
      %p227 = scmp.ne.s32.totalorder %s218, %s219
      %p228 = scmp.eq.s32.totalorder %s76, 0
      %p229 = por %p227, %p228
      %p230 = scmp.ne.s32.totalorder %s218, %s219
      %p231 = scmp.eq.s32.totalorder %s77, 7
      %p232 = por %p230, %p231
      %p234 = scmp.ne.s32.totalorder %s219, %s233
      %p235 = scmp.eq.s32.totalorder %s77, 0
      %p236 = por %p234, %p235
      %s238 = sadd.s32 %s237, 1
      %p241 = scmp.eq.s32.totalorder %s71, 7
      %p242 = scmp.ne.s32.totalorder %s237, %s239
      %p243 = scmp.eq.s32.totalorder %s71, 0
      %p244 = por %p242, %p243
      %p245 = scmp.ne.s32.totalorder %s237, %s239
      %p246 = scmp.eq.s32.totalorder %s76, 7
      %p247 = por %p245, %p246
      %p248 = scmp.ne.s32.totalorder %s239, %s240
      %p249 = scmp.eq.s32.totalorder %s76, 0
      %p250 = por %p248, %p249
      %p251 = scmp.ne.s32.totalorder %s239, %s240
      %p252 = scmp.eq.s32.totalorder %s77, 7
      %p253 = por %p251, %p252
      %p255 = scmp.ne.s32.totalorder %s240, %s254
      %p256 = scmp.eq.s32.totalorder %s77, 0
      %p257 = por %p255, %p256
      %s259 = sadd.s32 %s258, 1
      %p262 = scmp.eq.s32.totalorder %s71, 7
      %p263 = scmp.ne.s32.totalorder %s258, %s260
      %p264 = scmp.eq.s32.totalorder %s71, 0
      %p265 = por %p263, %p264
      %p266 = scmp.ne.s32.totalorder %s258, %s260
      %p267 = scmp.eq.s32.totalorder %s76, 7
      %p268 = por %p266, %p267
      %p269 = scmp.ne.s32.totalorder %s260, %s261
      %p270 = scmp.eq.s32.totalorder %s76, 0
      %p271 = por %p269, %p270
      %p272 = scmp.ne.s32.totalorder %s260, %s261
      %p273 = scmp.eq.s32.totalorder %s77, 7
      %p274 = por %p272, %p273
      %p276 = scmp.ne.s32.totalorder %s261, %s275
      %p277 = scmp.eq.s32.totalorder %s77, 0
      %p278 = por %p276, %p277
      %s280 = sadd.s32 %s279, 1
      %p283 = scmp.eq.s32.totalorder %s71, 7
      %p284 = scmp.ne.s32.totalorder %s279, %s281
      %p285 = scmp.eq.s32.totalorder %s71, 0
      %p286 = por %p284, %p285
      %p287 = scmp.ne.s32.totalorder %s279, %s281
      %p288 = scmp.eq.s32.totalorder %s76, 7
      %p289 = por %p287, %p288
      %p290 = scmp.ne.s32.totalorder %s281, %s282
      %p291 = scmp.eq.s32.totalorder %s76, 0
      %p292 = por %p290, %p291
      %p293 = scmp.ne.s32.totalorder %s281, %s282
      %p294 = scmp.eq.s32.totalorder %s77, 7
      %p295 = por %p293, %p294
      %p297 = scmp.ne.s32.totalorder %s282, %s296
      %p298 = scmp.eq.s32.totalorder %s77, 0
      %p299 = por %p297, %p298
      %s301 = sadd.s32 %s300, 1
      %p304 = scmp.eq.s32.totalorder %s71, 7
      %p305 = scmp.ne.s32.totalorder %s300, %s302
      %p306 = scmp.eq.s32.totalorder %s71, 0
      %p307 = por %p305, %p306
      %p308 = scmp.ne.s32.totalorder %s300, %s302
      %p309 = scmp.eq.s32.totalorder %s76, 7
      %p310 = por %p308, %p309
      %p311 = scmp.ne.s32.totalorder %s302, %s303
      %p312 = scmp.eq.s32.totalorder %s76, 0
      %p313 = por %p311, %p312
      %p314 = scmp.ne.s32.totalorder %s302, %s303
      %p315 = scmp.eq.s32.totalorder %s77, 7
      %p316 = por %p314, %p315
      %p318 = scmp.ne.s32.totalorder %s303, %s317
      %p319 = scmp.eq.s32.totalorder %s77, 0
      %p320 = por %p318, %p319
      %s322 = sadd.s32 %s321, 1
      %p325 = scmp.eq.s32.totalorder %s71, 7
      %p326 = scmp.ne.s32.totalorder %s321, %s323
      %p327 = scmp.eq.s32.totalorder %s71, 0
      %p328 = por %p326, %p327
      %p329 = scmp.ne.s32.totalorder %s321, %s323
      %p330 = scmp.eq.s32.totalorder %s76, 7
      %p331 = por %p329, %p330
      %p332 = scmp.ne.s32.totalorder %s323, %s324
      %p333 = scmp.eq.s32.totalorder %s76, 0
      %p334 = por %p332, %p333
      %p335 = scmp.ne.s32.totalorder %s323, %s324
      %p336 = scmp.eq.s32.totalorder %s77, 7
      %p337 = por %p335, %p336
      %p339 = scmp.ne.s32.totalorder %s324, %s338
      %p340 = scmp.eq.s32.totalorder %s77, 0
      %p341 = por %p339, %p340
      %s343 = sadd.s32 %s342, 1
      %p346 = scmp.eq.s32.totalorder %s71, 7
      %p347 = scmp.ne.s32.totalorder %s342, %s344
      %p348 = scmp.eq.s32.totalorder %s71, 0
      %p349 = por %p347, %p348
      %p350 = scmp.ne.s32.totalorder %s342, %s344
      %p351 = scmp.eq.s32.totalorder %s76, 7
      %p352 = por %p350, %p351
      %p353 = scmp.ne.s32.totalorder %s344, %s345
      %p354 = scmp.eq.s32.totalorder %s76, 0
      %p355 = por %p353, %p354
      %p356 = scmp.ne.s32.totalorder %s344, %s345
      %p357 = scmp.eq.s32.totalorder %s77, 7
      %p358 = por %p356, %p357
      %p360 = scmp.ne.s32.totalorder %s345, %s359
      %p361 = scmp.eq.s32.totalorder %s77, 0
      %p362 = por %p360, %p361
      %s364 = sadd.s32 %s363, 1
      %p367 = scmp.eq.s32.totalorder %s71, 7
      %p368 = scmp.ne.s32.totalorder %s363, %s365
      %p369 = scmp.eq.s32.totalorder %s71, 0
      %p370 = por %p368, %p369
      %p371 = scmp.ne.s32.totalorder %s363, %s365
      %p372 = scmp.eq.s32.totalorder %s76, 7
      %p373 = por %p371, %p372
      %p374 = scmp.ne.s32.totalorder %s365, %s366
      %p375 = scmp.eq.s32.totalorder %s76, 0
      %p376 = por %p374, %p375
      %p377 = scmp.ne.s32.totalorder %s365, %s366
      %p378 = scmp.eq.s32.totalorder %s77, 7
      %p379 = por %p377, %p378
      %p381 = scmp.ne.s32.totalorder %s366, %s380
      %p382 = scmp.eq.s32.totalorder %s77, 0
      %p383 = por %p381, %p382
      %s385 = sadd.s32 %s384, 1
      %p388 = scmp.eq.s32.totalorder %s71, 7
      %p389 = scmp.ne.s32.totalorder %s384, %s386
      %p390 = scmp.eq.s32.totalorder %s71, 0
      %p391 = por %p389, %p390
      %p392 = scmp.ne.s32.totalorder %s384, %s386
      %p393 = scmp.eq.s32.totalorder %s76, 7
      %p394 = por %p392, %p393
      %p395 = scmp.ne.s32.totalorder %s386, %s387
      %p396 = scmp.eq.s32.totalorder %s76, 0
      %p397 = por %p395, %p396
      %p398 = scmp.ne.s32.totalorder %s386, %s387
      %p399 = scmp.eq.s32.totalorder %s77, 7
      %p400 = por %p398, %p399
      %p402 = scmp.ne.s32.totalorder %s387, %s401
      %p403 = scmp.eq.s32.totalorder %s77, 0
      %p404 = por %p402, %p403
      %s406 = sadd.s32 %s405, 1
      %p409 = scmp.eq.s32.totalorder %s71, 7
      %p410 = scmp.ne.s32.totalorder %s405, %s407
      %p411 = scmp.eq.s32.totalorder %s71, 0
      %p412 = por %p410, %p411
      %p413 = scmp.ne.s32.totalorder %s405, %s407
      %p414 = scmp.eq.s32.totalorder %s76, 7
      %p415 = por %p413, %p414
      %p416 = scmp.ne.s32.totalorder %s407, %s408
      %p417 = scmp.eq.s32.totalorder %s76, 0
      %p418 = por %p416, %p417
      %p419 = scmp.ne.s32.totalorder %s407, %s408
      %p420 = scmp.eq.s32.totalorder %s77, 7
      %p421 = por %p419, %p420
      %p423 = scmp.ne.s32.totalorder %s408, %s422
      %p424 = scmp.eq.s32.totalorder %s77, 0
      %p425 = por %p423, %p424
      %s427 = sadd.s32 %s426, 1
      %p430 = scmp.eq.s32.totalorder %s71, 7
      %p431 = scmp.ne.s32.totalorder %s426, %s428
      %p432 = scmp.eq.s32.totalorder %s71, 0
      %p433 = por %p431, %p432
      %p434 = scmp.ne.s32.totalorder %s426, %s428
      %p435 = scmp.eq.s32.totalorder %s76, 7
      %p436 = por %p434, %p435
      %p437 = scmp.ne.s32.totalorder %s428, %s429
      %p438 = scmp.eq.s32.totalorder %s76, 0
      %p439 = por %p437, %p438
      %p440 = scmp.ne.s32.totalorder %s428, %s429
      %p441 = scmp.eq.s32.totalorder %s77, 7
      %p442 = por %p440, %p441
      %p444 = scmp.ne.s32.totalorder %s429, %s443
      %p445 = scmp.eq.s32.totalorder %s77, 0
      %p446 = por %p444, %p445
      %s448 = sadd.s32 %s447, 1
      %p451 = scmp.eq.s32.totalorder %s71, 7
      %p452 = scmp.ne.s32.totalorder %s447, %s449
      %p453 = scmp.eq.s32.totalorder %s71, 0
      %p454 = por %p452, %p453
      %p455 = scmp.ne.s32.totalorder %s447, %s449
      %p456 = scmp.eq.s32.totalorder %s76, 7
      %p457 = por %p455, %p456
      %p458 = scmp.ne.s32.totalorder %s449, %s450
      %p459 = scmp.eq.s32.totalorder %s76, 0
      %p460 = por %p458, %p459
      %p461 = scmp.ne.s32.totalorder %s449, %s450
      %p462 = scmp.eq.s32.totalorder %s77, 7
      %p463 = por %p461, %p462
      %p465 = scmp.ne.s32.totalorder %s450, %s464
      %p466 = scmp.eq.s32.totalorder %s77, 0
      %p467 = por %p465, %p466
      %s469 = sadd.s32 %s468, 1
      %p472 = scmp.eq.s32.totalorder %s71, 7
      %p473 = scmp.ne.s32.totalorder %s468, %s470
      %p474 = scmp.eq.s32.totalorder %s71, 0
      %p475 = por %p473, %p474
      %p476 = scmp.ne.s32.totalorder %s468, %s470
      %p477 = scmp.eq.s32.totalorder %s76, 7
      %p478 = por %p476, %p477
      %p479 = scmp.ne.s32.totalorder %s470, %s471
      %p480 = scmp.eq.s32.totalorder %s76, 0
      %p481 = por %p479, %p480
      %p482 = scmp.ne.s32.totalorder %s470, %s471
      %p483 = scmp.eq.s32.totalorder %s77, 7
      %p484 = por %p482, %p483
      %p486 = scmp.ne.s32.totalorder %s471, %s485
      %p487 = scmp.eq.s32.totalorder %s77, 0
      %p488 = por %p486, %p487
      %s490 = sadd.s32 %s489, 1
      %p493 = scmp.eq.s32.totalorder %s71, 7
      %p494 = scmp.ne.s32.totalorder %s489, %s491
      %p495 = scmp.eq.s32.totalorder %s71, 0
      %p496 = por %p494, %p495
      %p497 = scmp.ne.s32.totalorder %s489, %s491
      %p498 = scmp.eq.s32.totalorder %s76, 7
      %p499 = por %p497, %p498
      %p500 = scmp.ne.s32.totalorder %s491, %s492
      %p501 = scmp.eq.s32.totalorder %s76, 0
      %p502 = por %p500, %p501
      %p503 = scmp.ne.s32.totalorder %s491, %s492
      %p504 = scmp.eq.s32.totalorder %s77, 7
      %p505 = por %p503, %p504
      %p507 = scmp.ne.s32.totalorder %s492, %s506
      %p508 = scmp.eq.s32.totalorder %s77, 0
      %p509 = por %p507, %p508
      %s511 = sadd.s32 %s510, 1
      %p514 = scmp.eq.s32.totalorder %s71, 7
      %p515 = scmp.ne.s32.totalorder %s510, %s512
      %p516 = scmp.eq.s32.totalorder %s71, 0
      %p517 = por %p515, %p516
      %p518 = scmp.ne.s32.totalorder %s510, %s512
      %p519 = scmp.eq.s32.totalorder %s76, 7
      %p520 = por %p518, %p519
      %p521 = scmp.ne.s32.totalorder %s512, %s513
      %p522 = scmp.eq.s32.totalorder %s76, 0
      %p523 = por %p521, %p522
      %p524 = scmp.ne.s32.totalorder %s512, %s513
      %p525 = scmp.eq.s32.totalorder %s77, 7
      %p526 = por %p524, %p525
      %p528 = scmp.ne.s32.totalorder %s513, %s527
      %p529 = scmp.eq.s32.totalorder %s77, 0
      %p530 = por %p528, %p529
      %s532 = sadd.s32 %s531, 1
      %p535 = scmp.eq.s32.totalorder %s71, 7
      %p536 = scmp.ne.s32.totalorder %s531, %s533
      %p537 = scmp.eq.s32.totalorder %s71, 0
      %p538 = por %p536, %p537
      %p539 = scmp.ne.s32.totalorder %s531, %s533
      %p540 = scmp.eq.s32.totalorder %s76, 7
      %p541 = por %p539, %p540
      %p542 = scmp.ne.s32.totalorder %s533, %s534
      %p543 = scmp.eq.s32.totalorder %s76, 0
      %p544 = por %p542, %p543
      %p545 = scmp.ne.s32.totalorder %s533, %s534
      %p546 = scmp.eq.s32.totalorder %s77, 7
      %p547 = por %p545, %p546
      %p549 = scmp.ne.s32.totalorder %s534, %s548
      %p550 = scmp.eq.s32.totalorder %s77, 0
      %p551 = por %p549, %p550
      %s553 = sadd.s32 %s552, 1
      %p556 = scmp.eq.s32.totalorder %s71, 7
      %p557 = scmp.ne.s32.totalorder %s552, %s554
      %p558 = scmp.eq.s32.totalorder %s71, 0
      %p559 = por %p557, %p558
      %p560 = scmp.ne.s32.totalorder %s552, %s554
      %p561 = scmp.eq.s32.totalorder %s76, 7
      %p562 = por %p560, %p561
      %p563 = scmp.ne.s32.totalorder %s554, %s555
      %p564 = scmp.eq.s32.totalorder %s76, 0
      %p565 = por %p563, %p564
      %p566 = scmp.ne.s32.totalorder %s554, %s555
      %p567 = scmp.eq.s32.totalorder %s77, 7
      %p568 = por %p566, %p567
      %p570 = scmp.ne.s32.totalorder %s555, %s569
      %p571 = scmp.eq.s32.totalorder %s77, 0
      %p572 = por %p570, %p571
      %s574 = sadd.s32 %s573, 1
      %p577 = scmp.eq.s32.totalorder %s71, 7
      %p578 = scmp.ne.s32.totalorder %s573, %s575
      %p579 = scmp.eq.s32.totalorder %s71, 0
      %p580 = por %p578, %p579
      %p581 = scmp.ne.s32.totalorder %s573, %s575
      %p582 = scmp.eq.s32.totalorder %s76, 7
      %p583 = por %p581, %p582
      %p584 = scmp.ne.s32.totalorder %s575, %s576
      %p585 = scmp.eq.s32.totalorder %s76, 0
      %p586 = por %p584, %p585
      %p587 = scmp.ne.s32.totalorder %s575, %s576
      %p588 = scmp.eq.s32.totalorder %s77, 7
      %p589 = por %p587, %p588
      %p591 = scmp.ne.s32.totalorder %s576, %s590
      %p592 = scmp.eq.s32.totalorder %s77, 0
      %p593 = por %p591, %p592
      %s595 = sadd.s32 %s594, 1
      %p598 = scmp.eq.s32.totalorder %s71, 7
      %p599 = scmp.ne.s32.totalorder %s594, %s596
      %p600 = scmp.eq.s32.totalorder %s71, 0
      %p601 = por %p599, %p600
      %p602 = scmp.ne.s32.totalorder %s594, %s596
      %p603 = scmp.eq.s32.totalorder %s76, 7
      %p604 = por %p602, %p603
      %p605 = scmp.ne.s32.totalorder %s596, %s597
      %p606 = scmp.eq.s32.totalorder %s76, 0
      %p607 = por %p605, %p606
      %p608 = scmp.ne.s32.totalorder %s596, %s597
      %p609 = scmp.eq.s32.totalorder %s77, 7
      %p610 = por %p608, %p609
      %p612 = scmp.ne.s32.totalorder %s597, %s611
      %p613 = scmp.eq.s32.totalorder %s77, 0
      %p614 = por %p612, %p613
      %s616 = sadd.s32 %s615, 1
      %p619 = scmp.eq.s32.totalorder %s71, 7
      %p620 = scmp.ne.s32.totalorder %s615, %s617
      %p621 = scmp.eq.s32.totalorder %s71, 0
      %p622 = por %p620, %p621
      %p623 = scmp.ne.s32.totalorder %s615, %s617
      %p624 = scmp.eq.s32.totalorder %s76, 7
      %p625 = por %p623, %p624
      %p626 = scmp.ne.s32.totalorder %s617, %s618
      %p627 = scmp.eq.s32.totalorder %s76, 0
      %p628 = por %p626, %p627
      %p629 = scmp.ne.s32.totalorder %s617, %s618
      %p630 = scmp.eq.s32.totalorder %s77, 7
      %p631 = por %p629, %p630
      %p633 = scmp.ne.s32.totalorder %s618, %s632
      %p634 = scmp.eq.s32.totalorder %s77, 0
      %p635 = por %p633, %p634
      %s637 = sadd.s32 %s636, 1
      %p640 = scmp.eq.s32.totalorder %s71, 7
      %p641 = scmp.ne.s32.totalorder %s636, %s638
      %p642 = scmp.eq.s32.totalorder %s71, 0
      %p643 = por %p641, %p642
      %p644 = scmp.ne.s32.totalorder %s636, %s638
      %p645 = scmp.eq.s32.totalorder %s76, 7
      %p646 = por %p644, %p645
      %p647 = scmp.ne.s32.totalorder %s638, %s639
      %p648 = scmp.eq.s32.totalorder %s76, 0
      %p649 = por %p647, %p648
      %p650 = scmp.ne.s32.totalorder %s638, %s639
      %p651 = scmp.eq.s32.totalorder %s77, 7
      %p652 = por %p650, %p651
      %p654 = scmp.ne.s32.totalorder %s639, %s653
      %p655 = scmp.eq.s32.totalorder %s77, 0
      %p656 = por %p654, %p655
      %s657 = ssub.s32 %s79, %s86
      %p658 = scmp.eq.s32.totalorder %s657, 0
      %s660 = sadd.s32 %s659, 1
      %s661 = scalar_select %p658, %s659, %s660
      %p664 = pneg %p658
      %p665 = scmp.eq.s32.totalorder %s71, 7
      %p666 = por %p664, %p665
      %p667 = scmp.ne.s32.totalorder %s659, %s662
      %p668 = scmp.eq.s32.totalorder %s71, 0
      %p669 = por %p667, %p668
      %p670 = scmp.ne.s32.totalorder %s659, %s662
      %p671 = scmp.eq.s32.totalorder %s76, 7
      %p672 = por %p670, %p671
      %p673 = scmp.ne.s32.totalorder %s662, %s663
      %p674 = scmp.eq.s32.totalorder %s76, 0
      %p675 = por %p673, %p674
      %p676 = scmp.ne.s32.totalorder %s662, %s663
      %p677 = scmp.eq.s32.totalorder %s77, 7
      %p678 = por %p676, %p677
      %p680 = scmp.ne.s32.totalorder %s663, %s679
      %p681 = scmp.eq.s32.totalorder %s77, 0
      %p682 = por %p680, %p681
      %s683 = ssub.s32 %s79, %s86
      %p684 = scmp.eq.s32.totalorder %s683, 0
      %s686 = sadd.s32 %s685, 1
      %s687 = scalar_select %p684, %s685, %s686
      %p690 = pneg %p684
      %p691 = scmp.eq.s32.totalorder %s71, 7
      %p692 = por %p690, %p691
      %p693 = scmp.ne.s32.totalorder %s685, %s688
      %p694 = scmp.eq.s32.totalorder %s71, 0
      %p695 = por %p693, %p694
      %p696 = scmp.ne.s32.totalorder %s685, %s688
      %p697 = scmp.eq.s32.totalorder %s76, 7
      %p698 = por %p696, %p697
      %p699 = scmp.ne.s32.totalorder %s688, %s689
      %p700 = scmp.eq.s32.totalorder %s76, 0
      %p701 = por %p699, %p700
      %p702 = scmp.ne.s32.totalorder %s688, %s689
      %p703 = scmp.eq.s32.totalorder %s77, 7
      %p704 = por %p702, %p703
      %p706 = scmp.ne.s32.totalorder %s689, %s705
      %p707 = scmp.eq.s32.totalorder %s77, 0
      %p708 = por %p706, %p707
      %s709 = ssub.s32 %s78, %s90
      %s710 = ssub.s32 %s79, %s86
      %s711 = sor.u32 %s709, %s710
      %p712 = scmp.eq.s32.totalorder %s711, 0
      %s714 = sadd.s32 %s713, 1
      %s715 = scalar_select %p712, %s713, %s714
      %p718 = pneg %p712
      %p719 = scmp.eq.s32.totalorder %s71, 7
      %p720 = por %p718, %p719
      %p721 = scmp.ne.s32.totalorder %s713, %s716
      %p722 = scmp.eq.s32.totalorder %s71, 0
      %p723 = por %p721, %p722
      %p724 = scmp.ne.s32.totalorder %s713, %s716
      %p725 = scmp.eq.s32.totalorder %s76, 7
      %p726 = por %p724, %p725
      %p727 = scmp.ne.s32.totalorder %s716, %s717
      %p728 = scmp.eq.s32.totalorder %s76, 0
      %p729 = por %p727, %p728
      %p730 = scmp.ne.s32.totalorder %s716, %s717
      %p731 = scmp.eq.s32.totalorder %s77, 7
      %p732 = por %p730, %p731
      %p734 = scmp.ne.s32.totalorder %s717, %s733
      %p735 = scmp.eq.s32.totalorder %s77, 0
      %p736 = por %p734, %p735
      %s737 = ssub.s32 %s78, %s90
      %p738 = scmp.eq.s32.totalorder %s737, 0
      %s740 = sadd.s32 %s739, 1
      %s741 = scalar_select %p738, %s739, %s740
      %p744 = pneg %p738
      %p745 = scmp.eq.s32.totalorder %s71, 7
      %p746 = por %p744, %p745
      %p747 = scmp.ne.s32.totalorder %s739, %s742
      %p748 = scmp.eq.s32.totalorder %s71, 0
      %p749 = por %p747, %p748
      %p750 = scmp.ne.s32.totalorder %s739, %s742
      %p751 = scmp.eq.s32.totalorder %s76, 7
      %p752 = por %p750, %p751
      %p753 = scmp.ne.s32.totalorder %s742, %s743
      %p754 = scmp.eq.s32.totalorder %s76, 0
      %p755 = por %p753, %p754
      %p756 = scmp.ne.s32.totalorder %s742, %s743
      %p757 = scmp.eq.s32.totalorder %s77, 7
      %p758 = por %p756, %p757
      %p760 = scmp.ne.s32.totalorder %s743, %s759
      %p761 = scmp.eq.s32.totalorder %s77, 0
      %p762 = por %p760, %p761
      %s763 = ssub.s32 %s78, %s90
      %p764 = scmp.eq.s32.totalorder %s763, 0
      %s766 = sadd.s32 %s765, 1
      %s767 = scalar_select %p764, %s765, %s766
      %p770 = pneg %p764
      %p771 = scmp.eq.s32.totalorder %s71, 7
      %p772 = por %p770, %p771
      %p773 = scmp.ne.s32.totalorder %s765, %s768
      %p774 = scmp.eq.s32.totalorder %s71, 0
      %p775 = por %p773, %p774
      %p776 = scmp.ne.s32.totalorder %s765, %s768
      %p777 = scmp.eq.s32.totalorder %s76, 7
      %p778 = por %p776, %p777
      %p779 = scmp.ne.s32.totalorder %s768, %s769
      %p780 = scmp.eq.s32.totalorder %s76, 0
      %p781 = por %p779, %p780
      %p782 = scmp.ne.s32.totalorder %s768, %s769
      %p783 = scmp.eq.s32.totalorder %s77, 7
      %p784 = por %p782, %p783
      %p786 = scmp.ne.s32.totalorder %s769, %s785
      %p787 = scmp.eq.s32.totalorder %s77, 0
      %p788 = por %p786, %p787
      %p789 = scmp.le.s32.totalorder 1, %s71
      %p790 = scmp.lt.s32.totalorder %s71, 9
      %p791 = pnand %p789, %p790
      %p792 = pneg %p791
      // Predicated region
      $region9: #{joint_orchestrator_forward.5} parent=5 // pred_check
        _
      $region10: #{joint_orchestrator_forward.5} parent=5 // pred_check_branch
        %794 = sbr.rel (%p791) target = $region12
      $region11: #{joint_orchestrator_forward.5} parent=5 // pred_region
        %s795 = ssub.s32 %s71, 1
        // Predicated region
        $region13: #{joint_orchestrator_forward.5} parent=11 // pred_check
          %p796 = pneg %p208
        $region14: #{joint_orchestrator_forward.5} parent=11 // pred_check_branch
          %798 = sbr.rel (%p796) target = $region16
        $region15: #{joint_orchestrator_forward.5} parent=11 // pred_region
          _
        $region16: #{joint_orchestrator_forward.5} parent=11 // pred_fallthru
          _
        // Predicated region
        $region17: #{joint_orchestrator_forward.5} parent=11 // pred_check
          %p799 = pneg %p229
        $region18: #{joint_orchestrator_forward.5} parent=11 // pred_check_branch
          %801 = sbr.rel (%p799) target = $region20
        $region19: #{joint_orchestrator_forward.5} parent=11 // pred_region
          _
        $region20: #{joint_orchestrator_forward.5} parent=11 // pred_fallthru
          _
        // Predicated region
        $region21: #{joint_orchestrator_forward.5} parent=11 // pred_check
          %p802 = pneg %p250
        $region22: #{joint_orchestrator_forward.5} parent=11 // pred_check_branch
          %804 = sbr.rel (%p802) target = $region24
        $region23: #{joint_orchestrator_forward.5} parent=11 // pred_region
          _
        $region24: #{joint_orchestrator_forward.5} parent=11 // pred_fallthru
          _
        // Predicated region
        $region25: #{joint_orchestrator_forward.5} parent=11 // pred_check
          %p805 = pneg %p271
        $region26: #{joint_orchestrator_forward.5} parent=11 // pred_check_branch
          %807 = sbr.rel (%p805) target = $region28
        $region27: #{joint_orchestrator_forward.5} parent=11 // pred_region
          _
        $region28: #{joint_orchestrator_forward.5} parent=11 // pred_fallthru
          _
        // Predicated region
        $region29: #{joint_orchestrator_forward.5} parent=11 // pred_check
          %p808 = pneg %p292
        $region30: #{joint_orchestrator_forward.5} parent=11 // pred_check_branch
          %810 = sbr.rel (%p808) target = $region32
        $region31: #{joint_orchestrator_forward.5} parent=11 // pred_region
          _
        $region32: #{joint_orchestrator_forward.5} parent=11 // pred_fallthru
          _
        // Predicated region
        $region33: #{joint_orchestrator_forward.5} parent=11 // pred_check
          %p811 = pneg %p313
        $region34: #{joint_orchestrator_forward.5} parent=11 // pred_check_branch
          %813 = sbr.rel (%p811) target = $region36
        $region35: #{joint_orchestrator_forward.5} parent=11 // pred_region
          _
        $region36: #{joint_orchestrator_forward.5} parent=11 // pred_fallthru
          _
        // Predicated region
        $region37: #{joint_orchestrator_forward.5} parent=11 // pred_check
          %p814 = pneg %p334
        $region38: #{joint_orchestrator_forward.5} parent=11 // pred_check_branch
          %816 = sbr.rel (%p814) target = $region40
        $region39: #{joint_orchestrator_forward.5} parent=11 // pred_region
          _
        $region40: #{joint_orchestrator_forward.5} parent=11 // pred_fallthru
          _
        // Predicated region
        $region41: #{joint_orchestrator_forward.5} parent=11 // pred_check
          %p817 = pneg %p355
        $region42: #{joint_orchestrator_forward.5} parent=11 // pred_check_branch
          %819 = sbr.rel (%p817) target = $region44
        $region43: #{joint_orchestrator_forward.5} parent=11 // pred_region
          _
        $region44: #{joint_orchestrator_forward.5} parent=11 // pred_fallthru
          _
        // Predicated region
        $region45: #{joint_orchestrator_forward.5} parent=11 // pred_check
          %p820 = pneg %p376
        $region46: #{joint_orchestrator_forward.5} parent=11 // pred_check_branch
          %822 = sbr.rel (%p820) target = $region48
        $region47: #{joint_orchestrator_forward.5} parent=11 // pred_region
          _
        $region48: #{joint_orchestrator_forward.5} parent=11 // pred_fallthru
          _
        // Predicated region
        $region49: #{joint_orchestrator_forward.5} parent=11 // pred_check
          %p823 = pneg %p397
        $region50: #{joint_orchestrator_forward.5} parent=11 // pred_check_branch
          %825 = sbr.rel (%p823) target = $region52
        $region51: #{joint_orchestrator_forward.5} parent=11 // pred_region
          _
        $region52: #{joint_orchestrator_forward.5} parent=11 // pred_fallthru
          _
        // Predicated region
        $region53: #{joint_orchestrator_forward.5} parent=11 // pred_check
          %p826 = pneg %p418
        $region54: #{joint_orchestrator_forward.5} parent=11 // pred_check_branch
          %828 = sbr.rel (%p826) target = $region56
        $region55: #{joint_orchestrator_forward.5} parent=11 // pred_region
          _
        $region56: #{joint_orchestrator_forward.5} parent=11 // pred_fallthru
          _
        // Predicated region
        $region57: #{joint_orchestrator_forward.5} parent=11 // pred_check
          %p829 = pneg %p439
        $region58: #{joint_orchestrator_forward.5} parent=11 // pred_check_branch
          %831 = sbr.rel (%p829) target = $region60
        $region59: #{joint_orchestrator_forward.5} parent=11 // pred_region
          _
        $region60: #{joint_orchestrator_forward.5} parent=11 // pred_fallthru
          _
        // Predicated region
        $region61: #{joint_orchestrator_forward.5} parent=11 // pred_check
          %p832 = pneg %p460
        $region62: #{joint_orchestrator_forward.5} parent=11 // pred_check_branch
          %834 = sbr.rel (%p832) target = $region64
        $region63: #{joint_orchestrator_forward.5} parent=11 // pred_region
          _
        $region64: #{joint_orchestrator_forward.5} parent=11 // pred_fallthru
          _
        // Predicated region
        $region65: #{joint_orchestrator_forward.5} parent=11 // pred_check
          %p835 = pneg %p481
        $region66: #{joint_orchestrator_forward.5} parent=11 // pred_check_branch
          %837 = sbr.rel (%p835) target = $region68
        $region67: #{joint_orchestrator_forward.5} parent=11 // pred_region
          _
        $region68: #{joint_orchestrator_forward.5} parent=11 // pred_fallthru
          _
        // Predicated region
        $region69: #{joint_orchestrator_forward.5} parent=11 // pred_check
          %p838 = pneg %p502
        $region70: #{joint_orchestrator_forward.5} parent=11 // pred_check_branch
          %840 = sbr.rel (%p838) target = $region72
        $region71: #{joint_orchestrator_forward.5} parent=11 // pred_region
          _
        $region72: #{joint_orchestrator_forward.5} parent=11 // pred_fallthru
          _
        // Predicated region
        $region73: #{joint_orchestrator_forward.5} parent=11 // pred_check
          %p841 = pneg %p523
        $region74: #{joint_orchestrator_forward.5} parent=11 // pred_check_branch
          %843 = sbr.rel (%p841) target = $region76
        $region75: #{joint_orchestrator_forward.5} parent=11 // pred_region
          _
        $region76: #{joint_orchestrator_forward.5} parent=11 // pred_fallthru
          _
        // Predicated region
        $region77: #{joint_orchestrator_forward.5} parent=11 // pred_check
          %p844 = pneg %p544
        $region78: #{joint_orchestrator_forward.5} parent=11 // pred_check_branch
          %846 = sbr.rel (%p844) target = $region80
        $region79: #{joint_orchestrator_forward.5} parent=11 // pred_region
          _
        $region80: #{joint_orchestrator_forward.5} parent=11 // pred_fallthru
          _
        // Predicated region
        $region81: #{joint_orchestrator_forward.5} parent=11 // pred_check
          %p847 = pneg %p565
        $region82: #{joint_orchestrator_forward.5} parent=11 // pred_check_branch
          %849 = sbr.rel (%p847) target = $region84
        $region83: #{joint_orchestrator_forward.5} parent=11 // pred_region
          _
        $region84: #{joint_orchestrator_forward.5} parent=11 // pred_fallthru
          _
        // Predicated region
        $region85: #{joint_orchestrator_forward.5} parent=11 // pred_check
          %p850 = pneg %p586
        $region86: #{joint_orchestrator_forward.5} parent=11 // pred_check_branch
          %852 = sbr.rel (%p850) target = $region88
        $region87: #{joint_orchestrator_forward.5} parent=11 // pred_region
          _
        $region88: #{joint_orchestrator_forward.5} parent=11 // pred_fallthru
          _
        // Predicated region
        $region89: #{joint_orchestrator_forward.5} parent=11 // pred_check
          %p853 = pneg %p607
        $region90: #{joint_orchestrator_forward.5} parent=11 // pred_check_branch
          %855 = sbr.rel (%p853) target = $region92
        $region91: #{joint_orchestrator_forward.5} parent=11 // pred_region
          _
        $region92: #{joint_orchestrator_forward.5} parent=11 // pred_fallthru
          _
        // Predicated region
        $region93: #{joint_orchestrator_forward.5} parent=11 // pred_check
          %p856 = pneg %p628
        $region94: #{joint_orchestrator_forward.5} parent=11 // pred_check_branch
          %858 = sbr.rel (%p856) target = $region96
        $region95: #{joint_orchestrator_forward.5} parent=11 // pred_region
          _
        $region96: #{joint_orchestrator_forward.5} parent=11 // pred_fallthru
          _
        // Predicated region
        $region97: #{joint_orchestrator_forward.5} parent=11 // pred_check
          %p859 = pneg %p649
        $region98: #{joint_orchestrator_forward.5} parent=11 // pred_check_branch
          %861 = sbr.rel (%p859) target = $region100
        $region99: #{joint_orchestrator_forward.5} parent=11 // pred_region
          _
        $region100: #{joint_orchestrator_forward.5} parent=11 // pred_fallthru
          _
      $region12: #{joint_orchestrator_forward.5} parent=5 // pred_fallthru
        _
      %p862 = scmp.lt.s32.totalorder %s71, 8
      // Predicated region
      $region101: #{joint_orchestrator_forward.5} parent=5 // pred_check
        %p863 = pneg %p862
      $region102: #{joint_orchestrator_forward.5} parent=5 // pred_check_branch
        %865 = sbr.rel (%p863) target = $region104
      $region103: #{joint_orchestrator_forward.5} parent=5 // pred_region
        // Predicated region
        $region105: #{joint_orchestrator_forward.5} parent=103 // pred_check
          %p866 = pneg %p103
        $region106: #{joint_orchestrator_forward.5} parent=103 // pred_check_branch
          %868 = sbr.rel (%p866) target = $region108
        $region107: #{joint_orchestrator_forward.5} parent=103 // pred_region
          %p869 = scmp.lt.s32.totalorder %s78, 3
          %s870 = scalar_select %p869, %s78, 3
          %s871 = smul.addr %s870, 16
          %s872 = smul.addr %s871, 4
          %s873 = scalar_lea.vmem %s1, %s872
        $region108: #{joint_orchestrator_forward.5} parent=103 // pred_fallthru
          _
        // Predicated region
        $region109: #{joint_orchestrator_forward.5} parent=103 // pred_check
          %p874 = pneg %p129
        $region110: #{joint_orchestrator_forward.5} parent=103 // pred_check_branch
          %876 = sbr.rel (%p874) target = $region112
        $region111: #{joint_orchestrator_forward.5} parent=103 // pred_region
          %p877 = scmp.lt.s32.totalorder %s78, 3
          %s878 = scalar_select %p877, %s78, 3
          %s879 = smul.addr %s878, 16
          %s880 = smul.addr %s879, 4
          %s881 = scalar_lea.vmem %s3, %s880
        $region112: #{joint_orchestrator_forward.5} parent=103 // pred_fallthru
          _
        // Predicated region
        $region113: #{joint_orchestrator_forward.5} parent=103 // pred_check
          %p882 = pneg %p155
        $region114: #{joint_orchestrator_forward.5} parent=103 // pred_check_branch
          %884 = sbr.rel (%p882) target = $region116
        $region115: #{joint_orchestrator_forward.5} parent=103 // pred_region
          %p885 = scmp.lt.s32.totalorder %s78, 3
          %s886 = scalar_select %p885, %s78, 3
          %s887 = scalar_lea.vmem %s5, %s886
        $region116: #{joint_orchestrator_forward.5} parent=103 // pred_fallthru
          _
        // Predicated region
        $region117: #{joint_orchestrator_forward.5} parent=103 // pred_check
          %p888 = pneg %p181
        $region118: #{joint_orchestrator_forward.5} parent=103 // pred_check_branch
          %890 = sbr.rel (%p888) target = $region120
        $region119: #{joint_orchestrator_forward.5} parent=103 // pred_region
          %p891 = scmp.lt.s32.totalorder %s78, 3
          %s892 = scalar_select %p891, %s78, 3
          %s893 = smul.addr %s892, 16
          %s894 = smul.addr %s893, 8
          %s895 = scalar_lea.vmem %s7, %s894
        $region120: #{joint_orchestrator_forward.5} parent=103 // pred_fallthru
          _
        // Predicated region
        $region121: #{joint_orchestrator_forward.5} parent=103 // pred_check
          %p896 = pneg %p669
        $region122: #{joint_orchestrator_forward.5} parent=103 // pred_check_branch
          %898 = sbr.rel (%p896) target = $region124
        $region123: #{joint_orchestrator_forward.5} parent=103 // pred_region
          %s899 = sand.u32 %s659, 1
          %s900 = sand.u32 %s659, 1
          %s901 = smul.addr %s900, 64
          %s902 = scalar_lea.vmem [#allocation6], %s901
          %s903 = smul.addr %s79, 4
          %s904 = scalar_lea.vmem %s53, %s903
          // Predicated region
          $region125: #{joint_orchestrator_forward.5} parent=123 // pred_check
            _
          $region126: #{joint_orchestrator_forward.5} parent=123 // pred_check_branch
            %906 = sbr.rel (0) target = $region128
          $region127: #{joint_orchestrator_forward.5} parent=123 // pred_region
            // Predicated region
            $region129: #{joint_orchestrator_forward.5} parent=127 // pred_check
              _
            $region130: #{joint_orchestrator_forward.5} parent=127 // pred_check_branch
              %908 = sbr.rel target = $region132
            $region131: #{joint_orchestrator_forward.5} parent=127 // pred_region
              // Predicated region
              $region144: #{joint_orchestrator_forward.5} parent=131 // pred_check
                _
              $region145: #{joint_orchestrator_forward.5} parent=131 // pred_check_branch
                %954 = sbr.rel (0) target = $region147
              $region146: #{joint_orchestrator_forward.5} parent=131 // pred_region
                loop: start=0, step=1, limit=1
                $region148: #{joint_orchestrator_forward.5} parent=146 // loop_pre_header
                  _
                $region149: #{joint_orchestrator_forward.5} parent=146 // loop_header
                  %s956 = sphi 0, %s960
                  %p957 = scmp.ge.s32.totalorder %s956, 1
                  %s961 = sphi %s904, %s904
                  %s962 = sphi %s902, %s902
                $region150: #{joint_orchestrator_forward.5} parent=146 // loop_header_branch
                  %959 = sbr.rel (%p957) target = $region154
                $region151: #{joint_orchestrator_forward.5} parent=146 // loop_body
                  _
                $region152: #{joint_orchestrator_forward.5} parent=146 // loop_footer
                  %s960 = sadd.s32 1, %s956
                $region153: #{joint_orchestrator_forward.5} parent=146 // loop_footer_branch
                  %955 = sbr.rel target = $region149
                $region154: #{joint_orchestrator_forward.5} parent=146 // loop_exit
                  _
                %s964 = ssub.s32 16, 1
                loop: start=0, step=1, limit=1
                $region155: #{joint_orchestrator_forward.5} parent=146 // loop_pre_header
                  _
                $region156: #{joint_orchestrator_forward.5} parent=146 // loop_header
                  %s966 = sphi 0, %s970
                  %p967 = scmp.ge.s32.totalorder %s966, 1
                  %s971 = sphi %s904, %s904
                  %s972 = sphi %s902, %s902
                $region157: #{joint_orchestrator_forward.5} parent=146 // loop_header_branch
                  %969 = sbr.rel (%p967) target = $region161
                $region158: #{joint_orchestrator_forward.5} parent=146 // loop_body
                  %v973 = vld [vmem:[%s971] sm:%s964]
                  %974 = vst [vmem:[%s972] sm:%s964] %v973
                  %v975 = vld [vmem:[%s971 + $0x8] sm:%s964]
                  %976 = vst [vmem:[%s972 + $0x4] sm:%s964] %v975
                  %v977 = vld [vmem:[%s971 + $0x10] sm:%s964]
                  %978 = vst [vmem:[%s972 + $0x8] sm:%s964] %v977
                  %v979 = vld [vmem:[%s971 + $0x18] sm:%s964]
                  %980 = vst [vmem:[%s972 + $0xc] sm:%s964] %v979
                  %v981 = vld [vmem:[%s971 + $0x20] sm:%s964]
                  %982 = vst [vmem:[%s972 + $0x10] sm:%s964] %v981
                  %v983 = vld [vmem:[%s971 + $0x28] sm:%s964]
                  %984 = vst [vmem:[%s972 + $0x14] sm:%s964] %v983
                  %v985 = vld [vmem:[%s971 + $0x30] sm:%s964]
                  %986 = vst [vmem:[%s972 + $0x18] sm:%s964] %v985
                  %v987 = vld [vmem:[%s971 + $0x38] sm:%s964]
                  %988 = vst [vmem:[%s972 + $0x1c] sm:%s964] %v987
                  %v989 = vld [vmem:[%s971 + $0x40] sm:%s964]
                  %990 = vst [vmem:[%s972 + $0x20] sm:%s964] %v989
                  %v991 = vld [vmem:[%s971 + $0x48] sm:%s964]
                  %992 = vst [vmem:[%s972 + $0x24] sm:%s964] %v991
                  %v993 = vld [vmem:[%s971 + $0x50] sm:%s964]
                  %994 = vst [vmem:[%s972 + $0x28] sm:%s964] %v993
                  %v995 = vld [vmem:[%s971 + $0x58] sm:%s964]
                  %996 = vst [vmem:[%s972 + $0x2c] sm:%s964] %v995
                  %v997 = vld [vmem:[%s971 + $0x60] sm:%s964]
                  %998 = vst [vmem:[%s972 + $0x30] sm:%s964] %v997
                  %v999 = vld [vmem:[%s971 + $0x68] sm:%s964]
                  %1000 = vst [vmem:[%s972 + $0x34] sm:%s964] %v999
                  %v1001 = vld [vmem:[%s971 + $0x70] sm:%s964]
                  %1002 = vst [vmem:[%s972 + $0x38] sm:%s964] %v1001
                  %v1003 = vld [vmem:[%s971 + $0x78] sm:%s964]
                  %1004 = vst [vmem:[%s972 + $0x3c] sm:%s964] %v1003
                $region159: #{joint_orchestrator_forward.5} parent=146 // loop_footer
                  %s970 = sadd.s32 1, %s966
                $region160: #{joint_orchestrator_forward.5} parent=146 // loop_footer_branch
                  %965 = sbr.rel target = $region156
                $region161: #{joint_orchestrator_forward.5} parent=146 // loop_exit
                  _
              $region147: #{joint_orchestrator_forward.5} parent=131 // pred_fallthru
                _
            $region132: #{joint_orchestrator_forward.5} parent=127 // pred_fallthru
              _
            // Predicated region
            $region133: #{joint_orchestrator_forward.5} parent=127 // pred_check
              _
            $region134: #{joint_orchestrator_forward.5} parent=127 // pred_check_branch
              %910 = sbr.rel (0) target = $region136
            $region135: #{joint_orchestrator_forward.5} parent=127 // pred_region
              %s912 = ssub.s32 16, 1
              loop: start=0, step=1, limit=1
              $region137: #{joint_orchestrator_forward.5} parent=135 // loop_pre_header
                _
              $region138: #{joint_orchestrator_forward.5} parent=135 // loop_header
                %s914 = sphi 0, %s918
                %p915 = scmp.ge.s32.totalorder %s914, 1
                %s919 = sphi %s904, %s904
                %s920 = sphi %s902, %s902
              $region139: #{joint_orchestrator_forward.5} parent=135 // loop_header_branch
                %917 = sbr.rel (%p915) target = $region143
              $region140: #{joint_orchestrator_forward.5} parent=135 // loop_body
                %v921 = vld [vmem:[%s919] sm:%s912]
                %922 = vst [vmem:[%s920] sm:%s912] %v921
                %v923 = vld [vmem:[%s919 + $0x8] sm:%s912]
                %924 = vst [vmem:[%s920 + $0x4] sm:%s912] %v923
                %v925 = vld [vmem:[%s919 + $0x10] sm:%s912]
                %926 = vst [vmem:[%s920 + $0x8] sm:%s912] %v925
                %v927 = vld [vmem:[%s919 + $0x18] sm:%s912]
                %928 = vst [vmem:[%s920 + $0xc] sm:%s912] %v927
                %v929 = vld [vmem:[%s919 + $0x20] sm:%s912]
                %930 = vst [vmem:[%s920 + $0x10] sm:%s912] %v929
                %v931 = vld [vmem:[%s919 + $0x28] sm:%s912]
                %932 = vst [vmem:[%s920 + $0x14] sm:%s912] %v931
                %v933 = vld [vmem:[%s919 + $0x30] sm:%s912]
                %934 = vst [vmem:[%s920 + $0x18] sm:%s912] %v933
                %v935 = vld [vmem:[%s919 + $0x38] sm:%s912]
                %936 = vst [vmem:[%s920 + $0x1c] sm:%s912] %v935
                %v937 = vld [vmem:[%s919 + $0x40] sm:%s912]
                %938 = vst [vmem:[%s920 + $0x20] sm:%s912] %v937
                %v939 = vld [vmem:[%s919 + $0x48] sm:%s912]
                %940 = vst [vmem:[%s920 + $0x24] sm:%s912] %v939
                %v941 = vld [vmem:[%s919 + $0x50] sm:%s912]
                %942 = vst [vmem:[%s920 + $0x28] sm:%s912] %v941
                %v943 = vld [vmem:[%s919 + $0x58] sm:%s912]
                %944 = vst [vmem:[%s920 + $0x2c] sm:%s912] %v943
                %v945 = vld [vmem:[%s919 + $0x60] sm:%s912]
                %946 = vst [vmem:[%s920 + $0x30] sm:%s912] %v945
                %v947 = vld [vmem:[%s919 + $0x68] sm:%s912]
                %948 = vst [vmem:[%s920 + $0x34] sm:%s912] %v947
                %v949 = vld [vmem:[%s919 + $0x70] sm:%s912]
                %950 = vst [vmem:[%s920 + $0x38] sm:%s912] %v949
                %v951 = vld [vmem:[%s919 + $0x78] sm:%s912]
                %952 = vst [vmem:[%s920 + $0x3c] sm:%s912] %v951
              $region141: #{joint_orchestrator_forward.5} parent=135 // loop_footer
                %s918 = sadd.s32 1, %s914
              $region142: #{joint_orchestrator_forward.5} parent=135 // loop_footer_branch
                %913 = sbr.rel target = $region138
              $region143: #{joint_orchestrator_forward.5} parent=135 // loop_exit
                _
            $region136: #{joint_orchestrator_forward.5} parent=127 // pred_fallthru
              _
          $region128: #{joint_orchestrator_forward.5} parent=123 // pred_fallthru
            _
          %1005 = vnop
        $region124: #{joint_orchestrator_forward.5} parent=103 // pred_fallthru
          _
        // Predicated region
        $region162: #{joint_orchestrator_forward.5} parent=103 // pred_check
          %p1006 = pneg %p695
        $region163: #{joint_orchestrator_forward.5} parent=103 // pred_check_branch
          %1008 = sbr.rel (%p1006) target = $region165
        $region164: #{joint_orchestrator_forward.5} parent=103 // pred_region
          %p1009 = scmp.lt.s32.totalorder %s79, 1
          %s1010 = scalar_select %p1009, %s79, 1
          %s1011 = scalar_lea.vmem %s55, %s1010
        $region165: #{joint_orchestrator_forward.5} parent=103 // pred_fallthru
          _
      $region104: #{joint_orchestrator_forward.5} parent=5 // pred_fallthru
        _
      %p1012 = scmp.le.s32.totalorder 1, %s71
      %p1013 = scmp.lt.s32.totalorder %s71, 9
      %p1014 = pnand %p1012, %p1013
      %p1015 = pneg %p1014
      // Predicated region
      $region166: #{joint_orchestrator_forward.5} parent=5 // pred_check
        _
      $region167: #{joint_orchestrator_forward.5} parent=5 // pred_check_branch
        %1017 = sbr.rel (%p1014) target = $region169
      $region168: #{joint_orchestrator_forward.5} parent=5 // pred_region
        %s1018 = ssub.s32 %s71, 1
        %s1019 = sand.u32 %s662, 1
        %s1020 = sand.u32 %s662, 1
        %s1021 = smul.addr %s1020, 64
        %s1022 = scalar_lea.vmem [#allocation6], %s1021
        // Predicated region
        $region170: #{joint_orchestrator_forward.5} parent=168 // pred_check
          %p1023 = pneg %p675
        $region171: #{joint_orchestrator_forward.5} parent=168 // pred_check_branch
          %1025 = sbr.rel (%p1023) target = $region173
        $region172: #{joint_orchestrator_forward.5} parent=168 // pred_region
          _
        $region173: #{joint_orchestrator_forward.5} parent=168 // pred_fallthru
          _
        %p1026 = scmp.lt.s32.totalorder %s80, 3
        %s1027 = scalar_select %p1026, %s80, 3
        %s1028 = smul.addr %s1027, 16
        %s1029 = smul.addr %s1028, 4
        %s1030 = scalar_lea.vmem %s1, %s1029
        %p1031 = pneg %p109
        %p1032 = pneg %p106
        %p1033 = scmp.lt.s32.totalorder %s80, 3
        %s1034 = scalar_select %p1033, %s80, 3
        %s1035 = smul.addr %s1034, 16
        %s1036 = smul.addr %s1035, 4
        %s1037 = scalar_lea.vmem %s3, %s1036
        %p1038 = pneg %p135
        %p1039 = pneg %p132
        %p1040 = scmp.lt.s32.totalorder %s80, 3
        %s1041 = scalar_select %p1040, %s80, 3
        %s1042 = scalar_lea.vmem %s5, %s1041
        %p1043 = pneg %p161
        %p1044 = pneg %p158
        %p1045 = scmp.lt.s32.totalorder %s80, 3
        %s1046 = scalar_select %p1045, %s80, 3
        %s1047 = smul.addr %s1046, 16
        %s1048 = smul.addr %s1047, 8
        %s1049 = scalar_lea.vmem %s7, %s1048
        %p1050 = pneg %p187
        %p1051 = pneg %p184
        %p1052 = pneg %p208
        %p1053 = pneg %p205
        %p1054 = pneg %p229
        %p1055 = pneg %p226
        %p1056 = pneg %p250
        %p1057 = pneg %p247
        %p1058 = pneg %p271
        %p1059 = pneg %p268
        %p1060 = pneg %p292
        %p1061 = pneg %p289
        %p1062 = pneg %p313
        %p1063 = pneg %p310
        %p1064 = pneg %p334
        %p1065 = pneg %p331
        %p1066 = pneg %p355
        %p1067 = pneg %p352
        %p1068 = pneg %p376
        %p1069 = pneg %p373
        %p1070 = pneg %p397
        %p1071 = pneg %p394
        %p1072 = pneg %p418
        %p1073 = pneg %p415
        %p1074 = pneg %p439
        %p1075 = pneg %p436
        %p1076 = pneg %p460
        %p1077 = pneg %p457
        %p1078 = pneg %p481
        %p1079 = pneg %p478
        %p1080 = pneg %p502
        %p1081 = pneg %p499
        %p1082 = pneg %p523
        %p1083 = pneg %p520
        %p1084 = pneg %p544
        %p1085 = pneg %p541
        %p1086 = pneg %p565
        %p1087 = pneg %p562
        %p1088 = pneg %p586
        %p1089 = pneg %p583
        %p1090 = pneg %p607
        %p1091 = pneg %p604
        %p1092 = pneg %p628
        %p1093 = pneg %p625
        %p1094 = pneg %p649
        %p1095 = pneg %p646
        %s1096 = sand.u32 %s662, 1
        %s1097 = sand.u32 %s662, 1
        %s1098 = smul.addr %s1097, 64
        %s1099 = scalar_lea.vmem [#allocation6], %s1098
        %p1100 = pneg %p675
        %p1101 = pneg %p672
        %p1102 = scmp.lt.s32.totalorder %s81, 1
        %s1103 = scalar_select %p1102, %s81, 1
        %s1104 = scalar_lea.vmem %s55, %s1103
        %p1105 = pneg %p701
        %p1106 = pneg %p698
        %p1107 = pneg %p729
        %p1108 = pneg %p726
        %s1109 = sand.u32 %s716, 1
        %s1110 = scalar_lea.sflag [#allocation8], %s1109
        %s1111 = sand.u32 %s716, 1
        %s1112 = smul.addr %s1111, 64
        %s1113 = scalar_lea.vmem [#allocation7], %s1112
        %p1114 = pneg %p755
        %p1115 = pneg %p752
        %p1116 = scmp.lt.s32.totalorder %s80, 3
        %s1117 = scalar_select %p1116, %s80, 3
        %s1118 = scalar_lea.vmem %s59, %s1117
        %p1119 = pneg %p781
        %p1120 = pneg %p778
        %p1121 = scmp.lt.s32.totalorder %s80, 3
        %s1122 = scalar_select %p1121, %s80, 3
        %s1123 = scalar_lea.vmem %s61, %s1122
        %p1124 = scmp.lt.s32.totalorder %s80, 3
        %s1125 = scalar_select %p1124, %s80, 3
        %s1126 = smul.addr %s1125, 16
        %s1127 = smul.addr %s1126, 4
        %s1128 = scalar_lea.vmem %s1, %s1127
        %p1129 = scmp.lt.s32.totalorder %s80, 3
        %s1130 = scalar_select %p1129, %s80, 3
        %s1131 = smul.addr %s1130, 16
        %s1132 = smul.addr %s1131, 4
        %s1133 = scalar_lea.vmem %s3, %s1132
        %p1134 = scmp.lt.s32.totalorder %s80, 3
        %s1135 = scalar_select %p1134, %s80, 3
        %s1136 = scalar_lea.vmem %s5, %s1135
        %p1137 = scmp.lt.s32.totalorder %s80, 3
        %s1138 = scalar_select %p1137, %s80, 3
        %s1139 = smul.addr %s1138, 16
        %s1140 = smul.addr %s1139, 8
        %s1141 = scalar_lea.vmem %s7, %s1140
        %p1142 = scmp.lt.s32.totalorder %s81, 1
        %s1143 = scalar_select %p1142, %s81, 1
        %s1144 = scalar_lea.vmem %s55, %s1143
        %p1145 = scmp.lt.s32.totalorder %s80, 3
        %s1146 = scalar_select %p1145, %s80, 3
        %s1147 = scalar_lea.vmem %s59, %s1146
        %p1148 = scmp.lt.s32.totalorder %s80, 3
        %s1149 = scalar_select %p1148, %s80, 3
        %s1150 = scalar_lea.vmem %s61, %s1149
        %p1151 = scmp.eq.s32.totalorder %s81, 0
        // Predicated region
        $region174: #{joint_orchestrator_forward.5} parent=168 // pred_check
          %p1152 = pneg %p1151
        $region175: #{joint_orchestrator_forward.5} parent=168 // pred_check_branch
          %1154 = sbr.rel (%p1152) target = $region177
        $region176: #{joint_orchestrator_forward.5} parent=168 // pred_region
          %v1155 = vld [vmem:[%s1128] sm:$0xf]
          %v1156 = vld [vmem:[%s1128 + $0x4] sm:$0xf]
          %v1157 = vld [vmem:[%s1128 + $0x8] sm:$0xf]
          %v1158 = vld [vmem:[%s1128 + $0xc] sm:$0xf]
          %v1159 = vld [vmem:[%s1128 + $0x10] sm:$0xf]
          %v1160 = vld [vmem:[%s1128 + $0x14] sm:$0xf]
          %v1161 = vld [vmem:[%s1128 + $0x18] sm:$0xf]
          %v1162 = vld [vmem:[%s1128 + $0x1c] sm:$0xf]
          %v1163 = vld [vmem:[%s1128 + $0x20] sm:$0xf]
          %v1164 = vld [vmem:[%s1128 + $0x24] sm:$0xf]
          %v1165 = vld [vmem:[%s1128 + $0x28] sm:$0xf]
          %v1166 = vld [vmem:[%s1128 + $0x2c] sm:$0xf]
          %v1167 = vld [vmem:[%s1128 + $0x30] sm:$0xf]
          %v1168 = vld [vmem:[%s1128 + $0x34] sm:$0xf]
          %v1169 = vld [vmem:[%s1128 + $0x38] sm:$0xf]
          %v1170 = vld [vmem:[%s1128 + $0x3c] sm:$0xf]
          %v1171 = vld [vmem:[%s1136] sm:$0x1]
          %v1172 = vunpack.c.l.bf16 %v1155
          %v1173 = vunpack.c.l.bf16 %v1156
          %v1174 = vunpack.c.l.bf16 %v1157
          %v1175 = vunpack.c.l.bf16 %v1158
          %v1176 = vunpack.c.l.bf16 %v1159
          %v1177 = vunpack.c.l.bf16 %v1160
          %v1178 = vunpack.c.l.bf16 %v1161
          %v1179 = vunpack.c.l.bf16 %v1162
          %v1180 = vunpack.c.l.bf16 %v1163
          %v1181 = vunpack.c.l.bf16 %v1164
          %v1182 = vunpack.c.l.bf16 %v1165
          %v1183 = vunpack.c.l.bf16 %v1166
          %v1184 = vunpack.c.l.bf16 %v1167
          %v1185 = vunpack.c.l.bf16 %v1168
          %v1186 = vunpack.c.l.bf16 %v1169
          %v1187 = vunpack.c.l.bf16 %v1170
          %v1188 = vld [vmem:[%s9] sm:$0xff]
          %v1189 = vld [vmem:[%s9 + $0x8] sm:$0xf]
          %v1190 = vld [vmem:[%s9 + $0xc] sm:$0xff]
          %v1191 = vld [vmem:[%s9 + $0x14] sm:$0xf]
          %v1192 = vld [vmem:[%s9 + $0x18] sm:$0xff]
          %v1193 = vld [vmem:[%s9 + $0x20] sm:$0xf]
          %v1194 = vld [vmem:[%s9 + $0x24] sm:$0xff]
          %v1195 = vld [vmem:[%s9 + $0x2c] sm:$0xf]
          %v1196 = vld [vmem:[%s9 + $0x30] sm:$0xff]
          %v1197 = vld [vmem:[%s9 + $0x38] sm:$0xf]
          %v1198 = vld [vmem:[%s9 + $0x3c] sm:$0xff]
          %v1199 = vld [vmem:[%s9 + $0x44] sm:$0xf]
          %v1200 = vld [vmem:[%s9 + $0x48] sm:$0xff]
          %v1201 = vld [vmem:[%s9 + $0x50] sm:$0xf]
          %v1202 = vld [vmem:[%s9 + $0x54] sm:$0xff]
          %v1203 = vld [vmem:[%s9 + $0x5c] sm:$0xf]
          %v1204 = vld [vmem:[%s9 + $0x60] sm:$0xff]
          %v1205 = vld [vmem:[%s9 + $0x68] sm:$0xf]
          %v1206 = vld [vmem:[%s9 + $0x6c] sm:$0xff]
          %v1207 = vld [vmem:[%s9 + $0x74] sm:$0xf]
          %v1208 = vld [vmem:[%s9 + $0x78] sm:$0xff]
          %v1209 = vld [vmem:[%s9 + $0x80] sm:$0xf]
          %v1210 = vld [vmem:[%s9 + $0x84] sm:$0xff]
          %v1211 = vld [vmem:[%s9 + $0x8c] sm:$0xf]
          %v1212 = vld [vmem:[%s9 + $0x90] sm:$0xff]
          %v1213 = vld [vmem:[%s9 + $0x98] sm:$0xf]
          %v1214 = vld [vmem:[%s9 + $0x9c] sm:$0xff]
          %v1215 = vld [vmem:[%s9 + $0xa4] sm:$0xf]
          %v1216 = vld [vmem:[%s9 + $0xa8] sm:$0xff]
          %v1217 = vld [vmem:[%s9 + $0xb0] sm:$0xf]
          %v1218 = vld [vmem:[%s9 + $0xb4] sm:$0xff]
          %v1219 = vld [vmem:[%s9 + $0xbc] sm:$0xf]
          %v1220 = vld [vmem:[%s11] sm:$0x7]
          %v1222 = vperm.slane %v1220, 0
          %v1223 = vperm.slane %v1220, 1
          %v1224 = vperm.slane %v1220, 2
          %v1244 = vunpack.c.l.b16 %v1155
          %v1245 = vunpack.c.l.b16 %v1156
          %v1246 = vunpack.c.l.b16 %v1157
          %v1247 = vunpack.c.l.b16 %v1158
          %v1248 = vunpack.c.l.b16 %v1159
          %v1249 = vunpack.c.l.b16 %v1160
          %v1250 = vunpack.c.l.b16 %v1161
          %v1251 = vunpack.c.l.b16 %v1162
          %v1252 = vunpack.c.l.b16 %v1163
          %v1253 = vunpack.c.l.b16 %v1164
          %v1254 = vunpack.c.l.b16 %v1165
          %v1255 = vunpack.c.l.b16 %v1166
          %v1256 = vunpack.c.l.b16 %v1167
          %v1257 = vunpack.c.l.b16 %v1168
          %v1258 = vunpack.c.l.b16 %v1169
          %v1259 = vunpack.c.l.b16 %v1170
          %v1260 = vpack.c.b16 %v1245, %v1244
          %v1261 = vpack.c.b16 %v1247, %v1246
          %v1262 = vpack.c.b16 %v1249, %v1248
          %v1263 = vpack.c.b16 %v1251, %v1250
          %v1264 = vpack.c.b16 %v1253, %v1252
          %v1265 = vpack.c.b16 %v1255, %v1254
          %v1266 = vpack.c.b16 %v1257, %v1256
          %v1267 = vpack.c.b16 %v1259, %v1258
          %v1308 = vunpack.c.l.b16 %v1188
          %v1309 = vunpack.c.h.b16 %v1188
          %v1310 = vunpack.c.l.b16 %v1189
          %v1311 = vunpack.c.l.b16 %v1190
          %v1312 = vunpack.c.h.b16 %v1190
          %v1313 = vunpack.c.l.b16 %v1191
          %v1314 = vunpack.c.l.b16 %v1192
          %v1315 = vunpack.c.h.b16 %v1192
          %v1316 = vunpack.c.l.b16 %v1193
          %v1317 = vunpack.c.l.b16 %v1194
          %v1318 = vunpack.c.h.b16 %v1194
          %v1319 = vunpack.c.l.b16 %v1195
          %v1320 = vunpack.c.l.b16 %v1196
          %v1321 = vunpack.c.h.b16 %v1196
          %v1322 = vunpack.c.l.b16 %v1197
          %v1323 = vunpack.c.l.b16 %v1198
          %v1324 = vunpack.c.h.b16 %v1198
          %v1325 = vunpack.c.l.b16 %v1199
          %v1326 = vunpack.c.l.b16 %v1200
          %v1327 = vunpack.c.h.b16 %v1200
          %v1328 = vunpack.c.l.b16 %v1201
          %v1329 = vunpack.c.l.b16 %v1202
          %v1330 = vunpack.c.h.b16 %v1202
          %v1331 = vunpack.c.l.b16 %v1203
          %v1332 = vunpack.c.l.b16 %v1204
          %v1333 = vunpack.c.h.b16 %v1204
          %v1334 = vunpack.c.l.b16 %v1205
          %v1335 = vunpack.c.l.b16 %v1206
          %v1336 = vunpack.c.h.b16 %v1206
          %v1337 = vunpack.c.l.b16 %v1207
          %v1338 = vunpack.c.l.b16 %v1208
          %v1339 = vunpack.c.h.b16 %v1208
          %v1340 = vunpack.c.l.b16 %v1209
          %v1341 = vunpack.c.l.b16 %v1210
          %v1342 = vunpack.c.h.b16 %v1210
          %v1343 = vunpack.c.l.b16 %v1211
          %v1344 = vunpack.c.l.b16 %v1212
          %v1345 = vunpack.c.h.b16 %v1212
          %v1346 = vunpack.c.l.b16 %v1213
          %v1347 = vunpack.c.l.b16 %v1214
          %v1348 = vunpack.c.h.b16 %v1214
          %v1349 = vunpack.c.l.b16 %v1215
          %v1350 = vunpack.c.l.b16 %v1216
          %v1351 = vunpack.c.h.b16 %v1216
          %v1352 = vunpack.c.l.b16 %v1217
          %v1353 = vunpack.c.l.b16 %v1218
          %v1354 = vunpack.c.h.b16 %v1218
          %v1355 = vunpack.c.l.b16 %v1219
          %v1356 = vpack.c.b16 %v1311, %v1308
          %v1357 = vpack.c.b16 %v1312, %v1309
          %v1358 = vpack.c.b16 %v1313, %v1310
          %v1359 = vpack.c.b16 %v1317, %v1314
          %v1360 = vpack.c.b16 %v1318, %v1315
          %v1361 = vpack.c.b16 %v1319, %v1316
          %v1362 = vpack.c.b16 %v1323, %v1320
          %v1363 = vpack.c.b16 %v1324, %v1321
          %v1364 = vpack.c.b16 %v1325, %v1322
          %v1365 = vpack.c.b16 %v1329, %v1326
          %v1366 = vpack.c.b16 %v1330, %v1327
          %v1367 = vpack.c.b16 %v1331, %v1328
          %v1368 = vpack.c.b16 %v1335, %v1332
          %v1369 = vpack.c.b16 %v1336, %v1333
          %v1370 = vpack.c.b16 %v1337, %v1334
          %v1371 = vpack.c.b16 %v1341, %v1338
          %v1372 = vpack.c.b16 %v1342, %v1339
          %v1373 = vpack.c.b16 %v1343, %v1340
          %v1374 = vpack.c.b16 %v1347, %v1344
          %v1375 = vpack.c.b16 %v1348, %v1345
          %v1376 = vpack.c.b16 %v1349, %v1346
          %v1377 = vpack.c.b16 %v1353, %v1350
          %v1378 = vpack.c.b16 %v1354, %v1351
          %v1379 = vpack.c.b16 %v1355, %v1352
          %1404 = vmatpush.bf16.msra.mxu0 %v1377
          %1405 = vmatpush.bf16.msra.mxu0 %v1374
          %1406 = vmatpush.bf16.msra.mxu0 %v1371
          %1407 = vmatpush.bf16.msra.mxu0 %v1368
          %1408 = vmatpush.bf16.msra.mxu0 %v1365
          %1409 = vmatpush.bf16.msra.mxu0 %v1362
          %1410 = vmatpush.bf16.msra.mxu0 %v1359
          %1411 = vmatpush.bf16.msra.mxu0 %v1356
          %1412 = vmatmul.bf16.gmra.mxu0 %v1260
          %v1413 = vpop.f32.mrf.mxu0
          %v1414 = vadd.f32 %v1222, %v1413
          %v1415 = vpop.f32.mrf.mxu0
          %v1416 = vadd.f32 %v1222, %v1415
          %1417 = vmatmul.bf16.gmra.mxu0 %v1261
          %v1418 = vpop.f32.mrf.mxu0
          %v1419 = vadd.f32 %v1222, %v1418
          %v1420 = vpop.f32.mrf.mxu0
          %v1421 = vadd.f32 %v1222, %v1420
          %1422 = vmatmul.bf16.gmra.mxu0 %v1262
          %v1423 = vpop.f32.mrf.mxu0
          %v1424 = vadd.f32 %v1222, %v1423
          %v1425 = vpop.f32.mrf.mxu0
          %v1426 = vadd.f32 %v1222, %v1425
          %1427 = vmatmul.bf16.gmra.mxu0 %v1263
          %v1428 = vpop.f32.mrf.mxu0
          %v1429 = vadd.f32 %v1222, %v1428
          %v1430 = vpop.f32.mrf.mxu0
          %v1431 = vadd.f32 %v1222, %v1430
          %1432 = vmatmul.bf16.gmra.mxu0 %v1264
          %v1433 = vpop.f32.mrf.mxu0
          %v1434 = vadd.f32 %v1222, %v1433
          %v1435 = vpop.f32.mrf.mxu0
          %v1436 = vadd.f32 %v1222, %v1435
          %1437 = vmatmul.bf16.gmra.mxu0 %v1265
          %v1438 = vpop.f32.mrf.mxu0
          %v1439 = vadd.f32 %v1222, %v1438
          %v1440 = vpop.f32.mrf.mxu0
          %v1441 = vadd.f32 %v1222, %v1440
          %1442 = vmatmul.bf16.gmra.mxu0 %v1266
          %v1443 = vpop.f32.mrf.mxu0
          %v1444 = vadd.f32 %v1222, %v1443
          %v1445 = vpop.f32.mrf.mxu0
          %v1446 = vadd.f32 %v1222, %v1445
          %1447 = vmatmul.bf16.gmra.mxu0 %v1267
          %v1448 = vpop.f32.mrf.mxu0
          %v1449 = vadd.f32 %v1222, %v1448
          %v1450 = vpop.f32.mrf.mxu0
          %v1451 = vadd.f32 %v1222, %v1450
          %1452 = vdwg.mxu0
          %1453 = vmatpush.bf16.msra.mxu0 %v1378
          %1454 = vmatpush.bf16.msra.mxu0 %v1375
          %1455 = vmatpush.bf16.msra.mxu0 %v1372
          %1456 = vmatpush.bf16.msra.mxu0 %v1369
          %1457 = vmatpush.bf16.msra.mxu0 %v1366
          %1458 = vmatpush.bf16.msra.mxu0 %v1363
          %1459 = vmatpush.bf16.msra.mxu0 %v1360
          %1460 = vmatpush.bf16.msra.mxu0 %v1357
          %1461 = vmatmul.bf16.gmra.mxu0 %v1260
          %v1462 = vpop.f32.mrf.mxu0
          %v1463 = vadd.f32 %v1223, %v1462
          %v1464 = vpop.f32.mrf.mxu0
          %v1465 = vadd.f32 %v1223, %v1464
          %1466 = vmatmul.bf16.gmra.mxu0 %v1261
          %v1467 = vpop.f32.mrf.mxu0
          %v1468 = vadd.f32 %v1223, %v1467
          %v1469 = vpop.f32.mrf.mxu0
          %v1470 = vadd.f32 %v1223, %v1469
          %1471 = vmatmul.bf16.gmra.mxu0 %v1262
          %v1472 = vpop.f32.mrf.mxu0
          %v1473 = vadd.f32 %v1223, %v1472
          %v1474 = vpop.f32.mrf.mxu0
          %v1475 = vadd.f32 %v1223, %v1474
          %1476 = vmatmul.bf16.gmra.mxu0 %v1263
          %v1477 = vpop.f32.mrf.mxu0
          %v1478 = vadd.f32 %v1223, %v1477
          %v1479 = vpop.f32.mrf.mxu0
          %v1480 = vadd.f32 %v1223, %v1479
          %1481 = vmatmul.bf16.gmra.mxu0 %v1264
          %v1482 = vpop.f32.mrf.mxu0
          %v1483 = vadd.f32 %v1223, %v1482
          %v1484 = vpop.f32.mrf.mxu0
          %v1485 = vadd.f32 %v1223, %v1484
          %1486 = vmatmul.bf16.gmra.mxu0 %v1265
          %v1487 = vpop.f32.mrf.mxu0
          %v1488 = vadd.f32 %v1223, %v1487
          %v1489 = vpop.f32.mrf.mxu0
          %v1490 = vadd.f32 %v1223, %v1489
          %1491 = vmatmul.bf16.gmra.mxu0 %v1266
          %v1492 = vpop.f32.mrf.mxu0
          %v1493 = vadd.f32 %v1223, %v1492
          %v1494 = vpop.f32.mrf.mxu0
          %v1495 = vadd.f32 %v1223, %v1494
          %1496 = vmatmul.bf16.gmra.mxu0 %v1267
          %v1497 = vpop.f32.mrf.mxu0
          %v1498 = vadd.f32 %v1223, %v1497
          %v1499 = vpop.f32.mrf.mxu0
          %v1500 = vadd.f32 %v1223, %v1499
          %1501 = vdwg.mxu0
          %1502 = vmatpush.bf16.msra.mxu0 %v1379
          %1503 = vmatpush.bf16.msra.mxu0 %v1376
          %1504 = vmatpush.bf16.msra.mxu0 %v1373
          %1505 = vmatpush.bf16.msra.mxu0 %v1370
          %1506 = vmatpush.bf16.msra.mxu0 %v1367
          %1507 = vmatpush.bf16.msra.mxu0 %v1364
          %1508 = vmatpush.bf16.msra.mxu0 %v1361
          %1509 = vmatpush.bf16.msra.mxu0 %v1358
          %1510 = vmatmul.bf16.gmra.mxu0 %v1260
          %v1511 = vpop.f32.mrf.mxu0
          %v1512 = vadd.f32 %v1224, %v1511
          %v1513 = vpop.f32.mrf.mxu0
          %v1514 = vadd.f32 %v1224, %v1513
          %1515 = vmatmul.bf16.gmra.mxu0 %v1261
          %v1516 = vpop.f32.mrf.mxu0
          %v1517 = vadd.f32 %v1224, %v1516
          %v1518 = vpop.f32.mrf.mxu0
          %v1519 = vadd.f32 %v1224, %v1518
          %1520 = vmatmul.bf16.gmra.mxu0 %v1262
          %v1521 = vpop.f32.mrf.mxu0
          %v1522 = vadd.f32 %v1224, %v1521
          %v1523 = vpop.f32.mrf.mxu0
          %v1524 = vadd.f32 %v1224, %v1523
          %1525 = vmatmul.bf16.gmra.mxu0 %v1263
          %v1526 = vpop.f32.mrf.mxu0
          %v1527 = vadd.f32 %v1224, %v1526
          %v1528 = vpop.f32.mrf.mxu0
          %v1529 = vadd.f32 %v1224, %v1528
          %1530 = vmatmul.bf16.gmra.mxu0 %v1264
          %v1531 = vpop.f32.mrf.mxu0
          %v1532 = vadd.f32 %v1224, %v1531
          %v1533 = vpop.f32.mrf.mxu0
          %v1534 = vadd.f32 %v1224, %v1533
          %1535 = vmatmul.bf16.gmra.mxu0 %v1265
          %v1536 = vpop.f32.mrf.mxu0
          %v1537 = vadd.f32 %v1224, %v1536
          %v1538 = vpop.f32.mrf.mxu0
          %v1539 = vadd.f32 %v1224, %v1538
          %1540 = vmatmul.bf16.gmra.mxu0 %v1266
          %v1541 = vpop.f32.mrf.mxu0
          %v1542 = vadd.f32 %v1224, %v1541
          %v1543 = vpop.f32.mrf.mxu0
          %v1544 = vadd.f32 %v1224, %v1543
          %1545 = vmatmul.bf16.gmra.mxu0 %v1267
          %v1546 = vpop.f32.mrf.mxu0
          %v1547 = vadd.f32 %v1224, %v1546
          %v1548 = vpop.f32.mrf.mxu0
          %v1549 = vadd.f32 %v1224, %v1548
          %1550 = vdwg.mxu0
          %v1551 = vpack.c.bf16 %v1416, %v1414
          %v1552 = vpack.c.bf16 %v1421, %v1419
          %v1553 = vpack.c.bf16 %v1426, %v1424
          %v1554 = vpack.c.bf16 %v1431, %v1429
          %v1555 = vpack.c.bf16 %v1436, %v1434
          %v1556 = vpack.c.bf16 %v1441, %v1439
          %v1557 = vpack.c.bf16 %v1446, %v1444
          %v1558 = vpack.c.bf16 %v1451, %v1449
          %v1559 = vpack.c.bf16 %v1465, %v1463
          %v1560 = vpack.c.bf16 %v1470, %v1468
          %v1561 = vpack.c.bf16 %v1475, %v1473
          %v1562 = vpack.c.bf16 %v1480, %v1478
          %v1563 = vpack.c.bf16 %v1485, %v1483
          %v1564 = vpack.c.bf16 %v1490, %v1488
          %v1565 = vpack.c.bf16 %v1495, %v1493
          %v1566 = vpack.c.bf16 %v1500, %v1498
          %v1567 = vpack.c.bf16 %v1514, %v1512
          %v1568 = vpack.c.bf16 %v1519, %v1517
          %v1569 = vpack.c.bf16 %v1524, %v1522
          %v1570 = vpack.c.bf16 %v1529, %v1527
          %v1571 = vpack.c.bf16 %v1534, %v1532
          %v1572 = vpack.c.bf16 %v1539, %v1537
          %v1573 = vpack.c.bf16 %v1544, %v1542
          %v1574 = vpack.c.bf16 %v1549, %v1547
          %1575 = vmatpush.bf16.xpose.msra.mxu0 %v1566
          %1576 = vmatpush.bf16.xpose.msra.mxu0 %v1565
          %1577 = vmatpush.bf16.xpose.msra.mxu0 %v1564
          %1578 = vmatpush.bf16.xpose.msra.mxu0 %v1563
          %1579 = vmatpush.bf16.xpose.msra.mxu0 %v1562
          %1580 = vmatpush.bf16.xpose.msra.mxu0 %v1561
          %1581 = vmatpush.bf16.xpose.msra.mxu0 %v1560
          %1582 = vmatpush.bf16.xpose.msra.mxu0 %v1559
          %1583 = vmatmul.bf16.gmra.mxu0 %v1551
          %v1584 = vpop.f32.mrf.mxu0
          %v1585 = vadd.f32 0.0, %v1584
          %v1586 = vpop.f32.mrf.mxu0
          %v1587 = vadd.f32 0.0, %v1586
          %1588 = vmatmul.bf16.gmra.mxu0 %v1552
          %v1589 = vpop.f32.mrf.mxu0
          %v1590 = vadd.f32 0.0, %v1589
          %v1591 = vpop.f32.mrf.mxu0
          %v1592 = vadd.f32 0.0, %v1591
          %1593 = vmatmul.bf16.gmra.mxu0 %v1553
          %v1594 = vpop.f32.mrf.mxu0
          %v1595 = vadd.f32 0.0, %v1594
          %v1596 = vpop.f32.mrf.mxu0
          %v1597 = vadd.f32 0.0, %v1596
          %1598 = vmatmul.bf16.gmra.mxu0 %v1554
          %v1599 = vpop.f32.mrf.mxu0
          %v1600 = vadd.f32 0.0, %v1599
          %v1601 = vpop.f32.mrf.mxu0
          %v1602 = vadd.f32 0.0, %v1601
          %1603 = vmatmul.bf16.gmra.mxu0 %v1555
          %v1604 = vpop.f32.mrf.mxu0
          %v1605 = vadd.f32 0.0, %v1604
          %v1606 = vpop.f32.mrf.mxu0
          %v1607 = vadd.f32 0.0, %v1606
          %1608 = vmatmul.bf16.gmra.mxu0 %v1556
          %v1609 = vpop.f32.mrf.mxu0
          %v1610 = vadd.f32 0.0, %v1609
          %v1611 = vpop.f32.mrf.mxu0
          %v1612 = vadd.f32 0.0, %v1611
          %1613 = vmatmul.bf16.gmra.mxu0 %v1557
          %v1614 = vpop.f32.mrf.mxu0
          %v1615 = vadd.f32 0.0, %v1614
          %v1616 = vpop.f32.mrf.mxu0
          %v1617 = vadd.f32 0.0, %v1616
          %1618 = vmatmul.bf16.gmra.mxu0 %v1558
          %v1619 = vpop.f32.mrf.mxu0
          %v1620 = vadd.f32 0.0, %v1619
          %v1621 = vpop.f32.mrf.mxu0
          %v1622 = vadd.f32 0.0, %v1621
          %1623 = vdwg.mxu0
          %v1624 = vmul.f32 %v1585, 0.088388346
          %v1625 = vmul.f32 %v1587, 0.088388346
          %v1626 = vmul.f32 %v1590, 0.088388346
          %v1627 = vmul.f32 %v1592, 0.088388346
          %v1628 = vmul.f32 %v1595, 0.088388346
          %v1629 = vmul.f32 %v1597, 0.088388346
          %v1630 = vmul.f32 %v1600, 0.088388346
          %v1631 = vmul.f32 %v1602, 0.088388346
          %v1632 = vmul.f32 %v1605, 0.088388346
          %v1633 = vmul.f32 %v1607, 0.088388346
          %v1634 = vmul.f32 %v1610, 0.088388346
          %v1635 = vmul.f32 %v1612, 0.088388346
          %v1636 = vmul.f32 %v1615, 0.088388346
          %v1637 = vmul.f32 %v1617, 0.088388346
          %v1638 = vmul.f32 %v1620, 0.088388346
          %v1639 = vmul.f32 %v1622, 0.088388346
          %v1641 = vperm.slane %v1171, 0
          %v1643 = vadd.f32 %v1624, %v1641
          %v1644 = vadd.f32 %v1625, %v1641
          %v1645 = vadd.f32 %v1626, %v1641
          %v1646 = vadd.f32 %v1627, %v1641
          %v1647 = vadd.f32 %v1628, %v1641
          %v1648 = vadd.f32 %v1629, %v1641
          %v1649 = vadd.f32 %v1630, %v1641
          %v1650 = vadd.f32 %v1631, %v1641
          %v1651 = vadd.f32 %v1632, %v1641
          %v1652 = vadd.f32 %v1633, %v1641
          %v1653 = vadd.f32 %v1634, %v1641
          %v1654 = vadd.f32 %v1635, %v1641
          %v1655 = vadd.f32 %v1636, %v1641
          %v1656 = vadd.f32 %v1637, %v1641
          %v1657 = vadd.f32 %v1638, %v1641
          %v1658 = vadd.f32 %v1639, %v1641
          %1659 = vmax.xlane.f32.xlu0 %v1643
          %v1660 = vpop.xlane.xlu0 %1659
          %1661 = vmax.xlane.f32.xlu0 %v1644
          %v1662 = vpop.xlane.xlu0 %1661
          %1663 = vmax.xlane.f32.xlu0 %v1645
          %v1664 = vpop.xlane.xlu0 %1663
          %1665 = vmax.xlane.f32.xlu0 %v1646
          %v1666 = vpop.xlane.xlu0 %1665
          %1667 = vmax.xlane.f32.xlu0 %v1647
          %v1668 = vpop.xlane.xlu0 %1667
          %1669 = vmax.xlane.f32.xlu0 %v1648
          %v1670 = vpop.xlane.xlu0 %1669
          %1671 = vmax.xlane.f32.xlu0 %v1649
          %v1672 = vpop.xlane.xlu0 %1671
          %1673 = vmax.xlane.f32.xlu0 %v1650
          %v1674 = vpop.xlane.xlu0 %1673
          %1675 = vmax.xlane.f32.xlu0 %v1651
          %v1676 = vpop.xlane.xlu0 %1675
          %1677 = vmax.xlane.f32.xlu0 %v1652
          %v1678 = vpop.xlane.xlu0 %1677
          %1679 = vmax.xlane.f32.xlu0 %v1653
          %v1680 = vpop.xlane.xlu0 %1679
          %1681 = vmax.xlane.f32.xlu0 %v1654
          %v1682 = vpop.xlane.xlu0 %1681
          %1683 = vmax.xlane.f32.xlu0 %v1655
          %v1684 = vpop.xlane.xlu0 %1683
          %1685 = vmax.xlane.f32.xlu0 %v1656
          %v1686 = vpop.xlane.xlu0 %1685
          %1687 = vmax.xlane.f32.xlu0 %v1657
          %v1688 = vpop.xlane.xlu0 %1687
          %1689 = vmax.xlane.f32.xlu0 %v1658
          %v1690 = vpop.xlane.xlu0 %1689
          %v1691 = vsub.f32 %v1643, %v1660
          %v1692 = vsub.f32 %v1644, %v1662
          %v1693 = vsub.f32 %v1645, %v1664
          %v1694 = vsub.f32 %v1646, %v1666
          %v1695 = vsub.f32 %v1647, %v1668
          %v1696 = vsub.f32 %v1648, %v1670
          %v1697 = vsub.f32 %v1649, %v1672
          %v1698 = vsub.f32 %v1650, %v1674
          %v1699 = vsub.f32 %v1651, %v1676
          %v1700 = vsub.f32 %v1652, %v1678
          %v1701 = vsub.f32 %v1653, %v1680
          %v1702 = vsub.f32 %v1654, %v1682
          %v1703 = vsub.f32 %v1655, %v1684
          %v1704 = vsub.f32 %v1656, %v1686
          %v1705 = vsub.f32 %v1657, %v1688
          %v1706 = vsub.f32 %v1658, %v1690
          %v1707 = vmul.f32 %v1691, 1.442695
          %v1708 = vpow.pop %v1707
          %v1709 = vmul.f32 %v1692, 1.442695
          %v1710 = vpow.pop %v1709
          %v1711 = vmul.f32 %v1693, 1.442695
          %v1712 = vpow.pop %v1711
          %v1713 = vmul.f32 %v1694, 1.442695
          %v1714 = vpow.pop %v1713
          %v1715 = vmul.f32 %v1695, 1.442695
          %v1716 = vpow.pop %v1715
          %v1717 = vmul.f32 %v1696, 1.442695
          %v1718 = vpow.pop %v1717
          %v1719 = vmul.f32 %v1697, 1.442695
          %v1720 = vpow.pop %v1719
          %v1721 = vmul.f32 %v1698, 1.442695
          %v1722 = vpow.pop %v1721
          %v1723 = vmul.f32 %v1699, 1.442695
          %v1724 = vpow.pop %v1723
          %v1725 = vmul.f32 %v1700, 1.442695
          %v1726 = vpow.pop %v1725
          %v1727 = vmul.f32 %v1701, 1.442695
          %v1728 = vpow.pop %v1727
          %v1729 = vmul.f32 %v1702, 1.442695
          %v1730 = vpow.pop %v1729
          %v1731 = vmul.f32 %v1703, 1.442695
          %v1732 = vpow.pop %v1731
          %v1733 = vmul.f32 %v1704, 1.442695
          %v1734 = vpow.pop %v1733
          %v1735 = vmul.f32 %v1705, 1.442695
          %v1736 = vpow.pop %v1735
          %v1737 = vmul.f32 %v1706, 1.442695
          %v1738 = vpow.pop %v1737
          %1739 = vadd.xlane.f32.xlu0 %v1708
          %v1740 = vpop.xlane.xlu0 %1739
          %1741 = vadd.xlane.f32.xlu0 %v1710
          %v1742 = vpop.xlane.xlu0 %1741
          %1743 = vadd.xlane.f32.xlu0 %v1712
          %v1744 = vpop.xlane.xlu0 %1743
          %1745 = vadd.xlane.f32.xlu0 %v1714
          %v1746 = vpop.xlane.xlu0 %1745
          %1747 = vadd.xlane.f32.xlu0 %v1716
          %v1748 = vpop.xlane.xlu0 %1747
          %1749 = vadd.xlane.f32.xlu0 %v1718
          %v1750 = vpop.xlane.xlu0 %1749
          %1751 = vadd.xlane.f32.xlu0 %v1720
          %v1752 = vpop.xlane.xlu0 %1751
          %1753 = vadd.xlane.f32.xlu0 %v1722
          %v1754 = vpop.xlane.xlu0 %1753
          %1755 = vadd.xlane.f32.xlu0 %v1724
          %v1756 = vpop.xlane.xlu0 %1755
          %1757 = vadd.xlane.f32.xlu0 %v1726
          %v1758 = vpop.xlane.xlu0 %1757
          %1759 = vadd.xlane.f32.xlu0 %v1728
          %v1760 = vpop.xlane.xlu0 %1759
          %1761 = vadd.xlane.f32.xlu0 %v1730
          %v1762 = vpop.xlane.xlu0 %1761
          %1763 = vadd.xlane.f32.xlu0 %v1732
          %v1764 = vpop.xlane.xlu0 %1763
          %1765 = vadd.xlane.f32.xlu0 %v1734
          %v1766 = vpop.xlane.xlu0 %1765
          %1767 = vadd.xlane.f32.xlu0 %v1736
          %v1768 = vpop.xlane.xlu0 %1767
          %1769 = vadd.xlane.f32.xlu0 %v1738
          %v1770 = vpop.xlane.xlu0 %1769
          %v1771 = vrcp.pop %v1740
          %v1772 = vrcp.pop %v1742
          %v1773 = vrcp.pop %v1744
          %v1774 = vrcp.pop %v1746
          %v1775 = vrcp.pop %v1748
          %v1776 = vrcp.pop %v1750
          %v1777 = vrcp.pop %v1752
          %v1778 = vrcp.pop %v1754
          %v1779 = vrcp.pop %v1756
          %v1780 = vrcp.pop %v1758
          %v1781 = vrcp.pop %v1760
          %v1782 = vrcp.pop %v1762
          %v1783 = vrcp.pop %v1764
          %v1784 = vrcp.pop %v1766
          %v1785 = vrcp.pop %v1768
          %v1786 = vrcp.pop %v1770
          %v1787 = vmul.f32 %v1708, %v1771
          %v1788 = vmul.f32 %v1710, %v1772
          %v1789 = vmul.f32 %v1712, %v1773
          %v1790 = vmul.f32 %v1714, %v1774
          %v1791 = vmul.f32 %v1716, %v1775
          %v1792 = vmul.f32 %v1718, %v1776
          %v1793 = vmul.f32 %v1720, %v1777
          %v1794 = vmul.f32 %v1722, %v1778
          %v1795 = vmul.f32 %v1724, %v1779
          %v1796 = vmul.f32 %v1726, %v1780
          %v1797 = vmul.f32 %v1728, %v1781
          %v1798 = vmul.f32 %v1730, %v1782
          %v1799 = vmul.f32 %v1732, %v1783
          %v1800 = vmul.f32 %v1734, %v1784
          %v1801 = vmul.f32 %v1736, %v1785
          %v1802 = vmul.f32 %v1738, %v1786
          %v1803 = vpack.c.bf16 %v1788, %v1787
          %v1804 = vpack.c.bf16 %v1790, %v1789
          %v1805 = vpack.c.bf16 %v1792, %v1791
          %v1806 = vpack.c.bf16 %v1794, %v1793
          %v1807 = vpack.c.bf16 %v1796, %v1795
          %v1808 = vpack.c.bf16 %v1798, %v1797
          %v1809 = vpack.c.bf16 %v1800, %v1799
          %v1810 = vpack.c.bf16 %v1802, %v1801
          %1811 = vmatpush.bf16.msra.mxu0 %v1574
          %1812 = vmatpush.bf16.msra.mxu0 %v1573
          %1813 = vmatpush.bf16.msra.mxu0 %v1572
          %1814 = vmatpush.bf16.msra.mxu0 %v1571
          %1815 = vmatpush.bf16.msra.mxu0 %v1570
          %1816 = vmatpush.bf16.msra.mxu0 %v1569
          %1817 = vmatpush.bf16.msra.mxu0 %v1568
          %1818 = vmatpush.bf16.msra.mxu0 %v1567
          %1819 = vmatmul.bf16.gmra.mxu0 %v1803
          %v1820 = vpop.f32.mrf.mxu0
          %v1821 = vadd.f32 0.0, %v1820
          %v1822 = vpop.f32.mrf.mxu0
          %v1823 = vadd.f32 0.0, %v1822
          %1824 = vmatmul.bf16.gmra.mxu0 %v1804
          %v1825 = vpop.f32.mrf.mxu0
          %v1826 = vadd.f32 0.0, %v1825
          %v1827 = vpop.f32.mrf.mxu0
          %v1828 = vadd.f32 0.0, %v1827
          %1829 = vmatmul.bf16.gmra.mxu0 %v1805
          %v1830 = vpop.f32.mrf.mxu0
          %v1831 = vadd.f32 0.0, %v1830
          %v1832 = vpop.f32.mrf.mxu0
          %v1833 = vadd.f32 0.0, %v1832
          %1834 = vmatmul.bf16.gmra.mxu0 %v1806
          %v1835 = vpop.f32.mrf.mxu0
          %v1836 = vadd.f32 0.0, %v1835
          %v1837 = vpop.f32.mrf.mxu0
          %v1838 = vadd.f32 0.0, %v1837
          %1839 = vmatmul.bf16.gmra.mxu0 %v1807
          %v1840 = vpop.f32.mrf.mxu0
          %v1841 = vadd.f32 0.0, %v1840
          %v1842 = vpop.f32.mrf.mxu0
          %v1843 = vadd.f32 0.0, %v1842
          %1844 = vmatmul.bf16.gmra.mxu0 %v1808
          %v1845 = vpop.f32.mrf.mxu0
          %v1846 = vadd.f32 0.0, %v1845
          %v1847 = vpop.f32.mrf.mxu0
          %v1848 = vadd.f32 0.0, %v1847
          %1849 = vmatmul.bf16.gmra.mxu0 %v1809
          %v1850 = vpop.f32.mrf.mxu0
          %v1851 = vadd.f32 0.0, %v1850
          %v1852 = vpop.f32.mrf.mxu0
          %v1853 = vadd.f32 0.0, %v1852
          %1854 = vmatmul.bf16.gmra.mxu0 %v1810
          %v1855 = vpop.f32.mrf.mxu0
          %v1856 = vadd.f32 0.0, %v1855
          %v1857 = vpop.f32.mrf.mxu0
          %v1858 = vadd.f32 0.0, %v1857
          %1859 = vdwg.mxu0
          %v1860 = vpack.c.bf16 %v1823, %v1821
          %v1861 = vpack.c.bf16 %v1828, %v1826
          %v1862 = vpack.c.bf16 %v1833, %v1831
          %v1863 = vpack.c.bf16 %v1838, %v1836
          %v1864 = vpack.c.bf16 %v1843, %v1841
          %v1865 = vpack.c.bf16 %v1848, %v1846
          %v1866 = vpack.c.bf16 %v1853, %v1851
          %v1867 = vpack.c.bf16 %v1858, %v1856
          %v1868 = vld [vmem:[%s13] sm:$0xf]
          %v1869 = vld [vmem:[%s13 + $0x4] sm:$0xf]
          %v1870 = vld [vmem:[%s13 + $0x8] sm:$0xf]
          %v1871 = vld [vmem:[%s13 + $0xc] sm:$0xf]
          %v1872 = vld [vmem:[%s13 + $0x10] sm:$0xf]
          %v1873 = vld [vmem:[%s13 + $0x14] sm:$0xf]
          %v1874 = vld [vmem:[%s13 + $0x18] sm:$0xf]
          %v1875 = vld [vmem:[%s13 + $0x1c] sm:$0xf]
          %v1876 = vld [vmem:[%s13 + $0x20] sm:$0xf]
          %v1877 = vld [vmem:[%s13 + $0x24] sm:$0xf]
          %v1878 = vld [vmem:[%s13 + $0x28] sm:$0xf]
          %v1879 = vld [vmem:[%s13 + $0x2c] sm:$0xf]
          %v1880 = vld [vmem:[%s13 + $0x30] sm:$0xf]
          %v1881 = vld [vmem:[%s13 + $0x34] sm:$0xf]
          %v1882 = vld [vmem:[%s13 + $0x38] sm:$0xf]
          %v1883 = vld [vmem:[%s13 + $0x3c] sm:$0xf]
          %v1900 = vunpack.c.l.b16 %v1868
          %v1901 = vunpack.c.l.b16 %v1869
          %v1902 = vunpack.c.l.b16 %v1870
          %v1903 = vunpack.c.l.b16 %v1871
          %v1904 = vunpack.c.l.b16 %v1872
          %v1905 = vunpack.c.l.b16 %v1873
          %v1906 = vunpack.c.l.b16 %v1874
          %v1907 = vunpack.c.l.b16 %v1875
          %v1908 = vunpack.c.l.b16 %v1876
          %v1909 = vunpack.c.l.b16 %v1877
          %v1910 = vunpack.c.l.b16 %v1878
          %v1911 = vunpack.c.l.b16 %v1879
          %v1912 = vunpack.c.l.b16 %v1880
          %v1913 = vunpack.c.l.b16 %v1881
          %v1914 = vunpack.c.l.b16 %v1882
          %v1915 = vunpack.c.l.b16 %v1883
          %v1916 = vpack.c.b16 %v1901, %v1900
          %v1917 = vpack.c.b16 %v1903, %v1902
          %v1918 = vpack.c.b16 %v1905, %v1904
          %v1919 = vpack.c.b16 %v1907, %v1906
          %v1920 = vpack.c.b16 %v1909, %v1908
          %v1921 = vpack.c.b16 %v1911, %v1910
          %v1922 = vpack.c.b16 %v1913, %v1912
          %v1923 = vpack.c.b16 %v1915, %v1914
          %1932 = vmatpush.bf16.msra.mxu0 %v1923
          %1933 = vmatpush.bf16.msra.mxu0 %v1922
          %1934 = vmatpush.bf16.msra.mxu0 %v1921
          %1935 = vmatpush.bf16.msra.mxu0 %v1920
          %1936 = vmatpush.bf16.msra.mxu0 %v1919
          %1937 = vmatpush.bf16.msra.mxu0 %v1918
          %1938 = vmatpush.bf16.msra.mxu0 %v1917
          %1939 = vmatpush.bf16.msra.mxu0 %v1916
          %1940 = vmatmul.bf16.gmra.mxu0 %v1860
          %v1941 = vpop.f32.mrf.mxu0
          %v1942 = vadd.f32 0.0, %v1941
          %v1943 = vpop.f32.mrf.mxu0
          %v1944 = vadd.f32 0.0, %v1943
          %1945 = vmatmul.bf16.gmra.mxu0 %v1861
          %v1946 = vpop.f32.mrf.mxu0
          %v1947 = vadd.f32 0.0, %v1946
          %v1948 = vpop.f32.mrf.mxu0
          %v1949 = vadd.f32 0.0, %v1948
          %1950 = vmatmul.bf16.gmra.mxu0 %v1862
          %v1951 = vpop.f32.mrf.mxu0
          %v1952 = vadd.f32 0.0, %v1951
          %v1953 = vpop.f32.mrf.mxu0
          %v1954 = vadd.f32 0.0, %v1953
          %1955 = vmatmul.bf16.gmra.mxu0 %v1863
          %v1956 = vpop.f32.mrf.mxu0
          %v1957 = vadd.f32 0.0, %v1956
          %v1958 = vpop.f32.mrf.mxu0
          %v1959 = vadd.f32 0.0, %v1958
          %1960 = vmatmul.bf16.gmra.mxu0 %v1864
          %v1961 = vpop.f32.mrf.mxu0
          %v1962 = vadd.f32 0.0, %v1961
          %v1963 = vpop.f32.mrf.mxu0
          %v1964 = vadd.f32 0.0, %v1963
          %1965 = vmatmul.bf16.gmra.mxu0 %v1865
          %v1966 = vpop.f32.mrf.mxu0
          %v1967 = vadd.f32 0.0, %v1966
          %v1968 = vpop.f32.mrf.mxu0
          %v1969 = vadd.f32 0.0, %v1968
          %1970 = vmatmul.bf16.gmra.mxu0 %v1866
          %v1971 = vpop.f32.mrf.mxu0
          %v1972 = vadd.f32 0.0, %v1971
          %v1973 = vpop.f32.mrf.mxu0
          %v1974 = vadd.f32 0.0, %v1973
          %1975 = vmatmul.bf16.gmra.mxu0 %v1867
          %v1976 = vpop.f32.mrf.mxu0
          %v1977 = vadd.f32 0.0, %v1976
          %v1978 = vpop.f32.mrf.mxu0
          %v1979 = vadd.f32 0.0, %v1978
          %1980 = vdwg.mxu0
          %v1981 = vadd.f32 %v1172, %v1942
          %v1982 = vadd.f32 %v1173, %v1944
          %v1983 = vadd.f32 %v1174, %v1947
          %v1984 = vadd.f32 %v1175, %v1949
          %v1985 = vadd.f32 %v1176, %v1952
          %v1986 = vadd.f32 %v1177, %v1954
          %v1987 = vadd.f32 %v1178, %v1957
          %v1988 = vadd.f32 %v1179, %v1959
          %v1989 = vadd.f32 %v1180, %v1962
          %v1990 = vadd.f32 %v1181, %v1964
          %v1991 = vadd.f32 %v1182, %v1967
          %v1992 = vadd.f32 %v1183, %v1969
          %v1993 = vadd.f32 %v1184, %v1972
          %v1994 = vadd.f32 %v1185, %v1974
          %v1995 = vadd.f32 %v1186, %v1977
          %v1996 = vadd.f32 %v1187, %v1979
          %v1997 = vld [vmem:[%s15] sm:$0x1]
          %v1999 = vperm.slane %v1997, 0
          %v2001 = vadd.f32 %v1981, %v1999
          %v2002 = vadd.f32 %v1982, %v1999
          %v2003 = vadd.f32 %v1983, %v1999
          %v2004 = vadd.f32 %v1984, %v1999
          %v2005 = vadd.f32 %v1985, %v1999
          %v2006 = vadd.f32 %v1986, %v1999
          %v2007 = vadd.f32 %v1987, %v1999
          %v2008 = vadd.f32 %v1988, %v1999
          %v2009 = vadd.f32 %v1989, %v1999
          %v2010 = vadd.f32 %v1990, %v1999
          %v2011 = vadd.f32 %v1991, %v1999
          %v2012 = vadd.f32 %v1992, %v1999
          %v2013 = vadd.f32 %v1993, %v1999
          %v2014 = vadd.f32 %v1994, %v1999
          %v2015 = vadd.f32 %v1995, %v1999
          %v2016 = vadd.f32 %v1996, %v1999
          %v2017 = vpack.c.bf16 %v2002, %v2001
          %v2018 = vpack.c.bf16 %v2004, %v2003
          %v2019 = vpack.c.bf16 %v2006, %v2005
          %v2020 = vpack.c.bf16 %v2008, %v2007
          %v2021 = vpack.c.bf16 %v2010, %v2009
          %v2022 = vpack.c.bf16 %v2012, %v2011
          %v2023 = vpack.c.bf16 %v2014, %v2013
          %v2024 = vpack.c.bf16 %v2016, %v2015
          %v2025 = vld [vmem:[%s17] sm:$0xff]
          %v2026 = vld [vmem:[%s17 + $0x8] sm:$0xff]
          %v2027 = vld [vmem:[%s17 + $0x10] sm:$0xff]
          %v2028 = vld [vmem:[%s17 + $0x18] sm:$0xff]
          %v2029 = vld [vmem:[%s17 + $0x20] sm:$0xff]
          %v2030 = vld [vmem:[%s17 + $0x28] sm:$0xff]
          %v2031 = vld [vmem:[%s17 + $0x30] sm:$0xff]
          %v2032 = vld [vmem:[%s17 + $0x38] sm:$0xff]
          %v2033 = vld [vmem:[%s17 + $0x40] sm:$0xff]
          %v2034 = vld [vmem:[%s17 + $0x48] sm:$0xff]
          %v2035 = vld [vmem:[%s17 + $0x50] sm:$0xff]
          %v2036 = vld [vmem:[%s17 + $0x58] sm:$0xff]
          %v2037 = vld [vmem:[%s17 + $0x60] sm:$0xff]
          %v2038 = vld [vmem:[%s17 + $0x68] sm:$0xff]
          %v2039 = vld [vmem:[%s17 + $0x70] sm:$0xff]
          %v2040 = vld [vmem:[%s17 + $0x78] sm:$0xff]
          %v2041 = vld [vmem:[%s19] sm:$0x3]
          %v2043 = vperm.slane %v2041, 0
          %v2044 = vperm.slane %v2041, 1
          %v2063 = vunpack.c.l.b16 %v2025
          %v2064 = vunpack.c.h.b16 %v2025
          %v2065 = vunpack.c.l.b16 %v2026
          %v2066 = vunpack.c.h.b16 %v2026
          %v2067 = vunpack.c.l.b16 %v2027
          %v2068 = vunpack.c.h.b16 %v2027
          %v2069 = vunpack.c.l.b16 %v2028
          %v2070 = vunpack.c.h.b16 %v2028
          %v2071 = vunpack.c.l.b16 %v2029
          %v2072 = vunpack.c.h.b16 %v2029
          %v2073 = vunpack.c.l.b16 %v2030
          %v2074 = vunpack.c.h.b16 %v2030
          %v2075 = vunpack.c.l.b16 %v2031
          %v2076 = vunpack.c.h.b16 %v2031
          %v2077 = vunpack.c.l.b16 %v2032
          %v2078 = vunpack.c.h.b16 %v2032
          %v2079 = vunpack.c.l.b16 %v2033
          %v2080 = vunpack.c.h.b16 %v2033
          %v2081 = vunpack.c.l.b16 %v2034
          %v2082 = vunpack.c.h.b16 %v2034
          %v2083 = vunpack.c.l.b16 %v2035
          %v2084 = vunpack.c.h.b16 %v2035
          %v2085 = vunpack.c.l.b16 %v2036
          %v2086 = vunpack.c.h.b16 %v2036
          %v2087 = vunpack.c.l.b16 %v2037
          %v2088 = vunpack.c.h.b16 %v2037
          %v2089 = vunpack.c.l.b16 %v2038
          %v2090 = vunpack.c.h.b16 %v2038
          %v2091 = vunpack.c.l.b16 %v2039
          %v2092 = vunpack.c.h.b16 %v2039
          %v2093 = vunpack.c.l.b16 %v2040
          %v2094 = vunpack.c.h.b16 %v2040
          %v2095 = vpack.c.b16 %v2065, %v2063
          %v2096 = vpack.c.b16 %v2066, %v2064
          %v2097 = vpack.c.b16 %v2069, %v2067
          %v2098 = vpack.c.b16 %v2070, %v2068
          %v2099 = vpack.c.b16 %v2073, %v2071
          %v2100 = vpack.c.b16 %v2074, %v2072
          %v2101 = vpack.c.b16 %v2077, %v2075
          %v2102 = vpack.c.b16 %v2078, %v2076
          %v2103 = vpack.c.b16 %v2081, %v2079
          %v2104 = vpack.c.b16 %v2082, %v2080
          %v2105 = vpack.c.b16 %v2085, %v2083
          %v2106 = vpack.c.b16 %v2086, %v2084
          %v2107 = vpack.c.b16 %v2089, %v2087
          %v2108 = vpack.c.b16 %v2090, %v2088
          %v2109 = vpack.c.b16 %v2093, %v2091
          %v2110 = vpack.c.b16 %v2094, %v2092
          %2127 = vmatpush.bf16.msra.mxu0 %v2109
          %2128 = vmatpush.bf16.msra.mxu0 %v2107
          %2129 = vmatpush.bf16.msra.mxu0 %v2105
          %2130 = vmatpush.bf16.msra.mxu0 %v2103
          %2131 = vmatpush.bf16.msra.mxu0 %v2101
          %2132 = vmatpush.bf16.msra.mxu0 %v2099
          %2133 = vmatpush.bf16.msra.mxu0 %v2097
          %2134 = vmatpush.bf16.msra.mxu0 %v2095
          %2135 = vmatmul.bf16.gmra.mxu0 %v2017
          %v2136 = vpop.f32.mrf.mxu0
          %v2137 = vadd.f32 %v2043, %v2136
          %v2138 = vpop.f32.mrf.mxu0
          %v2139 = vadd.f32 %v2043, %v2138
          %2140 = vmatmul.bf16.gmra.mxu0 %v2018
          %v2141 = vpop.f32.mrf.mxu0
          %v2142 = vadd.f32 %v2043, %v2141
          %v2143 = vpop.f32.mrf.mxu0
          %v2144 = vadd.f32 %v2043, %v2143
          %2145 = vmatmul.bf16.gmra.mxu0 %v2019
          %v2146 = vpop.f32.mrf.mxu0
          %v2147 = vadd.f32 %v2043, %v2146
          %v2148 = vpop.f32.mrf.mxu0
          %v2149 = vadd.f32 %v2043, %v2148
          %2150 = vmatmul.bf16.gmra.mxu0 %v2020
          %v2151 = vpop.f32.mrf.mxu0
          %v2152 = vadd.f32 %v2043, %v2151
          %v2153 = vpop.f32.mrf.mxu0
          %v2154 = vadd.f32 %v2043, %v2153
          %2155 = vmatmul.bf16.gmra.mxu0 %v2021
          %v2156 = vpop.f32.mrf.mxu0
          %v2157 = vadd.f32 %v2043, %v2156
          %v2158 = vpop.f32.mrf.mxu0
          %v2159 = vadd.f32 %v2043, %v2158
          %2160 = vmatmul.bf16.gmra.mxu0 %v2022
          %v2161 = vpop.f32.mrf.mxu0
          %v2162 = vadd.f32 %v2043, %v2161
          %v2163 = vpop.f32.mrf.mxu0
          %v2164 = vadd.f32 %v2043, %v2163
          %2165 = vmatmul.bf16.gmra.mxu0 %v2023
          %v2166 = vpop.f32.mrf.mxu0
          %v2167 = vadd.f32 %v2043, %v2166
          %v2168 = vpop.f32.mrf.mxu0
          %v2169 = vadd.f32 %v2043, %v2168
          %2170 = vmatmul.bf16.gmra.mxu0 %v2024
          %v2171 = vpop.f32.mrf.mxu0
          %v2172 = vadd.f32 %v2043, %v2171
          %v2173 = vpop.f32.mrf.mxu0
          %v2174 = vadd.f32 %v2043, %v2173
          %2175 = vdwg.mxu0
          %2176 = vmatpush.bf16.msra.mxu0 %v2110
          %2177 = vmatpush.bf16.msra.mxu0 %v2108
          %2178 = vmatpush.bf16.msra.mxu0 %v2106
          %2179 = vmatpush.bf16.msra.mxu0 %v2104
          %2180 = vmatpush.bf16.msra.mxu0 %v2102
          %2181 = vmatpush.bf16.msra.mxu0 %v2100
          %2182 = vmatpush.bf16.msra.mxu0 %v2098
          %2183 = vmatpush.bf16.msra.mxu0 %v2096
          %2184 = vmatmul.bf16.gmra.mxu0 %v2017
          %v2185 = vpop.f32.mrf.mxu0
          %v2186 = vadd.f32 %v2044, %v2185
          %v2187 = vpop.f32.mrf.mxu0
          %v2188 = vadd.f32 %v2044, %v2187
          %2189 = vmatmul.bf16.gmra.mxu0 %v2018
          %v2190 = vpop.f32.mrf.mxu0
          %v2191 = vadd.f32 %v2044, %v2190
          %v2192 = vpop.f32.mrf.mxu0
          %v2193 = vadd.f32 %v2044, %v2192
          %2194 = vmatmul.bf16.gmra.mxu0 %v2019
          %v2195 = vpop.f32.mrf.mxu0
          %v2196 = vadd.f32 %v2044, %v2195
          %v2197 = vpop.f32.mrf.mxu0
          %v2198 = vadd.f32 %v2044, %v2197
          %2199 = vmatmul.bf16.gmra.mxu0 %v2020
          %v2200 = vpop.f32.mrf.mxu0
          %v2201 = vadd.f32 %v2044, %v2200
          %v2202 = vpop.f32.mrf.mxu0
          %v2203 = vadd.f32 %v2044, %v2202
          %2204 = vmatmul.bf16.gmra.mxu0 %v2021
          %v2205 = vpop.f32.mrf.mxu0
          %v2206 = vadd.f32 %v2044, %v2205
          %v2207 = vpop.f32.mrf.mxu0
          %v2208 = vadd.f32 %v2044, %v2207
          %2209 = vmatmul.bf16.gmra.mxu0 %v2022
          %v2210 = vpop.f32.mrf.mxu0
          %v2211 = vadd.f32 %v2044, %v2210
          %v2212 = vpop.f32.mrf.mxu0
          %v2213 = vadd.f32 %v2044, %v2212
          %2214 = vmatmul.bf16.gmra.mxu0 %v2023
          %v2215 = vpop.f32.mrf.mxu0
          %v2216 = vadd.f32 %v2044, %v2215
          %v2217 = vpop.f32.mrf.mxu0
          %v2218 = vadd.f32 %v2044, %v2217
          %2219 = vmatmul.bf16.gmra.mxu0 %v2024
          %v2220 = vpop.f32.mrf.mxu0
          %v2221 = vadd.f32 %v2044, %v2220
          %v2222 = vpop.f32.mrf.mxu0
          %v2223 = vadd.f32 %v2044, %v2222
          %2224 = vdwg.mxu0
          %v2225 = vmax.f32 %v2137, 0.0
          %v2226 = vmax.f32 %v2186, 0.0
          %v2227 = vmax.f32 %v2139, 0.0
          %v2228 = vmax.f32 %v2188, 0.0
          %v2229 = vmax.f32 %v2142, 0.0
          %v2230 = vmax.f32 %v2191, 0.0
          %v2231 = vmax.f32 %v2144, 0.0
          %v2232 = vmax.f32 %v2193, 0.0
          %v2233 = vmax.f32 %v2147, 0.0
          %v2234 = vmax.f32 %v2196, 0.0
          %v2235 = vmax.f32 %v2149, 0.0
          %v2236 = vmax.f32 %v2198, 0.0
          %v2237 = vmax.f32 %v2152, 0.0
          %v2238 = vmax.f32 %v2201, 0.0
          %v2239 = vmax.f32 %v2154, 0.0
          %v2240 = vmax.f32 %v2203, 0.0
          %v2241 = vmax.f32 %v2157, 0.0
          %v2242 = vmax.f32 %v2206, 0.0
          %v2243 = vmax.f32 %v2159, 0.0
          %v2244 = vmax.f32 %v2208, 0.0
          %v2245 = vmax.f32 %v2162, 0.0
          %v2246 = vmax.f32 %v2211, 0.0
          %v2247 = vmax.f32 %v2164, 0.0
          %v2248 = vmax.f32 %v2213, 0.0
          %v2249 = vmax.f32 %v2167, 0.0
          %v2250 = vmax.f32 %v2216, 0.0
          %v2251 = vmax.f32 %v2169, 0.0
          %v2252 = vmax.f32 %v2218, 0.0
          %v2253 = vmax.f32 %v2172, 0.0
          %v2254 = vmax.f32 %v2221, 0.0
          %v2255 = vmax.f32 %v2174, 0.0
          %v2256 = vmax.f32 %v2223, 0.0
          %v2257 = vpack.c.bf16 %v2227, %v2225
          %v2258 = vpack.c.bf16 %v2228, %v2226
          %v2259 = vpack.c.bf16 %v2231, %v2229
          %v2260 = vpack.c.bf16 %v2232, %v2230
          %v2261 = vpack.c.bf16 %v2235, %v2233
          %v2262 = vpack.c.bf16 %v2236, %v2234
          %v2263 = vpack.c.bf16 %v2239, %v2237
          %v2264 = vpack.c.bf16 %v2240, %v2238
          %v2265 = vpack.c.bf16 %v2243, %v2241
          %v2266 = vpack.c.bf16 %v2244, %v2242
          %v2267 = vpack.c.bf16 %v2247, %v2245
          %v2268 = vpack.c.bf16 %v2248, %v2246
          %v2269 = vpack.c.bf16 %v2251, %v2249
          %v2270 = vpack.c.bf16 %v2252, %v2250
          %v2271 = vpack.c.bf16 %v2255, %v2253
          %v2272 = vpack.c.bf16 %v2256, %v2254
          %v2273 = vld [vmem:[%s21] sm:$0xf]
          %v2274 = vld [vmem:[%s21 + $0x4] sm:$0xf]
          %v2275 = vld [vmem:[%s21 + $0x8] sm:$0xf]
          %v2276 = vld [vmem:[%s21 + $0xc] sm:$0xf]
          %v2277 = vld [vmem:[%s21 + $0x10] sm:$0xf]
          %v2278 = vld [vmem:[%s21 + $0x14] sm:$0xf]
          %v2279 = vld [vmem:[%s21 + $0x18] sm:$0xf]
          %v2280 = vld [vmem:[%s21 + $0x1c] sm:$0xf]
          %v2281 = vld [vmem:[%s21 + $0x20] sm:$0xf]
          %v2282 = vld [vmem:[%s21 + $0x24] sm:$0xf]
          %v2283 = vld [vmem:[%s21 + $0x28] sm:$0xf]
          %v2284 = vld [vmem:[%s21 + $0x2c] sm:$0xf]
          %v2285 = vld [vmem:[%s21 + $0x30] sm:$0xf]
          %v2286 = vld [vmem:[%s21 + $0x34] sm:$0xf]
          %v2287 = vld [vmem:[%s21 + $0x38] sm:$0xf]
          %v2288 = vld [vmem:[%s21 + $0x3c] sm:$0xf]
          %v2289 = vld [vmem:[%s21 + $0x40] sm:$0xf]
          %v2290 = vld [vmem:[%s21 + $0x44] sm:$0xf]
          %v2291 = vld [vmem:[%s21 + $0x48] sm:$0xf]
          %v2292 = vld [vmem:[%s21 + $0x4c] sm:$0xf]
          %v2293 = vld [vmem:[%s21 + $0x50] sm:$0xf]
          %v2294 = vld [vmem:[%s21 + $0x54] sm:$0xf]
          %v2295 = vld [vmem:[%s21 + $0x58] sm:$0xf]
          %v2296 = vld [vmem:[%s21 + $0x5c] sm:$0xf]
          %v2297 = vld [vmem:[%s21 + $0x60] sm:$0xf]
          %v2298 = vld [vmem:[%s21 + $0x64] sm:$0xf]
          %v2299 = vld [vmem:[%s21 + $0x68] sm:$0xf]
          %v2300 = vld [vmem:[%s21 + $0x6c] sm:$0xf]
          %v2301 = vld [vmem:[%s21 + $0x70] sm:$0xf]
          %v2302 = vld [vmem:[%s21 + $0x74] sm:$0xf]
          %v2303 = vld [vmem:[%s21 + $0x78] sm:$0xf]
          %v2304 = vld [vmem:[%s21 + $0x7c] sm:$0xf]
          %v2337 = vunpack.c.l.b16 %v2273
          %v2338 = vunpack.c.l.b16 %v2274
          %v2339 = vunpack.c.l.b16 %v2275
          %v2340 = vunpack.c.l.b16 %v2276
          %v2341 = vunpack.c.l.b16 %v2277
          %v2342 = vunpack.c.l.b16 %v2278
          %v2343 = vunpack.c.l.b16 %v2279
          %v2344 = vunpack.c.l.b16 %v2280
          %v2345 = vunpack.c.l.b16 %v2281
          %v2346 = vunpack.c.l.b16 %v2282
          %v2347 = vunpack.c.l.b16 %v2283
          %v2348 = vunpack.c.l.b16 %v2284
          %v2349 = vunpack.c.l.b16 %v2285
          %v2350 = vunpack.c.l.b16 %v2286
          %v2351 = vunpack.c.l.b16 %v2287
          %v2352 = vunpack.c.l.b16 %v2288
          %v2353 = vunpack.c.l.b16 %v2289
          %v2354 = vunpack.c.l.b16 %v2290
          %v2355 = vunpack.c.l.b16 %v2291
          %v2356 = vunpack.c.l.b16 %v2292
          %v2357 = vunpack.c.l.b16 %v2293
          %v2358 = vunpack.c.l.b16 %v2294
          %v2359 = vunpack.c.l.b16 %v2295
          %v2360 = vunpack.c.l.b16 %v2296
          %v2361 = vunpack.c.l.b16 %v2297
          %v2362 = vunpack.c.l.b16 %v2298
          %v2363 = vunpack.c.l.b16 %v2299
          %v2364 = vunpack.c.l.b16 %v2300
          %v2365 = vunpack.c.l.b16 %v2301
          %v2366 = vunpack.c.l.b16 %v2302
          %v2367 = vunpack.c.l.b16 %v2303
          %v2368 = vunpack.c.l.b16 %v2304
          %v2369 = vpack.c.b16 %v2338, %v2337
          %v2370 = vpack.c.b16 %v2340, %v2339
          %v2371 = vpack.c.b16 %v2342, %v2341
          %v2372 = vpack.c.b16 %v2344, %v2343
          %v2373 = vpack.c.b16 %v2346, %v2345
          %v2374 = vpack.c.b16 %v2348, %v2347
          %v2375 = vpack.c.b16 %v2350, %v2349
          %v2376 = vpack.c.b16 %v2352, %v2351
          %v2377 = vpack.c.b16 %v2354, %v2353
          %v2378 = vpack.c.b16 %v2356, %v2355
          %v2379 = vpack.c.b16 %v2358, %v2357
          %v2380 = vpack.c.b16 %v2360, %v2359
          %v2381 = vpack.c.b16 %v2362, %v2361
          %v2382 = vpack.c.b16 %v2364, %v2363
          %v2383 = vpack.c.b16 %v2366, %v2365
          %v2384 = vpack.c.b16 %v2368, %v2367
          %2401 = vmatpush.bf16.msra.mxu0 %v2376
          %2402 = vmatpush.bf16.msra.mxu0 %v2375
          %2403 = vmatpush.bf16.msra.mxu0 %v2374
          %2404 = vmatpush.bf16.msra.mxu0 %v2373
          %2405 = vmatpush.bf16.msra.mxu0 %v2372
          %2406 = vmatpush.bf16.msra.mxu0 %v2371
          %2407 = vmatpush.bf16.msra.mxu0 %v2370
          %2408 = vmatpush.bf16.msra.mxu0 %v2369
          %2409 = vmatmul.bf16.gmra.mxu0 %v2257
          %v2410 = vpop.f32.mrf.mxu0
          %v2411 = vadd.f32 0.0, %v2410
          %v2412 = vpop.f32.mrf.mxu0
          %v2413 = vadd.f32 0.0, %v2412
          %2414 = vmatmul.bf16.gmra.mxu0 %v2259
          %v2415 = vpop.f32.mrf.mxu0
          %v2416 = vadd.f32 0.0, %v2415
          %v2417 = vpop.f32.mrf.mxu0
          %v2418 = vadd.f32 0.0, %v2417
          %2419 = vmatmul.bf16.gmra.mxu0 %v2261
          %v2420 = vpop.f32.mrf.mxu0
          %v2421 = vadd.f32 0.0, %v2420
          %v2422 = vpop.f32.mrf.mxu0
          %v2423 = vadd.f32 0.0, %v2422
          %2424 = vmatmul.bf16.gmra.mxu0 %v2263
          %v2425 = vpop.f32.mrf.mxu0
          %v2426 = vadd.f32 0.0, %v2425
          %v2427 = vpop.f32.mrf.mxu0
          %v2428 = vadd.f32 0.0, %v2427
          %2429 = vmatmul.bf16.gmra.mxu0 %v2265
          %v2430 = vpop.f32.mrf.mxu0
          %v2431 = vadd.f32 0.0, %v2430
          %v2432 = vpop.f32.mrf.mxu0
          %v2433 = vadd.f32 0.0, %v2432
          %2434 = vmatmul.bf16.gmra.mxu0 %v2267
          %v2435 = vpop.f32.mrf.mxu0
          %v2436 = vadd.f32 0.0, %v2435
          %v2437 = vpop.f32.mrf.mxu0
          %v2438 = vadd.f32 0.0, %v2437
          %2439 = vmatmul.bf16.gmra.mxu0 %v2269
          %v2440 = vpop.f32.mrf.mxu0
          %v2441 = vadd.f32 0.0, %v2440
          %v2442 = vpop.f32.mrf.mxu0
          %v2443 = vadd.f32 0.0, %v2442
          %2444 = vmatmul.bf16.gmra.mxu0 %v2271
          %v2445 = vpop.f32.mrf.mxu0
          %v2446 = vadd.f32 0.0, %v2445
          %v2447 = vpop.f32.mrf.mxu0
          %v2448 = vadd.f32 0.0, %v2447
          %2449 = vdwg.mxu0
          %2450 = vmatpush.bf16.msra.mxu0 %v2384
          %2451 = vmatpush.bf16.msra.mxu0 %v2383
          %2452 = vmatpush.bf16.msra.mxu0 %v2382
          %2453 = vmatpush.bf16.msra.mxu0 %v2381
          %2454 = vmatpush.bf16.msra.mxu0 %v2380
          %2455 = vmatpush.bf16.msra.mxu0 %v2379
          %2456 = vmatpush.bf16.msra.mxu0 %v2378
          %2457 = vmatpush.bf16.msra.mxu0 %v2377
          %2458 = vmatmul.bf16.gmra.mxu0 %v2258
          %v2459 = vpop.f32.mrf.mxu0
          %v2460 = vadd.f32 %v2411, %v2459
          %v2461 = vpop.f32.mrf.mxu0
          %v2462 = vadd.f32 %v2413, %v2461
          %2463 = vmatmul.bf16.gmra.mxu0 %v2260
          %v2464 = vpop.f32.mrf.mxu0
          %v2465 = vadd.f32 %v2416, %v2464
          %v2466 = vpop.f32.mrf.mxu0
          %v2467 = vadd.f32 %v2418, %v2466
          %2468 = vmatmul.bf16.gmra.mxu0 %v2262
          %v2469 = vpop.f32.mrf.mxu0
          %v2470 = vadd.f32 %v2421, %v2469
          %v2471 = vpop.f32.mrf.mxu0
          %v2472 = vadd.f32 %v2423, %v2471
          %2473 = vmatmul.bf16.gmra.mxu0 %v2264
          %v2474 = vpop.f32.mrf.mxu0
          %v2475 = vadd.f32 %v2426, %v2474
          %v2476 = vpop.f32.mrf.mxu0
          %v2477 = vadd.f32 %v2428, %v2476
          %2478 = vmatmul.bf16.gmra.mxu0 %v2266
          %v2479 = vpop.f32.mrf.mxu0
          %v2480 = vadd.f32 %v2431, %v2479
          %v2481 = vpop.f32.mrf.mxu0
          %v2482 = vadd.f32 %v2433, %v2481
          %2483 = vmatmul.bf16.gmra.mxu0 %v2268
          %v2484 = vpop.f32.mrf.mxu0
          %v2485 = vadd.f32 %v2436, %v2484
          %v2486 = vpop.f32.mrf.mxu0
          %v2487 = vadd.f32 %v2438, %v2486
          %2488 = vmatmul.bf16.gmra.mxu0 %v2270
          %v2489 = vpop.f32.mrf.mxu0
          %v2490 = vadd.f32 %v2441, %v2489
          %v2491 = vpop.f32.mrf.mxu0
          %v2492 = vadd.f32 %v2443, %v2491
          %2493 = vmatmul.bf16.gmra.mxu0 %v2272
          %v2494 = vpop.f32.mrf.mxu0
          %v2495 = vadd.f32 %v2446, %v2494
          %v2496 = vpop.f32.mrf.mxu0
          %v2497 = vadd.f32 %v2448, %v2496
          %2498 = vdwg.mxu0
          %v2499 = vadd.f32 %v2001, %v2460
          %v2500 = vadd.f32 %v2002, %v2462
          %v2501 = vadd.f32 %v2003, %v2465
          %v2502 = vadd.f32 %v2004, %v2467
          %v2503 = vadd.f32 %v2005, %v2470
          %v2504 = vadd.f32 %v2006, %v2472
          %v2505 = vadd.f32 %v2007, %v2475
          %v2506 = vadd.f32 %v2008, %v2477
          %v2507 = vadd.f32 %v2009, %v2480
          %v2508 = vadd.f32 %v2010, %v2482
          %v2509 = vadd.f32 %v2011, %v2485
          %v2510 = vadd.f32 %v2012, %v2487
          %v2511 = vadd.f32 %v2013, %v2490
          %v2512 = vadd.f32 %v2014, %v2492
          %v2513 = vadd.f32 %v2015, %v2495
          %v2514 = vadd.f32 %v2016, %v2497
          %v2515 = vld [vmem:[%s23] sm:$0x1]
          %v2517 = vperm.slane %v2515, 0
          %v2519 = vadd.f32 %v2499, %v2517
          %v2520 = vadd.f32 %v2500, %v2517
          %v2521 = vadd.f32 %v2501, %v2517
          %v2522 = vadd.f32 %v2502, %v2517
          %v2523 = vadd.f32 %v2503, %v2517
          %v2524 = vadd.f32 %v2504, %v2517
          %v2525 = vadd.f32 %v2505, %v2517
          %v2526 = vadd.f32 %v2506, %v2517
          %v2527 = vadd.f32 %v2507, %v2517
          %v2528 = vadd.f32 %v2508, %v2517
          %v2529 = vadd.f32 %v2509, %v2517
          %v2530 = vadd.f32 %v2510, %v2517
          %v2531 = vadd.f32 %v2511, %v2517
          %v2532 = vadd.f32 %v2512, %v2517
          %v2533 = vadd.f32 %v2513, %v2517
          %v2534 = vadd.f32 %v2514, %v2517
          %v2535 = vpack.c.bf16 %v2520, %v2519
          %v2536 = vpack.c.bf16 %v2522, %v2521
          %v2537 = vpack.c.bf16 %v2524, %v2523
          %v2538 = vpack.c.bf16 %v2526, %v2525
          %v2539 = vpack.c.bf16 %v2528, %v2527
          %v2540 = vpack.c.bf16 %v2530, %v2529
          %v2541 = vpack.c.bf16 %v2532, %v2531
          %v2542 = vpack.c.bf16 %v2534, %v2533
          %v2543 = vld [vmem:[%s1133] sm:$0xf]
          %v2544 = vld [vmem:[%s1133 + $0x4] sm:$0xf]
          %v2545 = vld [vmem:[%s1133 + $0x8] sm:$0xf]
          %v2546 = vld [vmem:[%s1133 + $0xc] sm:$0xf]
          %v2547 = vld [vmem:[%s1133 + $0x10] sm:$0xf]
          %v2548 = vld [vmem:[%s1133 + $0x14] sm:$0xf]
          %v2549 = vld [vmem:[%s1133 + $0x18] sm:$0xf]
          %v2550 = vld [vmem:[%s1133 + $0x1c] sm:$0xf]
          %v2551 = vld [vmem:[%s1133 + $0x20] sm:$0xf]
          %v2552 = vld [vmem:[%s1133 + $0x24] sm:$0xf]
          %v2553 = vld [vmem:[%s1133 + $0x28] sm:$0xf]
          %v2554 = vld [vmem:[%s1133 + $0x2c] sm:$0xf]
          %v2555 = vld [vmem:[%s1133 + $0x30] sm:$0xf]
          %v2556 = vld [vmem:[%s1133 + $0x34] sm:$0xf]
          %v2557 = vld [vmem:[%s1133 + $0x38] sm:$0xf]
          %v2558 = vld [vmem:[%s1133 + $0x3c] sm:$0xf]
          %v2559 = vunpack.c.l.bf16 %v2543
          %v2560 = vunpack.c.l.bf16 %v2544
          %v2561 = vunpack.c.l.bf16 %v2545
          %v2562 = vunpack.c.l.bf16 %v2546
          %v2563 = vunpack.c.l.bf16 %v2547
          %v2564 = vunpack.c.l.bf16 %v2548
          %v2565 = vunpack.c.l.bf16 %v2549
          %v2566 = vunpack.c.l.bf16 %v2550
          %v2567 = vunpack.c.l.bf16 %v2551
          %v2568 = vunpack.c.l.bf16 %v2552
          %v2569 = vunpack.c.l.bf16 %v2553
          %v2570 = vunpack.c.l.bf16 %v2554
          %v2571 = vunpack.c.l.bf16 %v2555
          %v2572 = vunpack.c.l.bf16 %v2556
          %v2573 = vunpack.c.l.bf16 %v2557
          %v2574 = vunpack.c.l.bf16 %v2558
          %v2575 = vld [vmem:[%s25] sm:$0xff]
          %v2576 = vld [vmem:[%s25 + $0x8] sm:$0xf]
          %v2577 = vld [vmem:[%s25 + $0xc] sm:$0xff]
          %v2578 = vld [vmem:[%s25 + $0x14] sm:$0xf]
          %v2579 = vld [vmem:[%s25 + $0x18] sm:$0xff]
          %v2580 = vld [vmem:[%s25 + $0x20] sm:$0xf]
          %v2581 = vld [vmem:[%s25 + $0x24] sm:$0xff]
          %v2582 = vld [vmem:[%s25 + $0x2c] sm:$0xf]
          %v2583 = vld [vmem:[%s25 + $0x30] sm:$0xff]
          %v2584 = vld [vmem:[%s25 + $0x38] sm:$0xf]
          %v2585 = vld [vmem:[%s25 + $0x3c] sm:$0xff]
          %v2586 = vld [vmem:[%s25 + $0x44] sm:$0xf]
          %v2587 = vld [vmem:[%s25 + $0x48] sm:$0xff]
          %v2588 = vld [vmem:[%s25 + $0x50] sm:$0xf]
          %v2589 = vld [vmem:[%s25 + $0x54] sm:$0xff]
          %v2590 = vld [vmem:[%s25 + $0x5c] sm:$0xf]
          %v2591 = vld [vmem:[%s25 + $0x60] sm:$0xff]
          %v2592 = vld [vmem:[%s25 + $0x68] sm:$0xf]
          %v2593 = vld [vmem:[%s25 + $0x6c] sm:$0xff]
          %v2594 = vld [vmem:[%s25 + $0x74] sm:$0xf]
          %v2595 = vld [vmem:[%s25 + $0x78] sm:$0xff]
          %v2596 = vld [vmem:[%s25 + $0x80] sm:$0xf]
          %v2597 = vld [vmem:[%s25 + $0x84] sm:$0xff]
          %v2598 = vld [vmem:[%s25 + $0x8c] sm:$0xf]
          %v2599 = vld [vmem:[%s25 + $0x90] sm:$0xff]
          %v2600 = vld [vmem:[%s25 + $0x98] sm:$0xf]
          %v2601 = vld [vmem:[%s25 + $0x9c] sm:$0xff]
          %v2602 = vld [vmem:[%s25 + $0xa4] sm:$0xf]
          %v2603 = vld [vmem:[%s25 + $0xa8] sm:$0xff]
          %v2604 = vld [vmem:[%s25 + $0xb0] sm:$0xf]
          %v2605 = vld [vmem:[%s25 + $0xb4] sm:$0xff]
          %v2606 = vld [vmem:[%s25 + $0xbc] sm:$0xf]
          %v2607 = vld [vmem:[%s27] sm:$0x7]
          %v2609 = vperm.slane %v2607, 0
          %v2610 = vperm.slane %v2607, 1
          %v2611 = vperm.slane %v2607, 2
          %v2631 = vunpack.c.l.b16 %v2543
          %v2632 = vunpack.c.l.b16 %v2544
          %v2633 = vunpack.c.l.b16 %v2545
          %v2634 = vunpack.c.l.b16 %v2546
          %v2635 = vunpack.c.l.b16 %v2547
          %v2636 = vunpack.c.l.b16 %v2548
          %v2637 = vunpack.c.l.b16 %v2549
          %v2638 = vunpack.c.l.b16 %v2550
          %v2639 = vunpack.c.l.b16 %v2551
          %v2640 = vunpack.c.l.b16 %v2552
          %v2641 = vunpack.c.l.b16 %v2553
          %v2642 = vunpack.c.l.b16 %v2554
          %v2643 = vunpack.c.l.b16 %v2555
          %v2644 = vunpack.c.l.b16 %v2556
          %v2645 = vunpack.c.l.b16 %v2557
          %v2646 = vunpack.c.l.b16 %v2558
          %v2647 = vpack.c.b16 %v2632, %v2631
          %v2648 = vpack.c.b16 %v2634, %v2633
          %v2649 = vpack.c.b16 %v2636, %v2635
          %v2650 = vpack.c.b16 %v2638, %v2637
          %v2651 = vpack.c.b16 %v2640, %v2639
          %v2652 = vpack.c.b16 %v2642, %v2641
          %v2653 = vpack.c.b16 %v2644, %v2643
          %v2654 = vpack.c.b16 %v2646, %v2645
          %v2695 = vunpack.c.l.b16 %v2575
          %v2696 = vunpack.c.h.b16 %v2575
          %v2697 = vunpack.c.l.b16 %v2576
          %v2698 = vunpack.c.l.b16 %v2577
          %v2699 = vunpack.c.h.b16 %v2577
          %v2700 = vunpack.c.l.b16 %v2578
          %v2701 = vunpack.c.l.b16 %v2579
          %v2702 = vunpack.c.h.b16 %v2579
          %v2703 = vunpack.c.l.b16 %v2580
          %v2704 = vunpack.c.l.b16 %v2581
          %v2705 = vunpack.c.h.b16 %v2581
          %v2706 = vunpack.c.l.b16 %v2582
          %v2707 = vunpack.c.l.b16 %v2583
          %v2708 = vunpack.c.h.b16 %v2583
          %v2709 = vunpack.c.l.b16 %v2584
          %v2710 = vunpack.c.l.b16 %v2585
          %v2711 = vunpack.c.h.b16 %v2585
          %v2712 = vunpack.c.l.b16 %v2586
          %v2713 = vunpack.c.l.b16 %v2587
          %v2714 = vunpack.c.h.b16 %v2587
          %v2715 = vunpack.c.l.b16 %v2588
          %v2716 = vunpack.c.l.b16 %v2589
          %v2717 = vunpack.c.h.b16 %v2589
          %v2718 = vunpack.c.l.b16 %v2590
          %v2719 = vunpack.c.l.b16 %v2591
          %v2720 = vunpack.c.h.b16 %v2591
          %v2721 = vunpack.c.l.b16 %v2592
          %v2722 = vunpack.c.l.b16 %v2593
          %v2723 = vunpack.c.h.b16 %v2593
          %v2724 = vunpack.c.l.b16 %v2594
          %v2725 = vunpack.c.l.b16 %v2595
          %v2726 = vunpack.c.h.b16 %v2595
          %v2727 = vunpack.c.l.b16 %v2596
          %v2728 = vunpack.c.l.b16 %v2597
          %v2729 = vunpack.c.h.b16 %v2597
          %v2730 = vunpack.c.l.b16 %v2598
          %v2731 = vunpack.c.l.b16 %v2599
          %v2732 = vunpack.c.h.b16 %v2599
          %v2733 = vunpack.c.l.b16 %v2600
          %v2734 = vunpack.c.l.b16 %v2601
          %v2735 = vunpack.c.h.b16 %v2601
          %v2736 = vunpack.c.l.b16 %v2602
          %v2737 = vunpack.c.l.b16 %v2603
          %v2738 = vunpack.c.h.b16 %v2603
          %v2739 = vunpack.c.l.b16 %v2604
          %v2740 = vunpack.c.l.b16 %v2605
          %v2741 = vunpack.c.h.b16 %v2605
          %v2742 = vunpack.c.l.b16 %v2606
          %v2743 = vpack.c.b16 %v2698, %v2695
          %v2744 = vpack.c.b16 %v2699, %v2696
          %v2745 = vpack.c.b16 %v2700, %v2697
          %v2746 = vpack.c.b16 %v2704, %v2701
          %v2747 = vpack.c.b16 %v2705, %v2702
          %v2748 = vpack.c.b16 %v2706, %v2703
          %v2749 = vpack.c.b16 %v2710, %v2707
          %v2750 = vpack.c.b16 %v2711, %v2708
          %v2751 = vpack.c.b16 %v2712, %v2709
          %v2752 = vpack.c.b16 %v2716, %v2713
          %v2753 = vpack.c.b16 %v2717, %v2714
          %v2754 = vpack.c.b16 %v2718, %v2715
          %v2755 = vpack.c.b16 %v2722, %v2719
          %v2756 = vpack.c.b16 %v2723, %v2720
          %v2757 = vpack.c.b16 %v2724, %v2721
          %v2758 = vpack.c.b16 %v2728, %v2725
          %v2759 = vpack.c.b16 %v2729, %v2726
          %v2760 = vpack.c.b16 %v2730, %v2727
          %v2761 = vpack.c.b16 %v2734, %v2731
          %v2762 = vpack.c.b16 %v2735, %v2732
          %v2763 = vpack.c.b16 %v2736, %v2733
          %v2764 = vpack.c.b16 %v2740, %v2737
          %v2765 = vpack.c.b16 %v2741, %v2738
          %v2766 = vpack.c.b16 %v2742, %v2739
          %2791 = vmatpush.bf16.msra.mxu0 %v2764
          %2792 = vmatpush.bf16.msra.mxu0 %v2761
          %2793 = vmatpush.bf16.msra.mxu0 %v2758
          %2794 = vmatpush.bf16.msra.mxu0 %v2755
          %2795 = vmatpush.bf16.msra.mxu0 %v2752
          %2796 = vmatpush.bf16.msra.mxu0 %v2749
          %2797 = vmatpush.bf16.msra.mxu0 %v2746
          %2798 = vmatpush.bf16.msra.mxu0 %v2743
          %2799 = vmatmul.bf16.gmra.mxu0 %v2647
          %v2800 = vpop.f32.mrf.mxu0
          %v2801 = vadd.f32 %v2609, %v2800
          %v2802 = vpop.f32.mrf.mxu0
          %v2803 = vadd.f32 %v2609, %v2802
          %2804 = vmatmul.bf16.gmra.mxu0 %v2648
          %v2805 = vpop.f32.mrf.mxu0
          %v2806 = vadd.f32 %v2609, %v2805
          %v2807 = vpop.f32.mrf.mxu0
          %v2808 = vadd.f32 %v2609, %v2807
          %2809 = vmatmul.bf16.gmra.mxu0 %v2649
          %v2810 = vpop.f32.mrf.mxu0
          %v2811 = vadd.f32 %v2609, %v2810
          %v2812 = vpop.f32.mrf.mxu0
          %v2813 = vadd.f32 %v2609, %v2812
          %2814 = vmatmul.bf16.gmra.mxu0 %v2650
          %v2815 = vpop.f32.mrf.mxu0
          %v2816 = vadd.f32 %v2609, %v2815
          %v2817 = vpop.f32.mrf.mxu0
          %v2818 = vadd.f32 %v2609, %v2817
          %2819 = vmatmul.bf16.gmra.mxu0 %v2651
          %v2820 = vpop.f32.mrf.mxu0
          %v2821 = vadd.f32 %v2609, %v2820
          %v2822 = vpop.f32.mrf.mxu0
          %v2823 = vadd.f32 %v2609, %v2822
          %2824 = vmatmul.bf16.gmra.mxu0 %v2652
          %v2825 = vpop.f32.mrf.mxu0
          %v2826 = vadd.f32 %v2609, %v2825
          %v2827 = vpop.f32.mrf.mxu0
          %v2828 = vadd.f32 %v2609, %v2827
          %2829 = vmatmul.bf16.gmra.mxu0 %v2653
          %v2830 = vpop.f32.mrf.mxu0
          %v2831 = vadd.f32 %v2609, %v2830
          %v2832 = vpop.f32.mrf.mxu0
          %v2833 = vadd.f32 %v2609, %v2832
          %2834 = vmatmul.bf16.gmra.mxu0 %v2654
          %v2835 = vpop.f32.mrf.mxu0
          %v2836 = vadd.f32 %v2609, %v2835
          %v2837 = vpop.f32.mrf.mxu0
          %v2838 = vadd.f32 %v2609, %v2837
          %2839 = vdwg.mxu0
          %2840 = vmatpush.bf16.msra.mxu0 %v2765
          %2841 = vmatpush.bf16.msra.mxu0 %v2762
          %2842 = vmatpush.bf16.msra.mxu0 %v2759
          %2843 = vmatpush.bf16.msra.mxu0 %v2756
          %2844 = vmatpush.bf16.msra.mxu0 %v2753
          %2845 = vmatpush.bf16.msra.mxu0 %v2750
          %2846 = vmatpush.bf16.msra.mxu0 %v2747
          %2847 = vmatpush.bf16.msra.mxu0 %v2744
          %2848 = vmatmul.bf16.gmra.mxu0 %v2647
          %v2849 = vpop.f32.mrf.mxu0
          %v2850 = vadd.f32 %v2610, %v2849
          %v2851 = vpop.f32.mrf.mxu0
          %v2852 = vadd.f32 %v2610, %v2851
          %2853 = vmatmul.bf16.gmra.mxu0 %v2648
          %v2854 = vpop.f32.mrf.mxu0
          %v2855 = vadd.f32 %v2610, %v2854
          %v2856 = vpop.f32.mrf.mxu0
          %v2857 = vadd.f32 %v2610, %v2856
          %2858 = vmatmul.bf16.gmra.mxu0 %v2649
          %v2859 = vpop.f32.mrf.mxu0
          %v2860 = vadd.f32 %v2610, %v2859
          %v2861 = vpop.f32.mrf.mxu0
          %v2862 = vadd.f32 %v2610, %v2861
          %2863 = vmatmul.bf16.gmra.mxu0 %v2650
          %v2864 = vpop.f32.mrf.mxu0
          %v2865 = vadd.f32 %v2610, %v2864
          %v2866 = vpop.f32.mrf.mxu0
          %v2867 = vadd.f32 %v2610, %v2866
          %2868 = vmatmul.bf16.gmra.mxu0 %v2651
          %v2869 = vpop.f32.mrf.mxu0
          %v2870 = vadd.f32 %v2610, %v2869
          %v2871 = vpop.f32.mrf.mxu0
          %v2872 = vadd.f32 %v2610, %v2871
          %2873 = vmatmul.bf16.gmra.mxu0 %v2652
          %v2874 = vpop.f32.mrf.mxu0
          %v2875 = vadd.f32 %v2610, %v2874
          %v2876 = vpop.f32.mrf.mxu0
          %v2877 = vadd.f32 %v2610, %v2876
          %2878 = vmatmul.bf16.gmra.mxu0 %v2653
          %v2879 = vpop.f32.mrf.mxu0
          %v2880 = vadd.f32 %v2610, %v2879
          %v2881 = vpop.f32.mrf.mxu0
          %v2882 = vadd.f32 %v2610, %v2881
          %2883 = vmatmul.bf16.gmra.mxu0 %v2654
          %v2884 = vpop.f32.mrf.mxu0
          %v2885 = vadd.f32 %v2610, %v2884
          %v2886 = vpop.f32.mrf.mxu0
          %v2887 = vadd.f32 %v2610, %v2886
          %2888 = vdwg.mxu0
          %2889 = vmatpush.bf16.msra.mxu0 %v2766
          %2890 = vmatpush.bf16.msra.mxu0 %v2763
          %2891 = vmatpush.bf16.msra.mxu0 %v2760
          %2892 = vmatpush.bf16.msra.mxu0 %v2757
          %2893 = vmatpush.bf16.msra.mxu0 %v2754
          %2894 = vmatpush.bf16.msra.mxu0 %v2751
          %2895 = vmatpush.bf16.msra.mxu0 %v2748
          %2896 = vmatpush.bf16.msra.mxu0 %v2745
          %2897 = vmatmul.bf16.gmra.mxu0 %v2647
          %v2898 = vpop.f32.mrf.mxu0
          %v2899 = vadd.f32 %v2611, %v2898
          %v2900 = vpop.f32.mrf.mxu0
          %v2901 = vadd.f32 %v2611, %v2900
          %2902 = vmatmul.bf16.gmra.mxu0 %v2648
          %v2903 = vpop.f32.mrf.mxu0
          %v2904 = vadd.f32 %v2611, %v2903
          %v2905 = vpop.f32.mrf.mxu0
          %v2906 = vadd.f32 %v2611, %v2905
          %2907 = vmatmul.bf16.gmra.mxu0 %v2649
          %v2908 = vpop.f32.mrf.mxu0
          %v2909 = vadd.f32 %v2611, %v2908
          %v2910 = vpop.f32.mrf.mxu0
          %v2911 = vadd.f32 %v2611, %v2910
          %2912 = vmatmul.bf16.gmra.mxu0 %v2650
          %v2913 = vpop.f32.mrf.mxu0
          %v2914 = vadd.f32 %v2611, %v2913
          %v2915 = vpop.f32.mrf.mxu0
          %v2916 = vadd.f32 %v2611, %v2915
          %2917 = vmatmul.bf16.gmra.mxu0 %v2651
          %v2918 = vpop.f32.mrf.mxu0
          %v2919 = vadd.f32 %v2611, %v2918
          %v2920 = vpop.f32.mrf.mxu0
          %v2921 = vadd.f32 %v2611, %v2920
          %2922 = vmatmul.bf16.gmra.mxu0 %v2652
          %v2923 = vpop.f32.mrf.mxu0
          %v2924 = vadd.f32 %v2611, %v2923
          %v2925 = vpop.f32.mrf.mxu0
          %v2926 = vadd.f32 %v2611, %v2925
          %2927 = vmatmul.bf16.gmra.mxu0 %v2653
          %v2928 = vpop.f32.mrf.mxu0
          %v2929 = vadd.f32 %v2611, %v2928
          %v2930 = vpop.f32.mrf.mxu0
          %v2931 = vadd.f32 %v2611, %v2930
          %2932 = vmatmul.bf16.gmra.mxu0 %v2654
          %v2933 = vpop.f32.mrf.mxu0
          %v2934 = vadd.f32 %v2611, %v2933
          %v2935 = vpop.f32.mrf.mxu0
          %v2936 = vadd.f32 %v2611, %v2935
          %2937 = vdwg.mxu0
          %v2938 = vpack.c.bf16 %v2803, %v2801
          %v2939 = vpack.c.bf16 %v2808, %v2806
          %v2940 = vpack.c.bf16 %v2813, %v2811
          %v2941 = vpack.c.bf16 %v2818, %v2816
          %v2942 = vpack.c.bf16 %v2823, %v2821
          %v2943 = vpack.c.bf16 %v2828, %v2826
          %v2944 = vpack.c.bf16 %v2833, %v2831
          %v2945 = vpack.c.bf16 %v2838, %v2836
          %v2946 = vpack.c.bf16 %v2852, %v2850
          %v2947 = vpack.c.bf16 %v2857, %v2855
          %v2948 = vpack.c.bf16 %v2862, %v2860
          %v2949 = vpack.c.bf16 %v2867, %v2865
          %v2950 = vpack.c.bf16 %v2872, %v2870
          %v2951 = vpack.c.bf16 %v2877, %v2875
          %v2952 = vpack.c.bf16 %v2882, %v2880
          %v2953 = vpack.c.bf16 %v2887, %v2885
          %v2954 = vpack.c.bf16 %v2901, %v2899
          %v2955 = vpack.c.bf16 %v2906, %v2904
          %v2956 = vpack.c.bf16 %v2911, %v2909
          %v2957 = vpack.c.bf16 %v2916, %v2914
          %v2958 = vpack.c.bf16 %v2921, %v2919
          %v2959 = vpack.c.bf16 %v2926, %v2924
          %v2960 = vpack.c.bf16 %v2931, %v2929
          %v2961 = vpack.c.bf16 %v2936, %v2934
          %2962 = vmatpush.bf16.xpose.msra.mxu0 %v2953
          %2963 = vmatpush.bf16.xpose.msra.mxu0 %v2952
          %2964 = vmatpush.bf16.xpose.msra.mxu0 %v2951
          %2965 = vmatpush.bf16.xpose.msra.mxu0 %v2950
          %2966 = vmatpush.bf16.xpose.msra.mxu0 %v2949
          %2967 = vmatpush.bf16.xpose.msra.mxu0 %v2948
          %2968 = vmatpush.bf16.xpose.msra.mxu0 %v2947
          %2969 = vmatpush.bf16.xpose.msra.mxu0 %v2946
          %2970 = vmatmul.bf16.gmra.mxu0 %v2938
          %v2971 = vpop.f32.mrf.mxu0
          %v2972 = vadd.f32 0.0, %v2971
          %v2973 = vpop.f32.mrf.mxu0
          %v2974 = vadd.f32 0.0, %v2973
          %2975 = vmatmul.bf16.gmra.mxu0 %v2939
          %v2976 = vpop.f32.mrf.mxu0
          %v2977 = vadd.f32 0.0, %v2976
          %v2978 = vpop.f32.mrf.mxu0
          %v2979 = vadd.f32 0.0, %v2978
          %2980 = vmatmul.bf16.gmra.mxu0 %v2940
          %v2981 = vpop.f32.mrf.mxu0
          %v2982 = vadd.f32 0.0, %v2981
          %v2983 = vpop.f32.mrf.mxu0
          %v2984 = vadd.f32 0.0, %v2983
          %2985 = vmatmul.bf16.gmra.mxu0 %v2941
          %v2986 = vpop.f32.mrf.mxu0
          %v2987 = vadd.f32 0.0, %v2986
          %v2988 = vpop.f32.mrf.mxu0
          %v2989 = vadd.f32 0.0, %v2988
          %2990 = vmatmul.bf16.gmra.mxu0 %v2942
          %v2991 = vpop.f32.mrf.mxu0
          %v2992 = vadd.f32 0.0, %v2991
          %v2993 = vpop.f32.mrf.mxu0
          %v2994 = vadd.f32 0.0, %v2993
          %2995 = vmatmul.bf16.gmra.mxu0 %v2943
          %v2996 = vpop.f32.mrf.mxu0
          %v2997 = vadd.f32 0.0, %v2996
          %v2998 = vpop.f32.mrf.mxu0
          %v2999 = vadd.f32 0.0, %v2998
          %3000 = vmatmul.bf16.gmra.mxu0 %v2944
          %v3001 = vpop.f32.mrf.mxu0
          %v3002 = vadd.f32 0.0, %v3001
          %v3003 = vpop.f32.mrf.mxu0
          %v3004 = vadd.f32 0.0, %v3003
          %3005 = vmatmul.bf16.gmra.mxu0 %v2945
          %v3006 = vpop.f32.mrf.mxu0
          %v3007 = vadd.f32 0.0, %v3006
          %v3008 = vpop.f32.mrf.mxu0
          %v3009 = vadd.f32 0.0, %v3008
          %3010 = vdwg.mxu0
          %v3011 = vmul.f32 %v2972, 0.088388346
          %v3012 = vmul.f32 %v2974, 0.088388346
          %v3013 = vmul.f32 %v2977, 0.088388346
          %v3014 = vmul.f32 %v2979, 0.088388346
          %v3015 = vmul.f32 %v2982, 0.088388346
          %v3016 = vmul.f32 %v2984, 0.088388346
          %v3017 = vmul.f32 %v2987, 0.088388346
          %v3018 = vmul.f32 %v2989, 0.088388346
          %v3019 = vmul.f32 %v2992, 0.088388346
          %v3020 = vmul.f32 %v2994, 0.088388346
          %v3021 = vmul.f32 %v2997, 0.088388346
          %v3022 = vmul.f32 %v2999, 0.088388346
          %v3023 = vmul.f32 %v3002, 0.088388346
          %v3024 = vmul.f32 %v3004, 0.088388346
          %v3025 = vmul.f32 %v3007, 0.088388346
          %v3026 = vmul.f32 %v3009, 0.088388346
          %v3027 = vlaneseq
          %v3028 = vshrl.u32 %v3027, 7
          %v3029 = vadd.s32 %v3028, 8
          %v3030 = vadd.s32 %v3028, 16
          %v3031 = vadd.s32 %v3028, 24
          %v3032 = vadd.s32 %v3028, 32
          %v3033 = vadd.s32 %v3028, 40
          %v3034 = vadd.s32 %v3028, 48
          %v3035 = vadd.s32 %v3028, 56
          %v3036 = vadd.s32 %v3028, 64
          %v3037 = vadd.s32 %v3028, 72
          %v3038 = vadd.s32 %v3028, 80
          %v3039 = vadd.s32 %v3028, 88
          %v3040 = vadd.s32 %v3028, 96
          %v3041 = vadd.s32 %v3028, 104
          %v3042 = vadd.s32 %v3028, 112
          %v3043 = vadd.s32 %v3028, 120
          %v3044 = vlaneseq
          %v3045 = vand.u32 %v3044, 127
          %vm3046 = vcmp.le.s32.totalorder %v3045, %v3028
          %vm3047 = vcmp.le.s32.totalorder %v3045, %v3029
          %vm3048 = vcmp.le.s32.totalorder %v3045, %v3030
          %vm3049 = vcmp.le.s32.totalorder %v3045, %v3031
          %vm3050 = vcmp.le.s32.totalorder %v3045, %v3032
          %vm3051 = vcmp.le.s32.totalorder %v3045, %v3033
          %vm3052 = vcmp.le.s32.totalorder %v3045, %v3034
          %vm3053 = vcmp.le.s32.totalorder %v3045, %v3035
          %vm3054 = vcmp.le.s32.totalorder %v3045, %v3036
          %vm3055 = vcmp.le.s32.totalorder %v3045, %v3037
          %vm3056 = vcmp.le.s32.totalorder %v3045, %v3038
          %vm3057 = vcmp.le.s32.totalorder %v3045, %v3039
          %vm3058 = vcmp.le.s32.totalorder %v3045, %v3040
          %vm3059 = vcmp.le.s32.totalorder %v3045, %v3041
          %vm3060 = vcmp.le.s32.totalorder %v3045, %v3042
          %vm3061 = vcmp.le.s32.totalorder %v3045, %v3043
          %v3062 = vsel %vm3046, 0.0, -1e+30
          %v3063 = vsel %vm3047, 0.0, -1e+30
          %v3064 = vsel %vm3048, 0.0, -1e+30
          %v3065 = vsel %vm3049, 0.0, -1e+30
          %v3066 = vsel %vm3050, 0.0, -1e+30
          %v3067 = vsel %vm3051, 0.0, -1e+30
          %v3068 = vsel %vm3052, 0.0, -1e+30
          %v3069 = vsel %vm3053, 0.0, -1e+30
          %v3070 = vsel %vm3054, 0.0, -1e+30
          %v3071 = vsel %vm3055, 0.0, -1e+30
          %v3072 = vsel %vm3056, 0.0, -1e+30
          %v3073 = vsel %vm3057, 0.0, -1e+30
          %v3074 = vsel %vm3058, 0.0, -1e+30
          %v3075 = vsel %vm3059, 0.0, -1e+30
          %v3076 = vsel %vm3060, 0.0, -1e+30
          %v3077 = vsel %vm3061, 0.0, -1e+30
          %v3078 = vadd.f32 %v3011, %v3062
          %v3079 = vadd.f32 %v3012, %v3063
          %v3080 = vadd.f32 %v3013, %v3064
          %v3081 = vadd.f32 %v3014, %v3065
          %v3082 = vadd.f32 %v3015, %v3066
          %v3083 = vadd.f32 %v3016, %v3067
          %v3084 = vadd.f32 %v3017, %v3068
          %v3085 = vadd.f32 %v3018, %v3069
          %v3086 = vadd.f32 %v3019, %v3070
          %v3087 = vadd.f32 %v3020, %v3071
          %v3088 = vadd.f32 %v3021, %v3072
          %v3089 = vadd.f32 %v3022, %v3073
          %v3090 = vadd.f32 %v3023, %v3074
          %v3091 = vadd.f32 %v3024, %v3075
          %v3092 = vadd.f32 %v3025, %v3076
          %v3093 = vadd.f32 %v3026, %v3077
          %3094 = vmax.xlane.f32.xlu0 %v3078
          %v3095 = vpop.xlane.xlu0 %3094
          %3096 = vmax.xlane.f32.xlu0 %v3079
          %v3097 = vpop.xlane.xlu0 %3096
          %3098 = vmax.xlane.f32.xlu0 %v3080
          %v3099 = vpop.xlane.xlu0 %3098
          %3100 = vmax.xlane.f32.xlu0 %v3081
          %v3101 = vpop.xlane.xlu0 %3100
          %3102 = vmax.xlane.f32.xlu0 %v3082
          %v3103 = vpop.xlane.xlu0 %3102
          %3104 = vmax.xlane.f32.xlu0 %v3083
          %v3105 = vpop.xlane.xlu0 %3104
          %3106 = vmax.xlane.f32.xlu0 %v3084
          %v3107 = vpop.xlane.xlu0 %3106
          %3108 = vmax.xlane.f32.xlu0 %v3085
          %v3109 = vpop.xlane.xlu0 %3108
          %3110 = vmax.xlane.f32.xlu0 %v3086
          %v3111 = vpop.xlane.xlu0 %3110
          %3112 = vmax.xlane.f32.xlu0 %v3087
          %v3113 = vpop.xlane.xlu0 %3112
          %3114 = vmax.xlane.f32.xlu0 %v3088
          %v3115 = vpop.xlane.xlu0 %3114
          %3116 = vmax.xlane.f32.xlu0 %v3089
          %v3117 = vpop.xlane.xlu0 %3116
          %3118 = vmax.xlane.f32.xlu0 %v3090
          %v3119 = vpop.xlane.xlu0 %3118
          %3120 = vmax.xlane.f32.xlu0 %v3091
          %v3121 = vpop.xlane.xlu0 %3120
          %3122 = vmax.xlane.f32.xlu0 %v3092
          %v3123 = vpop.xlane.xlu0 %3122
          %3124 = vmax.xlane.f32.xlu0 %v3093
          %v3125 = vpop.xlane.xlu0 %3124
          %v3126 = vsub.f32 %v3078, %v3095
          %v3127 = vsub.f32 %v3079, %v3097
          %v3128 = vsub.f32 %v3080, %v3099
          %v3129 = vsub.f32 %v3081, %v3101
          %v3130 = vsub.f32 %v3082, %v3103
          %v3131 = vsub.f32 %v3083, %v3105
          %v3132 = vsub.f32 %v3084, %v3107
          %v3133 = vsub.f32 %v3085, %v3109
          %v3134 = vsub.f32 %v3086, %v3111
          %v3135 = vsub.f32 %v3087, %v3113
          %v3136 = vsub.f32 %v3088, %v3115
          %v3137 = vsub.f32 %v3089, %v3117
          %v3138 = vsub.f32 %v3090, %v3119
          %v3139 = vsub.f32 %v3091, %v3121
          %v3140 = vsub.f32 %v3092, %v3123
          %v3141 = vsub.f32 %v3093, %v3125
          %v3142 = vmul.f32 %v3126, 1.442695
          %v3143 = vpow.pop %v3142
          %v3144 = vmul.f32 %v3127, 1.442695
          %v3145 = vpow.pop %v3144
          %v3146 = vmul.f32 %v3128, 1.442695
          %v3147 = vpow.pop %v3146
          %v3148 = vmul.f32 %v3129, 1.442695
          %v3149 = vpow.pop %v3148
          %v3150 = vmul.f32 %v3130, 1.442695
          %v3151 = vpow.pop %v3150
          %v3152 = vmul.f32 %v3131, 1.442695
          %v3153 = vpow.pop %v3152
          %v3154 = vmul.f32 %v3132, 1.442695
          %v3155 = vpow.pop %v3154
          %v3156 = vmul.f32 %v3133, 1.442695
          %v3157 = vpow.pop %v3156
          %v3158 = vmul.f32 %v3134, 1.442695
          %v3159 = vpow.pop %v3158
          %v3160 = vmul.f32 %v3135, 1.442695
          %v3161 = vpow.pop %v3160
          %v3162 = vmul.f32 %v3136, 1.442695
          %v3163 = vpow.pop %v3162
          %v3164 = vmul.f32 %v3137, 1.442695
          %v3165 = vpow.pop %v3164
          %v3166 = vmul.f32 %v3138, 1.442695
          %v3167 = vpow.pop %v3166
          %v3168 = vmul.f32 %v3139, 1.442695
          %v3169 = vpow.pop %v3168
          %v3170 = vmul.f32 %v3140, 1.442695
          %v3171 = vpow.pop %v3170
          %v3172 = vmul.f32 %v3141, 1.442695
          %v3173 = vpow.pop %v3172
          %3174 = vadd.xlane.f32.xlu0 %v3143
          %v3175 = vpop.xlane.xlu0 %3174
          %3176 = vadd.xlane.f32.xlu0 %v3145
          %v3177 = vpop.xlane.xlu0 %3176
          %3178 = vadd.xlane.f32.xlu0 %v3147
          %v3179 = vpop.xlane.xlu0 %3178
          %3180 = vadd.xlane.f32.xlu0 %v3149
          %v3181 = vpop.xlane.xlu0 %3180
          %3182 = vadd.xlane.f32.xlu0 %v3151
          %v3183 = vpop.xlane.xlu0 %3182
          %3184 = vadd.xlane.f32.xlu0 %v3153
          %v3185 = vpop.xlane.xlu0 %3184
          %3186 = vadd.xlane.f32.xlu0 %v3155
          %v3187 = vpop.xlane.xlu0 %3186
          %3188 = vadd.xlane.f32.xlu0 %v3157
          %v3189 = vpop.xlane.xlu0 %3188
          %3190 = vadd.xlane.f32.xlu0 %v3159
          %v3191 = vpop.xlane.xlu0 %3190
          %3192 = vadd.xlane.f32.xlu0 %v3161
          %v3193 = vpop.xlane.xlu0 %3192
          %3194 = vadd.xlane.f32.xlu0 %v3163
          %v3195 = vpop.xlane.xlu0 %3194
          %3196 = vadd.xlane.f32.xlu0 %v3165
          %v3197 = vpop.xlane.xlu0 %3196
          %3198 = vadd.xlane.f32.xlu0 %v3167
          %v3199 = vpop.xlane.xlu0 %3198
          %3200 = vadd.xlane.f32.xlu0 %v3169
          %v3201 = vpop.xlane.xlu0 %3200
          %3202 = vadd.xlane.f32.xlu0 %v3171
          %v3203 = vpop.xlane.xlu0 %3202
          %3204 = vadd.xlane.f32.xlu0 %v3173
          %v3205 = vpop.xlane.xlu0 %3204
          %v3206 = vrcp.pop %v3175
          %v3207 = vrcp.pop %v3177
          %v3208 = vrcp.pop %v3179
          %v3209 = vrcp.pop %v3181
          %v3210 = vrcp.pop %v3183
          %v3211 = vrcp.pop %v3185
          %v3212 = vrcp.pop %v3187
          %v3213 = vrcp.pop %v3189
          %v3214 = vrcp.pop %v3191
          %v3215 = vrcp.pop %v3193
          %v3216 = vrcp.pop %v3195
          %v3217 = vrcp.pop %v3197
          %v3218 = vrcp.pop %v3199
          %v3219 = vrcp.pop %v3201
          %v3220 = vrcp.pop %v3203
          %v3221 = vrcp.pop %v3205
          %v3222 = vmul.f32 %v3143, %v3206
          %v3223 = vmul.f32 %v3145, %v3207
          %v3224 = vmul.f32 %v3147, %v3208
          %v3225 = vmul.f32 %v3149, %v3209
          %v3226 = vmul.f32 %v3151, %v3210
          %v3227 = vmul.f32 %v3153, %v3211
          %v3228 = vmul.f32 %v3155, %v3212
          %v3229 = vmul.f32 %v3157, %v3213
          %v3230 = vmul.f32 %v3159, %v3214
          %v3231 = vmul.f32 %v3161, %v3215
          %v3232 = vmul.f32 %v3163, %v3216
          %v3233 = vmul.f32 %v3165, %v3217
          %v3234 = vmul.f32 %v3167, %v3218
          %v3235 = vmul.f32 %v3169, %v3219
          %v3236 = vmul.f32 %v3171, %v3220
          %v3237 = vmul.f32 %v3173, %v3221
          %v3238 = vpack.c.bf16 %v3223, %v3222
          %v3239 = vpack.c.bf16 %v3225, %v3224
          %v3240 = vpack.c.bf16 %v3227, %v3226
          %v3241 = vpack.c.bf16 %v3229, %v3228
          %v3242 = vpack.c.bf16 %v3231, %v3230
          %v3243 = vpack.c.bf16 %v3233, %v3232
          %v3244 = vpack.c.bf16 %v3235, %v3234
          %v3245 = vpack.c.bf16 %v3237, %v3236
          %3246 = vmatpush.bf16.msra.mxu0 %v2961
          %3247 = vmatpush.bf16.msra.mxu0 %v2960
          %3248 = vmatpush.bf16.msra.mxu0 %v2959
          %3249 = vmatpush.bf16.msra.mxu0 %v2958
          %3250 = vmatpush.bf16.msra.mxu0 %v2957
          %3251 = vmatpush.bf16.msra.mxu0 %v2956
          %3252 = vmatpush.bf16.msra.mxu0 %v2955
          %3253 = vmatpush.bf16.msra.mxu0 %v2954
          %3254 = vmatmul.bf16.gmra.mxu0 %v3238
          %v3255 = vpop.f32.mrf.mxu0
          %v3256 = vadd.f32 0.0, %v3255
          %v3257 = vpop.f32.mrf.mxu0
          %v3258 = vadd.f32 0.0, %v3257
          %3259 = vmatmul.bf16.gmra.mxu0 %v3239
          %v3260 = vpop.f32.mrf.mxu0
          %v3261 = vadd.f32 0.0, %v3260
          %v3262 = vpop.f32.mrf.mxu0
          %v3263 = vadd.f32 0.0, %v3262
          %3264 = vmatmul.bf16.gmra.mxu0 %v3240
          %v3265 = vpop.f32.mrf.mxu0
          %v3266 = vadd.f32 0.0, %v3265
          %v3267 = vpop.f32.mrf.mxu0
          %v3268 = vadd.f32 0.0, %v3267
          %3269 = vmatmul.bf16.gmra.mxu0 %v3241
          %v3270 = vpop.f32.mrf.mxu0
          %v3271 = vadd.f32 0.0, %v3270
          %v3272 = vpop.f32.mrf.mxu0
          %v3273 = vadd.f32 0.0, %v3272
          %3274 = vmatmul.bf16.gmra.mxu0 %v3242
          %v3275 = vpop.f32.mrf.mxu0
          %v3276 = vadd.f32 0.0, %v3275
          %v3277 = vpop.f32.mrf.mxu0
          %v3278 = vadd.f32 0.0, %v3277
          %3279 = vmatmul.bf16.gmra.mxu0 %v3243
          %v3280 = vpop.f32.mrf.mxu0
          %v3281 = vadd.f32 0.0, %v3280
          %v3282 = vpop.f32.mrf.mxu0
          %v3283 = vadd.f32 0.0, %v3282
          %3284 = vmatmul.bf16.gmra.mxu0 %v3244
          %v3285 = vpop.f32.mrf.mxu0
          %v3286 = vadd.f32 0.0, %v3285
          %v3287 = vpop.f32.mrf.mxu0
          %v3288 = vadd.f32 0.0, %v3287
          %3289 = vmatmul.bf16.gmra.mxu0 %v3245
          %v3290 = vpop.f32.mrf.mxu0
          %v3291 = vadd.f32 0.0, %v3290
          %v3292 = vpop.f32.mrf.mxu0
          %v3293 = vadd.f32 0.0, %v3292
          %3294 = vdwg.mxu0
          %v3295 = vpack.c.bf16 %v3258, %v3256
          %v3296 = vpack.c.bf16 %v3263, %v3261
          %v3297 = vpack.c.bf16 %v3268, %v3266
          %v3298 = vpack.c.bf16 %v3273, %v3271
          %v3299 = vpack.c.bf16 %v3278, %v3276
          %v3300 = vpack.c.bf16 %v3283, %v3281
          %v3301 = vpack.c.bf16 %v3288, %v3286
          %v3302 = vpack.c.bf16 %v3293, %v3291
          %v3303 = vld [vmem:[%s29] sm:$0xf]
          %v3304 = vld [vmem:[%s29 + $0x4] sm:$0xf]
          %v3305 = vld [vmem:[%s29 + $0x8] sm:$0xf]
          %v3306 = vld [vmem:[%s29 + $0xc] sm:$0xf]
          %v3307 = vld [vmem:[%s29 + $0x10] sm:$0xf]
          %v3308 = vld [vmem:[%s29 + $0x14] sm:$0xf]
          %v3309 = vld [vmem:[%s29 + $0x18] sm:$0xf]
          %v3310 = vld [vmem:[%s29 + $0x1c] sm:$0xf]
          %v3311 = vld [vmem:[%s29 + $0x20] sm:$0xf]
          %v3312 = vld [vmem:[%s29 + $0x24] sm:$0xf]
          %v3313 = vld [vmem:[%s29 + $0x28] sm:$0xf]
          %v3314 = vld [vmem:[%s29 + $0x2c] sm:$0xf]
          %v3315 = vld [vmem:[%s29 + $0x30] sm:$0xf]
          %v3316 = vld [vmem:[%s29 + $0x34] sm:$0xf]
          %v3317 = vld [vmem:[%s29 + $0x38] sm:$0xf]
          %v3318 = vld [vmem:[%s29 + $0x3c] sm:$0xf]
          %v3335 = vunpack.c.l.b16 %v3303
          %v3336 = vunpack.c.l.b16 %v3304
          %v3337 = vunpack.c.l.b16 %v3305
          %v3338 = vunpack.c.l.b16 %v3306
          %v3339 = vunpack.c.l.b16 %v3307
          %v3340 = vunpack.c.l.b16 %v3308
          %v3341 = vunpack.c.l.b16 %v3309
          %v3342 = vunpack.c.l.b16 %v3310
          %v3343 = vunpack.c.l.b16 %v3311
          %v3344 = vunpack.c.l.b16 %v3312
          %v3345 = vunpack.c.l.b16 %v3313
          %v3346 = vunpack.c.l.b16 %v3314
          %v3347 = vunpack.c.l.b16 %v3315
          %v3348 = vunpack.c.l.b16 %v3316
          %v3349 = vunpack.c.l.b16 %v3317
          %v3350 = vunpack.c.l.b16 %v3318
          %v3351 = vpack.c.b16 %v3336, %v3335
          %v3352 = vpack.c.b16 %v3338, %v3337
          %v3353 = vpack.c.b16 %v3340, %v3339
          %v3354 = vpack.c.b16 %v3342, %v3341
          %v3355 = vpack.c.b16 %v3344, %v3343
          %v3356 = vpack.c.b16 %v3346, %v3345
          %v3357 = vpack.c.b16 %v3348, %v3347
          %v3358 = vpack.c.b16 %v3350, %v3349
          %3367 = vmatpush.bf16.msra.mxu0 %v3358
          %3368 = vmatpush.bf16.msra.mxu0 %v3357
          %3369 = vmatpush.bf16.msra.mxu0 %v3356
          %3370 = vmatpush.bf16.msra.mxu0 %v3355
          %3371 = vmatpush.bf16.msra.mxu0 %v3354
          %3372 = vmatpush.bf16.msra.mxu0 %v3353
          %3373 = vmatpush.bf16.msra.mxu0 %v3352
          %3374 = vmatpush.bf16.msra.mxu0 %v3351
          %3375 = vmatmul.bf16.gmra.mxu0 %v3295
          %v3376 = vpop.f32.mrf.mxu0
          %v3377 = vadd.f32 0.0, %v3376
          %v3378 = vpop.f32.mrf.mxu0
          %v3379 = vadd.f32 0.0, %v3378
          %3380 = vmatmul.bf16.gmra.mxu0 %v3296
          %v3381 = vpop.f32.mrf.mxu0
          %v3382 = vadd.f32 0.0, %v3381
          %v3383 = vpop.f32.mrf.mxu0
          %v3384 = vadd.f32 0.0, %v3383
          %3385 = vmatmul.bf16.gmra.mxu0 %v3297
          %v3386 = vpop.f32.mrf.mxu0
          %v3387 = vadd.f32 0.0, %v3386
          %v3388 = vpop.f32.mrf.mxu0
          %v3389 = vadd.f32 0.0, %v3388
          %3390 = vmatmul.bf16.gmra.mxu0 %v3298
          %v3391 = vpop.f32.mrf.mxu0
          %v3392 = vadd.f32 0.0, %v3391
          %v3393 = vpop.f32.mrf.mxu0
          %v3394 = vadd.f32 0.0, %v3393
          %3395 = vmatmul.bf16.gmra.mxu0 %v3299
          %v3396 = vpop.f32.mrf.mxu0
          %v3397 = vadd.f32 0.0, %v3396
          %v3398 = vpop.f32.mrf.mxu0
          %v3399 = vadd.f32 0.0, %v3398
          %3400 = vmatmul.bf16.gmra.mxu0 %v3300
          %v3401 = vpop.f32.mrf.mxu0
          %v3402 = vadd.f32 0.0, %v3401
          %v3403 = vpop.f32.mrf.mxu0
          %v3404 = vadd.f32 0.0, %v3403
          %3405 = vmatmul.bf16.gmra.mxu0 %v3301
          %v3406 = vpop.f32.mrf.mxu0
          %v3407 = vadd.f32 0.0, %v3406
          %v3408 = vpop.f32.mrf.mxu0
          %v3409 = vadd.f32 0.0, %v3408
          %3410 = vmatmul.bf16.gmra.mxu0 %v3302
          %v3411 = vpop.f32.mrf.mxu0
          %v3412 = vadd.f32 0.0, %v3411
          %v3413 = vpop.f32.mrf.mxu0
          %v3414 = vadd.f32 0.0, %v3413
          %3415 = vdwg.mxu0
          %v3416 = vadd.f32 %v2559, %v3377
          %v3417 = vadd.f32 %v2560, %v3379
          %v3418 = vadd.f32 %v2561, %v3382
          %v3419 = vadd.f32 %v2562, %v3384
          %v3420 = vadd.f32 %v2563, %v3387
          %v3421 = vadd.f32 %v2564, %v3389
          %v3422 = vadd.f32 %v2565, %v3392
          %v3423 = vadd.f32 %v2566, %v3394
          %v3424 = vadd.f32 %v2567, %v3397
          %v3425 = vadd.f32 %v2568, %v3399
          %v3426 = vadd.f32 %v2569, %v3402
          %v3427 = vadd.f32 %v2570, %v3404
          %v3428 = vadd.f32 %v2571, %v3407
          %v3429 = vadd.f32 %v2572, %v3409
          %v3430 = vadd.f32 %v2573, %v3412
          %v3431 = vadd.f32 %v2574, %v3414
          %v3432 = vld [vmem:[%s31] sm:$0x1]
          %v3434 = vperm.slane %v3432, 0
          %v3436 = vadd.f32 %v3416, %v3434
          %v3437 = vadd.f32 %v3417, %v3434
          %v3438 = vadd.f32 %v3418, %v3434
          %v3439 = vadd.f32 %v3419, %v3434
          %v3440 = vadd.f32 %v3420, %v3434
          %v3441 = vadd.f32 %v3421, %v3434
          %v3442 = vadd.f32 %v3422, %v3434
          %v3443 = vadd.f32 %v3423, %v3434
          %v3444 = vadd.f32 %v3424, %v3434
          %v3445 = vadd.f32 %v3425, %v3434
          %v3446 = vadd.f32 %v3426, %v3434
          %v3447 = vadd.f32 %v3427, %v3434
          %v3448 = vadd.f32 %v3428, %v3434
          %v3449 = vadd.f32 %v3429, %v3434
          %v3450 = vadd.f32 %v3430, %v3434
          %v3451 = vadd.f32 %v3431, %v3434
          %v3452 = vpack.c.bf16 %v3437, %v3436
          %v3453 = vpack.c.bf16 %v3439, %v3438
          %v3454 = vpack.c.bf16 %v3441, %v3440
          %v3455 = vpack.c.bf16 %v3443, %v3442
          %v3456 = vpack.c.bf16 %v3445, %v3444
          %v3457 = vpack.c.bf16 %v3447, %v3446
          %v3458 = vpack.c.bf16 %v3449, %v3448
          %v3459 = vpack.c.bf16 %v3451, %v3450
          %v3460 = vld [vmem:[%s33] sm:$0xf]
          %v3461 = vld [vmem:[%s33 + $0x4] sm:$0xf]
          %v3462 = vld [vmem:[%s33 + $0x8] sm:$0xf]
          %v3463 = vld [vmem:[%s33 + $0xc] sm:$0xf]
          %v3464 = vld [vmem:[%s33 + $0x10] sm:$0xf]
          %v3465 = vld [vmem:[%s33 + $0x14] sm:$0xf]
          %v3466 = vld [vmem:[%s33 + $0x18] sm:$0xf]
          %v3467 = vld [vmem:[%s33 + $0x1c] sm:$0xf]
          %v3468 = vld [vmem:[%s33 + $0x20] sm:$0xf]
          %v3469 = vld [vmem:[%s33 + $0x24] sm:$0xf]
          %v3470 = vld [vmem:[%s33 + $0x28] sm:$0xf]
          %v3471 = vld [vmem:[%s33 + $0x2c] sm:$0xf]
          %v3472 = vld [vmem:[%s33 + $0x30] sm:$0xf]
          %v3473 = vld [vmem:[%s33 + $0x34] sm:$0xf]
          %v3474 = vld [vmem:[%s33 + $0x38] sm:$0xf]
          %v3475 = vld [vmem:[%s33 + $0x3c] sm:$0xf]
          %v3476 = vld [vmem:[%s35] sm:$0x1]
          %v3478 = vperm.slane %v3476, 0
          %v3496 = vunpack.c.l.b16 %v3460
          %v3497 = vunpack.c.l.b16 %v3461
          %v3498 = vunpack.c.l.b16 %v3462
          %v3499 = vunpack.c.l.b16 %v3463
          %v3500 = vunpack.c.l.b16 %v3464
          %v3501 = vunpack.c.l.b16 %v3465
          %v3502 = vunpack.c.l.b16 %v3466
          %v3503 = vunpack.c.l.b16 %v3467
          %v3504 = vunpack.c.l.b16 %v3468
          %v3505 = vunpack.c.l.b16 %v3469
          %v3506 = vunpack.c.l.b16 %v3470
          %v3507 = vunpack.c.l.b16 %v3471
          %v3508 = vunpack.c.l.b16 %v3472
          %v3509 = vunpack.c.l.b16 %v3473
          %v3510 = vunpack.c.l.b16 %v3474
          %v3511 = vunpack.c.l.b16 %v3475
          %v3512 = vpack.c.b16 %v3497, %v3496
          %v3513 = vpack.c.b16 %v3499, %v3498
          %v3514 = vpack.c.b16 %v3501, %v3500
          %v3515 = vpack.c.b16 %v3503, %v3502
          %v3516 = vpack.c.b16 %v3505, %v3504
          %v3517 = vpack.c.b16 %v3507, %v3506
          %v3518 = vpack.c.b16 %v3509, %v3508
          %v3519 = vpack.c.b16 %v3511, %v3510
          %3528 = vmatpush.bf16.msra.mxu0 %v3519
          %3529 = vmatpush.bf16.msra.mxu0 %v3518
          %3530 = vmatpush.bf16.msra.mxu0 %v3517
          %3531 = vmatpush.bf16.msra.mxu0 %v3516
          %3532 = vmatpush.bf16.msra.mxu0 %v3515
          %3533 = vmatpush.bf16.msra.mxu0 %v3514
          %3534 = vmatpush.bf16.msra.mxu0 %v3513
          %3535 = vmatpush.bf16.msra.mxu0 %v3512
          %3536 = vmatmul.bf16.gmra.mxu0 %v3452
          %v3537 = vpop.f32.mrf.mxu0
          %v3538 = vadd.f32 %v3478, %v3537
          %v3539 = vpop.f32.mrf.mxu0
          %v3540 = vadd.f32 %v3478, %v3539
          %3541 = vmatmul.bf16.gmra.mxu0 %v3453
          %v3542 = vpop.f32.mrf.mxu0
          %v3543 = vadd.f32 %v3478, %v3542
          %v3544 = vpop.f32.mrf.mxu0
          %v3545 = vadd.f32 %v3478, %v3544
          %3546 = vmatmul.bf16.gmra.mxu0 %v3454
          %v3547 = vpop.f32.mrf.mxu0
          %v3548 = vadd.f32 %v3478, %v3547
          %v3549 = vpop.f32.mrf.mxu0
          %v3550 = vadd.f32 %v3478, %v3549
          %3551 = vmatmul.bf16.gmra.mxu0 %v3455
          %v3552 = vpop.f32.mrf.mxu0
          %v3553 = vadd.f32 %v3478, %v3552
          %v3554 = vpop.f32.mrf.mxu0
          %v3555 = vadd.f32 %v3478, %v3554
          %3556 = vmatmul.bf16.gmra.mxu0 %v3456
          %v3557 = vpop.f32.mrf.mxu0
          %v3558 = vadd.f32 %v3478, %v3557
          %v3559 = vpop.f32.mrf.mxu0
          %v3560 = vadd.f32 %v3478, %v3559
          %3561 = vmatmul.bf16.gmra.mxu0 %v3457
          %v3562 = vpop.f32.mrf.mxu0
          %v3563 = vadd.f32 %v3478, %v3562
          %v3564 = vpop.f32.mrf.mxu0
          %v3565 = vadd.f32 %v3478, %v3564
          %3566 = vmatmul.bf16.gmra.mxu0 %v3458
          %v3567 = vpop.f32.mrf.mxu0
          %v3568 = vadd.f32 %v3478, %v3567
          %v3569 = vpop.f32.mrf.mxu0
          %v3570 = vadd.f32 %v3478, %v3569
          %3571 = vmatmul.bf16.gmra.mxu0 %v3459
          %v3572 = vpop.f32.mrf.mxu0
          %v3573 = vadd.f32 %v3478, %v3572
          %v3574 = vpop.f32.mrf.mxu0
          %v3575 = vadd.f32 %v3478, %v3574
          %3576 = vdwg.mxu0
          %v3577 = vpack.c.bf16 %v3540, %v3538
          %v3578 = vpack.c.bf16 %v3545, %v3543
          %v3579 = vpack.c.bf16 %v3550, %v3548
          %v3580 = vpack.c.bf16 %v3555, %v3553
          %v3581 = vpack.c.bf16 %v3560, %v3558
          %v3582 = vpack.c.bf16 %v3565, %v3563
          %v3583 = vpack.c.bf16 %v3570, %v3568
          %v3584 = vpack.c.bf16 %v3575, %v3573
          %v3585 = vld [vmem:[%s37] sm:$0xff]
          %v3586 = vld [vmem:[%s37 + $0x8] sm:$0xff]
          %v3587 = vld [vmem:[%s37 + $0x10] sm:$0xff]
          %v3588 = vld [vmem:[%s37 + $0x18] sm:$0xff]
          %v3589 = vld [vmem:[%s37 + $0x20] sm:$0xff]
          %v3590 = vld [vmem:[%s37 + $0x28] sm:$0xff]
          %v3591 = vld [vmem:[%s37 + $0x30] sm:$0xff]
          %v3592 = vld [vmem:[%s37 + $0x38] sm:$0xff]
          %v3593 = vld [vmem:[%s37 + $0x40] sm:$0xff]
          %v3594 = vld [vmem:[%s37 + $0x48] sm:$0xff]
          %v3595 = vld [vmem:[%s37 + $0x50] sm:$0xff]
          %v3596 = vld [vmem:[%s37 + $0x58] sm:$0xff]
          %v3597 = vld [vmem:[%s37 + $0x60] sm:$0xff]
          %v3598 = vld [vmem:[%s37 + $0x68] sm:$0xff]
          %v3599 = vld [vmem:[%s37 + $0x70] sm:$0xff]
          %v3600 = vld [vmem:[%s37 + $0x78] sm:$0xff]
          %v3601 = vld [vmem:[%s39] sm:$0x3]
          %v3603 = vperm.slane %v3601, 0
          %v3604 = vperm.slane %v3601, 1
          %v3623 = vunpack.c.l.b16 %v3585
          %v3624 = vunpack.c.h.b16 %v3585
          %v3625 = vunpack.c.l.b16 %v3586
          %v3626 = vunpack.c.h.b16 %v3586
          %v3627 = vunpack.c.l.b16 %v3587
          %v3628 = vunpack.c.h.b16 %v3587
          %v3629 = vunpack.c.l.b16 %v3588
          %v3630 = vunpack.c.h.b16 %v3588
          %v3631 = vunpack.c.l.b16 %v3589
          %v3632 = vunpack.c.h.b16 %v3589
          %v3633 = vunpack.c.l.b16 %v3590
          %v3634 = vunpack.c.h.b16 %v3590
          %v3635 = vunpack.c.l.b16 %v3591
          %v3636 = vunpack.c.h.b16 %v3591
          %v3637 = vunpack.c.l.b16 %v3592
          %v3638 = vunpack.c.h.b16 %v3592
          %v3639 = vunpack.c.l.b16 %v3593
          %v3640 = vunpack.c.h.b16 %v3593
          %v3641 = vunpack.c.l.b16 %v3594
          %v3642 = vunpack.c.h.b16 %v3594
          %v3643 = vunpack.c.l.b16 %v3595
          %v3644 = vunpack.c.h.b16 %v3595
          %v3645 = vunpack.c.l.b16 %v3596
          %v3646 = vunpack.c.h.b16 %v3596
          %v3647 = vunpack.c.l.b16 %v3597
          %v3648 = vunpack.c.h.b16 %v3597
          %v3649 = vunpack.c.l.b16 %v3598
          %v3650 = vunpack.c.h.b16 %v3598
          %v3651 = vunpack.c.l.b16 %v3599
          %v3652 = vunpack.c.h.b16 %v3599
          %v3653 = vunpack.c.l.b16 %v3600
          %v3654 = vunpack.c.h.b16 %v3600
          %v3655 = vpack.c.b16 %v3625, %v3623
          %v3656 = vpack.c.b16 %v3626, %v3624
          %v3657 = vpack.c.b16 %v3629, %v3627
          %v3658 = vpack.c.b16 %v3630, %v3628
          %v3659 = vpack.c.b16 %v3633, %v3631
          %v3660 = vpack.c.b16 %v3634, %v3632
          %v3661 = vpack.c.b16 %v3637, %v3635
          %v3662 = vpack.c.b16 %v3638, %v3636
          %v3663 = vpack.c.b16 %v3641, %v3639
          %v3664 = vpack.c.b16 %v3642, %v3640
          %v3665 = vpack.c.b16 %v3645, %v3643
          %v3666 = vpack.c.b16 %v3646, %v3644
          %v3667 = vpack.c.b16 %v3649, %v3647
          %v3668 = vpack.c.b16 %v3650, %v3648
          %v3669 = vpack.c.b16 %v3653, %v3651
          %v3670 = vpack.c.b16 %v3654, %v3652
          %3687 = vmatpush.bf16.msra.mxu0 %v3669
          %3688 = vmatpush.bf16.msra.mxu0 %v3667
          %3689 = vmatpush.bf16.msra.mxu0 %v3665
          %3690 = vmatpush.bf16.msra.mxu0 %v3663
          %3691 = vmatpush.bf16.msra.mxu0 %v3661
          %3692 = vmatpush.bf16.msra.mxu0 %v3659
          %3693 = vmatpush.bf16.msra.mxu0 %v3657
          %3694 = vmatpush.bf16.msra.mxu0 %v3655
          %3695 = vmatmul.bf16.gmra.mxu0 %v2535
          %v3696 = vpop.f32.mrf.mxu0
          %v3697 = vadd.f32 %v3603, %v3696
          %v3698 = vpop.f32.mrf.mxu0
          %v3699 = vadd.f32 %v3603, %v3698
          %3700 = vmatmul.bf16.gmra.mxu0 %v2536
          %v3701 = vpop.f32.mrf.mxu0
          %v3702 = vadd.f32 %v3603, %v3701
          %v3703 = vpop.f32.mrf.mxu0
          %v3704 = vadd.f32 %v3603, %v3703
          %3705 = vmatmul.bf16.gmra.mxu0 %v2537
          %v3706 = vpop.f32.mrf.mxu0
          %v3707 = vadd.f32 %v3603, %v3706
          %v3708 = vpop.f32.mrf.mxu0
          %v3709 = vadd.f32 %v3603, %v3708
          %3710 = vmatmul.bf16.gmra.mxu0 %v2538
          %v3711 = vpop.f32.mrf.mxu0
          %v3712 = vadd.f32 %v3603, %v3711
          %v3713 = vpop.f32.mrf.mxu0
          %v3714 = vadd.f32 %v3603, %v3713
          %3715 = vmatmul.bf16.gmra.mxu0 %v2539
          %v3716 = vpop.f32.mrf.mxu0
          %v3717 = vadd.f32 %v3603, %v3716
          %v3718 = vpop.f32.mrf.mxu0
          %v3719 = vadd.f32 %v3603, %v3718
          %3720 = vmatmul.bf16.gmra.mxu0 %v2540
          %v3721 = vpop.f32.mrf.mxu0
          %v3722 = vadd.f32 %v3603, %v3721
          %v3723 = vpop.f32.mrf.mxu0
          %v3724 = vadd.f32 %v3603, %v3723
          %3725 = vmatmul.bf16.gmra.mxu0 %v2541
          %v3726 = vpop.f32.mrf.mxu0
          %v3727 = vadd.f32 %v3603, %v3726
          %v3728 = vpop.f32.mrf.mxu0
          %v3729 = vadd.f32 %v3603, %v3728
          %3730 = vmatmul.bf16.gmra.mxu0 %v2542
          %v3731 = vpop.f32.mrf.mxu0
          %v3732 = vadd.f32 %v3603, %v3731
          %v3733 = vpop.f32.mrf.mxu0
          %v3734 = vadd.f32 %v3603, %v3733
          %3735 = vdwg.mxu0
          %3736 = vmatpush.bf16.msra.mxu0 %v3670
          %3737 = vmatpush.bf16.msra.mxu0 %v3668
          %3738 = vmatpush.bf16.msra.mxu0 %v3666
          %3739 = vmatpush.bf16.msra.mxu0 %v3664
          %3740 = vmatpush.bf16.msra.mxu0 %v3662
          %3741 = vmatpush.bf16.msra.mxu0 %v3660
          %3742 = vmatpush.bf16.msra.mxu0 %v3658
          %3743 = vmatpush.bf16.msra.mxu0 %v3656
          %3744 = vmatmul.bf16.gmra.mxu0 %v2535
          %v3745 = vpop.f32.mrf.mxu0
          %v3746 = vadd.f32 %v3604, %v3745
          %v3747 = vpop.f32.mrf.mxu0
          %v3748 = vadd.f32 %v3604, %v3747
          %3749 = vmatmul.bf16.gmra.mxu0 %v2536
          %v3750 = vpop.f32.mrf.mxu0
          %v3751 = vadd.f32 %v3604, %v3750
          %v3752 = vpop.f32.mrf.mxu0
          %v3753 = vadd.f32 %v3604, %v3752
          %3754 = vmatmul.bf16.gmra.mxu0 %v2537
          %v3755 = vpop.f32.mrf.mxu0
          %v3756 = vadd.f32 %v3604, %v3755
          %v3757 = vpop.f32.mrf.mxu0
          %v3758 = vadd.f32 %v3604, %v3757
          %3759 = vmatmul.bf16.gmra.mxu0 %v2538
          %v3760 = vpop.f32.mrf.mxu0
          %v3761 = vadd.f32 %v3604, %v3760
          %v3762 = vpop.f32.mrf.mxu0
          %v3763 = vadd.f32 %v3604, %v3762
          %3764 = vmatmul.bf16.gmra.mxu0 %v2539
          %v3765 = vpop.f32.mrf.mxu0
          %v3766 = vadd.f32 %v3604, %v3765
          %v3767 = vpop.f32.mrf.mxu0
          %v3768 = vadd.f32 %v3604, %v3767
          %3769 = vmatmul.bf16.gmra.mxu0 %v2540
          %v3770 = vpop.f32.mrf.mxu0
          %v3771 = vadd.f32 %v3604, %v3770
          %v3772 = vpop.f32.mrf.mxu0
          %v3773 = vadd.f32 %v3604, %v3772
          %3774 = vmatmul.bf16.gmra.mxu0 %v2541
          %v3775 = vpop.f32.mrf.mxu0
          %v3776 = vadd.f32 %v3604, %v3775
          %v3777 = vpop.f32.mrf.mxu0
          %v3778 = vadd.f32 %v3604, %v3777
          %3779 = vmatmul.bf16.gmra.mxu0 %v2542
          %v3780 = vpop.f32.mrf.mxu0
          %v3781 = vadd.f32 %v3604, %v3780
          %v3782 = vpop.f32.mrf.mxu0
          %v3783 = vadd.f32 %v3604, %v3782
          %3784 = vdwg.mxu0
          %v3785 = vpack.c.bf16 %v3699, %v3697
          %v3786 = vpack.c.bf16 %v3704, %v3702
          %v3787 = vpack.c.bf16 %v3709, %v3707
          %v3788 = vpack.c.bf16 %v3714, %v3712
          %v3789 = vpack.c.bf16 %v3719, %v3717
          %v3790 = vpack.c.bf16 %v3724, %v3722
          %v3791 = vpack.c.bf16 %v3729, %v3727
          %v3792 = vpack.c.bf16 %v3734, %v3732
          %v3793 = vpack.c.bf16 %v3748, %v3746
          %v3794 = vpack.c.bf16 %v3753, %v3751
          %v3795 = vpack.c.bf16 %v3758, %v3756
          %v3796 = vpack.c.bf16 %v3763, %v3761
          %v3797 = vpack.c.bf16 %v3768, %v3766
          %v3798 = vpack.c.bf16 %v3773, %v3771
          %v3799 = vpack.c.bf16 %v3778, %v3776
          %v3800 = vpack.c.bf16 %v3783, %v3781
          %3801 = vmatpush.bf16.xpose.msra.mxu0 %v3792
          %3802 = vmatpush.bf16.xpose.msra.mxu0 %v3791
          %3803 = vmatpush.bf16.xpose.msra.mxu0 %v3790
          %3804 = vmatpush.bf16.xpose.msra.mxu0 %v3789
          %3805 = vmatpush.bf16.xpose.msra.mxu0 %v3788
          %3806 = vmatpush.bf16.xpose.msra.mxu0 %v3787
          %3807 = vmatpush.bf16.xpose.msra.mxu0 %v3786
          %3808 = vmatpush.bf16.xpose.msra.mxu0 %v3785
          %3809 = vmatmul.bf16.gmra.mxu0 %v3577
          %v3810 = vpop.f32.mrf.mxu0
          %v3811 = vadd.f32 0.0, %v3810
          %v3812 = vpop.f32.mrf.mxu0
          %v3813 = vadd.f32 0.0, %v3812
          %3814 = vmatmul.bf16.gmra.mxu0 %v3578
          %v3815 = vpop.f32.mrf.mxu0
          %v3816 = vadd.f32 0.0, %v3815
          %v3817 = vpop.f32.mrf.mxu0
          %v3818 = vadd.f32 0.0, %v3817
          %3819 = vmatmul.bf16.gmra.mxu0 %v3579
          %v3820 = vpop.f32.mrf.mxu0
          %v3821 = vadd.f32 0.0, %v3820
          %v3822 = vpop.f32.mrf.mxu0
          %v3823 = vadd.f32 0.0, %v3822
          %3824 = vmatmul.bf16.gmra.mxu0 %v3580
          %v3825 = vpop.f32.mrf.mxu0
          %v3826 = vadd.f32 0.0, %v3825
          %v3827 = vpop.f32.mrf.mxu0
          %v3828 = vadd.f32 0.0, %v3827
          %3829 = vmatmul.bf16.gmra.mxu0 %v3581
          %v3830 = vpop.f32.mrf.mxu0
          %v3831 = vadd.f32 0.0, %v3830
          %v3832 = vpop.f32.mrf.mxu0
          %v3833 = vadd.f32 0.0, %v3832
          %3834 = vmatmul.bf16.gmra.mxu0 %v3582
          %v3835 = vpop.f32.mrf.mxu0
          %v3836 = vadd.f32 0.0, %v3835
          %v3837 = vpop.f32.mrf.mxu0
          %v3838 = vadd.f32 0.0, %v3837
          %3839 = vmatmul.bf16.gmra.mxu0 %v3583
          %v3840 = vpop.f32.mrf.mxu0
          %v3841 = vadd.f32 0.0, %v3840
          %v3842 = vpop.f32.mrf.mxu0
          %v3843 = vadd.f32 0.0, %v3842
          %3844 = vmatmul.bf16.gmra.mxu0 %v3584
          %v3845 = vpop.f32.mrf.mxu0
          %v3846 = vadd.f32 0.0, %v3845
          %v3847 = vpop.f32.mrf.mxu0
          %v3848 = vadd.f32 0.0, %v3847
          %3849 = vdwg.mxu0
          %v3850 = vmul.f32 %v3811, 0.088388346
          %v3851 = vmul.f32 %v3813, 0.088388346
          %v3852 = vmul.f32 %v3816, 0.088388346
          %v3853 = vmul.f32 %v3818, 0.088388346
          %v3854 = vmul.f32 %v3821, 0.088388346
          %v3855 = vmul.f32 %v3823, 0.088388346
          %v3856 = vmul.f32 %v3826, 0.088388346
          %v3857 = vmul.f32 %v3828, 0.088388346
          %v3858 = vmul.f32 %v3831, 0.088388346
          %v3859 = vmul.f32 %v3833, 0.088388346
          %v3860 = vmul.f32 %v3836, 0.088388346
          %v3861 = vmul.f32 %v3838, 0.088388346
          %v3862 = vmul.f32 %v3841, 0.088388346
          %v3863 = vmul.f32 %v3843, 0.088388346
          %v3864 = vmul.f32 %v3846, 0.088388346
          %v3865 = vmul.f32 %v3848, 0.088388346
          %v3866 = vadd.f32 %v3850, %v1641
          %v3867 = vadd.f32 %v3851, %v1641
          %v3868 = vadd.f32 %v3852, %v1641
          %v3869 = vadd.f32 %v3853, %v1641
          %v3870 = vadd.f32 %v3854, %v1641
          %v3871 = vadd.f32 %v3855, %v1641
          %v3872 = vadd.f32 %v3856, %v1641
          %v3873 = vadd.f32 %v3857, %v1641
          %v3874 = vadd.f32 %v3858, %v1641
          %v3875 = vadd.f32 %v3859, %v1641
          %v3876 = vadd.f32 %v3860, %v1641
          %v3877 = vadd.f32 %v3861, %v1641
          %v3878 = vadd.f32 %v3862, %v1641
          %v3879 = vadd.f32 %v3863, %v1641
          %v3880 = vadd.f32 %v3864, %v1641
          %v3881 = vadd.f32 %v3865, %v1641
          %3882 = vmax.xlane.f32.xlu0 %v3866
          %v3883 = vpop.xlane.xlu0 %3882
          %3884 = vmax.xlane.f32.xlu0 %v3867
          %v3885 = vpop.xlane.xlu0 %3884
          %3886 = vmax.xlane.f32.xlu0 %v3868
          %v3887 = vpop.xlane.xlu0 %3886
          %3888 = vmax.xlane.f32.xlu0 %v3869
          %v3889 = vpop.xlane.xlu0 %3888
          %3890 = vmax.xlane.f32.xlu0 %v3870
          %v3891 = vpop.xlane.xlu0 %3890
          %3892 = vmax.xlane.f32.xlu0 %v3871
          %v3893 = vpop.xlane.xlu0 %3892
          %3894 = vmax.xlane.f32.xlu0 %v3872
          %v3895 = vpop.xlane.xlu0 %3894
          %3896 = vmax.xlane.f32.xlu0 %v3873
          %v3897 = vpop.xlane.xlu0 %3896
          %3898 = vmax.xlane.f32.xlu0 %v3874
          %v3899 = vpop.xlane.xlu0 %3898
          %3900 = vmax.xlane.f32.xlu0 %v3875
          %v3901 = vpop.xlane.xlu0 %3900
          %3902 = vmax.xlane.f32.xlu0 %v3876
          %v3903 = vpop.xlane.xlu0 %3902
          %3904 = vmax.xlane.f32.xlu0 %v3877
          %v3905 = vpop.xlane.xlu0 %3904
          %3906 = vmax.xlane.f32.xlu0 %v3878
          %v3907 = vpop.xlane.xlu0 %3906
          %3908 = vmax.xlane.f32.xlu0 %v3879
          %v3909 = vpop.xlane.xlu0 %3908
          %3910 = vmax.xlane.f32.xlu0 %v3880
          %v3911 = vpop.xlane.xlu0 %3910
          %3912 = vmax.xlane.f32.xlu0 %v3881
          %v3913 = vpop.xlane.xlu0 %3912
          %v3914 = vsub.f32 %v3866, %v3883
          %v3915 = vsub.f32 %v3867, %v3885
          %v3916 = vsub.f32 %v3868, %v3887
          %v3917 = vsub.f32 %v3869, %v3889
          %v3918 = vsub.f32 %v3870, %v3891
          %v3919 = vsub.f32 %v3871, %v3893
          %v3920 = vsub.f32 %v3872, %v3895
          %v3921 = vsub.f32 %v3873, %v3897
          %v3922 = vsub.f32 %v3874, %v3899
          %v3923 = vsub.f32 %v3875, %v3901
          %v3924 = vsub.f32 %v3876, %v3903
          %v3925 = vsub.f32 %v3877, %v3905
          %v3926 = vsub.f32 %v3878, %v3907
          %v3927 = vsub.f32 %v3879, %v3909
          %v3928 = vsub.f32 %v3880, %v3911
          %v3929 = vsub.f32 %v3881, %v3913
          %v3930 = vmul.f32 %v3914, 1.442695
          %v3931 = vpow.pop %v3930
          %v3932 = vmul.f32 %v3915, 1.442695
          %v3933 = vpow.pop %v3932
          %v3934 = vmul.f32 %v3916, 1.442695
          %v3935 = vpow.pop %v3934
          %v3936 = vmul.f32 %v3917, 1.442695
          %v3937 = vpow.pop %v3936
          %v3938 = vmul.f32 %v3918, 1.442695
          %v3939 = vpow.pop %v3938
          %v3940 = vmul.f32 %v3919, 1.442695
          %v3941 = vpow.pop %v3940
          %v3942 = vmul.f32 %v3920, 1.442695
          %v3943 = vpow.pop %v3942
          %v3944 = vmul.f32 %v3921, 1.442695
          %v3945 = vpow.pop %v3944
          %v3946 = vmul.f32 %v3922, 1.442695
          %v3947 = vpow.pop %v3946
          %v3948 = vmul.f32 %v3923, 1.442695
          %v3949 = vpow.pop %v3948
          %v3950 = vmul.f32 %v3924, 1.442695
          %v3951 = vpow.pop %v3950
          %v3952 = vmul.f32 %v3925, 1.442695
          %v3953 = vpow.pop %v3952
          %v3954 = vmul.f32 %v3926, 1.442695
          %v3955 = vpow.pop %v3954
          %v3956 = vmul.f32 %v3927, 1.442695
          %v3957 = vpow.pop %v3956
          %v3958 = vmul.f32 %v3928, 1.442695
          %v3959 = vpow.pop %v3958
          %v3960 = vmul.f32 %v3929, 1.442695
          %v3961 = vpow.pop %v3960
          %3962 = vadd.xlane.f32.xlu0 %v3931
          %v3963 = vpop.xlane.xlu0 %3962
          %3964 = vadd.xlane.f32.xlu0 %v3933
          %v3965 = vpop.xlane.xlu0 %3964
          %3966 = vadd.xlane.f32.xlu0 %v3935
          %v3967 = vpop.xlane.xlu0 %3966
          %3968 = vadd.xlane.f32.xlu0 %v3937
          %v3969 = vpop.xlane.xlu0 %3968
          %3970 = vadd.xlane.f32.xlu0 %v3939
          %v3971 = vpop.xlane.xlu0 %3970
          %3972 = vadd.xlane.f32.xlu0 %v3941
          %v3973 = vpop.xlane.xlu0 %3972
          %3974 = vadd.xlane.f32.xlu0 %v3943
          %v3975 = vpop.xlane.xlu0 %3974
          %3976 = vadd.xlane.f32.xlu0 %v3945
          %v3977 = vpop.xlane.xlu0 %3976
          %3978 = vadd.xlane.f32.xlu0 %v3947
          %v3979 = vpop.xlane.xlu0 %3978
          %3980 = vadd.xlane.f32.xlu0 %v3949
          %v3981 = vpop.xlane.xlu0 %3980
          %3982 = vadd.xlane.f32.xlu0 %v3951
          %v3983 = vpop.xlane.xlu0 %3982
          %3984 = vadd.xlane.f32.xlu0 %v3953
          %v3985 = vpop.xlane.xlu0 %3984
          %3986 = vadd.xlane.f32.xlu0 %v3955
          %v3987 = vpop.xlane.xlu0 %3986
          %3988 = vadd.xlane.f32.xlu0 %v3957
          %v3989 = vpop.xlane.xlu0 %3988
          %3990 = vadd.xlane.f32.xlu0 %v3959
          %v3991 = vpop.xlane.xlu0 %3990
          %3992 = vadd.xlane.f32.xlu0 %v3961
          %v3993 = vpop.xlane.xlu0 %3992
          %v3994 = vrcp.pop %v3963
          %v3995 = vmul.f32 %v3963, %v3994
          %v3996 = vsub.f32 1.0, %v3995
          %v3997 = vmul.f32 %v3994, %v3996
          %v3998 = vadd.f32 %v3994, %v3997
          %vm3999 = vweird.f32 %v3963
          %vm4000 = vweird.f32 %v3994
          %vm4001 = vmor %vm3999, %vm4000
          %v4002 = vsel %vm4001, %v3994, %v3998
          %v4003 = vand.u32 2147483647, %v3963
          %vm4004 = vcmp.eq.f32.partialorder %v4003, 8.507059e+37
          %v4005 = vand.u32 %v3963, 2147483648
          %v4006 = vor.u32 1.1754944e-38, %v4005
          %v4007 = vsel %vm4004, %v4006, %v4002
          %v4008 = vmul.f32 %v3931, %v4007
          %v4009 = vrcp.pop %v3965
          %v4010 = vmul.f32 %v3965, %v4009
          %v4011 = vsub.f32 1.0, %v4010
          %v4012 = vmul.f32 %v4009, %v4011
          %v4013 = vadd.f32 %v4009, %v4012
          %vm4014 = vweird.f32 %v3965
          %vm4015 = vweird.f32 %v4009
          %vm4016 = vmor %vm4014, %vm4015
          %v4017 = vsel %vm4016, %v4009, %v4013
          %v4018 = vand.u32 2147483647, %v3965
          %vm4019 = vcmp.eq.f32.partialorder %v4018, 8.507059e+37
          %v4020 = vand.u32 %v3965, 2147483648
          %v4021 = vor.u32 1.1754944e-38, %v4020
          %v4022 = vsel %vm4019, %v4021, %v4017
          %v4023 = vmul.f32 %v3933, %v4022
          %v4024 = vrcp.pop %v3967
          %v4025 = vmul.f32 %v3967, %v4024
          %v4026 = vsub.f32 1.0, %v4025
          %v4027 = vmul.f32 %v4024, %v4026
          %v4028 = vadd.f32 %v4024, %v4027
          %vm4029 = vweird.f32 %v3967
          %vm4030 = vweird.f32 %v4024
          %vm4031 = vmor %vm4029, %vm4030
          %v4032 = vsel %vm4031, %v4024, %v4028
          %v4033 = vand.u32 2147483647, %v3967
          %vm4034 = vcmp.eq.f32.partialorder %v4033, 8.507059e+37
          %v4035 = vand.u32 %v3967, 2147483648
          %v4036 = vor.u32 1.1754944e-38, %v4035
          %v4037 = vsel %vm4034, %v4036, %v4032
          %v4038 = vmul.f32 %v3935, %v4037
          %v4039 = vrcp.pop %v3969
          %v4040 = vmul.f32 %v3969, %v4039
          %v4041 = vsub.f32 1.0, %v4040
          %v4042 = vmul.f32 %v4039, %v4041
          %v4043 = vadd.f32 %v4039, %v4042
          %vm4044 = vweird.f32 %v3969
          %vm4045 = vweird.f32 %v4039
          %vm4046 = vmor %vm4044, %vm4045
          %v4047 = vsel %vm4046, %v4039, %v4043
          %v4048 = vand.u32 2147483647, %v3969
          %vm4049 = vcmp.eq.f32.partialorder %v4048, 8.507059e+37
          %v4050 = vand.u32 %v3969, 2147483648
          %v4051 = vor.u32 1.1754944e-38, %v4050
          %v4052 = vsel %vm4049, %v4051, %v4047
          %v4053 = vmul.f32 %v3937, %v4052
          %v4054 = vrcp.pop %v3971
          %v4055 = vmul.f32 %v3971, %v4054
          %v4056 = vsub.f32 1.0, %v4055
          %v4057 = vmul.f32 %v4054, %v4056
          %v4058 = vadd.f32 %v4054, %v4057
          %vm4059 = vweird.f32 %v3971
          %vm4060 = vweird.f32 %v4054
          %vm4061 = vmor %vm4059, %vm4060
          %v4062 = vsel %vm4061, %v4054, %v4058
          %v4063 = vand.u32 2147483647, %v3971
          %vm4064 = vcmp.eq.f32.partialorder %v4063, 8.507059e+37
          %v4065 = vand.u32 %v3971, 2147483648
          %v4066 = vor.u32 1.1754944e-38, %v4065
          %v4067 = vsel %vm4064, %v4066, %v4062
          %v4068 = vmul.f32 %v3939, %v4067
          %v4069 = vrcp.pop %v3973
          %v4070 = vmul.f32 %v3973, %v4069
          %v4071 = vsub.f32 1.0, %v4070
          %v4072 = vmul.f32 %v4069, %v4071
          %v4073 = vadd.f32 %v4069, %v4072
          %vm4074 = vweird.f32 %v3973
          %vm4075 = vweird.f32 %v4069
          %vm4076 = vmor %vm4074, %vm4075
          %v4077 = vsel %vm4076, %v4069, %v4073
          %v4078 = vand.u32 2147483647, %v3973
          %vm4079 = vcmp.eq.f32.partialorder %v4078, 8.507059e+37
          %v4080 = vand.u32 %v3973, 2147483648
          %v4081 = vor.u32 1.1754944e-38, %v4080
          %v4082 = vsel %vm4079, %v4081, %v4077
          %v4083 = vmul.f32 %v3941, %v4082
          %v4084 = vrcp.pop %v3975
          %v4085 = vmul.f32 %v3975, %v4084
          %v4086 = vsub.f32 1.0, %v4085
          %v4087 = vmul.f32 %v4084, %v4086
          %v4088 = vadd.f32 %v4084, %v4087
          %vm4089 = vweird.f32 %v3975
          %vm4090 = vweird.f32 %v4084
          %vm4091 = vmor %vm4089, %vm4090
          %v4092 = vsel %vm4091, %v4084, %v4088
          %v4093 = vand.u32 2147483647, %v3975
          %vm4094 = vcmp.eq.f32.partialorder %v4093, 8.507059e+37
          %v4095 = vand.u32 %v3975, 2147483648
          %v4096 = vor.u32 1.1754944e-38, %v4095
          %v4097 = vsel %vm4094, %v4096, %v4092
          %v4098 = vmul.f32 %v3943, %v4097
          %v4099 = vrcp.pop %v3977
          %v4100 = vmul.f32 %v3977, %v4099
          %v4101 = vsub.f32 1.0, %v4100
          %v4102 = vmul.f32 %v4099, %v4101
          %v4103 = vadd.f32 %v4099, %v4102
          %vm4104 = vweird.f32 %v3977
          %vm4105 = vweird.f32 %v4099
          %vm4106 = vmor %vm4104, %vm4105
          %v4107 = vsel %vm4106, %v4099, %v4103
          %v4108 = vand.u32 2147483647, %v3977
          %vm4109 = vcmp.eq.f32.partialorder %v4108, 8.507059e+37
          %v4110 = vand.u32 %v3977, 2147483648
          %v4111 = vor.u32 1.1754944e-38, %v4110
          %v4112 = vsel %vm4109, %v4111, %v4107
          %v4113 = vmul.f32 %v3945, %v4112
          %v4114 = vrcp.pop %v3979
          %v4115 = vmul.f32 %v3979, %v4114
          %v4116 = vsub.f32 1.0, %v4115
          %v4117 = vmul.f32 %v4114, %v4116
          %v4118 = vadd.f32 %v4114, %v4117
          %vm4119 = vweird.f32 %v3979
          %vm4120 = vweird.f32 %v4114
          %vm4121 = vmor %vm4119, %vm4120
          %v4122 = vsel %vm4121, %v4114, %v4118
          %v4123 = vand.u32 2147483647, %v3979
          %vm4124 = vcmp.eq.f32.partialorder %v4123, 8.507059e+37
          %v4125 = vand.u32 %v3979, 2147483648
          %v4126 = vor.u32 1.1754944e-38, %v4125
          %v4127 = vsel %vm4124, %v4126, %v4122
          %v4128 = vmul.f32 %v3947, %v4127
          %v4129 = vrcp.pop %v3981
          %v4130 = vmul.f32 %v3981, %v4129
          %v4131 = vsub.f32 1.0, %v4130
          %v4132 = vmul.f32 %v4129, %v4131
          %v4133 = vadd.f32 %v4129, %v4132
          %vm4134 = vweird.f32 %v3981
          %vm4135 = vweird.f32 %v4129
          %vm4136 = vmor %vm4134, %vm4135
          %v4137 = vsel %vm4136, %v4129, %v4133
          %v4138 = vand.u32 2147483647, %v3981
          %vm4139 = vcmp.eq.f32.partialorder %v4138, 8.507059e+37
          %v4140 = vand.u32 %v3981, 2147483648
          %v4141 = vor.u32 1.1754944e-38, %v4140
          %v4142 = vsel %vm4139, %v4141, %v4137
          %v4143 = vmul.f32 %v3949, %v4142
          %v4144 = vrcp.pop %v3983
          %v4145 = vmul.f32 %v3983, %v4144
          %v4146 = vsub.f32 1.0, %v4145
          %v4147 = vmul.f32 %v4144, %v4146
          %v4148 = vadd.f32 %v4144, %v4147
          %vm4149 = vweird.f32 %v3983
          %vm4150 = vweird.f32 %v4144
          %vm4151 = vmor %vm4149, %vm4150
          %v4152 = vsel %vm4151, %v4144, %v4148
          %v4153 = vand.u32 2147483647, %v3983
          %vm4154 = vcmp.eq.f32.partialorder %v4153, 8.507059e+37
          %v4155 = vand.u32 %v3983, 2147483648
          %v4156 = vor.u32 1.1754944e-38, %v4155
          %v4157 = vsel %vm4154, %v4156, %v4152
          %v4158 = vmul.f32 %v3951, %v4157
          %v4159 = vrcp.pop %v3985
          %v4160 = vmul.f32 %v3985, %v4159
          %v4161 = vsub.f32 1.0, %v4160
          %v4162 = vmul.f32 %v4159, %v4161
          %v4163 = vadd.f32 %v4159, %v4162
          %vm4164 = vweird.f32 %v3985
          %vm4165 = vweird.f32 %v4159
          %vm4166 = vmor %vm4164, %vm4165
          %v4167 = vsel %vm4166, %v4159, %v4163
          %v4168 = vand.u32 2147483647, %v3985
          %vm4169 = vcmp.eq.f32.partialorder %v4168, 8.507059e+37
          %v4170 = vand.u32 %v3985, 2147483648
          %v4171 = vor.u32 1.1754944e-38, %v4170
          %v4172 = vsel %vm4169, %v4171, %v4167
          %v4173 = vmul.f32 %v3953, %v4172
          %v4174 = vrcp.pop %v3987
          %v4175 = vmul.f32 %v3987, %v4174
          %v4176 = vsub.f32 1.0, %v4175
          %v4177 = vmul.f32 %v4174, %v4176
          %v4178 = vadd.f32 %v4174, %v4177
          %vm4179 = vweird.f32 %v3987
          %vm4180 = vweird.f32 %v4174
          %vm4181 = vmor %vm4179, %vm4180
          %v4182 = vsel %vm4181, %v4174, %v4178
          %v4183 = vand.u32 2147483647, %v3987
          %vm4184 = vcmp.eq.f32.partialorder %v4183, 8.507059e+37
          %v4185 = vand.u32 %v3987, 2147483648
          %v4186 = vor.u32 1.1754944e-38, %v4185
          %v4187 = vsel %vm4184, %v4186, %v4182
          %v4188 = vmul.f32 %v3955, %v4187
          %v4189 = vrcp.pop %v3989
          %v4190 = vmul.f32 %v3989, %v4189
          %v4191 = vsub.f32 1.0, %v4190
          %v4192 = vmul.f32 %v4189, %v4191
          %v4193 = vadd.f32 %v4189, %v4192
          %vm4194 = vweird.f32 %v3989
          %vm4195 = vweird.f32 %v4189
          %vm4196 = vmor %vm4194, %vm4195
          %v4197 = vsel %vm4196, %v4189, %v4193
          %v4198 = vand.u32 2147483647, %v3989
          %vm4199 = vcmp.eq.f32.partialorder %v4198, 8.507059e+37
          %v4200 = vand.u32 %v3989, 2147483648
          %v4201 = vor.u32 1.1754944e-38, %v4200
          %v4202 = vsel %vm4199, %v4201, %v4197
          %v4203 = vmul.f32 %v3957, %v4202
          %v4204 = vrcp.pop %v3991
          %v4205 = vmul.f32 %v3991, %v4204
          %v4206 = vsub.f32 1.0, %v4205
          %v4207 = vmul.f32 %v4204, %v4206
          %v4208 = vadd.f32 %v4204, %v4207
          %vm4209 = vweird.f32 %v3991
          %vm4210 = vweird.f32 %v4204
          %vm4211 = vmor %vm4209, %vm4210
          %v4212 = vsel %vm4211, %v4204, %v4208
          %v4213 = vand.u32 2147483647, %v3991
          %vm4214 = vcmp.eq.f32.partialorder %v4213, 8.507059e+37
          %v4215 = vand.u32 %v3991, 2147483648
          %v4216 = vor.u32 1.1754944e-38, %v4215
          %v4217 = vsel %vm4214, %v4216, %v4212
          %v4218 = vmul.f32 %v3959, %v4217
          %v4219 = vrcp.pop %v3993
          %v4220 = vmul.f32 %v3993, %v4219
          %v4221 = vsub.f32 1.0, %v4220
          %v4222 = vmul.f32 %v4219, %v4221
          %v4223 = vadd.f32 %v4219, %v4222
          %vm4224 = vweird.f32 %v3993
          %vm4225 = vweird.f32 %v4219
          %vm4226 = vmor %vm4224, %vm4225
          %v4227 = vsel %vm4226, %v4219, %v4223
          %v4228 = vand.u32 2147483647, %v3993
          %vm4229 = vcmp.eq.f32.partialorder %v4228, 8.507059e+37
          %v4230 = vand.u32 %v3993, 2147483648
          %v4231 = vor.u32 1.1754944e-38, %v4230
          %v4232 = vsel %vm4229, %v4231, %v4227
          %v4233 = vmul.f32 %v3961, %v4232
          %v4234 = vadd.f32 %v4008, %v4023
          %v4235 = vadd.f32 %v4234, %v4038
          %v4236 = vadd.f32 %v4235, %v4053
          %v4237 = vadd.f32 %v4236, %v4068
          %v4238 = vadd.f32 %v4237, %v4083
          %v4239 = vadd.f32 %v4238, %v4098
          %v4240 = vadd.f32 %v4239, %v4113
          %v4241 = vadd.f32 %v4240, %v4128
          %v4242 = vadd.f32 %v4241, %v4143
          %v4243 = vadd.f32 %v4242, %v4158
          %v4244 = vadd.f32 %v4243, %v4173
          %v4245 = vadd.f32 %v4244, %v4188
          %v4246 = vadd.f32 %v4245, %v4203
          %v4247 = vadd.f32 %v4246, %v4218
          %v4248 = vadd.f32 %v4247, %v4233
          %v4249 = vrot.slane %v4248, 4
          %v4250 = vadd.f32 %v4248, %v4249
          %v4251 = vrot.slane %v4250, 2
          %v4252 = vadd.f32 %v4250, %v4251
          %v4253 = vrot.slane %v4252, 1
          %v4254 = vadd.f32 %v4252, %v4253
          %4255 = vst [vmem:[%s1150] sm:$0x1] %v4254
          %v4256 = vpack.c.bf16 %v4023, %v4008
          %v4257 = vpack.c.bf16 %v4053, %v4038
          %v4258 = vpack.c.bf16 %v4083, %v4068
          %v4259 = vpack.c.bf16 %v4113, %v4098
          %v4260 = vpack.c.bf16 %v4143, %v4128
          %v4261 = vpack.c.bf16 %v4173, %v4158
          %v4262 = vpack.c.bf16 %v4203, %v4188
          %v4263 = vpack.c.bf16 %v4233, %v4218
          %4264 = vmatpush.bf16.msra.mxu0 %v3800
          %4265 = vmatpush.bf16.msra.mxu0 %v3799
          %4266 = vmatpush.bf16.msra.mxu0 %v3798
          %4267 = vmatpush.bf16.msra.mxu0 %v3797
          %4268 = vmatpush.bf16.msra.mxu0 %v3796
          %4269 = vmatpush.bf16.msra.mxu0 %v3795
          %4270 = vmatpush.bf16.msra.mxu0 %v3794
          %4271 = vmatpush.bf16.msra.mxu0 %v3793
          %4272 = vmatmul.bf16.gmra.mxu0 %v4256
          %v4273 = vpop.f32.mrf.mxu0
          %v4274 = vadd.f32 0.0, %v4273
          %v4275 = vpop.f32.mrf.mxu0
          %v4276 = vadd.f32 0.0, %v4275
          %4277 = vmatmul.bf16.gmra.mxu0 %v4257
          %v4278 = vpop.f32.mrf.mxu0
          %v4279 = vadd.f32 0.0, %v4278
          %v4280 = vpop.f32.mrf.mxu0
          %v4281 = vadd.f32 0.0, %v4280
          %4282 = vmatmul.bf16.gmra.mxu0 %v4258
          %v4283 = vpop.f32.mrf.mxu0
          %v4284 = vadd.f32 0.0, %v4283
          %v4285 = vpop.f32.mrf.mxu0
          %v4286 = vadd.f32 0.0, %v4285
          %4287 = vmatmul.bf16.gmra.mxu0 %v4259
          %v4288 = vpop.f32.mrf.mxu0
          %v4289 = vadd.f32 0.0, %v4288
          %v4290 = vpop.f32.mrf.mxu0
          %v4291 = vadd.f32 0.0, %v4290
          %4292 = vmatmul.bf16.gmra.mxu0 %v4260
          %v4293 = vpop.f32.mrf.mxu0
          %v4294 = vadd.f32 0.0, %v4293
          %v4295 = vpop.f32.mrf.mxu0
          %v4296 = vadd.f32 0.0, %v4295
          %4297 = vmatmul.bf16.gmra.mxu0 %v4261
          %v4298 = vpop.f32.mrf.mxu0
          %v4299 = vadd.f32 0.0, %v4298
          %v4300 = vpop.f32.mrf.mxu0
          %v4301 = vadd.f32 0.0, %v4300
          %4302 = vmatmul.bf16.gmra.mxu0 %v4262
          %v4303 = vpop.f32.mrf.mxu0
          %v4304 = vadd.f32 0.0, %v4303
          %v4305 = vpop.f32.mrf.mxu0
          %v4306 = vadd.f32 0.0, %v4305
          %4307 = vmatmul.bf16.gmra.mxu0 %v4263
          %v4308 = vpop.f32.mrf.mxu0
          %v4309 = vadd.f32 0.0, %v4308
          %v4310 = vpop.f32.mrf.mxu0
          %v4311 = vadd.f32 0.0, %v4310
          %4312 = vdwg.mxu0
          %v4313 = vpack.c.bf16 %v4276, %v4274
          %v4314 = vpack.c.bf16 %v4281, %v4279
          %v4315 = vpack.c.bf16 %v4286, %v4284
          %v4316 = vpack.c.bf16 %v4291, %v4289
          %v4317 = vpack.c.bf16 %v4296, %v4294
          %v4318 = vpack.c.bf16 %v4301, %v4299
          %v4319 = vpack.c.bf16 %v4306, %v4304
          %v4320 = vpack.c.bf16 %v4311, %v4309
          %v4321 = vld [vmem:[%s41] sm:$0xf]
          %v4322 = vld [vmem:[%s41 + $0x4] sm:$0xf]
          %v4323 = vld [vmem:[%s41 + $0x8] sm:$0xf]
          %v4324 = vld [vmem:[%s41 + $0xc] sm:$0xf]
          %v4325 = vld [vmem:[%s41 + $0x10] sm:$0xf]
          %v4326 = vld [vmem:[%s41 + $0x14] sm:$0xf]
          %v4327 = vld [vmem:[%s41 + $0x18] sm:$0xf]
          %v4328 = vld [vmem:[%s41 + $0x1c] sm:$0xf]
          %v4329 = vld [vmem:[%s41 + $0x20] sm:$0xf]
          %v4330 = vld [vmem:[%s41 + $0x24] sm:$0xf]
          %v4331 = vld [vmem:[%s41 + $0x28] sm:$0xf]
          %v4332 = vld [vmem:[%s41 + $0x2c] sm:$0xf]
          %v4333 = vld [vmem:[%s41 + $0x30] sm:$0xf]
          %v4334 = vld [vmem:[%s41 + $0x34] sm:$0xf]
          %v4335 = vld [vmem:[%s41 + $0x38] sm:$0xf]
          %v4336 = vld [vmem:[%s41 + $0x3c] sm:$0xf]
          %v4353 = vunpack.c.l.b16 %v4321
          %v4354 = vunpack.c.l.b16 %v4322
          %v4355 = vunpack.c.l.b16 %v4323
          %v4356 = vunpack.c.l.b16 %v4324
          %v4357 = vunpack.c.l.b16 %v4325
          %v4358 = vunpack.c.l.b16 %v4326
          %v4359 = vunpack.c.l.b16 %v4327
          %v4360 = vunpack.c.l.b16 %v4328
          %v4361 = vunpack.c.l.b16 %v4329
          %v4362 = vunpack.c.l.b16 %v4330
          %v4363 = vunpack.c.l.b16 %v4331
          %v4364 = vunpack.c.l.b16 %v4332
          %v4365 = vunpack.c.l.b16 %v4333
          %v4366 = vunpack.c.l.b16 %v4334
          %v4367 = vunpack.c.l.b16 %v4335
          %v4368 = vunpack.c.l.b16 %v4336
          %v4369 = vpack.c.b16 %v4354, %v4353
          %v4370 = vpack.c.b16 %v4356, %v4355
          %v4371 = vpack.c.b16 %v4358, %v4357
          %v4372 = vpack.c.b16 %v4360, %v4359
          %v4373 = vpack.c.b16 %v4362, %v4361
          %v4374 = vpack.c.b16 %v4364, %v4363
          %v4375 = vpack.c.b16 %v4366, %v4365
          %v4376 = vpack.c.b16 %v4368, %v4367
          %4385 = vmatpush.bf16.msra.mxu0 %v4376
          %4386 = vmatpush.bf16.msra.mxu0 %v4375
          %4387 = vmatpush.bf16.msra.mxu0 %v4374
          %4388 = vmatpush.bf16.msra.mxu0 %v4373
          %4389 = vmatpush.bf16.msra.mxu0 %v4372
          %4390 = vmatpush.bf16.msra.mxu0 %v4371
          %4391 = vmatpush.bf16.msra.mxu0 %v4370
          %4392 = vmatpush.bf16.msra.mxu0 %v4369
          %4393 = vmatmul.bf16.gmra.mxu0 %v4313
          %v4394 = vpop.f32.mrf.mxu0
          %v4395 = vadd.f32 0.0, %v4394
          %v4396 = vpop.f32.mrf.mxu0
          %v4397 = vadd.f32 0.0, %v4396
          %4398 = vmatmul.bf16.gmra.mxu0 %v4314
          %v4399 = vpop.f32.mrf.mxu0
          %v4400 = vadd.f32 0.0, %v4399
          %v4401 = vpop.f32.mrf.mxu0
          %v4402 = vadd.f32 0.0, %v4401
          %4403 = vmatmul.bf16.gmra.mxu0 %v4315
          %v4404 = vpop.f32.mrf.mxu0
          %v4405 = vadd.f32 0.0, %v4404
          %v4406 = vpop.f32.mrf.mxu0
          %v4407 = vadd.f32 0.0, %v4406
          %4408 = vmatmul.bf16.gmra.mxu0 %v4316
          %v4409 = vpop.f32.mrf.mxu0
          %v4410 = vadd.f32 0.0, %v4409
          %v4411 = vpop.f32.mrf.mxu0
          %v4412 = vadd.f32 0.0, %v4411
          %4413 = vmatmul.bf16.gmra.mxu0 %v4317
          %v4414 = vpop.f32.mrf.mxu0
          %v4415 = vadd.f32 0.0, %v4414
          %v4416 = vpop.f32.mrf.mxu0
          %v4417 = vadd.f32 0.0, %v4416
          %4418 = vmatmul.bf16.gmra.mxu0 %v4318
          %v4419 = vpop.f32.mrf.mxu0
          %v4420 = vadd.f32 0.0, %v4419
          %v4421 = vpop.f32.mrf.mxu0
          %v4422 = vadd.f32 0.0, %v4421
          %4423 = vmatmul.bf16.gmra.mxu0 %v4319
          %v4424 = vpop.f32.mrf.mxu0
          %v4425 = vadd.f32 0.0, %v4424
          %v4426 = vpop.f32.mrf.mxu0
          %v4427 = vadd.f32 0.0, %v4426
          %4428 = vmatmul.bf16.gmra.mxu0 %v4320
          %v4429 = vpop.f32.mrf.mxu0
          %v4430 = vadd.f32 0.0, %v4429
          %v4431 = vpop.f32.mrf.mxu0
          %v4432 = vadd.f32 0.0, %v4431
          %4433 = vdwg.mxu0
          %v4434 = vadd.f32 %v3436, %v4395
          %v4435 = vadd.f32 %v3437, %v4397
          %v4436 = vadd.f32 %v3438, %v4400
          %v4437 = vadd.f32 %v3439, %v4402
          %v4438 = vadd.f32 %v3440, %v4405
          %v4439 = vadd.f32 %v3441, %v4407
          %v4440 = vadd.f32 %v3442, %v4410
          %v4441 = vadd.f32 %v3443, %v4412
          %v4442 = vadd.f32 %v3444, %v4415
          %v4443 = vadd.f32 %v3445, %v4417
          %v4444 = vadd.f32 %v3446, %v4420
          %v4445 = vadd.f32 %v3447, %v4422
          %v4446 = vadd.f32 %v3448, %v4425
          %v4447 = vadd.f32 %v3449, %v4427
          %v4448 = vadd.f32 %v3450, %v4430
          %v4449 = vadd.f32 %v3451, %v4432
          %v4450 = vld [vmem:[%s43] sm:$0x1]
          %v4452 = vperm.slane %v4450, 0
          %v4454 = vadd.f32 %v4434, %v4452
          %v4455 = vadd.f32 %v4435, %v4452
          %v4456 = vadd.f32 %v4436, %v4452
          %v4457 = vadd.f32 %v4437, %v4452
          %v4458 = vadd.f32 %v4438, %v4452
          %v4459 = vadd.f32 %v4439, %v4452
          %v4460 = vadd.f32 %v4440, %v4452
          %v4461 = vadd.f32 %v4441, %v4452
          %v4462 = vadd.f32 %v4442, %v4452
          %v4463 = vadd.f32 %v4443, %v4452
          %v4464 = vadd.f32 %v4444, %v4452
          %v4465 = vadd.f32 %v4445, %v4452
          %v4466 = vadd.f32 %v4446, %v4452
          %v4467 = vadd.f32 %v4447, %v4452
          %v4468 = vadd.f32 %v4448, %v4452
          %v4469 = vadd.f32 %v4449, %v4452
          %v4470 = vpack.c.bf16 %v4455, %v4454
          %v4471 = vpack.c.bf16 %v4457, %v4456
          %v4472 = vpack.c.bf16 %v4459, %v4458
          %v4473 = vpack.c.bf16 %v4461, %v4460
          %v4474 = vpack.c.bf16 %v4463, %v4462
          %v4475 = vpack.c.bf16 %v4465, %v4464
          %v4476 = vpack.c.bf16 %v4467, %v4466
          %v4477 = vpack.c.bf16 %v4469, %v4468
          %v4478 = vld [vmem:[%s45] sm:$0xff]
          %v4479 = vld [vmem:[%s45 + $0x8] sm:$0xff]
          %v4480 = vld [vmem:[%s45 + $0x10] sm:$0xff]
          %v4481 = vld [vmem:[%s45 + $0x18] sm:$0xff]
          %v4482 = vld [vmem:[%s45 + $0x20] sm:$0xff]
          %v4483 = vld [vmem:[%s45 + $0x28] sm:$0xff]
          %v4484 = vld [vmem:[%s45 + $0x30] sm:$0xff]
          %v4485 = vld [vmem:[%s45 + $0x38] sm:$0xff]
          %v4486 = vld [vmem:[%s45 + $0x40] sm:$0xff]
          %v4487 = vld [vmem:[%s45 + $0x48] sm:$0xff]
          %v4488 = vld [vmem:[%s45 + $0x50] sm:$0xff]
          %v4489 = vld [vmem:[%s45 + $0x58] sm:$0xff]
          %v4490 = vld [vmem:[%s45 + $0x60] sm:$0xff]
          %v4491 = vld [vmem:[%s45 + $0x68] sm:$0xff]
          %v4492 = vld [vmem:[%s45 + $0x70] sm:$0xff]
          %v4493 = vld [vmem:[%s45 + $0x78] sm:$0xff]
          %v4494 = vld [vmem:[%s47] sm:$0x3]
          %v4496 = vperm.slane %v4494, 0
          %v4497 = vperm.slane %v4494, 1
          %v4516 = vunpack.c.l.b16 %v4478
          %v4517 = vunpack.c.h.b16 %v4478
          %v4518 = vunpack.c.l.b16 %v4479
          %v4519 = vunpack.c.h.b16 %v4479
          %v4520 = vunpack.c.l.b16 %v4480
          %v4521 = vunpack.c.h.b16 %v4480
          %v4522 = vunpack.c.l.b16 %v4481
          %v4523 = vunpack.c.h.b16 %v4481
          %v4524 = vunpack.c.l.b16 %v4482
          %v4525 = vunpack.c.h.b16 %v4482
          %v4526 = vunpack.c.l.b16 %v4483
          %v4527 = vunpack.c.h.b16 %v4483
          %v4528 = vunpack.c.l.b16 %v4484
          %v4529 = vunpack.c.h.b16 %v4484
          %v4530 = vunpack.c.l.b16 %v4485
          %v4531 = vunpack.c.h.b16 %v4485
          %v4532 = vunpack.c.l.b16 %v4486
          %v4533 = vunpack.c.h.b16 %v4486
          %v4534 = vunpack.c.l.b16 %v4487
          %v4535 = vunpack.c.h.b16 %v4487
          %v4536 = vunpack.c.l.b16 %v4488
          %v4537 = vunpack.c.h.b16 %v4488
          %v4538 = vunpack.c.l.b16 %v4489
          %v4539 = vunpack.c.h.b16 %v4489
          %v4540 = vunpack.c.l.b16 %v4490
          %v4541 = vunpack.c.h.b16 %v4490
          %v4542 = vunpack.c.l.b16 %v4491
          %v4543 = vunpack.c.h.b16 %v4491
          %v4544 = vunpack.c.l.b16 %v4492
          %v4545 = vunpack.c.h.b16 %v4492
          %v4546 = vunpack.c.l.b16 %v4493
          %v4547 = vunpack.c.h.b16 %v4493
          %v4548 = vpack.c.b16 %v4518, %v4516
          %v4549 = vpack.c.b16 %v4519, %v4517
          %v4550 = vpack.c.b16 %v4522, %v4520
          %v4551 = vpack.c.b16 %v4523, %v4521
          %v4552 = vpack.c.b16 %v4526, %v4524
          %v4553 = vpack.c.b16 %v4527, %v4525
          %v4554 = vpack.c.b16 %v4530, %v4528
          %v4555 = vpack.c.b16 %v4531, %v4529
          %v4556 = vpack.c.b16 %v4534, %v4532
          %v4557 = vpack.c.b16 %v4535, %v4533
          %v4558 = vpack.c.b16 %v4538, %v4536
          %v4559 = vpack.c.b16 %v4539, %v4537
          %v4560 = vpack.c.b16 %v4542, %v4540
          %v4561 = vpack.c.b16 %v4543, %v4541
          %v4562 = vpack.c.b16 %v4546, %v4544
          %v4563 = vpack.c.b16 %v4547, %v4545
          %4580 = vmatpush.bf16.msra.mxu0 %v4562
          %4581 = vmatpush.bf16.msra.mxu0 %v4560
          %4582 = vmatpush.bf16.msra.mxu0 %v4558
          %4583 = vmatpush.bf16.msra.mxu0 %v4556
          %4584 = vmatpush.bf16.msra.mxu0 %v4554
          %4585 = vmatpush.bf16.msra.mxu0 %v4552
          %4586 = vmatpush.bf16.msra.mxu0 %v4550
          %4587 = vmatpush.bf16.msra.mxu0 %v4548
          %4588 = vmatmul.bf16.gmra.mxu0 %v4470
          %v4589 = vpop.f32.mrf.mxu0
          %v4590 = vadd.f32 %v4496, %v4589
          %v4591 = vpop.f32.mrf.mxu0
          %v4592 = vadd.f32 %v4496, %v4591
          %4593 = vmatmul.bf16.gmra.mxu0 %v4471
          %v4594 = vpop.f32.mrf.mxu0
          %v4595 = vadd.f32 %v4496, %v4594
          %v4596 = vpop.f32.mrf.mxu0
          %v4597 = vadd.f32 %v4496, %v4596
          %4598 = vmatmul.bf16.gmra.mxu0 %v4472
          %v4599 = vpop.f32.mrf.mxu0
          %v4600 = vadd.f32 %v4496, %v4599
          %v4601 = vpop.f32.mrf.mxu0
          %v4602 = vadd.f32 %v4496, %v4601
          %4603 = vmatmul.bf16.gmra.mxu0 %v4473
          %v4604 = vpop.f32.mrf.mxu0
          %v4605 = vadd.f32 %v4496, %v4604
          %v4606 = vpop.f32.mrf.mxu0
          %v4607 = vadd.f32 %v4496, %v4606
          %4608 = vmatmul.bf16.gmra.mxu0 %v4474
          %v4609 = vpop.f32.mrf.mxu0
          %v4610 = vadd.f32 %v4496, %v4609
          %v4611 = vpop.f32.mrf.mxu0
          %v4612 = vadd.f32 %v4496, %v4611
          %4613 = vmatmul.bf16.gmra.mxu0 %v4475
          %v4614 = vpop.f32.mrf.mxu0
          %v4615 = vadd.f32 %v4496, %v4614
          %v4616 = vpop.f32.mrf.mxu0
          %v4617 = vadd.f32 %v4496, %v4616
          %4618 = vmatmul.bf16.gmra.mxu0 %v4476
          %v4619 = vpop.f32.mrf.mxu0
          %v4620 = vadd.f32 %v4496, %v4619
          %v4621 = vpop.f32.mrf.mxu0
          %v4622 = vadd.f32 %v4496, %v4621
          %4623 = vmatmul.bf16.gmra.mxu0 %v4477
          %v4624 = vpop.f32.mrf.mxu0
          %v4625 = vadd.f32 %v4496, %v4624
          %v4626 = vpop.f32.mrf.mxu0
          %v4627 = vadd.f32 %v4496, %v4626
          %4628 = vdwg.mxu0
          %4629 = vmatpush.bf16.msra.mxu0 %v4563
          %4630 = vmatpush.bf16.msra.mxu0 %v4561
          %4631 = vmatpush.bf16.msra.mxu0 %v4559
          %4632 = vmatpush.bf16.msra.mxu0 %v4557
          %4633 = vmatpush.bf16.msra.mxu0 %v4555
          %4634 = vmatpush.bf16.msra.mxu0 %v4553
          %4635 = vmatpush.bf16.msra.mxu0 %v4551
          %4636 = vmatpush.bf16.msra.mxu0 %v4549
          %4637 = vmatmul.bf16.gmra.mxu0 %v4470
          %v4638 = vpop.f32.mrf.mxu0
          %v4639 = vadd.f32 %v4497, %v4638
          %v4640 = vpop.f32.mrf.mxu0
          %v4641 = vadd.f32 %v4497, %v4640
          %4642 = vmatmul.bf16.gmra.mxu0 %v4471
          %v4643 = vpop.f32.mrf.mxu0
          %v4644 = vadd.f32 %v4497, %v4643
          %v4645 = vpop.f32.mrf.mxu0
          %v4646 = vadd.f32 %v4497, %v4645
          %4647 = vmatmul.bf16.gmra.mxu0 %v4472
          %v4648 = vpop.f32.mrf.mxu0
          %v4649 = vadd.f32 %v4497, %v4648
          %v4650 = vpop.f32.mrf.mxu0
          %v4651 = vadd.f32 %v4497, %v4650
          %4652 = vmatmul.bf16.gmra.mxu0 %v4473
          %v4653 = vpop.f32.mrf.mxu0
          %v4654 = vadd.f32 %v4497, %v4653
          %v4655 = vpop.f32.mrf.mxu0
          %v4656 = vadd.f32 %v4497, %v4655
          %4657 = vmatmul.bf16.gmra.mxu0 %v4474
          %v4658 = vpop.f32.mrf.mxu0
          %v4659 = vadd.f32 %v4497, %v4658
          %v4660 = vpop.f32.mrf.mxu0
          %v4661 = vadd.f32 %v4497, %v4660
          %4662 = vmatmul.bf16.gmra.mxu0 %v4475
          %v4663 = vpop.f32.mrf.mxu0
          %v4664 = vadd.f32 %v4497, %v4663
          %v4665 = vpop.f32.mrf.mxu0
          %v4666 = vadd.f32 %v4497, %v4665
          %4667 = vmatmul.bf16.gmra.mxu0 %v4476
          %v4668 = vpop.f32.mrf.mxu0
          %v4669 = vadd.f32 %v4497, %v4668
          %v4670 = vpop.f32.mrf.mxu0
          %v4671 = vadd.f32 %v4497, %v4670
          %4672 = vmatmul.bf16.gmra.mxu0 %v4477
          %v4673 = vpop.f32.mrf.mxu0
          %v4674 = vadd.f32 %v4497, %v4673
          %v4675 = vpop.f32.mrf.mxu0
          %v4676 = vadd.f32 %v4497, %v4675
          %4677 = vdwg.mxu0
          %v4678 = vmax.f32 %v4590, 0.0
          %v4679 = vmax.f32 %v4639, 0.0
          %v4680 = vmax.f32 %v4592, 0.0
          %v4681 = vmax.f32 %v4641, 0.0
          %v4682 = vmax.f32 %v4595, 0.0
          %v4683 = vmax.f32 %v4644, 0.0
          %v4684 = vmax.f32 %v4597, 0.0
          %v4685 = vmax.f32 %v4646, 0.0
          %v4686 = vmax.f32 %v4600, 0.0
          %v4687 = vmax.f32 %v4649, 0.0
          %v4688 = vmax.f32 %v4602, 0.0
          %v4689 = vmax.f32 %v4651, 0.0
          %v4690 = vmax.f32 %v4605, 0.0
          %v4691 = vmax.f32 %v4654, 0.0
          %v4692 = vmax.f32 %v4607, 0.0
          %v4693 = vmax.f32 %v4656, 0.0
          %v4694 = vmax.f32 %v4610, 0.0
          %v4695 = vmax.f32 %v4659, 0.0
          %v4696 = vmax.f32 %v4612, 0.0
          %v4697 = vmax.f32 %v4661, 0.0
          %v4698 = vmax.f32 %v4615, 0.0
          %v4699 = vmax.f32 %v4664, 0.0
          %v4700 = vmax.f32 %v4617, 0.0
          %v4701 = vmax.f32 %v4666, 0.0
          %v4702 = vmax.f32 %v4620, 0.0
          %v4703 = vmax.f32 %v4669, 0.0
          %v4704 = vmax.f32 %v4622, 0.0
          %v4705 = vmax.f32 %v4671, 0.0
          %v4706 = vmax.f32 %v4625, 0.0
          %v4707 = vmax.f32 %v4674, 0.0
          %v4708 = vmax.f32 %v4627, 0.0
          %v4709 = vmax.f32 %v4676, 0.0
          %v4710 = vpack.c.bf16 %v4680, %v4678
          %v4711 = vpack.c.bf16 %v4681, %v4679
          %v4712 = vpack.c.bf16 %v4684, %v4682
          %v4713 = vpack.c.bf16 %v4685, %v4683
          %v4714 = vpack.c.bf16 %v4688, %v4686
          %v4715 = vpack.c.bf16 %v4689, %v4687
          %v4716 = vpack.c.bf16 %v4692, %v4690
          %v4717 = vpack.c.bf16 %v4693, %v4691
          %v4718 = vpack.c.bf16 %v4696, %v4694
          %v4719 = vpack.c.bf16 %v4697, %v4695
          %v4720 = vpack.c.bf16 %v4700, %v4698
          %v4721 = vpack.c.bf16 %v4701, %v4699
          %v4722 = vpack.c.bf16 %v4704, %v4702
          %v4723 = vpack.c.bf16 %v4705, %v4703
          %v4724 = vpack.c.bf16 %v4708, %v4706
          %v4725 = vpack.c.bf16 %v4709, %v4707
          %v4726 = vld [vmem:[%s49] sm:$0xf]
          %v4727 = vld [vmem:[%s49 + $0x4] sm:$0xf]
          %v4728 = vld [vmem:[%s49 + $0x8] sm:$0xf]
          %v4729 = vld [vmem:[%s49 + $0xc] sm:$0xf]
          %v4730 = vld [vmem:[%s49 + $0x10] sm:$0xf]
          %v4731 = vld [vmem:[%s49 + $0x14] sm:$0xf]
          %v4732 = vld [vmem:[%s49 + $0x18] sm:$0xf]
          %v4733 = vld [vmem:[%s49 + $0x1c] sm:$0xf]
          %v4734 = vld [vmem:[%s49 + $0x20] sm:$0xf]
          %v4735 = vld [vmem:[%s49 + $0x24] sm:$0xf]
          %v4736 = vld [vmem:[%s49 + $0x28] sm:$0xf]
          %v4737 = vld [vmem:[%s49 + $0x2c] sm:$0xf]
          %v4738 = vld [vmem:[%s49 + $0x30] sm:$0xf]
          %v4739 = vld [vmem:[%s49 + $0x34] sm:$0xf]
          %v4740 = vld [vmem:[%s49 + $0x38] sm:$0xf]
          %v4741 = vld [vmem:[%s49 + $0x3c] sm:$0xf]
          %v4742 = vld [vmem:[%s49 + $0x40] sm:$0xf]
          %v4743 = vld [vmem:[%s49 + $0x44] sm:$0xf]
          %v4744 = vld [vmem:[%s49 + $0x48] sm:$0xf]
          %v4745 = vld [vmem:[%s49 + $0x4c] sm:$0xf]
          %v4746 = vld [vmem:[%s49 + $0x50] sm:$0xf]
          %v4747 = vld [vmem:[%s49 + $0x54] sm:$0xf]
          %v4748 = vld [vmem:[%s49 + $0x58] sm:$0xf]
          %v4749 = vld [vmem:[%s49 + $0x5c] sm:$0xf]
          %v4750 = vld [vmem:[%s49 + $0x60] sm:$0xf]
          %v4751 = vld [vmem:[%s49 + $0x64] sm:$0xf]
          %v4752 = vld [vmem:[%s49 + $0x68] sm:$0xf]
          %v4753 = vld [vmem:[%s49 + $0x6c] sm:$0xf]
          %v4754 = vld [vmem:[%s49 + $0x70] sm:$0xf]
          %v4755 = vld [vmem:[%s49 + $0x74] sm:$0xf]
          %v4756 = vld [vmem:[%s49 + $0x78] sm:$0xf]
          %v4757 = vld [vmem:[%s49 + $0x7c] sm:$0xf]
          %v4790 = vunpack.c.l.b16 %v4726
          %v4791 = vunpack.c.l.b16 %v4727
          %v4792 = vunpack.c.l.b16 %v4728
          %v4793 = vunpack.c.l.b16 %v4729
          %v4794 = vunpack.c.l.b16 %v4730
          %v4795 = vunpack.c.l.b16 %v4731
          %v4796 = vunpack.c.l.b16 %v4732
          %v4797 = vunpack.c.l.b16 %v4733
          %v4798 = vunpack.c.l.b16 %v4734
          %v4799 = vunpack.c.l.b16 %v4735
          %v4800 = vunpack.c.l.b16 %v4736
          %v4801 = vunpack.c.l.b16 %v4737
          %v4802 = vunpack.c.l.b16 %v4738
          %v4803 = vunpack.c.l.b16 %v4739
          %v4804 = vunpack.c.l.b16 %v4740
          %v4805 = vunpack.c.l.b16 %v4741
          %v4806 = vunpack.c.l.b16 %v4742
          %v4807 = vunpack.c.l.b16 %v4743
          %v4808 = vunpack.c.l.b16 %v4744
          %v4809 = vunpack.c.l.b16 %v4745
          %v4810 = vunpack.c.l.b16 %v4746
          %v4811 = vunpack.c.l.b16 %v4747
          %v4812 = vunpack.c.l.b16 %v4748
          %v4813 = vunpack.c.l.b16 %v4749
          %v4814 = vunpack.c.l.b16 %v4750
          %v4815 = vunpack.c.l.b16 %v4751
          %v4816 = vunpack.c.l.b16 %v4752
          %v4817 = vunpack.c.l.b16 %v4753
          %v4818 = vunpack.c.l.b16 %v4754
          %v4819 = vunpack.c.l.b16 %v4755
          %v4820 = vunpack.c.l.b16 %v4756
          %v4821 = vunpack.c.l.b16 %v4757
          %v4822 = vpack.c.b16 %v4791, %v4790
          %v4823 = vpack.c.b16 %v4793, %v4792
          %v4824 = vpack.c.b16 %v4795, %v4794
          %v4825 = vpack.c.b16 %v4797, %v4796
          %v4826 = vpack.c.b16 %v4799, %v4798
          %v4827 = vpack.c.b16 %v4801, %v4800
          %v4828 = vpack.c.b16 %v4803, %v4802
          %v4829 = vpack.c.b16 %v4805, %v4804
          %v4830 = vpack.c.b16 %v4807, %v4806
          %v4831 = vpack.c.b16 %v4809, %v4808
          %v4832 = vpack.c.b16 %v4811, %v4810
          %v4833 = vpack.c.b16 %v4813, %v4812
          %v4834 = vpack.c.b16 %v4815, %v4814
          %v4835 = vpack.c.b16 %v4817, %v4816
          %v4836 = vpack.c.b16 %v4819, %v4818
          %v4837 = vpack.c.b16 %v4821, %v4820
          %4854 = vmatpush.bf16.msra.mxu0 %v4829
          %4855 = vmatpush.bf16.msra.mxu0 %v4828
          %4856 = vmatpush.bf16.msra.mxu0 %v4827
          %4857 = vmatpush.bf16.msra.mxu0 %v4826
          %4858 = vmatpush.bf16.msra.mxu0 %v4825
          %4859 = vmatpush.bf16.msra.mxu0 %v4824
          %4860 = vmatpush.bf16.msra.mxu0 %v4823
          %4861 = vmatpush.bf16.msra.mxu0 %v4822
          %4862 = vmatmul.bf16.gmra.mxu0 %v4710
          %v4863 = vpop.f32.mrf.mxu0
          %v4864 = vadd.f32 0.0, %v4863
          %v4865 = vpop.f32.mrf.mxu0
          %v4866 = vadd.f32 0.0, %v4865
          %4867 = vmatmul.bf16.gmra.mxu0 %v4712
          %v4868 = vpop.f32.mrf.mxu0
          %v4869 = vadd.f32 0.0, %v4868
          %v4870 = vpop.f32.mrf.mxu0
          %v4871 = vadd.f32 0.0, %v4870
          %4872 = vmatmul.bf16.gmra.mxu0 %v4714
          %v4873 = vpop.f32.mrf.mxu0
          %v4874 = vadd.f32 0.0, %v4873
          %v4875 = vpop.f32.mrf.mxu0
          %v4876 = vadd.f32 0.0, %v4875
          %4877 = vmatmul.bf16.gmra.mxu0 %v4716
          %v4878 = vpop.f32.mrf.mxu0
          %v4879 = vadd.f32 0.0, %v4878
          %v4880 = vpop.f32.mrf.mxu0
          %v4881 = vadd.f32 0.0, %v4880
          %4882 = vmatmul.bf16.gmra.mxu0 %v4718
          %v4883 = vpop.f32.mrf.mxu0
          %v4884 = vadd.f32 0.0, %v4883
          %v4885 = vpop.f32.mrf.mxu0
          %v4886 = vadd.f32 0.0, %v4885
          %4887 = vmatmul.bf16.gmra.mxu0 %v4720
          %v4888 = vpop.f32.mrf.mxu0
          %v4889 = vadd.f32 0.0, %v4888
          %v4890 = vpop.f32.mrf.mxu0
          %v4891 = vadd.f32 0.0, %v4890
          %4892 = vmatmul.bf16.gmra.mxu0 %v4722
          %v4893 = vpop.f32.mrf.mxu0
          %v4894 = vadd.f32 0.0, %v4893
          %v4895 = vpop.f32.mrf.mxu0
          %v4896 = vadd.f32 0.0, %v4895
          %4897 = vmatmul.bf16.gmra.mxu0 %v4724
          %v4898 = vpop.f32.mrf.mxu0
          %v4899 = vadd.f32 0.0, %v4898
          %v4900 = vpop.f32.mrf.mxu0
          %v4901 = vadd.f32 0.0, %v4900
          %4902 = vdwg.mxu0
          %4903 = vmatpush.bf16.msra.mxu0 %v4837
          %4904 = vmatpush.bf16.msra.mxu0 %v4836
          %4905 = vmatpush.bf16.msra.mxu0 %v4835
          %4906 = vmatpush.bf16.msra.mxu0 %v4834
          %4907 = vmatpush.bf16.msra.mxu0 %v4833
          %4908 = vmatpush.bf16.msra.mxu0 %v4832
          %4909 = vmatpush.bf16.msra.mxu0 %v4831
          %4910 = vmatpush.bf16.msra.mxu0 %v4830
          %4911 = vmatmul.bf16.gmra.mxu0 %v4711
          %v4912 = vpop.f32.mrf.mxu0
          %v4913 = vadd.f32 %v4864, %v4912
          %v4914 = vpop.f32.mrf.mxu0
          %v4915 = vadd.f32 %v4866, %v4914
          %4916 = vmatmul.bf16.gmra.mxu0 %v4713
          %v4917 = vpop.f32.mrf.mxu0
          %v4918 = vadd.f32 %v4869, %v4917
          %v4919 = vpop.f32.mrf.mxu0
          %v4920 = vadd.f32 %v4871, %v4919
          %4921 = vmatmul.bf16.gmra.mxu0 %v4715
          %v4922 = vpop.f32.mrf.mxu0
          %v4923 = vadd.f32 %v4874, %v4922
          %v4924 = vpop.f32.mrf.mxu0
          %v4925 = vadd.f32 %v4876, %v4924
          %4926 = vmatmul.bf16.gmra.mxu0 %v4717
          %v4927 = vpop.f32.mrf.mxu0
          %v4928 = vadd.f32 %v4879, %v4927
          %v4929 = vpop.f32.mrf.mxu0
          %v4930 = vadd.f32 %v4881, %v4929
          %4931 = vmatmul.bf16.gmra.mxu0 %v4719
          %v4932 = vpop.f32.mrf.mxu0
          %v4933 = vadd.f32 %v4884, %v4932
          %v4934 = vpop.f32.mrf.mxu0
          %v4935 = vadd.f32 %v4886, %v4934
          %4936 = vmatmul.bf16.gmra.mxu0 %v4721
          %v4937 = vpop.f32.mrf.mxu0
          %v4938 = vadd.f32 %v4889, %v4937
          %v4939 = vpop.f32.mrf.mxu0
          %v4940 = vadd.f32 %v4891, %v4939
          %4941 = vmatmul.bf16.gmra.mxu0 %v4723
          %v4942 = vpop.f32.mrf.mxu0
          %v4943 = vadd.f32 %v4894, %v4942
          %v4944 = vpop.f32.mrf.mxu0
          %v4945 = vadd.f32 %v4896, %v4944
          %4946 = vmatmul.bf16.gmra.mxu0 %v4725
          %v4947 = vpop.f32.mrf.mxu0
          %v4948 = vadd.f32 %v4899, %v4947
          %v4949 = vpop.f32.mrf.mxu0
          %v4950 = vadd.f32 %v4901, %v4949
          %4951 = vdwg.mxu0
          %v4952 = vadd.f32 %v4454, %v4913
          %v4953 = vadd.f32 %v4455, %v4915
          %v4954 = vadd.f32 %v4456, %v4918
          %v4955 = vadd.f32 %v4457, %v4920
          %v4956 = vadd.f32 %v4458, %v4923
          %v4957 = vadd.f32 %v4459, %v4925
          %v4958 = vadd.f32 %v4460, %v4928
          %v4959 = vadd.f32 %v4461, %v4930
          %v4960 = vadd.f32 %v4462, %v4933
          %v4961 = vadd.f32 %v4463, %v4935
          %v4962 = vadd.f32 %v4464, %v4938
          %v4963 = vadd.f32 %v4465, %v4940
          %v4964 = vadd.f32 %v4466, %v4943
          %v4965 = vadd.f32 %v4467, %v4945
          %v4966 = vadd.f32 %v4468, %v4948
          %v4967 = vadd.f32 %v4469, %v4950
          %v4968 = vld [vmem:[%s51] sm:$0x1]
          %v4970 = vperm.slane %v4968, 0
          %v4972 = vadd.f32 %v4952, %v4970
          %v4973 = vadd.f32 %v4953, %v4970
          %v4974 = vadd.f32 %v4954, %v4970
          %v4975 = vadd.f32 %v4955, %v4970
          %v4976 = vadd.f32 %v4956, %v4970
          %v4977 = vadd.f32 %v4957, %v4970
          %v4978 = vadd.f32 %v4958, %v4970
          %v4979 = vadd.f32 %v4959, %v4970
          %v4980 = vadd.f32 %v4960, %v4970
          %v4981 = vadd.f32 %v4961, %v4970
          %v4982 = vadd.f32 %v4962, %v4970
          %v4983 = vadd.f32 %v4963, %v4970
          %v4984 = vadd.f32 %v4964, %v4970
          %v4985 = vadd.f32 %v4965, %v4970
          %v4986 = vadd.f32 %v4966, %v4970
          %v4987 = vadd.f32 %v4967, %v4970
          %v4988 = vpack.c.bf16 %v4972, %v4972
          %v4989 = vpack.c.bf16 %v4973, %v4973
          %v4990 = vpack.c.bf16 %v4974, %v4974
          %v4991 = vpack.c.bf16 %v4975, %v4975
          %v4992 = vpack.c.bf16 %v4976, %v4976
          %v4993 = vpack.c.bf16 %v4977, %v4977
          %v4994 = vpack.c.bf16 %v4978, %v4978
          %v4995 = vpack.c.bf16 %v4979, %v4979
          %v4996 = vpack.c.bf16 %v4980, %v4980
          %v4997 = vpack.c.bf16 %v4981, %v4981
          %v4998 = vpack.c.bf16 %v4982, %v4982
          %v4999 = vpack.c.bf16 %v4983, %v4983
          %v5000 = vpack.c.bf16 %v4984, %v4984
          %v5001 = vpack.c.bf16 %v4985, %v4985
          %v5002 = vpack.c.bf16 %v4986, %v4986
          %v5003 = vpack.c.bf16 %v4987, %v4987
          %5004 = vst [vmem:[#allocation2] sm:$0xf] %v4988
          %5005 = vst [vmem:[#allocation2 + $0x4] sm:$0xf] %v4989
          %5006 = vst [vmem:[#allocation2 + $0x8] sm:$0xf] %v4990
          %5007 = vst [vmem:[#allocation2 + $0xc] sm:$0xf] %v4991
          %5008 = vst [vmem:[#allocation2 + $0x10] sm:$0xf] %v4992
          %5009 = vst [vmem:[#allocation2 + $0x14] sm:$0xf] %v4993
          %5010 = vst [vmem:[#allocation2 + $0x18] sm:$0xf] %v4994
          %5011 = vst [vmem:[#allocation2 + $0x1c] sm:$0xf] %v4995
          %5012 = vst [vmem:[#allocation2 + $0x20] sm:$0xf] %v4996
          %5013 = vst [vmem:[#allocation2 + $0x24] sm:$0xf] %v4997
          %5014 = vst [vmem:[#allocation2 + $0x28] sm:$0xf] %v4998
          %5015 = vst [vmem:[#allocation2 + $0x2c] sm:$0xf] %v4999
          %5016 = vst [vmem:[#allocation2 + $0x30] sm:$0xf] %v5000
          %5017 = vst [vmem:[#allocation2 + $0x34] sm:$0xf] %v5001
          %5018 = vst [vmem:[#allocation2 + $0x38] sm:$0xf] %v5002
          %5019 = vst [vmem:[#allocation2 + $0x3c] sm:$0xf] %v5003
          %vm5020 = vcmask 7168
          %5021 = vst.msk [vmem:[#allocation3] sm:$0xff] %vm5020, -inf
          %5022 = vst.msk [vmem:[#allocation3 + $0x8] sm:$0xff] %vm5020, -inf
          %5023 = vst.msk [vmem:[#allocation3 + $0x10] sm:$0xff] %vm5020, -inf
          %5024 = vst.msk [vmem:[#allocation3 + $0x18] sm:$0xff] %vm5020, -inf
          %5025 = vst.msk [vmem:[#allocation3 + $0x20] sm:$0xff] %vm5020, -inf
          %5026 = vst.msk [vmem:[#allocation3 + $0x28] sm:$0xff] %vm5020, -inf
          %5027 = vst.msk [vmem:[#allocation3 + $0x30] sm:$0xff] %vm5020, -inf
          %5028 = vst.msk [vmem:[#allocation3 + $0x38] sm:$0xff] %vm5020, -inf
          %5029 = vst.msk [vmem:[#allocation3 + $0x40] sm:$0xff] %vm5020, -inf
          %5030 = vst.msk [vmem:[#allocation3 + $0x48] sm:$0xff] %vm5020, -inf
          %5031 = vst.msk [vmem:[#allocation3 + $0x50] sm:$0xff] %vm5020, -inf
          %5032 = vst.msk [vmem:[#allocation3 + $0x58] sm:$0xff] %vm5020, -inf
          %5033 = vst.msk [vmem:[#allocation3 + $0x60] sm:$0xff] %vm5020, -inf
          %5034 = vst.msk [vmem:[#allocation3 + $0x68] sm:$0xff] %vm5020, -inf
          %5035 = vst.msk [vmem:[#allocation3 + $0x70] sm:$0xff] %vm5020, -inf
          %5036 = vst.msk [vmem:[#allocation3 + $0x78] sm:$0xff] %vm5020, -inf
          %5037 = vst.msk [vmem:[#allocation4] sm:$0xff] %vm5020, 0.0
          %5038 = vst.msk [vmem:[#allocation4 + $0x8] sm:$0xff] %vm5020, 0.0
          %5039 = vst.msk [vmem:[#allocation4 + $0x10] sm:$0xff] %vm5020, 0.0
          %5040 = vst.msk [vmem:[#allocation4 + $0x18] sm:$0xff] %vm5020, 0.0
          %5041 = vst.msk [vmem:[#allocation4 + $0x20] sm:$0xff] %vm5020, 0.0
          %5042 = vst.msk [vmem:[#allocation4 + $0x28] sm:$0xff] %vm5020, 0.0
          %5043 = vst.msk [vmem:[#allocation4 + $0x30] sm:$0xff] %vm5020, 0.0
          %5044 = vst.msk [vmem:[#allocation4 + $0x38] sm:$0xff] %vm5020, 0.0
          %5045 = vst.msk [vmem:[#allocation4 + $0x40] sm:$0xff] %vm5020, 0.0
          %5046 = vst.msk [vmem:[#allocation4 + $0x48] sm:$0xff] %vm5020, 0.0
          %5047 = vst.msk [vmem:[#allocation4 + $0x50] sm:$0xff] %vm5020, 0.0
          %5048 = vst.msk [vmem:[#allocation4 + $0x58] sm:$0xff] %vm5020, 0.0
          %5049 = vst.msk [vmem:[#allocation4 + $0x60] sm:$0xff] %vm5020, 0.0
          %5050 = vst.msk [vmem:[#allocation4 + $0x68] sm:$0xff] %vm5020, 0.0
          %5051 = vst.msk [vmem:[#allocation4 + $0x70] sm:$0xff] %vm5020, 0.0
          %5052 = vst.msk [vmem:[#allocation4 + $0x78] sm:$0xff] %vm5020, 0.0
          %5053 = vst.msk [vmem:[#allocation5] sm:$0xff] %vm5020, 0.0
          %5054 = vst.msk [vmem:[#allocation5 + $0x8] sm:$0xff] %vm5020, 0.0
          %5055 = vst.msk [vmem:[#allocation5 + $0x10] sm:$0xff] %vm5020, 0.0
          %5056 = vst.msk [vmem:[#allocation5 + $0x18] sm:$0xff] %vm5020, 0.0
          %5057 = vst.msk [vmem:[#allocation5 + $0x20] sm:$0xff] %vm5020, 0.0
          %5058 = vst.msk [vmem:[#allocation5 + $0x28] sm:$0xff] %vm5020, 0.0
          %5059 = vst.msk [vmem:[#allocation5 + $0x30] sm:$0xff] %vm5020, 0.0
          %5060 = vst.msk [vmem:[#allocation5 + $0x38] sm:$0xff] %vm5020, 0.0
          %5061 = vst.msk [vmem:[#allocation5 + $0x40] sm:$0xff] %vm5020, 0.0
          %5062 = vst.msk [vmem:[#allocation5 + $0x48] sm:$0xff] %vm5020, 0.0
          %5063 = vst.msk [vmem:[#allocation5 + $0x50] sm:$0xff] %vm5020, 0.0
          %5064 = vst.msk [vmem:[#allocation5 + $0x58] sm:$0xff] %vm5020, 0.0
          %5065 = vst.msk [vmem:[#allocation5 + $0x60] sm:$0xff] %vm5020, 0.0
          %5066 = vst.msk [vmem:[#allocation5 + $0x68] sm:$0xff] %vm5020, 0.0
          %5067 = vst.msk [vmem:[#allocation5 + $0x70] sm:$0xff] %vm5020, 0.0
          %5068 = vst.msk [vmem:[#allocation5 + $0x78] sm:$0xff] %vm5020, 0.0
        $region177: #{joint_orchestrator_forward.5} parent=168 // pred_fallthru
          _
        %v5069 = vld [vmem:[%s1141] sm:$0xff]
        %v5070 = vld [vmem:[%s1141 + $0x8] sm:$0xff]
        %v5071 = vld [vmem:[%s1141 + $0x10] sm:$0xff]
        %v5072 = vld [vmem:[%s1141 + $0x18] sm:$0xff]
        %v5073 = vld [vmem:[%s1141 + $0x20] sm:$0xff]
        %v5074 = vld [vmem:[%s1141 + $0x28] sm:$0xff]
        %v5075 = vld [vmem:[%s1141 + $0x30] sm:$0xff]
        %v5076 = vld [vmem:[%s1141 + $0x38] sm:$0xff]
        %v5077 = vld [vmem:[%s1141 + $0x40] sm:$0xff]
        %v5078 = vld [vmem:[%s1141 + $0x48] sm:$0xff]
        %v5079 = vld [vmem:[%s1141 + $0x50] sm:$0xff]
        %v5080 = vld [vmem:[%s1141 + $0x58] sm:$0xff]
        %v5081 = vld [vmem:[%s1141 + $0x60] sm:$0xff]
        %v5082 = vld [vmem:[%s1141 + $0x68] sm:$0xff]
        %v5083 = vld [vmem:[%s1141 + $0x70] sm:$0xff]
        %v5084 = vld [vmem:[%s1141 + $0x78] sm:$0xff]
        %v5085 = vld [vmem:[#allocation2] sm:$0xf]
        %v5086 = vld [vmem:[#allocation2 + $0x4] sm:$0xf]
        %v5087 = vld [vmem:[#allocation2 + $0x8] sm:$0xf]
        %v5088 = vld [vmem:[#allocation2 + $0xc] sm:$0xf]
        %v5089 = vld [vmem:[#allocation2 + $0x10] sm:$0xf]
        %v5090 = vld [vmem:[#allocation2 + $0x14] sm:$0xf]
        %v5091 = vld [vmem:[#allocation2 + $0x18] sm:$0xf]
        %v5092 = vld [vmem:[#allocation2 + $0x1c] sm:$0xf]
        %v5093 = vld [vmem:[#allocation2 + $0x20] sm:$0xf]
        %v5094 = vld [vmem:[#allocation2 + $0x24] sm:$0xf]
        %v5095 = vld [vmem:[#allocation2 + $0x28] sm:$0xf]
        %v5096 = vld [vmem:[#allocation2 + $0x2c] sm:$0xf]
        %v5097 = vld [vmem:[#allocation2 + $0x30] sm:$0xf]
        %v5098 = vld [vmem:[#allocation2 + $0x34] sm:$0xf]
        %v5099 = vld [vmem:[#allocation2 + $0x38] sm:$0xf]
        %v5100 = vld [vmem:[#allocation2 + $0x3c] sm:$0xf]
        %v5101 = vld [vmem:[%s1022] sm:$0xf]
        %v5102 = vld [vmem:[%s1022 + $0x4] sm:$0xf]
        %v5103 = vld [vmem:[%s1022 + $0x8] sm:$0xf]
        %v5104 = vld [vmem:[%s1022 + $0xc] sm:$0xf]
        %v5105 = vld [vmem:[%s1022 + $0x10] sm:$0xf]
        %v5106 = vld [vmem:[%s1022 + $0x14] sm:$0xf]
        %v5107 = vld [vmem:[%s1022 + $0x18] sm:$0xf]
        %v5108 = vld [vmem:[%s1022 + $0x1c] sm:$0xf]
        %v5109 = vld [vmem:[%s1022 + $0x20] sm:$0xf]
        %v5110 = vld [vmem:[%s1022 + $0x24] sm:$0xf]
        %v5111 = vld [vmem:[%s1022 + $0x28] sm:$0xf]
        %v5112 = vld [vmem:[%s1022 + $0x2c] sm:$0xf]
        %v5113 = vld [vmem:[%s1022 + $0x30] sm:$0xf]
        %v5114 = vld [vmem:[%s1022 + $0x34] sm:$0xf]
        %v5115 = vld [vmem:[%s1022 + $0x38] sm:$0xf]
        %v5116 = vld [vmem:[%s1022 + $0x3c] sm:$0xf]
        %v5117 = vld [vmem:[%s1144] sm:$0x1]
        %v5119 = vperm.slane %v5117, 0
        %v5137 = vunpack.c.l.b16 %v5085
        %v5138 = vunpack.c.l.b16 %v5086
        %v5139 = vunpack.c.l.b16 %v5087
        %v5140 = vunpack.c.l.b16 %v5088
        %v5141 = vunpack.c.l.b16 %v5089
        %v5142 = vunpack.c.l.b16 %v5090
        %v5143 = vunpack.c.l.b16 %v5091
        %v5144 = vunpack.c.l.b16 %v5092
        %v5145 = vunpack.c.l.b16 %v5093
        %v5146 = vunpack.c.l.b16 %v5094
        %v5147 = vunpack.c.l.b16 %v5095
        %v5148 = vunpack.c.l.b16 %v5096
        %v5149 = vunpack.c.l.b16 %v5097
        %v5150 = vunpack.c.l.b16 %v5098
        %v5151 = vunpack.c.l.b16 %v5099
        %v5152 = vunpack.c.l.b16 %v5100
        %v5153 = vpack.c.b16 %v5138, %v5137
        %v5154 = vpack.c.b16 %v5140, %v5139
        %v5155 = vpack.c.b16 %v5142, %v5141
        %v5156 = vpack.c.b16 %v5144, %v5143
        %v5157 = vpack.c.b16 %v5146, %v5145
        %v5158 = vpack.c.b16 %v5148, %v5147
        %v5159 = vpack.c.b16 %v5150, %v5149
        %v5160 = vpack.c.b16 %v5152, %v5151
        %v5185 = vunpack.c.l.b16 %v5101
        %v5186 = vunpack.c.l.b16 %v5102
        %v5187 = vunpack.c.l.b16 %v5103
        %v5188 = vunpack.c.l.b16 %v5104
        %v5189 = vunpack.c.l.b16 %v5105
        %v5190 = vunpack.c.l.b16 %v5106
        %v5191 = vunpack.c.l.b16 %v5107
        %v5192 = vunpack.c.l.b16 %v5108
        %v5193 = vunpack.c.l.b16 %v5109
        %v5194 = vunpack.c.l.b16 %v5110
        %v5195 = vunpack.c.l.b16 %v5111
        %v5196 = vunpack.c.l.b16 %v5112
        %v5197 = vunpack.c.l.b16 %v5113
        %v5198 = vunpack.c.l.b16 %v5114
        %v5199 = vunpack.c.l.b16 %v5115
        %v5200 = vunpack.c.l.b16 %v5116
        %v5201 = vpack.c.b16 %v5186, %v5185
        %v5202 = vpack.c.b16 %v5188, %v5187
        %v5203 = vpack.c.b16 %v5190, %v5189
        %v5204 = vpack.c.b16 %v5192, %v5191
        %v5205 = vpack.c.b16 %v5194, %v5193
        %v5206 = vpack.c.b16 %v5196, %v5195
        %v5207 = vpack.c.b16 %v5198, %v5197
        %v5208 = vpack.c.b16 %v5200, %v5199
        %5217 = vmatpush.bf16.msra.mxu0 %v5208
        %5218 = vmatpush.bf16.msra.mxu0 %v5207
        %5219 = vmatpush.bf16.msra.mxu0 %v5206
        %5220 = vmatpush.bf16.msra.mxu0 %v5205
        %5221 = vmatpush.bf16.msra.mxu0 %v5204
        %5222 = vmatpush.bf16.msra.mxu0 %v5203
        %5223 = vmatpush.bf16.msra.mxu0 %v5202
        %5224 = vmatpush.bf16.msra.mxu0 %v5201
        %5225 = vmatmul.bf16.gmra.mxu0 %v5153
        %v5226 = vpop.f32.mrf.mxu0
        %v5227 = vadd.f32 %v5119, %v5226
        %v5228 = vpop.f32.mrf.mxu0
        %v5229 = vadd.f32 %v5119, %v5228
        %5230 = vmatmul.bf16.gmra.mxu0 %v5154
        %v5231 = vpop.f32.mrf.mxu0
        %v5232 = vadd.f32 %v5119, %v5231
        %v5233 = vpop.f32.mrf.mxu0
        %v5234 = vadd.f32 %v5119, %v5233
        %5235 = vmatmul.bf16.gmra.mxu0 %v5155
        %v5236 = vpop.f32.mrf.mxu0
        %v5237 = vadd.f32 %v5119, %v5236
        %v5238 = vpop.f32.mrf.mxu0
        %v5239 = vadd.f32 %v5119, %v5238
        %5240 = vmatmul.bf16.gmra.mxu0 %v5156
        %v5241 = vpop.f32.mrf.mxu0
        %v5242 = vadd.f32 %v5119, %v5241
        %v5243 = vpop.f32.mrf.mxu0
        %v5244 = vadd.f32 %v5119, %v5243
        %5245 = vmatmul.bf16.gmra.mxu0 %v5157
        %v5246 = vpop.f32.mrf.mxu0
        %v5247 = vadd.f32 %v5119, %v5246
        %v5248 = vpop.f32.mrf.mxu0
        %v5249 = vadd.f32 %v5119, %v5248
        %5250 = vmatmul.bf16.gmra.mxu0 %v5158
        %v5251 = vpop.f32.mrf.mxu0
        %v5252 = vadd.f32 %v5119, %v5251
        %v5253 = vpop.f32.mrf.mxu0
        %v5254 = vadd.f32 %v5119, %v5253
        %5255 = vmatmul.bf16.gmra.mxu0 %v5159
        %v5256 = vpop.f32.mrf.mxu0
        %v5257 = vadd.f32 %v5119, %v5256
        %v5258 = vpop.f32.mrf.mxu0
        %v5259 = vadd.f32 %v5119, %v5258
        %5260 = vmatmul.bf16.gmra.mxu0 %v5160
        %v5261 = vpop.f32.mrf.mxu0
        %v5262 = vadd.f32 %v5119, %v5261
        %v5263 = vpop.f32.mrf.mxu0
        %v5264 = vadd.f32 %v5119, %v5263
        %5265 = vdwg.mxu0
        %v5266 = vpack.c.bf16 %v5227, %v5227
        %v5267 = vpack.c.bf16 %v5229, %v5229
        %v5268 = vpack.c.bf16 %v5232, %v5232
        %v5269 = vpack.c.bf16 %v5234, %v5234
        %v5270 = vpack.c.bf16 %v5237, %v5237
        %v5271 = vpack.c.bf16 %v5239, %v5239
        %v5272 = vpack.c.bf16 %v5242, %v5242
        %v5273 = vpack.c.bf16 %v5244, %v5244
        %v5274 = vpack.c.bf16 %v5247, %v5247
        %v5275 = vpack.c.bf16 %v5249, %v5249
        %v5276 = vpack.c.bf16 %v5252, %v5252
        %v5277 = vpack.c.bf16 %v5254, %v5254
        %v5278 = vpack.c.bf16 %v5257, %v5257
        %v5279 = vpack.c.bf16 %v5259, %v5259
        %v5280 = vpack.c.bf16 %v5262, %v5262
        %v5281 = vpack.c.bf16 %v5264, %v5264
        %5282 = vst [vmem:[%s1113] sm:$0xf] %v5266
        %5283 = vst [vmem:[%s1113 + $0x4] sm:$0xf] %v5267
        %5284 = vst [vmem:[%s1113 + $0x8] sm:$0xf] %v5268
        %5285 = vst [vmem:[%s1113 + $0xc] sm:$0xf] %v5269
        %5286 = vst [vmem:[%s1113 + $0x10] sm:$0xf] %v5270
        %5287 = vst [vmem:[%s1113 + $0x14] sm:$0xf] %v5271
        %5288 = vst [vmem:[%s1113 + $0x18] sm:$0xf] %v5272
        %5289 = vst [vmem:[%s1113 + $0x1c] sm:$0xf] %v5273
        %5290 = vst [vmem:[%s1113 + $0x20] sm:$0xf] %v5274
        %5291 = vst [vmem:[%s1113 + $0x24] sm:$0xf] %v5275
        %5292 = vst [vmem:[%s1113 + $0x28] sm:$0xf] %v5276
        %5293 = vst [vmem:[%s1113 + $0x2c] sm:$0xf] %v5277
        %5294 = vst [vmem:[%s1113 + $0x30] sm:$0xf] %v5278
        %5295 = vst [vmem:[%s1113 + $0x34] sm:$0xf] %v5279
        %5296 = vst [vmem:[%s1113 + $0x38] sm:$0xf] %v5280
        %5297 = vst [vmem:[%s1113 + $0x3c] sm:$0xf] %v5281
        %v5298 = vld [vmem:[#allocation3] sm:$0xff]
        %v5299 = vld [vmem:[#allocation3 + $0x8] sm:$0xff]
        %v5300 = vld [vmem:[#allocation3 + $0x10] sm:$0xff]
        %v5301 = vld [vmem:[#allocation3 + $0x18] sm:$0xff]
        %v5302 = vld [vmem:[#allocation3 + $0x20] sm:$0xff]
        %v5303 = vld [vmem:[#allocation3 + $0x28] sm:$0xff]
        %v5304 = vld [vmem:[#allocation3 + $0x30] sm:$0xff]
        %v5305 = vld [vmem:[#allocation3 + $0x38] sm:$0xff]
        %v5306 = vld [vmem:[#allocation3 + $0x40] sm:$0xff]
        %v5307 = vld [vmem:[#allocation3 + $0x48] sm:$0xff]
        %v5308 = vld [vmem:[#allocation3 + $0x50] sm:$0xff]
        %v5309 = vld [vmem:[#allocation3 + $0x58] sm:$0xff]
        %v5310 = vld [vmem:[#allocation3 + $0x60] sm:$0xff]
        %v5311 = vld [vmem:[#allocation3 + $0x68] sm:$0xff]
        %v5312 = vld [vmem:[#allocation3 + $0x70] sm:$0xff]
        %v5313 = vld [vmem:[#allocation3 + $0x78] sm:$0xff]
        %5314 = vmax.xlane.f32.xlu0 %v5227
        %v5315 = vpop.xlane.xlu0 %5314
        %5316 = vmax.xlane.f32.xlu0 %v5229
        %v5317 = vpop.xlane.xlu0 %5316
        %5318 = vmax.xlane.f32.xlu0 %v5232
        %v5319 = vpop.xlane.xlu0 %5318
        %5320 = vmax.xlane.f32.xlu0 %v5234
        %v5321 = vpop.xlane.xlu0 %5320
        %5322 = vmax.xlane.f32.xlu0 %v5237
        %v5323 = vpop.xlane.xlu0 %5322
        %5324 = vmax.xlane.f32.xlu0 %v5239
        %v5325 = vpop.xlane.xlu0 %5324
        %5326 = vmax.xlane.f32.xlu0 %v5242
        %v5327 = vpop.xlane.xlu0 %5326
        %5328 = vmax.xlane.f32.xlu0 %v5244
        %v5329 = vpop.xlane.xlu0 %5328
        %5330 = vmax.xlane.f32.xlu0 %v5247
        %v5331 = vpop.xlane.xlu0 %5330
        %5332 = vmax.xlane.f32.xlu0 %v5249
        %v5333 = vpop.xlane.xlu0 %5332
        %5334 = vmax.xlane.f32.xlu0 %v5252
        %v5335 = vpop.xlane.xlu0 %5334
        %5336 = vmax.xlane.f32.xlu0 %v5254
        %v5337 = vpop.xlane.xlu0 %5336
        %5338 = vmax.xlane.f32.xlu0 %v5257
        %v5339 = vpop.xlane.xlu0 %5338
        %5340 = vmax.xlane.f32.xlu0 %v5259
        %v5341 = vpop.xlane.xlu0 %5340
        %5342 = vmax.xlane.f32.xlu0 %v5262
        %v5343 = vpop.xlane.xlu0 %5342
        %5344 = vmax.xlane.f32.xlu0 %v5264
        %v5345 = vpop.xlane.xlu0 %5344
        %v5346 = vmax.f32 %v5298, %v5315
        %v5347 = vmax.f32 %v5299, %v5317
        %v5348 = vmax.f32 %v5300, %v5319
        %v5349 = vmax.f32 %v5301, %v5321
        %v5350 = vmax.f32 %v5302, %v5323
        %v5351 = vmax.f32 %v5303, %v5325
        %v5352 = vmax.f32 %v5304, %v5327
        %v5353 = vmax.f32 %v5305, %v5329
        %v5354 = vmax.f32 %v5306, %v5331
        %v5355 = vmax.f32 %v5307, %v5333
        %v5356 = vmax.f32 %v5308, %v5335
        %v5357 = vmax.f32 %v5309, %v5337
        %v5358 = vmax.f32 %v5310, %v5339
        %v5359 = vmax.f32 %v5311, %v5341
        %v5360 = vmax.f32 %v5312, %v5343
        %v5361 = vmax.f32 %v5313, %v5345
        %v5362 = vld [vmem:[#allocation4] sm:$0xff]
        %v5363 = vld [vmem:[#allocation4 + $0x8] sm:$0xff]
        %v5364 = vld [vmem:[#allocation4 + $0x10] sm:$0xff]
        %v5365 = vld [vmem:[#allocation4 + $0x18] sm:$0xff]
        %v5366 = vld [vmem:[#allocation4 + $0x20] sm:$0xff]
        %v5367 = vld [vmem:[#allocation4 + $0x28] sm:$0xff]
        %v5368 = vld [vmem:[#allocation4 + $0x30] sm:$0xff]
        %v5369 = vld [vmem:[#allocation4 + $0x38] sm:$0xff]
        %v5370 = vld [vmem:[#allocation4 + $0x40] sm:$0xff]
        %v5371 = vld [vmem:[#allocation4 + $0x48] sm:$0xff]
        %v5372 = vld [vmem:[#allocation4 + $0x50] sm:$0xff]
        %v5373 = vld [vmem:[#allocation4 + $0x58] sm:$0xff]
        %v5374 = vld [vmem:[#allocation4 + $0x60] sm:$0xff]
        %v5375 = vld [vmem:[#allocation4 + $0x68] sm:$0xff]
        %v5376 = vld [vmem:[#allocation4 + $0x70] sm:$0xff]
        %v5377 = vld [vmem:[#allocation4 + $0x78] sm:$0xff]
        %v5378 = vsub.f32 %v5298, %v5346
        %v5379 = vsub.f32 %v5299, %v5347
        %v5380 = vsub.f32 %v5300, %v5348
        %v5381 = vsub.f32 %v5301, %v5349
        %v5382 = vsub.f32 %v5302, %v5350
        %v5383 = vsub.f32 %v5303, %v5351
        %v5384 = vsub.f32 %v5304, %v5352
        %v5385 = vsub.f32 %v5305, %v5353
        %v5386 = vsub.f32 %v5306, %v5354
        %v5387 = vsub.f32 %v5307, %v5355
        %v5388 = vsub.f32 %v5308, %v5356
        %v5389 = vsub.f32 %v5309, %v5357
        %v5390 = vsub.f32 %v5310, %v5358
        %v5391 = vsub.f32 %v5311, %v5359
        %v5392 = vsub.f32 %v5312, %v5360
        %v5393 = vsub.f32 %v5313, %v5361
        %v5394 = vmul.f32 %v5378, 1.442695
        %v5395 = vpow.pop %v5394
        %v5396 = vmul.f32 %v5379, 1.442695
        %v5397 = vpow.pop %v5396
        %v5398 = vmul.f32 %v5380, 1.442695
        %v5399 = vpow.pop %v5398
        %v5400 = vmul.f32 %v5381, 1.442695
        %v5401 = vpow.pop %v5400
        %v5402 = vmul.f32 %v5382, 1.442695
        %v5403 = vpow.pop %v5402
        %v5404 = vmul.f32 %v5383, 1.442695
        %v5405 = vpow.pop %v5404
        %v5406 = vmul.f32 %v5384, 1.442695
        %v5407 = vpow.pop %v5406
        %v5408 = vmul.f32 %v5385, 1.442695
        %v5409 = vpow.pop %v5408
        %v5410 = vmul.f32 %v5386, 1.442695
        %v5411 = vpow.pop %v5410
        %v5412 = vmul.f32 %v5387, 1.442695
        %v5413 = vpow.pop %v5412
        %v5414 = vmul.f32 %v5388, 1.442695
        %v5415 = vpow.pop %v5414
        %v5416 = vmul.f32 %v5389, 1.442695
        %v5417 = vpow.pop %v5416
        %v5418 = vmul.f32 %v5390, 1.442695
        %v5419 = vpow.pop %v5418
        %v5420 = vmul.f32 %v5391, 1.442695
        %v5421 = vpow.pop %v5420
        %v5422 = vmul.f32 %v5392, 1.442695
        %v5423 = vpow.pop %v5422
        %v5424 = vmul.f32 %v5393, 1.442695
        %v5425 = vpow.pop %v5424
        %v5426 = vmul.f32 %v5362, %v5395
        %v5427 = vmul.f32 %v5363, %v5397
        %v5428 = vmul.f32 %v5364, %v5399
        %v5429 = vmul.f32 %v5365, %v5401
        %v5430 = vmul.f32 %v5366, %v5403
        %v5431 = vmul.f32 %v5367, %v5405
        %v5432 = vmul.f32 %v5368, %v5407
        %v5433 = vmul.f32 %v5369, %v5409
        %v5434 = vmul.f32 %v5370, %v5411
        %v5435 = vmul.f32 %v5371, %v5413
        %v5436 = vmul.f32 %v5372, %v5415
        %v5437 = vmul.f32 %v5373, %v5417
        %v5438 = vmul.f32 %v5374, %v5419
        %v5439 = vmul.f32 %v5375, %v5421
        %v5440 = vmul.f32 %v5376, %v5423
        %v5441 = vmul.f32 %v5377, %v5425
        %5443 = vset.pattern.permute.xlu0 0
        %5444 = vperm.xlu0 %5443, %v5346
        %v5445 = vpop.permute.xlu0 %5444
        %5448 = vset.pattern.permute.xlu0 0
        %5449 = vperm.xlu0 %5448, %v5347
        %v5450 = vpop.permute.xlu0 %5449
        %5453 = vset.pattern.permute.xlu0 0
        %5454 = vperm.xlu0 %5453, %v5348
        %v5455 = vpop.permute.xlu0 %5454
        %5458 = vset.pattern.permute.xlu0 0
        %5459 = vperm.xlu0 %5458, %v5349
        %v5460 = vpop.permute.xlu0 %5459
        %5463 = vset.pattern.permute.xlu0 0
        %5464 = vperm.xlu0 %5463, %v5350
        %v5465 = vpop.permute.xlu0 %5464
        %5468 = vset.pattern.permute.xlu0 0
        %5469 = vperm.xlu0 %5468, %v5351
        %v5470 = vpop.permute.xlu0 %5469
        %5473 = vset.pattern.permute.xlu0 0
        %5474 = vperm.xlu0 %5473, %v5352
        %v5475 = vpop.permute.xlu0 %5474
        %5478 = vset.pattern.permute.xlu0 0
        %5479 = vperm.xlu0 %5478, %v5353
        %v5480 = vpop.permute.xlu0 %5479
        %5483 = vset.pattern.permute.xlu0 0
        %5484 = vperm.xlu0 %5483, %v5354
        %v5485 = vpop.permute.xlu0 %5484
        %5488 = vset.pattern.permute.xlu0 0
        %5489 = vperm.xlu0 %5488, %v5355
        %v5490 = vpop.permute.xlu0 %5489
        %5493 = vset.pattern.permute.xlu0 0
        %5494 = vperm.xlu0 %5493, %v5356
        %v5495 = vpop.permute.xlu0 %5494
        %5498 = vset.pattern.permute.xlu0 0
        %5499 = vperm.xlu0 %5498, %v5357
        %v5500 = vpop.permute.xlu0 %5499
        %5503 = vset.pattern.permute.xlu0 0
        %5504 = vperm.xlu0 %5503, %v5358
        %v5505 = vpop.permute.xlu0 %5504
        %5508 = vset.pattern.permute.xlu0 0
        %5509 = vperm.xlu0 %5508, %v5359
        %v5510 = vpop.permute.xlu0 %5509
        %5513 = vset.pattern.permute.xlu0 0
        %5514 = vperm.xlu0 %5513, %v5360
        %v5515 = vpop.permute.xlu0 %5514
        %5518 = vset.pattern.permute.xlu0 0
        %5519 = vperm.xlu0 %5518, %v5361
        %v5520 = vpop.permute.xlu0 %5519
        %v5522 = vsub.f32 %v5227, %v5445
        %v5523 = vsub.f32 %v5229, %v5450
        %v5524 = vsub.f32 %v5232, %v5455
        %v5525 = vsub.f32 %v5234, %v5460
        %v5526 = vsub.f32 %v5237, %v5465
        %v5527 = vsub.f32 %v5239, %v5470
        %v5528 = vsub.f32 %v5242, %v5475
        %v5529 = vsub.f32 %v5244, %v5480
        %v5530 = vsub.f32 %v5247, %v5485
        %v5531 = vsub.f32 %v5249, %v5490
        %v5532 = vsub.f32 %v5252, %v5495
        %v5533 = vsub.f32 %v5254, %v5500
        %v5534 = vsub.f32 %v5257, %v5505
        %v5535 = vsub.f32 %v5259, %v5510
        %v5536 = vsub.f32 %v5262, %v5515
        %v5537 = vsub.f32 %v5264, %v5520
        %v5538 = vmul.f32 %v5522, 1.442695
        %v5539 = vpow.pop %v5538
        %v5540 = vmul.f32 %v5523, 1.442695
        %v5541 = vpow.pop %v5540
        %v5542 = vmul.f32 %v5524, 1.442695
        %v5543 = vpow.pop %v5542
        %v5544 = vmul.f32 %v5525, 1.442695
        %v5545 = vpow.pop %v5544
        %v5546 = vmul.f32 %v5526, 1.442695
        %v5547 = vpow.pop %v5546
        %v5548 = vmul.f32 %v5527, 1.442695
        %v5549 = vpow.pop %v5548
        %v5550 = vmul.f32 %v5528, 1.442695
        %v5551 = vpow.pop %v5550
        %v5552 = vmul.f32 %v5529, 1.442695
        %v5553 = vpow.pop %v5552
        %v5554 = vmul.f32 %v5530, 1.442695
        %v5555 = vpow.pop %v5554
        %v5556 = vmul.f32 %v5531, 1.442695
        %v5557 = vpow.pop %v5556
        %v5558 = vmul.f32 %v5532, 1.442695
        %v5559 = vpow.pop %v5558
        %v5560 = vmul.f32 %v5533, 1.442695
        %v5561 = vpow.pop %v5560
        %v5562 = vmul.f32 %v5534, 1.442695
        %v5563 = vpow.pop %v5562
        %v5564 = vmul.f32 %v5535, 1.442695
        %v5565 = vpow.pop %v5564
        %v5566 = vmul.f32 %v5536, 1.442695
        %v5567 = vpow.pop %v5566
        %v5568 = vmul.f32 %v5537, 1.442695
        %v5569 = vpow.pop %v5568
        %5570 = vadd.xlane.f32.xlu0 %v5539
        %v5571 = vpop.xlane.xlu0 %5570
        %5572 = vadd.xlane.f32.xlu0 %v5541
        %v5573 = vpop.xlane.xlu0 %5572
        %5574 = vadd.xlane.f32.xlu0 %v5543
        %v5575 = vpop.xlane.xlu0 %5574
        %5576 = vadd.xlane.f32.xlu0 %v5545
        %v5577 = vpop.xlane.xlu0 %5576
        %5578 = vadd.xlane.f32.xlu0 %v5547
        %v5579 = vpop.xlane.xlu0 %5578
        %5580 = vadd.xlane.f32.xlu0 %v5549
        %v5581 = vpop.xlane.xlu0 %5580
        %5582 = vadd.xlane.f32.xlu0 %v5551
        %v5583 = vpop.xlane.xlu0 %5582
        %5584 = vadd.xlane.f32.xlu0 %v5553
        %v5585 = vpop.xlane.xlu0 %5584
        %5586 = vadd.xlane.f32.xlu0 %v5555
        %v5587 = vpop.xlane.xlu0 %5586
        %5588 = vadd.xlane.f32.xlu0 %v5557
        %v5589 = vpop.xlane.xlu0 %5588
        %5590 = vadd.xlane.f32.xlu0 %v5559
        %v5591 = vpop.xlane.xlu0 %5590
        %5592 = vadd.xlane.f32.xlu0 %v5561
        %v5593 = vpop.xlane.xlu0 %5592
        %5594 = vadd.xlane.f32.xlu0 %v5563
        %v5595 = vpop.xlane.xlu0 %5594
        %5596 = vadd.xlane.f32.xlu0 %v5565
        %v5597 = vpop.xlane.xlu0 %5596
        %5598 = vadd.xlane.f32.xlu0 %v5567
        %v5599 = vpop.xlane.xlu0 %5598
        %5600 = vadd.xlane.f32.xlu0 %v5569
        %v5601 = vpop.xlane.xlu0 %5600
        %v5602 = vadd.f32 %v5426, %v5571
        %v5603 = vadd.f32 %v5427, %v5573
        %v5604 = vadd.f32 %v5428, %v5575
        %v5605 = vadd.f32 %v5429, %v5577
        %v5606 = vadd.f32 %v5430, %v5579
        %v5607 = vadd.f32 %v5431, %v5581
        %v5608 = vadd.f32 %v5432, %v5583
        %v5609 = vadd.f32 %v5433, %v5585
        %v5610 = vadd.f32 %v5434, %v5587
        %v5611 = vadd.f32 %v5435, %v5589
        %v5612 = vadd.f32 %v5436, %v5591
        %v5613 = vadd.f32 %v5437, %v5593
        %v5614 = vadd.f32 %v5438, %v5595
        %v5615 = vadd.f32 %v5439, %v5597
        %v5616 = vadd.f32 %v5440, %v5599
        %v5617 = vadd.f32 %v5441, %v5601
        %vm5618 = vcmask 7168
        %5619 = vst.msk [vmem:[#allocation4] sm:$0xff] %vm5618, %v5602
        %5620 = vst.msk [vmem:[#allocation4 + $0x8] sm:$0xff] %vm5618, %v5603
        %5621 = vst.msk [vmem:[#allocation4 + $0x10] sm:$0xff] %vm5618, %v5604
        %5622 = vst.msk [vmem:[#allocation4 + $0x18] sm:$0xff] %vm5618, %v5605
        %5623 = vst.msk [vmem:[#allocation4 + $0x20] sm:$0xff] %vm5618, %v5606
        %5624 = vst.msk [vmem:[#allocation4 + $0x28] sm:$0xff] %vm5618, %v5607
        %5625 = vst.msk [vmem:[#allocation4 + $0x30] sm:$0xff] %vm5618, %v5608
        %5626 = vst.msk [vmem:[#allocation4 + $0x38] sm:$0xff] %vm5618, %v5609
        %5627 = vst.msk [vmem:[#allocation4 + $0x40] sm:$0xff] %vm5618, %v5610
        %5628 = vst.msk [vmem:[#allocation4 + $0x48] sm:$0xff] %vm5618, %v5611
        %5629 = vst.msk [vmem:[#allocation4 + $0x50] sm:$0xff] %vm5618, %v5612
        %5630 = vst.msk [vmem:[#allocation4 + $0x58] sm:$0xff] %vm5618, %v5613
        %5631 = vst.msk [vmem:[#allocation4 + $0x60] sm:$0xff] %vm5618, %v5614
        %5632 = vst.msk [vmem:[#allocation4 + $0x68] sm:$0xff] %vm5618, %v5615
        %5633 = vst.msk [vmem:[#allocation4 + $0x70] sm:$0xff] %vm5618, %v5616
        %5634 = vst.msk [vmem:[#allocation4 + $0x78] sm:$0xff] %vm5618, %v5617
        %5635 = vst.msk [vmem:[#allocation3] sm:$0xff] %vm5618, %v5346
        %5636 = vst.msk [vmem:[#allocation3 + $0x8] sm:$0xff] %vm5618, %v5347
        %5637 = vst.msk [vmem:[#allocation3 + $0x10] sm:$0xff] %vm5618, %v5348
        %5638 = vst.msk [vmem:[#allocation3 + $0x18] sm:$0xff] %vm5618, %v5349
        %5639 = vst.msk [vmem:[#allocation3 + $0x20] sm:$0xff] %vm5618, %v5350
        %5640 = vst.msk [vmem:[#allocation3 + $0x28] sm:$0xff] %vm5618, %v5351
        %5641 = vst.msk [vmem:[#allocation3 + $0x30] sm:$0xff] %vm5618, %v5352
        %5642 = vst.msk [vmem:[#allocation3 + $0x38] sm:$0xff] %vm5618, %v5353
        %5643 = vst.msk [vmem:[#allocation3 + $0x40] sm:$0xff] %vm5618, %v5354
        %5644 = vst.msk [vmem:[#allocation3 + $0x48] sm:$0xff] %vm5618, %v5355
        %5645 = vst.msk [vmem:[#allocation3 + $0x50] sm:$0xff] %vm5618, %v5356
        %5646 = vst.msk [vmem:[#allocation3 + $0x58] sm:$0xff] %vm5618, %v5357
        %5647 = vst.msk [vmem:[#allocation3 + $0x60] sm:$0xff] %vm5618, %v5358
        %5648 = vst.msk [vmem:[#allocation3 + $0x68] sm:$0xff] %vm5618, %v5359
        %5649 = vst.msk [vmem:[#allocation3 + $0x70] sm:$0xff] %vm5618, %v5360
        %5650 = vst.msk [vmem:[#allocation3 + $0x78] sm:$0xff] %vm5618, %v5361
        %v5651 = vlaneseq
        %v5652 = vand.u32 %v5651, 127
        %s5653 = smul.u32 %s81, 128
        %v5654 = vstv %s5653
        %v5655 = vadd.s32 %v5652, %v5654
        %v5656 = vld [vmem:[#allocation5] sm:$0xff]
        %v5657 = vld [vmem:[#allocation5 + $0x8] sm:$0xff]
        %v5658 = vld [vmem:[#allocation5 + $0x10] sm:$0xff]
        %v5659 = vld [vmem:[#allocation5 + $0x18] sm:$0xff]
        %v5660 = vld [vmem:[#allocation5 + $0x20] sm:$0xff]
        %v5661 = vld [vmem:[#allocation5 + $0x28] sm:$0xff]
        %v5662 = vld [vmem:[#allocation5 + $0x30] sm:$0xff]
        %v5663 = vld [vmem:[#allocation5 + $0x38] sm:$0xff]
        %v5664 = vld [vmem:[#allocation5 + $0x40] sm:$0xff]
        %v5665 = vld [vmem:[#allocation5 + $0x48] sm:$0xff]
        %v5666 = vld [vmem:[#allocation5 + $0x50] sm:$0xff]
        %v5667 = vld [vmem:[#allocation5 + $0x58] sm:$0xff]
        %v5668 = vld [vmem:[#allocation5 + $0x60] sm:$0xff]
        %v5669 = vld [vmem:[#allocation5 + $0x68] sm:$0xff]
        %v5670 = vld [vmem:[#allocation5 + $0x70] sm:$0xff]
        %v5671 = vld [vmem:[#allocation5 + $0x78] sm:$0xff]
        %5672 = vset.pattern.permute.xlu0 0
        %5673 = vperm.xlu0 %5672, %v5069
        %v5674 = vpop.permute.xlu0 %5673
        %5675 = vset.pattern.permute.xlu0 0
        %5676 = vperm.xlu0 %5675, %v5070
        %v5677 = vpop.permute.xlu0 %5676
        %5678 = vset.pattern.permute.xlu0 0
        %5679 = vperm.xlu0 %5678, %v5071
        %v5680 = vpop.permute.xlu0 %5679
        %5681 = vset.pattern.permute.xlu0 0
        %5682 = vperm.xlu0 %5681, %v5072
        %v5683 = vpop.permute.xlu0 %5682
        %5684 = vset.pattern.permute.xlu0 0
        %5685 = vperm.xlu0 %5684, %v5073
        %v5686 = vpop.permute.xlu0 %5685
        %5687 = vset.pattern.permute.xlu0 0
        %5688 = vperm.xlu0 %5687, %v5074
        %v5689 = vpop.permute.xlu0 %5688
        %5690 = vset.pattern.permute.xlu0 0
        %5691 = vperm.xlu0 %5690, %v5075
        %v5692 = vpop.permute.xlu0 %5691
        %5693 = vset.pattern.permute.xlu0 0
        %5694 = vperm.xlu0 %5693, %v5076
        %v5695 = vpop.permute.xlu0 %5694
        %5696 = vset.pattern.permute.xlu0 0
        %5697 = vperm.xlu0 %5696, %v5077
        %v5698 = vpop.permute.xlu0 %5697
        %5699 = vset.pattern.permute.xlu0 0
        %5700 = vperm.xlu0 %5699, %v5078
        %v5701 = vpop.permute.xlu0 %5700
        %5702 = vset.pattern.permute.xlu0 0
        %5703 = vperm.xlu0 %5702, %v5079
        %v5704 = vpop.permute.xlu0 %5703
        %5705 = vset.pattern.permute.xlu0 0
        %5706 = vperm.xlu0 %5705, %v5080
        %v5707 = vpop.permute.xlu0 %5706
        %5708 = vset.pattern.permute.xlu0 0
        %5709 = vperm.xlu0 %5708, %v5081
        %v5710 = vpop.permute.xlu0 %5709
        %5711 = vset.pattern.permute.xlu0 0
        %5712 = vperm.xlu0 %5711, %v5082
        %v5713 = vpop.permute.xlu0 %5712
        %5714 = vset.pattern.permute.xlu0 0
        %5715 = vperm.xlu0 %5714, %v5083
        %v5716 = vpop.permute.xlu0 %5715
        %5717 = vset.pattern.permute.xlu0 0
        %5718 = vperm.xlu0 %5717, %v5084
        %v5719 = vpop.permute.xlu0 %5718
        %vm5720 = vcmp.eq.s32.totalorder %v5655, %v5674
        %vm5721 = vcmp.eq.s32.totalorder %v5655, %v5677
        %vm5722 = vcmp.eq.s32.totalorder %v5655, %v5680
        %vm5723 = vcmp.eq.s32.totalorder %v5655, %v5683
        %vm5724 = vcmp.eq.s32.totalorder %v5655, %v5686
        %vm5725 = vcmp.eq.s32.totalorder %v5655, %v5689
        %vm5726 = vcmp.eq.s32.totalorder %v5655, %v5692
        %vm5727 = vcmp.eq.s32.totalorder %v5655, %v5695
        %vm5728 = vcmp.eq.s32.totalorder %v5655, %v5698
        %vm5729 = vcmp.eq.s32.totalorder %v5655, %v5701
        %vm5730 = vcmp.eq.s32.totalorder %v5655, %v5704
        %vm5731 = vcmp.eq.s32.totalorder %v5655, %v5707
        %vm5732 = vcmp.eq.s32.totalorder %v5655, %v5710
        %vm5733 = vcmp.eq.s32.totalorder %v5655, %v5713
        %vm5734 = vcmp.eq.s32.totalorder %v5655, %v5716
        %vm5735 = vcmp.eq.s32.totalorder %v5655, %v5719
        %v5736 = vsel %vm5720, %v5227, 0.0
        %v5737 = vsel %vm5721, %v5229, 0.0
        %v5738 = vsel %vm5722, %v5232, 0.0
        %v5739 = vsel %vm5723, %v5234, 0.0
        %v5740 = vsel %vm5724, %v5237, 0.0
        %v5741 = vsel %vm5725, %v5239, 0.0
        %v5742 = vsel %vm5726, %v5242, 0.0
        %v5743 = vsel %vm5727, %v5244, 0.0
        %v5744 = vsel %vm5728, %v5247, 0.0
        %v5745 = vsel %vm5729, %v5249, 0.0
        %v5746 = vsel %vm5730, %v5252, 0.0
        %v5747 = vsel %vm5731, %v5254, 0.0
        %v5748 = vsel %vm5732, %v5257, 0.0
        %v5749 = vsel %vm5733, %v5259, 0.0
        %v5750 = vsel %vm5734, %v5262, 0.0
        %v5751 = vsel %vm5735, %v5264, 0.0
        %5752 = vadd.xlane.f32.xlu0 %v5736
        %v5753 = vpop.xlane.xlu0 %5752
        %5754 = vadd.xlane.f32.xlu0 %v5737
        %v5755 = vpop.xlane.xlu0 %5754
        %5756 = vadd.xlane.f32.xlu0 %v5738
        %v5757 = vpop.xlane.xlu0 %5756
        %5758 = vadd.xlane.f32.xlu0 %v5739
        %v5759 = vpop.xlane.xlu0 %5758
        %5760 = vadd.xlane.f32.xlu0 %v5740
        %v5761 = vpop.xlane.xlu0 %5760
        %5762 = vadd.xlane.f32.xlu0 %v5741
        %v5763 = vpop.xlane.xlu0 %5762
        %5764 = vadd.xlane.f32.xlu0 %v5742
        %v5765 = vpop.xlane.xlu0 %5764
        %5766 = vadd.xlane.f32.xlu0 %v5743
        %v5767 = vpop.xlane.xlu0 %5766
        %5768 = vadd.xlane.f32.xlu0 %v5744
        %v5769 = vpop.xlane.xlu0 %5768
        %5770 = vadd.xlane.f32.xlu0 %v5745
        %v5771 = vpop.xlane.xlu0 %5770
        %5772 = vadd.xlane.f32.xlu0 %v5746
        %v5773 = vpop.xlane.xlu0 %5772
        %5774 = vadd.xlane.f32.xlu0 %v5747
        %v5775 = vpop.xlane.xlu0 %5774
        %5776 = vadd.xlane.f32.xlu0 %v5748
        %v5777 = vpop.xlane.xlu0 %5776
        %5778 = vadd.xlane.f32.xlu0 %v5749
        %v5779 = vpop.xlane.xlu0 %5778
        %5780 = vadd.xlane.f32.xlu0 %v5750
        %v5781 = vpop.xlane.xlu0 %5780
        %5782 = vadd.xlane.f32.xlu0 %v5751
        %v5783 = vpop.xlane.xlu0 %5782
        %v5784 = vadd.f32 %v5656, %v5753
        %v5785 = vadd.f32 %v5657, %v5755
        %v5786 = vadd.f32 %v5658, %v5757
        %v5787 = vadd.f32 %v5659, %v5759
        %v5788 = vadd.f32 %v5660, %v5761
        %v5789 = vadd.f32 %v5661, %v5763
        %v5790 = vadd.f32 %v5662, %v5765
        %v5791 = vadd.f32 %v5663, %v5767
        %v5792 = vadd.f32 %v5664, %v5769
        %v5793 = vadd.f32 %v5665, %v5771
        %v5794 = vadd.f32 %v5666, %v5773
        %v5795 = vadd.f32 %v5667, %v5775
        %v5796 = vadd.f32 %v5668, %v5777
        %v5797 = vadd.f32 %v5669, %v5779
        %v5798 = vadd.f32 %v5670, %v5781
        %v5799 = vadd.f32 %v5671, %v5783
        %5800 = vst.msk [vmem:[#allocation5] sm:$0xff] %vm5618, %v5784
        %5801 = vst.msk [vmem:[#allocation5 + $0x8] sm:$0xff] %vm5618, %v5785
        %5802 = vst.msk [vmem:[#allocation5 + $0x10] sm:$0xff] %vm5618, %v5786
        %5803 = vst.msk [vmem:[#allocation5 + $0x18] sm:$0xff] %vm5618, %v5787
        %5804 = vst.msk [vmem:[#allocation5 + $0x20] sm:$0xff] %vm5618, %v5788
        %5805 = vst.msk [vmem:[#allocation5 + $0x28] sm:$0xff] %vm5618, %v5789
        %5806 = vst.msk [vmem:[#allocation5 + $0x30] sm:$0xff] %vm5618, %v5790
        %5807 = vst.msk [vmem:[#allocation5 + $0x38] sm:$0xff] %vm5618, %v5791
        %5808 = vst.msk [vmem:[#allocation5 + $0x40] sm:$0xff] %vm5618, %v5792
        %5809 = vst.msk [vmem:[#allocation5 + $0x48] sm:$0xff] %vm5618, %v5793
        %5810 = vst.msk [vmem:[#allocation5 + $0x50] sm:$0xff] %vm5618, %v5794
        %5811 = vst.msk [vmem:[#allocation5 + $0x58] sm:$0xff] %vm5618, %v5795
        %5812 = vst.msk [vmem:[#allocation5 + $0x60] sm:$0xff] %vm5618, %v5796
        %5813 = vst.msk [vmem:[#allocation5 + $0x68] sm:$0xff] %vm5618, %v5797
        %5814 = vst.msk [vmem:[#allocation5 + $0x70] sm:$0xff] %vm5618, %v5798
        %5815 = vst.msk [vmem:[#allocation5 + $0x78] sm:$0xff] %vm5618, %v5799
        %p5816 = scmp.eq.s32.totalorder %s81, 1
        // Predicated region
        $region178: #{joint_orchestrator_forward.5} parent=168 // pred_check
          %p5817 = pneg %p5816
        $region179: #{joint_orchestrator_forward.5} parent=168 // pred_check_branch
          %5819 = sbr.rel (%p5817) target = $region181
        $region180: #{joint_orchestrator_forward.5} parent=168 // pred_region
          %v5820 = vld [vmem:[#allocation3] sm:$0xff]
          %v5821 = vld [vmem:[#allocation3 + $0x8] sm:$0xff]
          %v5822 = vld [vmem:[#allocation3 + $0x10] sm:$0xff]
          %v5823 = vld [vmem:[#allocation3 + $0x18] sm:$0xff]
          %v5824 = vld [vmem:[#allocation3 + $0x20] sm:$0xff]
          %v5825 = vld [vmem:[#allocation3 + $0x28] sm:$0xff]
          %v5826 = vld [vmem:[#allocation3 + $0x30] sm:$0xff]
          %v5827 = vld [vmem:[#allocation3 + $0x38] sm:$0xff]
          %v5828 = vld [vmem:[#allocation3 + $0x40] sm:$0xff]
          %v5829 = vld [vmem:[#allocation3 + $0x48] sm:$0xff]
          %v5830 = vld [vmem:[#allocation3 + $0x50] sm:$0xff]
          %v5831 = vld [vmem:[#allocation3 + $0x58] sm:$0xff]
          %v5832 = vld [vmem:[#allocation3 + $0x60] sm:$0xff]
          %v5833 = vld [vmem:[#allocation3 + $0x68] sm:$0xff]
          %v5834 = vld [vmem:[#allocation3 + $0x70] sm:$0xff]
          %v5835 = vld [vmem:[#allocation3 + $0x78] sm:$0xff]
          %v5836 = vld [vmem:[#allocation4] sm:$0xff]
          %v5837 = vld [vmem:[#allocation4 + $0x8] sm:$0xff]
          %v5838 = vld [vmem:[#allocation4 + $0x10] sm:$0xff]
          %v5839 = vld [vmem:[#allocation4 + $0x18] sm:$0xff]
          %v5840 = vld [vmem:[#allocation4 + $0x20] sm:$0xff]
          %v5841 = vld [vmem:[#allocation4 + $0x28] sm:$0xff]
          %v5842 = vld [vmem:[#allocation4 + $0x30] sm:$0xff]
          %v5843 = vld [vmem:[#allocation4 + $0x38] sm:$0xff]
          %v5844 = vld [vmem:[#allocation4 + $0x40] sm:$0xff]
          %v5845 = vld [vmem:[#allocation4 + $0x48] sm:$0xff]
          %v5846 = vld [vmem:[#allocation4 + $0x50] sm:$0xff]
          %v5847 = vld [vmem:[#allocation4 + $0x58] sm:$0xff]
          %v5848 = vld [vmem:[#allocation4 + $0x60] sm:$0xff]
          %v5849 = vld [vmem:[#allocation4 + $0x68] sm:$0xff]
          %v5850 = vld [vmem:[#allocation4 + $0x70] sm:$0xff]
          %v5851 = vld [vmem:[#allocation4 + $0x78] sm:$0xff]
          %v5852 = vlog2.pop %v5836
          %v5853 = vmul.f32 %v5852, 0.6931472
          %v5854 = vlog2.pop %v5837
          %v5855 = vmul.f32 %v5854, 0.6931472
          %v5856 = vlog2.pop %v5838
          %v5857 = vmul.f32 %v5856, 0.6931472
          %v5858 = vlog2.pop %v5839
          %v5859 = vmul.f32 %v5858, 0.6931472
          %v5860 = vlog2.pop %v5840
          %v5861 = vmul.f32 %v5860, 0.6931472
          %v5862 = vlog2.pop %v5841
          %v5863 = vmul.f32 %v5862, 0.6931472
          %v5864 = vlog2.pop %v5842
          %v5865 = vmul.f32 %v5864, 0.6931472
          %v5866 = vlog2.pop %v5843
          %v5867 = vmul.f32 %v5866, 0.6931472
          %v5868 = vlog2.pop %v5844
          %v5869 = vmul.f32 %v5868, 0.6931472
          %v5870 = vlog2.pop %v5845
          %v5871 = vmul.f32 %v5870, 0.6931472
          %v5872 = vlog2.pop %v5846
          %v5873 = vmul.f32 %v5872, 0.6931472
          %v5874 = vlog2.pop %v5847
          %v5875 = vmul.f32 %v5874, 0.6931472
          %v5876 = vlog2.pop %v5848
          %v5877 = vmul.f32 %v5876, 0.6931472
          %v5878 = vlog2.pop %v5849
          %v5879 = vmul.f32 %v5878, 0.6931472
          %v5880 = vlog2.pop %v5850
          %v5881 = vmul.f32 %v5880, 0.6931472
          %v5882 = vlog2.pop %v5851
          %v5883 = vmul.f32 %v5882, 0.6931472
          %v5884 = vadd.f32 %v5820, %v5853
          %v5885 = vadd.f32 %v5821, %v5855
          %v5886 = vadd.f32 %v5822, %v5857
          %v5887 = vadd.f32 %v5823, %v5859
          %v5888 = vadd.f32 %v5824, %v5861
          %v5889 = vadd.f32 %v5825, %v5863
          %v5890 = vadd.f32 %v5826, %v5865
          %v5891 = vadd.f32 %v5827, %v5867
          %v5892 = vadd.f32 %v5828, %v5869
          %v5893 = vadd.f32 %v5829, %v5871
          %v5894 = vadd.f32 %v5830, %v5873
          %v5895 = vadd.f32 %v5831, %v5875
          %v5896 = vadd.f32 %v5832, %v5877
          %v5897 = vadd.f32 %v5833, %v5879
          %v5898 = vadd.f32 %v5834, %v5881
          %v5899 = vadd.f32 %v5835, %v5883
          %v5900 = vld [vmem:[#allocation5] sm:$0xff]
          %v5901 = vld [vmem:[#allocation5 + $0x8] sm:$0xff]
          %v5902 = vld [vmem:[#allocation5 + $0x10] sm:$0xff]
          %v5903 = vld [vmem:[#allocation5 + $0x18] sm:$0xff]
          %v5904 = vld [vmem:[#allocation5 + $0x20] sm:$0xff]
          %v5905 = vld [vmem:[#allocation5 + $0x28] sm:$0xff]
          %v5906 = vld [vmem:[#allocation5 + $0x30] sm:$0xff]
          %v5907 = vld [vmem:[#allocation5 + $0x38] sm:$0xff]
          %v5908 = vld [vmem:[#allocation5 + $0x40] sm:$0xff]
          %v5909 = vld [vmem:[#allocation5 + $0x48] sm:$0xff]
          %v5910 = vld [vmem:[#allocation5 + $0x50] sm:$0xff]
          %v5911 = vld [vmem:[#allocation5 + $0x58] sm:$0xff]
          %v5912 = vld [vmem:[#allocation5 + $0x60] sm:$0xff]
          %v5913 = vld [vmem:[#allocation5 + $0x68] sm:$0xff]
          %v5914 = vld [vmem:[#allocation5 + $0x70] sm:$0xff]
          %v5915 = vld [vmem:[#allocation5 + $0x78] sm:$0xff]
          %v5916 = vsub.f32 %v5884, %v5900
          %v5917 = vsub.f32 %v5885, %v5901
          %v5918 = vsub.f32 %v5886, %v5902
          %v5919 = vsub.f32 %v5887, %v5903
          %v5920 = vsub.f32 %v5888, %v5904
          %v5921 = vsub.f32 %v5889, %v5905
          %v5922 = vsub.f32 %v5890, %v5906
          %v5923 = vsub.f32 %v5891, %v5907
          %v5924 = vsub.f32 %v5892, %v5908
          %v5925 = vsub.f32 %v5893, %v5909
          %v5926 = vsub.f32 %v5894, %v5910
          %v5927 = vsub.f32 %v5895, %v5911
          %v5928 = vsub.f32 %v5896, %v5912
          %v5929 = vsub.f32 %v5897, %v5913
          %v5930 = vsub.f32 %v5898, %v5914
          %v5931 = vsub.f32 %v5899, %v5915
          %v5932 = vlaneseq
          %v5933 = vshrl.u32 %v5932, 7
          %v5934 = vadd.s32 %v5933, 8
          %v5935 = vadd.s32 %v5933, 16
          %v5936 = vadd.s32 %v5933, 24
          %v5937 = vadd.s32 %v5933, 32
          %v5938 = vadd.s32 %v5933, 40
          %v5939 = vadd.s32 %v5933, 48
          %v5940 = vadd.s32 %v5933, 56
          %v5941 = vadd.s32 %v5933, 64
          %v5942 = vadd.s32 %v5933, 72
          %v5943 = vadd.s32 %v5933, 80
          %v5944 = vadd.s32 %v5933, 88
          %v5945 = vadd.s32 %v5933, 96
          %v5946 = vadd.s32 %v5933, 104
          %v5947 = vadd.s32 %v5933, 112
          %v5948 = vadd.s32 %v5933, 120
          %vm5949 = vcmp.eq.s32.totalorder %v5933, %v5652
          %vm5950 = vcmp.eq.s32.totalorder %v5934, %v5652
          %vm5951 = vcmp.eq.s32.totalorder %v5935, %v5652
          %vm5952 = vcmp.eq.s32.totalorder %v5936, %v5652
          %vm5953 = vcmp.eq.s32.totalorder %v5937, %v5652
          %vm5954 = vcmp.eq.s32.totalorder %v5938, %v5652
          %vm5955 = vcmp.eq.s32.totalorder %v5939, %v5652
          %vm5956 = vcmp.eq.s32.totalorder %v5940, %v5652
          %vm5957 = vcmp.eq.s32.totalorder %v5941, %v5652
          %vm5958 = vcmp.eq.s32.totalorder %v5942, %v5652
          %vm5959 = vcmp.eq.s32.totalorder %v5943, %v5652
          %vm5960 = vcmp.eq.s32.totalorder %v5944, %v5652
          %vm5961 = vcmp.eq.s32.totalorder %v5945, %v5652
          %vm5962 = vcmp.eq.s32.totalorder %v5946, %v5652
          %vm5963 = vcmp.eq.s32.totalorder %v5947, %v5652
          %vm5964 = vcmp.eq.s32.totalorder %v5948, %v5652
          %5966 = vset.pattern.permute.xlu0 0
          %5967 = vperm.xlu0 %5966, %v5916
          %v5968 = vpop.permute.xlu0 %5967
          %5971 = vset.pattern.permute.xlu0 0
          %5972 = vperm.xlu0 %5971, %v5917
          %v5973 = vpop.permute.xlu0 %5972
          %5976 = vset.pattern.permute.xlu0 0
          %5977 = vperm.xlu0 %5976, %v5918
          %v5978 = vpop.permute.xlu0 %5977
          %5981 = vset.pattern.permute.xlu0 0
          %5982 = vperm.xlu0 %5981, %v5919
          %v5983 = vpop.permute.xlu0 %5982
          %5986 = vset.pattern.permute.xlu0 0
          %5987 = vperm.xlu0 %5986, %v5920
          %v5988 = vpop.permute.xlu0 %5987
          %5991 = vset.pattern.permute.xlu0 0
          %5992 = vperm.xlu0 %5991, %v5921
          %v5993 = vpop.permute.xlu0 %5992
          %5996 = vset.pattern.permute.xlu0 0
          %5997 = vperm.xlu0 %5996, %v5922
          %v5998 = vpop.permute.xlu0 %5997
          %6001 = vset.pattern.permute.xlu0 0
          %6002 = vperm.xlu0 %6001, %v5923
          %v6003 = vpop.permute.xlu0 %6002
          %6006 = vset.pattern.permute.xlu0 0
          %6007 = vperm.xlu0 %6006, %v5924
          %v6008 = vpop.permute.xlu0 %6007
          %6011 = vset.pattern.permute.xlu0 0
          %6012 = vperm.xlu0 %6011, %v5925
          %v6013 = vpop.permute.xlu0 %6012
          %6016 = vset.pattern.permute.xlu0 0
          %6017 = vperm.xlu0 %6016, %v5926
          %v6018 = vpop.permute.xlu0 %6017
          %6021 = vset.pattern.permute.xlu0 0
          %6022 = vperm.xlu0 %6021, %v5927
          %v6023 = vpop.permute.xlu0 %6022
          %6026 = vset.pattern.permute.xlu0 0
          %6027 = vperm.xlu0 %6026, %v5928
          %v6028 = vpop.permute.xlu0 %6027
          %6031 = vset.pattern.permute.xlu0 0
          %6032 = vperm.xlu0 %6031, %v5929
          %v6033 = vpop.permute.xlu0 %6032
          %6036 = vset.pattern.permute.xlu0 0
          %6037 = vperm.xlu0 %6036, %v5930
          %v6038 = vpop.permute.xlu0 %6037
          %6041 = vset.pattern.permute.xlu0 0
          %6042 = vperm.xlu0 %6041, %v5931
          %v6043 = vpop.permute.xlu0 %6042
          %v6045 = vsel %vm5949, %v5968, 0.0
          %v6046 = vsel %vm5950, %v5973, 0.0
          %v6047 = vsel %vm5951, %v5978, 0.0
          %v6048 = vsel %vm5952, %v5983, 0.0
          %v6049 = vsel %vm5953, %v5988, 0.0
          %v6050 = vsel %vm5954, %v5993, 0.0
          %v6051 = vsel %vm5955, %v5998, 0.0
          %v6052 = vsel %vm5956, %v6003, 0.0
          %v6053 = vsel %vm5957, %v6008, 0.0
          %v6054 = vsel %vm5958, %v6013, 0.0
          %v6055 = vsel %vm5959, %v6018, 0.0
          %v6056 = vsel %vm5960, %v6023, 0.0
          %v6057 = vsel %vm5961, %v6028, 0.0
          %v6058 = vsel %vm5962, %v6033, 0.0
          %v6059 = vsel %vm5963, %v6038, 0.0
          %v6060 = vsel %vm5964, %v6043, 0.0
          %v6061 = vadd.f32 %v6045, %v6046
          %v6062 = vadd.f32 %v6061, %v6047
          %v6063 = vadd.f32 %v6062, %v6048
          %v6064 = vadd.f32 %v6063, %v6049
          %v6065 = vadd.f32 %v6064, %v6050
          %v6066 = vadd.f32 %v6065, %v6051
          %v6067 = vadd.f32 %v6066, %v6052
          %v6068 = vadd.f32 %v6067, %v6053
          %v6069 = vadd.f32 %v6068, %v6054
          %v6070 = vadd.f32 %v6069, %v6055
          %v6071 = vadd.f32 %v6070, %v6056
          %v6072 = vadd.f32 %v6071, %v6057
          %v6073 = vadd.f32 %v6072, %v6058
          %v6074 = vadd.f32 %v6073, %v6059
          %v6075 = vadd.f32 %v6074, %v6060
          %v6076 = vrot.slane %v6075, 4
          %v6077 = vadd.f32 %v6075, %v6076
          %v6078 = vrot.slane %v6077, 2
          %v6079 = vadd.f32 %v6077, %v6078
          %v6080 = vrot.slane %v6079, 1
          %v6081 = vadd.f32 %v6079, %v6080
          %6082 = vst [vmem:[%s1147] sm:$0x1] %v6081
        $region181: #{joint_orchestrator_forward.5} parent=168 // pred_fallthru
          _
        %s6083 = sand.u32 %s716, 1
        %s6084 = scalar_lea.sflag [#allocation8], %s6083
        %s6085 = sand.u32 %s716, 1
        %s6086 = smul.addr %s6085, 64
        %s6087 = scalar_lea.vmem [#allocation7], %s6086
        %p6088 = scmp.lt.s32.totalorder %s80, 3
        %s6089 = scalar_select %p6088, %s80, 3
        %s6090 = scalar_lea.vmem %s59, %s6089
        %p6091 = scmp.lt.s32.totalorder %s80, 3
        %s6092 = scalar_select %p6091, %s80, 3
        %s6093 = scalar_lea.vmem %s61, %s6092
        // Predicated region
        $region182: #{joint_orchestrator_forward.5} parent=168 // pred_check
          %p6094 = pneg %p726
        $region183: #{joint_orchestrator_forward.5} parent=168 // pred_check_branch
          %6096 = sbr.rel (%p6094) target = $region185
        $region184: #{joint_orchestrator_forward.5} parent=168 // pred_region
          %6098 = vsyncadd %s6084, 0
          %s6099 = smul.addr %s80, 32
          %s6100 = sadd.s32 %s81, %s6099
          %s6101 = smul.addr %s6100, 4
          %s6102 = scalar_lea.hbm %s57, %s6101
          %s6103 = sshll.u32 %s6087, 4
          %s6104 = int_to_ptr.vmem [resolvable:$true] %s6103
          %s6105 = sshll.u32 %s6102, 4
          %s6106 = int_to_ptr.hbm [resolvable:$true] %s6105
          %6111 = dma.vmem_to_hbm [thread:$0]  %s6104, 1024, %s6106, %s6084, 64, 128, 4
        $region185: #{joint_orchestrator_forward.5} parent=168 // pred_fallthru
          _
        // Predicated region
        $region186: #{joint_orchestrator_forward.5} parent=168 // pred_check
          %p6112 = pneg %p752
        $region187: #{joint_orchestrator_forward.5} parent=168 // pred_check_branch
          %6114 = sbr.rel (%p6112) target = $region189
        $region188: #{joint_orchestrator_forward.5} parent=168 // pred_region
          _
        $region189: #{joint_orchestrator_forward.5} parent=168 // pred_fallthru
          _
        // Predicated region
        $region190: #{joint_orchestrator_forward.5} parent=168 // pred_check
          %p6115 = pneg %p778
        $region191: #{joint_orchestrator_forward.5} parent=168 // pred_check_branch
          %6117 = sbr.rel (%p6115) target = $region193
        $region192: #{joint_orchestrator_forward.5} parent=168 // pred_region
          _
        $region193: #{joint_orchestrator_forward.5} parent=168 // pred_fallthru
          _
      $region169: #{joint_orchestrator_forward.5} parent=5 // pred_fallthru
        _
      %p6118 = scmp.le.s32.totalorder 2, %s71
      // Predicated region
      $region194: #{joint_orchestrator_forward.5} parent=5 // pred_check
        %p6119 = pneg %p6118
      $region195: #{joint_orchestrator_forward.5} parent=5 // pred_check_branch
        %6121 = sbr.rel (%p6119) target = $region197
      $region196: #{joint_orchestrator_forward.5} parent=5 // pred_region
        %s6122 = ssub.s32 %s71, 2
        // Predicated region
        $region198: #{joint_orchestrator_forward.5} parent=196 // pred_check
          %p6123 = pneg %p732
        $region199: #{joint_orchestrator_forward.5} parent=196 // pred_check_branch
          %6125 = sbr.rel (%p6123) target = $region201
        $region200: #{joint_orchestrator_forward.5} parent=196 // pred_region
          %s6126 = sand.u32 %s717, 1
          %s6127 = scalar_lea.sflag [#allocation8], %s6126
          %s6128 = sand.u32 %s717, 1
          %s6129 = smul.addr %s6128, 64
          %s6130 = scalar_lea.vmem [#allocation7], %s6129
          %6132 = dma.done %s6127, 1024
        $region201: #{joint_orchestrator_forward.5} parent=196 // pred_fallthru
          _
        // Predicated region
        $region202: #{joint_orchestrator_forward.5} parent=196 // pred_check
          %p6133 = pneg %p758
        $region203: #{joint_orchestrator_forward.5} parent=196 // pred_check_branch
          %6135 = sbr.rel (%p6133) target = $region205
        $region204: #{joint_orchestrator_forward.5} parent=196 // pred_region
          %p6136 = scmp.lt.s32.totalorder %s82, 3
          %s6137 = scalar_select %p6136, %s82, 3
          %s6138 = scalar_lea.vmem %s59, %s6137
        $region205: #{joint_orchestrator_forward.5} parent=196 // pred_fallthru
          _
        // Predicated region
        $region206: #{joint_orchestrator_forward.5} parent=196 // pred_check
          %p6139 = pneg %p784
        $region207: #{joint_orchestrator_forward.5} parent=196 // pred_check_branch
          %6141 = sbr.rel (%p6139) target = $region209
        $region208: #{joint_orchestrator_forward.5} parent=196 // pred_region
          %p6142 = scmp.lt.s32.totalorder %s82, 3
          %s6143 = scalar_select %p6142, %s82, 3
          %s6144 = scalar_lea.vmem %s61, %s6143
        $region209: #{joint_orchestrator_forward.5} parent=196 // pred_fallthru
          _
      $region197: #{joint_orchestrator_forward.5} parent=5 // pred_fallthru
        _
    $region6: #{joint_orchestrator_forward.5} parent=1 // loop_footer
      %s75 = sadd.s32 1, %s71
    $region7: #{joint_orchestrator_forward.5} parent=1 // loop_footer_branch
      %70 = sbr.rel target = $region3
    $region8: #{joint_orchestrator_forward.5} parent=1 // loop_exit
      _
    %6145 = vsyncpa [#allocation8], 1
    %s6146 = scalar_lea.sflag [#allocation8], 1
    %6147 = vsyncpa %s6146, 1

</llo_original>
